<compile_context>
chip_gen: v7x
topology: tpu7x:2x2x1
jax: 0.10.0
libtpu: 0.0.40
codegen_flags: <defaults>
</compile_context>

<pallas_src>
import functools

import numpy as np
import jax
import jax.numpy as jnp
from jax.experimental import pallas as pl
from jax.experimental.pallas import tpu as pltpu

MATMUL_DTYPE = jnp.bfloat16   # MXU operand dtype; f32 accumulate + f32 epilogues.


# --------------------------------- kernel ----------------------------------- #

def _tinyvgg_kernel(x_ref, w1_ref, b1_ref, w2_ref, b2_ref, w3_ref, b3_ref,
                    w4_ref, b4_ref, fcw_ref, fcb_ref,
                    sxa1_ref, sxb1_ref, sy1_ref, sxa2_ref, sxb2_ref, sy2_ref,
                    m1_ref, m2_ref,
                    out_ref,
                    pad2, pad3, pad4, s2, s4, p2,
                    *, bimg, hv1, hv2, rows1, rows2, h3):
    f32 = jnp.float32

    def conv3x3_relu(src_ref, w_ref, b_ref, hv):
        """Stacked 3x3/s1/p1 conv + bias + ReLU as three MXU matmuls.

        src_ref: y-zero-padded activation slab, BIMG images stacked along the
                 sublane axis, rows = hv + 2, lanes = W*Cin laid out [x*Cin+ci].
        Returns (hv, W*Cout) f32; rows with (q % rows_per_image) >= H are
        cross-image garbage (caller masks them or the pool never reads them).
        """
        acc = jnp.dot(src_ref[0:hv, :].astype(MATMUL_DTYPE), w_ref[0],
                      preferred_element_type=f32)
        acc = acc + jnp.dot(src_ref[1:1 + hv, :].astype(MATMUL_DTYPE), w_ref[1],
                            preferred_element_type=f32)
        acc = acc + jnp.dot(src_ref[2:2 + hv, :].astype(MATMUL_DTYPE), w_ref[2],
                            preferred_element_type=f32)
        return jnp.maximum(acc + b_ref[...], 0.0)

    def maxpool2x2(src_ref, hv, sxa_ref, sxb_ref, sy_ref):
        """Fully vectorised 2x2 maxpool of a stacked activation slab.

        rows: single VPU max of two row-shifted slices;
        cols: two even/odd x-block selection matmuls + VPU max;
        row compaction / re-layout (incl. zero y-borders): one 0/1 matmul.
        """
        rm = jnp.maximum(src_ref[0:hv - 1, :], src_ref[1:hv, :])
        rm = rm.astype(MATMUL_DTYPE)
        even = jnp.dot(rm, sxa_ref[...], preferred_element_type=f32)
        odd = jnp.dot(rm, sxb_ref[...], preferred_element_type=f32)
        xm = jnp.maximum(even, odd).astype(MATMUL_DTYPE)
        return jnp.dot(sy_ref[...], xm, preferred_element_type=f32)

    # ---- conv_block_1: conv+relu, conv+relu, maxpool ----
    a1 = conv3x3_relu(x_ref, w1_ref, b1_ref, hv1)
    pad2[1:1 + hv1, :] = a1 * m1_ref[...]            # kill cross-image rows
    pad2[0:1, :] = jnp.zeros((1, pad2.shape[1]), f32)
    pad2[rows1 - 1:rows1, :] = jnp.zeros((1, pad2.shape[1]), f32)
    s2[...] = conv3x3_relu(pad2, w2_ref, b2_ref, hv1)
    pad3[...] = maxpool2x2(s2, hv1, sxa1_ref, sxb1_ref, sy1_ref)

    # ---- conv_block_2: conv+relu, conv+relu, maxpool ----
    a3 = conv3x3_relu(pad3, w3_ref, b3_ref, hv2)
    pad4[1:1 + hv2, :] = a3 * m2_ref[...]
    pad4[0:1, :] = jnp.zeros((1, pad4.shape[1]), f32)
    pad4[rows2 - 1:rows2, :] = jnp.zeros((1, pad4.shape[1]), f32)
    s4[...] = conv3x3_relu(pad4, w4_ref, b4_ref, hv2)
    p2[...] = maxpool2x2(s4, hv2, sxa2_ref, sxb2_ref, sy2_ref)

    # ---- classifier: 7 matmuls with M = BIMG (flatten order folded into fcw) --
    logits = jnp.dot(p2[0:bimg, :].astype(MATMUL_DTYPE), fcw_ref[0],
                     preferred_element_type=f32)
    for y in range(1, h3):
        logits = logits + jnp.dot(
            p2[y * bimg:(y + 1) * bimg, :].astype(MATMUL_DTYPE), fcw_ref[y],
            preferred_element_type=f32)
    out_ref[...] = logits + fcb_ref[...]             # lane-dense (BIMG, 128)


# --------------------- host-side parameter / constant prep ------------------- #

def _prep_conv(w_oihw, bias, wdim):
    """PyTorch (Cout, Cin, 3, 3) conv weight -> (3, W*Cin, W*Cout) per-ky
    block-tridiagonal matrices (x zero padding folded in) + x-tiled bias row."""
    cout, cin = int(w_oihw.shape[0]), int(w_oihw.shape[1])
    wt = jnp.transpose(w_oihw, (2, 3, 1, 0)).astype(jnp.float32)   # (ky,kx,ci,co)
    mats = []
    for ky in range(3):
        m = jnp.zeros((wdim * cin, wdim * cout), jnp.float32)
        for kx in range(3):
            sel = jnp.eye(wdim, k=1 - kx, dtype=jnp.float32)       # x_in = x_out+kx-1
            blk = jnp.einsum("ab,cd->acbd", sel, wt[ky, kx])
            m = m + blk.reshape(wdim * cin, wdim * cout)
        mats.append(m)
    w_comb = jnp.stack(mats, 0).astype(MATMUL_DTYPE)
    b_row = jnp.tile(bias.astype(jnp.float32), (wdim,)).reshape(1, wdim * cout)
    return w_comb, b_row


def prepare_params(params, spatial=28):
    """One-time weight re-layout (host JAX)."""
    C = int(params["c1w"].shape[0])
    n_cls = int(params["fcw"].shape[0])
    npad = 128 * pl.cdiv(n_cls, 128)
    s1, s2_, s3 = spatial, spatial // 2, spatial // 4

    w1, b1 = _prep_conv(params["c1w"], params["c1b"], s1)
    w2, b2 = _prep_conv(params["c2w"], params["c2b"], s1)
    w3, b3 = _prep_conv(params["c3w"], params["c3b"], s2_)
    w4, b4 = _prep_conv(params["c4w"], params["c4b"], s2_)

    # Linear: fold NCHW Flatten order into the weight layout; pad out to 128 lanes.
    fcw = params["fcw"].reshape(n_cls, C, s3, s3)
    fcw = jnp.transpose(fcw, (2, 3, 1, 0)).reshape(s3, s3 * C, n_cls)
    fcw = jnp.pad(fcw, ((0, 0), (0, 0), (0, npad - n_cls))).astype(MATMUL_DTYPE)
    fcb = jnp.pad(params["fcb"].astype(jnp.float32), (0, npad - n_cls)).reshape(1, npad)

    return dict(w1=w1, b1=b1, w2=w2, b2=b2, w3=w3, b3=b3, w4=w4, b4=b4,
                fcw=fcw, fcb=fcb, hidden=C, out_features=n_cls, npad=npad)


def _sel_x(wdim, c):
    """0/1 matrices selecting the even / odd x channel-blocks."""
    wh = wdim // 2
    sxa = np.zeros((wdim * c, wh * c), np.float32)
    sxb = np.zeros((wdim * c, wh * c), np.float32)
    for xo in range(wh):
        for ch in range(c):
            sxa[(2 * xo) * c + ch, xo * c + ch] = 1.0
            sxb[(2 * xo + 1) * c + ch, xo * c + ch] = 1.0
    return sxa, sxb


def _sel_rows_to_padded(bimg, r_in, h_in, r_out):
    """Row-compaction matrix: picks each image's pooled rows out of the stacked
    row-max slab and drops them at the next conv block's padded-slab rows
    (zero y-borders come out for free)."""
    hv = bimg * r_in - 2
    sy = np.zeros((bimg * r_out, hv - 1), np.float32)
    for b in range(bimg):
        for yo in range(h_in // 2):
            sy[b * r_out + 1 + yo, b * r_in + 2 * yo] = 1.0
    return sy


def _sel_rows_to_fc(bimg, r_in, h_in):
    """Row-compaction matrix producing the classifier input layout:
    output row yo*bimg + b holds pooled(image b, row yo)."""
    hv = bimg * r_in - 2
    sy = np.zeros(((h_in // 2) * bimg, hv - 1), np.float32)
    for b in range(bimg):
        for yo in range(h_in // 2):
            sy[yo * bimg + b, b * r_in + 2 * yo] = 1.0
    return sy


def _row_mask(bimg, r, h):
    """(hv, 1) 0/1 mask killing the cross-image rows of a stacked conv output."""
    hv = bimg * r - 2
    q = np.arange(hv)
    return ((q % r) < h).astype(np.float32).reshape(hv, 1)


# ------------------------------ forward wrapper ------------------------------ #

def tinyvgg_forward(x_nchw, prep, bimg=8):
    B, cin, H, W = x_nchw.shape
    assert H == 28 and W == 28, "classifier expects hidden_units * 7 * 7 features"
    C = prep["hidden"]
    npad = prep["npad"]
    n_cls = prep["out_features"]
    H2, W2, H3, W3 = H // 2, W // 2, H // 4, W // 4
    R1, R2 = H + 2, H2 + 2
    rows1, rows2 = bimg * R1, bimg * R2
    hv1, hv2 = rows1 - 2, rows2 - 2
    bpad = bimg * pl.cdiv(B, bimg)
    nsteps = bpad // bimg

    # NCHW -> per-image y-zero-padded (H+2, W*Cin) slabs; BIMG images stacked
    # along the sublane axis per grid step.
    x2 = jnp.transpose(x_nchw, (0, 2, 3, 1)).reshape(B, H, W * cin)
    x2 = jnp.pad(x2, ((0, bpad - B), (1, 1), (0, 0)))
    x_slab = x2.reshape(nsteps, rows1, W * cin)

    # trace-time constants: pooling selection matrices and garbage-row masks
    sxa1, sxb1 = _sel_x(W, C)
    sxa2, sxb2 = _sel_x(W2, C)
    sy1 = _sel_rows_to_padded(bimg, R1, H, R2)
    sy2 = _sel_rows_to_fc(bimg, R2, H2)
    as_mm = lambda a: jnp.asarray(a, MATMUL_DTYPE)
    sxa1, sxb1, sy1 = as_mm(sxa1), as_mm(sxb1), as_mm(sy1)
    sxa2, sxb2, sy2 = as_mm(sxa2), as_mm(sxb2), as_mm(sy2)
    m1 = jnp.asarray(_row_mask(bimg, R1, H))
    m2 = jnp.asarray(_row_mask(bimg, R2, H2))

    kernel = functools.partial(_tinyvgg_kernel, bimg=bimg, hv1=hv1, hv2=hv2,
                               rows1=rows1, rows2=rows2, h3=H3)

    def cspec(a):
        return pl.BlockSpec(a.shape, lambda i, _z=(0,) * a.ndim: _z)

    out = pl.pallas_call(
        kernel,
        out_shape=jax.ShapeDtypeStruct((nsteps, bimg, npad), jnp.float32),
        grid_spec=pltpu.PrefetchScalarGridSpec(
            num_scalar_prefetch=0,
            grid=(nsteps,),
            in_specs=[
                pl.BlockSpec((None, rows1, W * cin), lambda i: (i, 0, 0)),
                cspec(prep["w1"]), cspec(prep["b1"]),
                cspec(prep["w2"]), cspec(prep["b2"]),
                cspec(prep["w3"]), cspec(prep["b3"]),
                cspec(prep["w4"]), cspec(prep["b4"]),
                cspec(prep["fcw"]), cspec(prep["fcb"]),
                cspec(sxa1), cspec(sxb1), cspec(sy1),
                cspec(sxa2), cspec(sxb2), cspec(sy2),
                cspec(m1), cspec(m2),
            ],
            out_specs=pl.BlockSpec((None, bimg, npad), lambda i: (i, 0, 0)),
            scratch_shapes=[
                pltpu.VMEM((rows1, W * C), jnp.float32),      # pad2: conv2 input
                pltpu.VMEM((rows2, W2 * C), jnp.float32),     # pad3: conv3 input
                pltpu.VMEM((rows2, W2 * C), jnp.float32),     # pad4: conv4 input
                pltpu.VMEM((hv1, W * C), jnp.float32),        # s2: conv2 output
                pltpu.VMEM((hv2, W2 * C), jnp.float32),       # s4: conv4 output
                pltpu.VMEM((H3 * bimg, W3 * C), jnp.float32),  # p2: fc input
            ],
        ),
        compiler_params=pltpu.CompilerParams(
            dimension_semantics=("parallel",),
        ),
    )(x_slab, prep["w1"], prep["b1"], prep["w2"], prep["b2"],
      prep["w3"], prep["b3"], prep["w4"], prep["b4"],
      prep["fcw"], prep["fcb"],
      sxa1, sxb1, sy1, sxa2, sxb2, sy2, m1, m2)

    return out.reshape(bpad, npad)[:B, :n_cls]


# --------------------------- parameter creation / ref ------------------------ #

def init_params(key, in_ch, hidden, out_ch):
    ks = jax.random.split(key, 10)

    def conv_p(kw, kb, cin, cout):
        bound = (cin * 9) ** -0.5
        w = jax.random.uniform(kw, (cout, cin, 3, 3), jnp.float32, -bound, bound)
        b = jax.random.uniform(kb, (cout,), jnp.float32, -bound, bound)
        return w, b

    c1w, c1b = conv_p(ks[0], ks[1], in_ch, hidden)
    c2w, c2b = conv_p(ks[2], ks[3], hidden, hidden)
    c3w, c3b = conv_p(ks[4], ks[5], hidden, hidden)
    c4w, c4b = conv_p(ks[6], ks[7], hidden, hidden)
    fin = hidden * 7 * 7
    bound = fin ** -0.5
    fcw = jax.random.uniform(ks[8], (out_ch, fin), jnp.float32, -bound, bound)
    fcb = jax.random.uniform(ks[9], (out_ch,), jnp.float32, -bound, bound)
    return dict(c1w=c1w, c1b=c1b, c2w=c2w, c2b=c2b, c3w=c3w, c3b=c3b,
                c4w=c4w, c4b=c4b, fcw=fcw, fcb=fcb)


def tinyvgg_reference(x, p):
    dn = ("NCHW", "OIHW", "NCHW")

    def conv(h, w, b):
        h = jax.lax.conv_general_dilated(h, w, (1, 1), "SAME",
                                         dimension_numbers=dn)
        return jax.nn.relu(h + b[None, :, None, None])

    def pool(h):
        return jax.lax.reduce_window(h, -jnp.inf, jax.lax.max,
                                     (1, 1, 2, 2), (1, 1, 2, 2), "VALID")

    h = pool(conv(conv(x, p["c1w"], p["c1b"]), p["c2w"], p["c2b"]))
    h = pool(conv(conv(h, p["c3w"], p["c3b"]), p["c4w"], p["c4b"]))
    h = h.reshape(h.shape[0], -1)
    return h @ p["fcw"].T + p["fcb"]


if __name__ == "__main__":
    key = jax.random.PRNGKey(0)
    pkey, xkey = jax.random.split(key)
    in_channels, hidden_units, num_classes = 1, 8, 10
    raw = init_params(pkey, in_channels, hidden_units, num_classes)
    prep = prepare_params(raw, spatial=28)
    # 28x28 spatial is required so the classifier sees hidden_units * 7 * 7.
    x = jax.random.normal(xkey, (16, in_channels, 28, 28), jnp.float32)

    fwd = jax.jit(functools.partial(tinyvgg_forward, prep=prep, bimg=8))
    logits = jax.block_until_ready(fwd(x))
    assert logits.shape == (16, num_classes)

    # loose sanity check vs a pure-JAX f32 reference (kernel uses bf16 operands)
    ref = tinyvgg_reference(x, raw)
    rel = float(jnp.linalg.norm(logits - ref) / (jnp.linalg.norm(ref) + 1e-9))
    assert rel < 0.08, f"kernel deviates from reference: rel_l2={rel:.4f}"
    print("KERNEL_OK")
</pallas_src>

<mosaic_0001>
module attributes {stable_mosaic.version = 11 : i64} {
  func.func @_tinyvgg_kernel(%arg0: i32, %arg1: memref<1x240x28xf32, #tpu.memory_space<vmem>>, %arg2: memref<3x28x224xbf16, #tpu.memory_space<vmem>>, %arg3: memref<1x224xf32, #tpu.memory_space<vmem>>, %arg4: memref<3x224x224xbf16, #tpu.memory_space<vmem>>, %arg5: memref<1x224xf32, #tpu.memory_space<vmem>>, %arg6: memref<3x112x112xbf16, #tpu.memory_space<vmem>>, %arg7: memref<1x112xf32, #tpu.memory_space<vmem>>, %arg8: memref<3x112x112xbf16, #tpu.memory_space<vmem>>, %arg9: memref<1x112xf32, #tpu.memory_space<vmem>>, %arg10: memref<7x56x128xbf16, #tpu.memory_space<vmem>>, %arg11: memref<1x128xf32, #tpu.memory_space<vmem>>, %arg12: memref<224x112xbf16, #tpu.memory_space<vmem>>, %arg13: memref<224x112xbf16, #tpu.memory_space<vmem>>, %arg14: memref<128x237xbf16, #tpu.memory_space<vmem>>, %arg15: memref<112x56xbf16, #tpu.memory_space<vmem>>, %arg16: memref<112x56xbf16, #tpu.memory_space<vmem>>, %arg17: memref<56x125xbf16, #tpu.memory_space<vmem>>, %arg18: memref<238x1xf32, #tpu.memory_space<vmem>>, %arg19: memref<126x1xf32, #tpu.memory_space<vmem>>, %arg20: memref<1x8x128xf32, #tpu.memory_space<vmem>>, %arg21: memref<240x224xf32, #tpu.memory_space<vmem>>, %arg22: memref<128x112xf32, #tpu.memory_space<vmem>>, %arg23: memref<128x112xf32, #tpu.memory_space<vmem>>, %arg24: memref<238x224xf32, #tpu.memory_space<vmem>>, %arg25: memref<126x112xf32, #tpu.memory_space<vmem>>, %arg26: memref<56x56xf32, #tpu.memory_space<vmem>>) attributes {dimension_semantics = [#tpu.dimension_semantics<parallel>], iteration_bounds = array<i64: 2>, scalar_prefetch = 0 : i64, scratch_operands = 6 : i64, tpu.core_type = #tpu.core_type<tc>, window_params = [{transform_indices = @transform_0, window_bounds = array<i64: 1, 240, 28>}, {pipeline_mode = #tpu.pipeline_mode<synchronous>, transform_indices = @transform_1, window_bounds = array<i64: 3, 28, 224>}, {pipeline_mode = #tpu.pipeline_mode<synchronous>, transform_indices = @transform_2, window_bounds = array<i64: 1, 224>}, {pipeline_mode = #tpu.pipeline_mode<synchronous>, transform_indices = @transform_3, window_bounds = array<i64: 3, 224, 224>}, {pipeline_mode = #tpu.pipeline_mode<synchronous>, transform_indices = @transform_4, window_bounds = array<i64: 1, 224>}, {pipeline_mode = #tpu.pipeline_mode<synchronous>, transform_indices = @transform_5, window_bounds = array<i64: 3, 112, 112>}, {pipeline_mode = #tpu.pipeline_mode<synchronous>, transform_indices = @transform_6, window_bounds = array<i64: 1, 112>}, {pipeline_mode = #tpu.pipeline_mode<synchronous>, transform_indices = @transform_7, window_bounds = array<i64: 3, 112, 112>}, {pipeline_mode = #tpu.pipeline_mode<synchronous>, transform_indices = @transform_8, window_bounds = array<i64: 1, 112>}, {pipeline_mode = #tpu.pipeline_mode<synchronous>, transform_indices = @transform_9, window_bounds = array<i64: 7, 56, 128>}, {pipeline_mode = #tpu.pipeline_mode<synchronous>, transform_indices = @transform_10, window_bounds = array<i64: 1, 128>}, {pipeline_mode = #tpu.pipeline_mode<synchronous>, transform_indices = @transform_11, window_bounds = array<i64: 224, 112>}, {pipeline_mode = #tpu.pipeline_mode<synchronous>, transform_indices = @transform_12, window_bounds = array<i64: 224, 112>}, {pipeline_mode = #tpu.pipeline_mode<synchronous>, transform_indices = @transform_13, window_bounds = array<i64: 128, 237>}, {pipeline_mode = #tpu.pipeline_mode<synchronous>, transform_indices = @transform_14, window_bounds = array<i64: 112, 56>}, {pipeline_mode = #tpu.pipeline_mode<synchronous>, transform_indices = @transform_15, window_bounds = array<i64: 112, 56>}, {pipeline_mode = #tpu.pipeline_mode<synchronous>, transform_indices = @transform_16, window_bounds = array<i64: 56, 125>}, {pipeline_mode = #tpu.pipeline_mode<synchronous>, transform_indices = @transform_17, window_bounds = array<i64: 238, 1>}, {pipeline_mode = #tpu.pipeline_mode<synchronous>, transform_indices = @transform_18, window_bounds = array<i64: 126, 1>}, {transform_indices = @transform_19, window_bounds = array<i64: 1, 8, 128>}]} {
    %c0 = arith.constant 0 : index
    %c0_0 = arith.constant 0 : index
    %c0_1 = arith.constant 0 : index
    %0 = vector.load %arg1[%c0, %c0_0, %c0_1] : memref<1x240x28xf32, #tpu.memory_space<vmem>>, vector<1x238x28xf32>
    %1 = vector.shape_cast %0 : vector<1x238x28xf32> to vector<238x28xf32>
    %2 = arith.truncf %1 : vector<238x28xf32> to vector<238x28xbf16>
    %c0_2 = arith.constant 0 : index
    %c0_3 = arith.constant 0 : index
    %c0_4 = arith.constant 0 : index
    %3 = vector.load %arg2[%c0_2, %c0_3, %c0_4] : memref<3x28x224xbf16, #tpu.memory_space<vmem>>, vector<1x28x224xbf16>
    %4 = vector.shape_cast %3 : vector<1x28x224xbf16> to vector<28x224xbf16>
    %cst = arith.constant dense<0.000000e+00> : vector<238x224xf32>
    %5 = tpu.matmul %2, %4, %cst {dimension_numbers = #tpu.dot_dimension_numbers<[1], [0], [0], [1], [0, 0, 1, 1], [], []>} : vector<238x28xbf16>, vector<28x224xbf16>, vector<238x224xf32> -> vector<238x224xf32>
    %c0_5 = arith.constant 0 : index
    %c1 = arith.constant 1 : index
    %c0_6 = arith.constant 0 : index
    %6 = vector.load %arg1[%c0_5, %c1, %c0_6] : memref<1x240x28xf32, #tpu.memory_space<vmem>>, vector<1x238x28xf32>
    %7 = vector.shape_cast %6 : vector<1x238x28xf32> to vector<238x28xf32>
    %8 = arith.truncf %7 : vector<238x28xf32> to vector<238x28xbf16>
    %c1_7 = arith.constant 1 : index
    %c0_8 = arith.constant 0 : index
    %c0_9 = arith.constant 0 : index
    %9 = vector.load %arg2[%c1_7, %c0_8, %c0_9] : memref<3x28x224xbf16, #tpu.memory_space<vmem>>, vector<1x28x224xbf16>
    %10 = vector.shape_cast %9 : vector<1x28x224xbf16> to vector<28x224xbf16>
    %cst_10 = arith.constant dense<0.000000e+00> : vector<238x224xf32>
    %11 = tpu.matmul %8, %10, %cst_10 {dimension_numbers = #tpu.dot_dimension_numbers<[1], [0], [0], [1], [0, 0, 1, 1], [], []>} : vector<238x28xbf16>, vector<28x224xbf16>, vector<238x224xf32> -> vector<238x224xf32>
    %12 = arith.addf %5, %11 : vector<238x224xf32>
    %c0_11 = arith.constant 0 : index
    %c2 = arith.constant 2 : index
    %c0_12 = arith.constant 0 : index
    %13 = vector.load %arg1[%c0_11, %c2, %c0_12] : memref<1x240x28xf32, #tpu.memory_space<vmem>>, vector<1x238x28xf32>
    %14 = vector.shape_cast %13 : vector<1x238x28xf32> to vector<238x28xf32>
    %15 = arith.truncf %14 : vector<238x28xf32> to vector<238x28xbf16>
    %c2_13 = arith.constant 2 : index
    %c0_14 = arith.constant 0 : index
    %c0_15 = arith.constant 0 : index
    %16 = vector.load %arg2[%c2_13, %c0_14, %c0_15] : memref<3x28x224xbf16, #tpu.memory_space<vmem>>, vector<1x28x224xbf16>
    %17 = vector.shape_cast %16 : vector<1x28x224xbf16> to vector<28x224xbf16>
    %cst_16 = arith.constant dense<0.000000e+00> : vector<238x224xf32>
    %18 = tpu.matmul %15, %17, %cst_16 {dimension_numbers = #tpu.dot_dimension_numbers<[1], [0], [0], [1], [0, 0, 1, 1], [], []>} : vector<238x28xbf16>, vector<28x224xbf16>, vector<238x224xf32> -> vector<238x224xf32>
    %19 = arith.addf %12, %18 : vector<238x224xf32>
    %c0_17 = arith.constant 0 : index
    %c0_18 = arith.constant 0 : index
    %20 = vector.load %arg3[%c0_17, %c0_18] : memref<1x224xf32, #tpu.memory_space<vmem>>, vector<1x224xf32>
    %21 = vector.broadcast %20 : vector<1x224xf32> to vector<238x224xf32>
    %22 = arith.addf %19, %21 : vector<238x224xf32>
    %cst_19 = arith.constant 0.000000e+00 : f32
    %23 = vector.broadcast %cst_19 : f32 to vector<238x224xf32>
    %24 = arith.maximumf %22, %23 : vector<238x224xf32>
    %c0_20 = arith.constant 0 : index
    %c0_21 = arith.constant 0 : index
    %25 = vector.load %arg18[%c0_20, %c0_21] : memref<238x1xf32, #tpu.memory_space<vmem>>, vector<238x1xf32>
    %26 = vector.broadcast %25 : vector<238x1xf32> to vector<238x224xf32>
    %27 = arith.mulf %24, %26 : vector<238x224xf32>
    %c1_22 = arith.constant 1 : index
    %c0_23 = arith.constant 0 : index
    %28 = vector.load %arg21[%c1_22, %c0_23] : memref<240x224xf32, #tpu.memory_space<vmem>>, vector<238x224xf32>
    tpu.vector_store %arg21[%c1_22, %c0_23], %27 {strides = array<i32>} : memref<240x224xf32, #tpu.memory_space<vmem>>, vector<238x224xf32>,
    %cst_24 = arith.constant 0.000000e+00 : f32
    %29 = vector.broadcast %cst_24 : f32 to vector<1x224xf32>
    %c0_25 = arith.constant 0 : index
    %c0_26 = arith.constant 0 : index
    %30 = vector.load %arg21[%c0_25, %c0_26] : memref<240x224xf32, #tpu.memory_space<vmem>>, vector<1x224xf32>
    tpu.vector_store %arg21[%c0_25, %c0_26], %29 {strides = array<i32>} : memref<240x224xf32, #tpu.memory_space<vmem>>, vector<1x224xf32>,
    %cst_27 = arith.constant 0.000000e+00 : f32
    %31 = vector.broadcast %cst_27 : f32 to vector<1x224xf32>
    %c239 = arith.constant 239 : index
    %c0_28 = arith.constant 0 : index
    %32 = vector.load %arg21[%c239, %c0_28] : memref<240x224xf32, #tpu.memory_space<vmem>>, vector<1x224xf32>
    tpu.vector_store %arg21[%c239, %c0_28], %31 {strides = array<i32>} : memref<240x224xf32, #tpu.memory_space<vmem>>, vector<1x224xf32>,
    %c0_29 = arith.constant 0 : index
    %c0_30 = arith.constant 0 : index
    %33 = vector.load %arg21[%c0_29, %c0_30] : memref<240x224xf32, #tpu.memory_space<vmem>>, vector<238x224xf32>
    %34 = arith.truncf %33 : vector<238x224xf32> to vector<238x224xbf16>
    %c0_31 = arith.constant 0 : index
    %c0_32 = arith.constant 0 : index
    %c0_33 = arith.constant 0 : index
    %35 = vector.load %arg4[%c0_31, %c0_32, %c0_33] : memref<3x224x224xbf16, #tpu.memory_space<vmem>>, vector<1x224x224xbf16>
    %36 = vector.shape_cast %35 : vector<1x224x224xbf16> to vector<224x224xbf16>
    %cst_34 = arith.constant dense<0.000000e+00> : vector<238x224xf32>
    %37 = tpu.matmul %34, %36, %cst_34 {dimension_numbers = #tpu.dot_dimension_numbers<[1], [0], [0], [1], [0, 0, 1, 1], [], []>} : vector<238x224xbf16>, vector<224x224xbf16>, vector<238x224xf32> -> vector<238x224xf32>
    %c1_35 = arith.constant 1 : index
    %c0_36 = arith.constant 0 : index
    %38 = vector.load %arg21[%c1_35, %c0_36] : memref<240x224xf32, #tpu.memory_space<vmem>>, vector<238x224xf32>
    %39 = arith.truncf %38 : vector<238x224xf32> to vector<238x224xbf16>
    %c1_37 = arith.constant 1 : index
    %c0_38 = arith.constant 0 : index
    %c0_39 = arith.constant 0 : index
    %40 = vector.load %arg4[%c1_37, %c0_38, %c0_39] : memref<3x224x224xbf16, #tpu.memory_space<vmem>>, vector<1x224x224xbf16>
    %41 = vector.shape_cast %40 : vector<1x224x224xbf16> to vector<224x224xbf16>
    %cst_40 = arith.constant dense<0.000000e+00> : vector<238x224xf32>
    %42 = tpu.matmul %39, %41, %cst_40 {dimension_numbers = #tpu.dot_dimension_numbers<[1], [0], [0], [1], [0, 0, 1, 1], [], []>} : vector<238x224xbf16>, vector<224x224xbf16>, vector<238x224xf32> -> vector<238x224xf32>
    %43 = arith.addf %37, %42 : vector<238x224xf32>
    %c2_41 = arith.constant 2 : index
    %c0_42 = arith.constant 0 : index
    %44 = vector.load %arg21[%c2_41, %c0_42] : memref<240x224xf32, #tpu.memory_space<vmem>>, vector<238x224xf32>
    %45 = arith.truncf %44 : vector<238x224xf32> to vector<238x224xbf16>
    %c2_43 = arith.constant 2 : index
    %c0_44 = arith.constant 0 : index
    %c0_45 = arith.constant 0 : index
    %46 = vector.load %arg4[%c2_43, %c0_44, %c0_45] : memref<3x224x224xbf16, #tpu.memory_space<vmem>>, vector<1x224x224xbf16>
    %47 = vector.shape_cast %46 : vector<1x224x224xbf16> to vector<224x224xbf16>
    %cst_46 = arith.constant dense<0.000000e+00> : vector<238x224xf32>
    %48 = tpu.matmul %45, %47, %cst_46 {dimension_numbers = #tpu.dot_dimension_numbers<[1], [0], [0], [1], [0, 0, 1, 1], [], []>} : vector<238x224xbf16>, vector<224x224xbf16>, vector<238x224xf32> -> vector<238x224xf32>
    %49 = arith.addf %43, %48 : vector<238x224xf32>
    %c0_47 = arith.constant 0 : index
    %c0_48 = arith.constant 0 : index
    %50 = vector.load %arg5[%c0_47, %c0_48] : memref<1x224xf32, #tpu.memory_space<vmem>>, vector<1x224xf32>
    %51 = vector.broadcast %50 : vector<1x224xf32> to vector<238x224xf32>
    %52 = arith.addf %49, %51 : vector<238x224xf32>
    %cst_49 = arith.constant 0.000000e+00 : f32
    %53 = vector.broadcast %cst_49 : f32 to vector<238x224xf32>
    %54 = arith.maximumf %52, %53 : vector<238x224xf32>
    %c0_50 = arith.constant 0 : index
    %c0_51 = arith.constant 0 : index
    %55 = vector.load %arg24[%c0_50, %c0_51] : memref<238x224xf32, #tpu.memory_space<vmem>>, vector<238x224xf32>
    tpu.vector_store %arg24[%c0_50, %c0_51], %54 {strides = array<i32>} : memref<238x224xf32, #tpu.memory_space<vmem>>, vector<238x224xf32>,
    %c0_52 = arith.constant 0 : index
    %c0_53 = arith.constant 0 : index
    %56 = vector.load %arg24[%c0_52, %c0_53] : memref<238x224xf32, #tpu.memory_space<vmem>>, vector<237x224xf32>
    %c1_54 = arith.constant 1 : index
    %c0_55 = arith.constant 0 : index
    %57 = vector.load %arg24[%c1_54, %c0_55] : memref<238x224xf32, #tpu.memory_space<vmem>>, vector<237x224xf32>
    %58 = arith.maximumf %56, %57 : vector<237x224xf32>
    %59 = arith.truncf %58 : vector<237x224xf32> to vector<237x224xbf16>
    %c0_56 = arith.constant 0 : index
    %c0_57 = arith.constant 0 : index
    %60 = vector.load %arg12[%c0_56, %c0_57] : memref<224x112xbf16, #tpu.memory_space<vmem>>, vector<224x112xbf16>
    %cst_58 = arith.constant dense<0.000000e+00> : vector<237x112xf32>
    %61 = tpu.matmul %59, %60, %cst_58 {dimension_numbers = #tpu.dot_dimension_numbers<[1], [0], [0], [1], [0, 0, 1, 1], [], []>} : vector<237x224xbf16>, vector<224x112xbf16>, vector<237x112xf32> -> vector<237x112xf32>
    %c0_59 = arith.constant 0 : index
    %c0_60 = arith.constant 0 : index
    %62 = vector.load %arg13[%c0_59, %c0_60] : memref<224x112xbf16, #tpu.memory_space<vmem>>, vector<224x112xbf16>
    %cst_61 = arith.constant dense<0.000000e+00> : vector<237x112xf32>
    %63 = tpu.matmul %59, %62, %cst_61 {dimension_numbers = #tpu.dot_dimension_numbers<[1], [0], [0], [1], [0, 0, 1, 1], [], []>} : vector<237x224xbf16>, vector<224x112xbf16>, vector<237x112xf32> -> vector<237x112xf32>
    %64 = arith.maximumf %61, %63 : vector<237x112xf32>
    %65 = arith.truncf %64 : vector<237x112xf32> to vector<237x112xbf16>
    %c0_62 = arith.constant 0 : index
    %c0_63 = arith.constant 0 : index
    %66 = vector.load %arg14[%c0_62, %c0_63] : memref<128x237xbf16, #tpu.memory_space<vmem>>, vector<128x237xbf16>
    %cst_64 = arith.constant dense<0.000000e+00> : vector<128x112xf32>
    %67 = tpu.matmul %66, %65, %cst_64 {dimension_numbers = #tpu.dot_dimension_numbers<[1], [0], [0], [1], [0, 0, 1, 1], [], []>} : vector<128x237xbf16>, vector<237x112xbf16>, vector<128x112xf32> -> vector<128x112xf32>
    %c0_65 = arith.constant 0 : index
    %c0_66 = arith.constant 0 : index
    %68 = vector.load %arg22[%c0_65, %c0_66] : memref<128x112xf32, #tpu.memory_space<vmem>>, vector<128x112xf32>
    tpu.vector_store %arg22[%c0_65, %c0_66], %67 {strides = array<i32>} : memref<128x112xf32, #tpu.memory_space<vmem>>, vector<128x112xf32>,
    %c0_67 = arith.constant 0 : index
    %c0_68 = arith.constant 0 : index
    %69 = vector.load %arg22[%c0_67, %c0_68] : memref<128x112xf32, #tpu.memory_space<vmem>>, vector<126x112xf32>
    %70 = arith.truncf %69 : vector<126x112xf32> to vector<126x112xbf16>
    %c0_69 = arith.constant 0 : index
    %c0_70 = arith.constant 0 : index
    %c0_71 = arith.constant 0 : index
    %71 = vector.load %arg6[%c0_69, %c0_70, %c0_71] : memref<3x112x112xbf16, #tpu.memory_space<vmem>>, vector<1x112x112xbf16>
    %72 = vector.shape_cast %71 : vector<1x112x112xbf16> to vector<112x112xbf16>
    %cst_72 = arith.constant dense<0.000000e+00> : vector<126x112xf32>
    %73 = tpu.matmul %70, %72, %cst_72 {dimension_numbers = #tpu.dot_dimension_numbers<[1], [0], [0], [1], [0, 0, 1, 1], [], []>} : vector<126x112xbf16>, vector<112x112xbf16>, vector<126x112xf32> -> vector<126x112xf32>
    %c1_73 = arith.constant 1 : index
    %c0_74 = arith.constant 0 : index
    %74 = vector.load %arg22[%c1_73, %c0_74] : memref<128x112xf32, #tpu.memory_space<vmem>>, vector<126x112xf32>
    %75 = arith.truncf %74 : vector<126x112xf32> to vector<126x112xbf16>
    %c1_75 = arith.constant 1 : index
    %c0_76 = arith.constant 0 : index
    %c0_77 = arith.constant 0 : index
    %76 = vector.load %arg6[%c1_75, %c0_76, %c0_77] : memref<3x112x112xbf16, #tpu.memory_space<vmem>>, vector<1x112x112xbf16>
    %77 = vector.shape_cast %76 : vector<1x112x112xbf16> to vector<112x112xbf16>
    %cst_78 = arith.constant dense<0.000000e+00> : vector<126x112xf32>
    %78 = tpu.matmul %75, %77, %cst_78 {dimension_numbers = #tpu.dot_dimension_numbers<[1], [0], [0], [1], [0, 0, 1, 1], [], []>} : vector<126x112xbf16>, vector<112x112xbf16>, vector<126x112xf32> -> vector<126x112xf32>
    %79 = arith.addf %73, %78 : vector<126x112xf32>
    %c2_79 = arith.constant 2 : index
    %c0_80 = arith.constant 0 : index
    %80 = vector.load %arg22[%c2_79, %c0_80] : memref<128x112xf32, #tpu.memory_space<vmem>>, vector<126x112xf32>
    %81 = arith.truncf %80 : vector<126x112xf32> to vector<126x112xbf16>
    %c2_81 = arith.constant 2 : index
    %c0_82 = arith.constant 0 : index
    %c0_83 = arith.constant 0 : index
    %82 = vector.load %arg6[%c2_81, %c0_82, %c0_83] : memref<3x112x112xbf16, #tpu.memory_space<vmem>>, vector<1x112x112xbf16>
    %83 = vector.shape_cast %82 : vector<1x112x112xbf16> to vector<112x112xbf16>
    %cst_84 = arith.constant dense<0.000000e+00> : vector<126x112xf32>
    %84 = tpu.matmul %81, %83, %cst_84 {dimension_numbers = #tpu.dot_dimension_numbers<[1], [0], [0], [1], [0, 0, 1, 1], [], []>} : vector<126x112xbf16>, vector<112x112xbf16>, vector<126x112xf32> -> vector<126x112xf32>
    %85 = arith.addf %79, %84 : vector<126x112xf32>
    %c0_85 = arith.constant 0 : index
    %c0_86 = arith.constant 0 : index
    %86 = vector.load %arg7[%c0_85, %c0_86] : memref<1x112xf32, #tpu.memory_space<vmem>>, vector<1x112xf32>
    %87 = vector.broadcast %86 : vector<1x112xf32> to vector<126x112xf32>
    %88 = arith.addf %85, %87 : vector<126x112xf32>
    %cst_87 = arith.constant 0.000000e+00 : f32
    %89 = vector.broadcast %cst_87 : f32 to vector<126x112xf32>
    %90 = arith.maximumf %88, %89 : vector<126x112xf32>
    %c0_88 = arith.constant 0 : index
    %c0_89 = arith.constant 0 : index
    %91 = vector.load %arg19[%c0_88, %c0_89] : memref<126x1xf32, #tpu.memory_space<vmem>>, vector<126x1xf32>
    %92 = vector.broadcast %91 : vector<126x1xf32> to vector<126x112xf32>
    %93 = arith.mulf %90, %92 : vector<126x112xf32>
    %c1_90 = arith.constant 1 : index
    %c0_91 = arith.constant 0 : index
    %94 = vector.load %arg23[%c1_90, %c0_91] : memref<128x112xf32, #tpu.memory_space<vmem>>, vector<126x112xf32>
    tpu.vector_store %arg23[%c1_90, %c0_91], %93 {strides = array<i32>} : memref<128x112xf32, #tpu.memory_space<vmem>>, vector<126x112xf32>,
    %cst_92 = arith.constant 0.000000e+00 : f32
    %95 = vector.broadcast %cst_92 : f32 to vector<1x112xf32>
    %c0_93 = arith.constant 0 : index
    %c0_94 = arith.constant 0 : index
    %96 = vector.load %arg23[%c0_93, %c0_94] : memref<128x112xf32, #tpu.memory_space<vmem>>, vector<1x112xf32>
    tpu.vector_store %arg23[%c0_93, %c0_94], %95 {strides = array<i32>} : memref<128x112xf32, #tpu.memory_space<vmem>>, vector<1x112xf32>,
    %cst_95 = arith.constant 0.000000e+00 : f32
    %97 = vector.broadcast %cst_95 : f32 to vector<1x112xf32>
    %c127 = arith.constant 127 : index
    %c0_96 = arith.constant 0 : index
    %98 = vector.load %arg23[%c127, %c0_96] : memref<128x112xf32, #tpu.memory_space<vmem>>, vector<1x112xf32>
    tpu.vector_store %arg23[%c127, %c0_96], %97 {strides = array<i32>} : memref<128x112xf32, #tpu.memory_space<vmem>>, vector<1x112xf32>,
    %c0_97 = arith.constant 0 : index
    %c0_98 = arith.constant 0 : index
    %99 = vector.load %arg23[%c0_97, %c0_98] : memref<128x112xf32, #tpu.memory_space<vmem>>, vector<126x112xf32>
    %100 = arith.truncf %99 : vector<126x112xf32> to vector<126x112xbf16>
    %c0_99 = arith.constant 0 : index
    %c0_100 = arith.constant 0 : index
    %c0_101 = arith.constant 0 : index
    %101 = vector.load %arg8[%c0_99, %c0_100, %c0_101] : memref<3x112x112xbf16, #tpu.memory_space<vmem>>, vector<1x112x112xbf16>
    %102 = vector.shape_cast %101 : vector<1x112x112xbf16> to vector<112x112xbf16>
    %cst_102 = arith.constant dense<0.000000e+00> : vector<126x112xf32>
    %103 = tpu.matmul %100, %102, %cst_102 {dimension_numbers = #tpu.dot_dimension_numbers<[1], [0], [0], [1], [0, 0, 1, 1], [], []>} : vector<126x112xbf16>, vector<112x112xbf16>, vector<126x112xf32> -> vector<126x112xf32>
    %c1_103 = arith.constant 1 : index
    %c0_104 = arith.constant 0 : index
    %104 = vector.load %arg23[%c1_103, %c0_104] : memref<128x112xf32, #tpu.memory_space<vmem>>, vector<126x112xf32>
    %105 = arith.truncf %104 : vector<126x112xf32> to vector<126x112xbf16>
    %c1_105 = arith.constant 1 : index
    %c0_106 = arith.constant 0 : index
    %c0_107 = arith.constant 0 : index
    %106 = vector.load %arg8[%c1_105, %c0_106, %c0_107] : memref<3x112x112xbf16, #tpu.memory_space<vmem>>, vector<1x112x112xbf16>
    %107 = vector.shape_cast %106 : vector<1x112x112xbf16> to vector<112x112xbf16>
    %cst_108 = arith.constant dense<0.000000e+00> : vector<126x112xf32>
    %108 = tpu.matmul %105, %107, %cst_108 {dimension_numbers = #tpu.dot_dimension_numbers<[1], [0], [0], [1], [0, 0, 1, 1], [], []>} : vector<126x112xbf16>, vector<112x112xbf16>, vector<126x112xf32> -> vector<126x112xf32>
    %109 = arith.addf %103, %108 : vector<126x112xf32>
    %c2_109 = arith.constant 2 : index
    %c0_110 = arith.constant 0 : index
    %110 = vector.load %arg23[%c2_109, %c0_110] : memref<128x112xf32, #tpu.memory_space<vmem>>, vector<126x112xf32>
    %111 = arith.truncf %110 : vector<126x112xf32> to vector<126x112xbf16>
    %c2_111 = arith.constant 2 : index
    %c0_112 = arith.constant 0 : index
    %c0_113 = arith.constant 0 : index
    %112 = vector.load %arg8[%c2_111, %c0_112, %c0_113] : memref<3x112x112xbf16, #tpu.memory_space<vmem>>, vector<1x112x112xbf16>
    %113 = vector.shape_cast %112 : vector<1x112x112xbf16> to vector<112x112xbf16>
    %cst_114 = arith.constant dense<0.000000e+00> : vector<126x112xf32>
    %114 = tpu.matmul %111, %113, %cst_114 {dimension_numbers = #tpu.dot_dimension_numbers<[1], [0], [0], [1], [0, 0, 1, 1], [], []>} : vector<126x112xbf16>, vector<112x112xbf16>, vector<126x112xf32> -> vector<126x112xf32>
    %115 = arith.addf %109, %114 : vector<126x112xf32>
    %c0_115 = arith.constant 0 : index
    %c0_116 = arith.constant 0 : index
    %116 = vector.load %arg9[%c0_115, %c0_116] : memref<1x112xf32, #tpu.memory_space<vmem>>, vector<1x112xf32>
    %117 = vector.broadcast %116 : vector<1x112xf32> to vector<126x112xf32>
    %118 = arith.addf %115, %117 : vector<126x112xf32>
    %cst_117 = arith.constant 0.000000e+00 : f32
    %119 = vector.broadcast %cst_117 : f32 to vector<126x112xf32>
    %120 = arith.maximumf %118, %119 : vector<126x112xf32>
    %c0_118 = arith.constant 0 : index
    %c0_119 = arith.constant 0 : index
    %121 = vector.load %arg25[%c0_118, %c0_119] : memref<126x112xf32, #tpu.memory_space<vmem>>, vector<126x112xf32>
    tpu.vector_store %arg25[%c0_118, %c0_119], %120 {strides = array<i32>} : memref<126x112xf32, #tpu.memory_space<vmem>>, vector<126x112xf32>,
    %c0_120 = arith.constant 0 : index
    %c0_121 = arith.constant 0 : index
    %122 = vector.load %arg25[%c0_120, %c0_121] : memref<126x112xf32, #tpu.memory_space<vmem>>, vector<125x112xf32>
    %c1_122 = arith.constant 1 : index
    %c0_123 = arith.constant 0 : index
    %123 = vector.load %arg25[%c1_122, %c0_123] : memref<126x112xf32, #tpu.memory_space<vmem>>, vector<125x112xf32>
    %124 = arith.maximumf %122, %123 : vector<125x112xf32>
    %125 = arith.truncf %124 : vector<125x112xf32> to vector<125x112xbf16>
    %c0_124 = arith.constant 0 : index
    %c0_125 = arith.constant 0 : index
    %126 = vector.load %arg15[%c0_124, %c0_125] : memref<112x56xbf16, #tpu.memory_space<vmem>>, vector<112x56xbf16>
    %cst_126 = arith.constant dense<0.000000e+00> : vector<125x56xf32>
    %127 = tpu.matmul %125, %126, %cst_126 {dimension_numbers = #tpu.dot_dimension_numbers<[1], [0], [0], [1], [0, 0, 1, 1], [], []>} : vector<125x112xbf16>, vector<112x56xbf16>, vector<125x56xf32> -> vector<125x56xf32>
    %c0_127 = arith.constant 0 : index
    %c0_128 = arith.constant 0 : index
    %128 = vector.load %arg16[%c0_127, %c0_128] : memref<112x56xbf16, #tpu.memory_space<vmem>>, vector<112x56xbf16>
    %cst_129 = arith.constant dense<0.000000e+00> : vector<125x56xf32>
    %129 = tpu.matmul %125, %128, %cst_129 {dimension_numbers = #tpu.dot_dimension_numbers<[1], [0], [0], [1], [0, 0, 1, 1], [], []>} : vector<125x112xbf16>, vector<112x56xbf16>, vector<125x56xf32> -> vector<125x56xf32>
    %130 = arith.maximumf %127, %129 : vector<125x56xf32>
    %131 = arith.truncf %130 : vector<125x56xf32> to vector<125x56xbf16>
    %c0_130 = arith.constant 0 : index
    %c0_131 = arith.constant 0 : index
    %132 = vector.load %arg17[%c0_130, %c0_131] : memref<56x125xbf16, #tpu.memory_space<vmem>>, vector<56x125xbf16>
    %cst_132 = arith.constant dense<0.000000e+00> : vector<56x56xf32>
    %133 = tpu.matmul %132, %131, %cst_132 {dimension_numbers = #tpu.dot_dimension_numbers<[1], [0], [0], [1], [0, 0, 1, 1], [], []>} : vector<56x125xbf16>, vector<125x56xbf16>, vector<56x56xf32> -> vector<56x56xf32>
    %c0_133 = arith.constant 0 : index
    %c0_134 = arith.constant 0 : index
    %134 = vector.load %arg26[%c0_133, %c0_134] : memref<56x56xf32, #tpu.memory_space<vmem>>, vector<56x56xf32>
    tpu.vector_store %arg26[%c0_133, %c0_134], %133 {strides = array<i32>} : memref<56x56xf32, #tpu.memory_space<vmem>>, vector<56x56xf32>,
    %c0_135 = arith.constant 0 : index
    %c0_136 = arith.constant 0 : index
    %135 = vector.load %arg26[%c0_135, %c0_136] : memref<56x56xf32, #tpu.memory_space<vmem>>, vector<8x56xf32>
    %136 = arith.truncf %135 : vector<8x56xf32> to vector<8x56xbf16>
    %c0_137 = arith.constant 0 : index
    %c0_138 = arith.constant 0 : index
    %c0_139 = arith.constant 0 : index
    %137 = vector.load %arg10[%c0_137, %c0_138, %c0_139] : memref<7x56x128xbf16, #tpu.memory_space<vmem>>, vector<1x56x128xbf16>
    %138 = vector.shape_cast %137 : vector<1x56x128xbf16> to vector<56x128xbf16>
    %cst_140 = arith.constant dense<0.000000e+00> : vector<8x128xf32>
    %139 = tpu.matmul %136, %138, %cst_140 {dimension_numbers = #tpu.dot_dimension_numbers<[1], [0], [0], [1], [0, 0, 1, 1], [], []>} : vector<8x56xbf16>, vector<56x128xbf16>, vector<8x128xf32> -> vector<8x128xf32>
    %c8 = arith.constant 8 : index
    %c0_141 = arith.constant 0 : index
    %140 = vector.load %arg26[%c8, %c0_141] : memref<56x56xf32, #tpu.memory_space<vmem>>, vector<8x56xf32>
    %141 = arith.truncf %140 : vector<8x56xf32> to vector<8x56xbf16>
    %c1_142 = arith.constant 1 : index
    %c0_143 = arith.constant 0 : index
    %c0_144 = arith.constant 0 : index
    %142 = vector.load %arg10[%c1_142, %c0_143, %c0_144] : memref<7x56x128xbf16, #tpu.memory_space<vmem>>, vector<1x56x128xbf16>
    %143 = vector.shape_cast %142 : vector<1x56x128xbf16> to vector<56x128xbf16>
    %cst_145 = arith.constant dense<0.000000e+00> : vector<8x128xf32>
    %144 = tpu.matmul %141, %143, %cst_145 {dimension_numbers = #tpu.dot_dimension_numbers<[1], [0], [0], [1], [0, 0, 1, 1], [], []>} : vector<8x56xbf16>, vector<56x128xbf16>, vector<8x128xf32> -> vector<8x128xf32>
    %145 = arith.addf %139, %144 : vector<8x128xf32>
    %c16 = arith.constant 16 : index
    %c0_146 = arith.constant 0 : index
    %146 = vector.load %arg26[%c16, %c0_146] : memref<56x56xf32, #tpu.memory_space<vmem>>, vector<8x56xf32>
    %147 = arith.truncf %146 : vector<8x56xf32> to vector<8x56xbf16>
    %c2_147 = arith.constant 2 : index
    %c0_148 = arith.constant 0 : index
    %c0_149 = arith.constant 0 : index
    %148 = vector.load %arg10[%c2_147, %c0_148, %c0_149] : memref<7x56x128xbf16, #tpu.memory_space<vmem>>, vector<1x56x128xbf16>
    %149 = vector.shape_cast %148 : vector<1x56x128xbf16> to vector<56x128xbf16>
    %cst_150 = arith.constant dense<0.000000e+00> : vector<8x128xf32>
    %150 = tpu.matmul %147, %149, %cst_150 {dimension_numbers = #tpu.dot_dimension_numbers<[1], [0], [0], [1], [0, 0, 1, 1], [], []>} : vector<8x56xbf16>, vector<56x128xbf16>, vector<8x128xf32> -> vector<8x128xf32>
    %151 = arith.addf %145, %150 : vector<8x128xf32>
    %c24 = arith.constant 24 : index
    %c0_151 = arith.constant 0 : index
    %152 = vector.load %arg26[%c24, %c0_151] : memref<56x56xf32, #tpu.memory_space<vmem>>, vector<8x56xf32>
    %153 = arith.truncf %152 : vector<8x56xf32> to vector<8x56xbf16>
    %c3 = arith.constant 3 : index
    %c0_152 = arith.constant 0 : index
    %c0_153 = arith.constant 0 : index
    %154 = vector.load %arg10[%c3, %c0_152, %c0_153] : memref<7x56x128xbf16, #tpu.memory_space<vmem>>, vector<1x56x128xbf16>
    %155 = vector.shape_cast %154 : vector<1x56x128xbf16> to vector<56x128xbf16>
    %cst_154 = arith.constant dense<0.000000e+00> : vector<8x128xf32>
    %156 = tpu.matmul %153, %155, %cst_154 {dimension_numbers = #tpu.dot_dimension_numbers<[1], [0], [0], [1], [0, 0, 1, 1], [], []>} : vector<8x56xbf16>, vector<56x128xbf16>, vector<8x128xf32> -> vector<8x128xf32>
    %157 = arith.addf %151, %156 : vector<8x128xf32>
    %c32 = arith.constant 32 : index
    %c0_155 = arith.constant 0 : index
    %158 = vector.load %arg26[%c32, %c0_155] : memref<56x56xf32, #tpu.memory_space<vmem>>, vector<8x56xf32>
    %159 = arith.truncf %158 : vector<8x56xf32> to vector<8x56xbf16>
    %c4 = arith.constant 4 : index
    %c0_156 = arith.constant 0 : index
    %c0_157 = arith.constant 0 : index
    %160 = vector.load %arg10[%c4, %c0_156, %c0_157] : memref<7x56x128xbf16, #tpu.memory_space<vmem>>, vector<1x56x128xbf16>
    %161 = vector.shape_cast %160 : vector<1x56x128xbf16> to vector<56x128xbf16>
    %cst_158 = arith.constant dense<0.000000e+00> : vector<8x128xf32>
    %162 = tpu.matmul %159, %161, %cst_158 {dimension_numbers = #tpu.dot_dimension_numbers<[1], [0], [0], [1], [0, 0, 1, 1], [], []>} : vector<8x56xbf16>, vector<56x128xbf16>, vector<8x128xf32> -> vector<8x128xf32>
    %163 = arith.addf %157, %162 : vector<8x128xf32>
    %c40 = arith.constant 40 : index
    %c0_159 = arith.constant 0 : index
    %164 = vector.load %arg26[%c40, %c0_159] : memref<56x56xf32, #tpu.memory_space<vmem>>, vector<8x56xf32>
    %165 = arith.truncf %164 : vector<8x56xf32> to vector<8x56xbf16>
    %c5 = arith.constant 5 : index
    %c0_160 = arith.constant 0 : index
    %c0_161 = arith.constant 0 : index
    %166 = vector.load %arg10[%c5, %c0_160, %c0_161] : memref<7x56x128xbf16, #tpu.memory_space<vmem>>, vector<1x56x128xbf16>
    %167 = vector.shape_cast %166 : vector<1x56x128xbf16> to vector<56x128xbf16>
    %cst_162 = arith.constant dense<0.000000e+00> : vector<8x128xf32>
    %168 = tpu.matmul %165, %167, %cst_162 {dimension_numbers = #tpu.dot_dimension_numbers<[1], [0], [0], [1], [0, 0, 1, 1], [], []>} : vector<8x56xbf16>, vector<56x128xbf16>, vector<8x128xf32> -> vector<8x128xf32>
    %169 = arith.addf %163, %168 : vector<8x128xf32>
    %c48 = arith.constant 48 : index
    %c0_163 = arith.constant 0 : index
    %170 = vector.load %arg26[%c48, %c0_163] : memref<56x56xf32, #tpu.memory_space<vmem>>, vector<8x56xf32>
    %171 = arith.truncf %170 : vector<8x56xf32> to vector<8x56xbf16>
    %c6 = arith.constant 6 : index
    %c0_164 = arith.constant 0 : index
    %c0_165 = arith.constant 0 : index
    %172 = vector.load %arg10[%c6, %c0_164, %c0_165] : memref<7x56x128xbf16, #tpu.memory_space<vmem>>, vector<1x56x128xbf16>
    %173 = vector.shape_cast %172 : vector<1x56x128xbf16> to vector<56x128xbf16>
    %cst_166 = arith.constant dense<0.000000e+00> : vector<8x128xf32>
    %174 = tpu.matmul %171, %173, %cst_166 {dimension_numbers = #tpu.dot_dimension_numbers<[1], [0], [0], [1], [0, 0, 1, 1], [], []>} : vector<8x56xbf16>, vector<56x128xbf16>, vector<8x128xf32> -> vector<8x128xf32>
    %175 = arith.addf %169, %174 : vector<8x128xf32>
    %c0_167 = arith.constant 0 : index
    %c0_168 = arith.constant 0 : index
    %176 = vector.load %arg11[%c0_167, %c0_168] : memref<1x128xf32, #tpu.memory_space<vmem>>, vector<1x128xf32>
    %177 = vector.broadcast %176 : vector<1x128xf32> to vector<8x128xf32>
    %178 = arith.addf %175, %177 : vector<8x128xf32>
    %c0_169 = arith.constant 0 : index
    %c0_170 = arith.constant 0 : index
    %c0_171 = arith.constant 0 : index
    %179 = vector.load %arg20[%c0_169, %c0_170, %c0_171] : memref<1x8x128xf32, #tpu.memory_space<vmem>>, vector<1x8x128xf32>
    %180 = vector.shape_cast %179 : vector<1x8x128xf32> to vector<8x128xf32>
    %181 = vector.shape_cast %178 : vector<8x128xf32> to vector<1x8x128xf32>
    tpu.vector_store %arg20[%c0_169, %c0_170, %c0_171], %181 {strides = array<i32>} : memref<1x8x128xf32, #tpu.memory_space<vmem>>, vector<1x8x128xf32>,
    return
  }
  func.func @transform_0(%arg0: i32) -> (i32, i32, i32) {
    %c0_i32 = arith.constant 0 : i32
    %c0_i32_0 = arith.constant 0 : i32
    %c0_i32_1 = arith.constant 0 : i32
    return %arg0, %c0_i32, %c0_i32_0 : i32, i32, i32
  }
  func.func @transform_1(%arg0: i32) -> (i32, i32, i32) {
    %c0_i32 = arith.constant 0 : i32
    %c0_i32_0 = arith.constant 0 : i32
    %c0_i32_1 = arith.constant 0 : i32
    %c0_i32_2 = arith.constant 0 : i32
    return %c0_i32, %c0_i32_0, %c0_i32_1 : i32, i32, i32
  }
  func.func @transform_2(%arg0: i32) -> (i32, i32) {
    %c0_i32 = arith.constant 0 : i32
    %c0_i32_0 = arith.constant 0 : i32
    %c0_i32_1 = arith.constant 0 : i32
    return %c0_i32, %c0_i32_0 : i32, i32
  }
  func.func @transform_3(%arg0: i32) -> (i32, i32, i32) {
    %c0_i32 = arith.constant 0 : i32
    %c0_i32_0 = arith.constant 0 : i32
    %c0_i32_1 = arith.constant 0 : i32
    %c0_i32_2 = arith.constant 0 : i32
    return %c0_i32, %c0_i32_0, %c0_i32_1 : i32, i32, i32
  }
  func.func @transform_4(%arg0: i32) -> (i32, i32) {
    %c0_i32 = arith.constant 0 : i32
    %c0_i32_0 = arith.constant 0 : i32
    %c0_i32_1 = arith.constant 0 : i32
    return %c0_i32, %c0_i32_0 : i32, i32
  }
  func.func @transform_5(%arg0: i32) -> (i32, i32, i32) {
    %c0_i32 = arith.constant 0 : i32
    %c0_i32_0 = arith.constant 0 : i32
    %c0_i32_1 = arith.constant 0 : i32
    %c0_i32_2 = arith.constant 0 : i32
    return %c0_i32, %c0_i32_0, %c0_i32_1 : i32, i32, i32
  }
  func.func @transform_6(%arg0: i32) -> (i32, i32) {
    %c0_i32 = arith.constant 0 : i32
    %c0_i32_0 = arith.constant 0 : i32
    %c0_i32_1 = arith.constant 0 : i32
    return %c0_i32, %c0_i32_0 : i32, i32
  }
  func.func @transform_7(%arg0: i32) -> (i32, i32, i32) {
    %c0_i32 = arith.constant 0 : i32
    %c0_i32_0 = arith.constant 0 : i32
    %c0_i32_1 = arith.constant 0 : i32
    %c0_i32_2 = arith.constant 0 : i32
    return %c0_i32, %c0_i32_0, %c0_i32_1 : i32, i32, i32
  }
  func.func @transform_8(%arg0: i32) -> (i32, i32) {
    %c0_i32 = arith.constant 0 : i32
    %c0_i32_0 = arith.constant 0 : i32
    %c0_i32_1 = arith.constant 0 : i32
    return %c0_i32, %c0_i32_0 : i32, i32
  }
  func.func @transform_9(%arg0: i32) -> (i32, i32, i32) {
    %c0_i32 = arith.constant 0 : i32
    %c0_i32_0 = arith.constant 0 : i32
    %c0_i32_1 = arith.constant 0 : i32
    %c0_i32_2 = arith.constant 0 : i32
    return %c0_i32, %c0_i32_0, %c0_i32_1 : i32, i32, i32
  }
  func.func @transform_10(%arg0: i32) -> (i32, i32) {
    %c0_i32 = arith.constant 0 : i32
    %c0_i32_0 = arith.constant 0 : i32
    %c0_i32_1 = arith.constant 0 : i32
    return %c0_i32, %c0_i32_0 : i32, i32
  }
  func.func @transform_11(%arg0: i32) -> (i32, i32) {
    %c0_i32 = arith.constant 0 : i32
    %c0_i32_0 = arith.constant 0 : i32
    %c0_i32_1 = arith.constant 0 : i32
    return %c0_i32, %c0_i32_0 : i32, i32
  }
  func.func @transform_12(%arg0: i32) -> (i32, i32) {
    %c0_i32 = arith.constant 0 : i32
    %c0_i32_0 = arith.constant 0 : i32
    %c0_i32_1 = arith.constant 0 : i32
    return %c0_i32, %c0_i32_0 : i32, i32
  }
  func.func @transform_13(%arg0: i32) -> (i32, i32) {
    %c0_i32 = arith.constant 0 : i32
    %c0_i32_0 = arith.constant 0 : i32
    %c0_i32_1 = arith.constant 0 : i32
    return %c0_i32, %c0_i32_0 : i32, i32
  }
  func.func @transform_14(%arg0: i32) -> (i32, i32) {
    %c0_i32 = arith.constant 0 : i32
    %c0_i32_0 = arith.constant 0 : i32
    %c0_i32_1 = arith.constant 0 : i32
    return %c0_i32, %c0_i32_0 : i32, i32
  }
  func.func @transform_15(%arg0: i32) -> (i32, i32) {
    %c0_i32 = arith.constant 0 : i32
    %c0_i32_0 = arith.constant 0 : i32
    %c0_i32_1 = arith.constant 0 : i32
    return %c0_i32, %c0_i32_0 : i32, i32
  }
  func.func @transform_16(%arg0: i32) -> (i32, i32) {
    %c0_i32 = arith.constant 0 : i32
    %c0_i32_0 = arith.constant 0 : i32
    %c0_i32_1 = arith.constant 0 : i32
    return %c0_i32, %c0_i32_0 : i32, i32
  }
  func.func @transform_17(%arg0: i32) -> (i32, i32) {
    %c0_i32 = arith.constant 0 : i32
    %c0_i32_0 = arith.constant 0 : i32
    %c0_i32_1 = arith.constant 0 : i32
    return %c0_i32, %c0_i32_0 : i32, i32
  }
  func.func @transform_18(%arg0: i32) -> (i32, i32) {
    %c0_i32 = arith.constant 0 : i32
    %c0_i32_0 = arith.constant 0 : i32
    %c0_i32_1 = arith.constant 0 : i32
    return %c0_i32, %c0_i32_0 : i32, i32
  }
  func.func @transform_19(%arg0: i32) -> (i32, i32, i32) {
    %c0_i32 = arith.constant 0 : i32
    %c0_i32_0 = arith.constant 0 : i32
    %c0_i32_1 = arith.constant 0 : i32
    return %arg0, %c0_i32, %c0_i32_0 : i32, i32, i32
  }
}

</mosaic_0001>

<llo_original>
// kernel: tinyvgg_forward.1
$region0: #{tinyvgg_forward.1}
  #allocation0 [shape = 'u32[]', space=smem, size = 0x4, offset = 0x4, fixed_abs, tag = 'smem constant byte address 0x4 - core index']
  #allocation1 [shape = 'u32[144,128]{1,0:T(1,128)}', space=vmem, size = 0x12000, scoped, tag = 'internal scratch']
  #allocation2 [shape = 'f32[240,224]{1,0:T(8,128)}', space=vmem, size = 0x3c000, scoped, tag = 'scratch operand']
  #allocation3 [shape = 'f32[128,112]{1,0:T(8,128)}', space=vmem, size = 0x10000, scoped, tag = 'scratch operand']
  #allocation4 [shape = 'f32[128,112]{1,0:T(8,128)}', space=vmem, size = 0x10000, scoped, tag = 'scratch operand']
  #allocation5 [shape = 'f32[238,224]{1,0:T(8,128)}', space=vmem, size = 0x3c000, scoped, tag = 'scratch operand']
  #allocation6 [shape = 'f32[126,112]{1,0:T(8,128)}', space=vmem, size = 0x10000, scoped, tag = 'scratch operand']
  #allocation7 [shape = 'f32[56,56]{1,0:T(8,128)}', space=vmem, size = 0x7000, scoped, tag = 'scratch operand']
  %s0 = inlined_call_operand.vmem [shape: f32[2,240,28], index: 0, kind: input, shape index: {}]
  %s1 = inlined_call_operand.vmem [shape: bf16[3,28,224], index: 1, kind: input, shape index: {}]
  %s2 = inlined_call_operand.vmem [shape: f32[1,224], index: 2, kind: input, shape index: {}]
  %s3 = inlined_call_operand.vmem [shape: bf16[3,224,224], index: 3, kind: input, shape index: {}]
  %s4 = inlined_call_operand.vmem [shape: f32[1,224], index: 4, kind: input, shape index: {}]
  %s5 = inlined_call_operand.vmem [shape: bf16[3,112,112], index: 5, kind: input, shape index: {}]
  %s6 = inlined_call_operand.vmem [shape: f32[1,112], index: 6, kind: input, shape index: {}]
  %s7 = inlined_call_operand.vmem [shape: bf16[3,112,112], index: 7, kind: input, shape index: {}]
  %s8 = inlined_call_operand.vmem [shape: f32[1,112], index: 8, kind: input, shape index: {}]
  %s9 = inlined_call_operand.vmem [shape: bf16[7,56,128], index: 9, kind: input, shape index: {}]
  %s10 = inlined_call_operand.vmem [shape: f32[1,128], index: 10, kind: input, shape index: {}]
  %s11 = inlined_call_operand.vmem [shape: bf16[224,112], index: 11, kind: input, shape index: {}]
  %s12 = inlined_call_operand.vmem [shape: bf16[224,112], index: 12, kind: input, shape index: {}]
  %s13 = inlined_call_operand.vmem [shape: bf16[128,237], index: 13, kind: input, shape index: {}]
  %s14 = inlined_call_operand.vmem [shape: bf16[112,56], index: 14, kind: input, shape index: {}]
  %s15 = inlined_call_operand.vmem [shape: bf16[112,56], index: 15, kind: input, shape index: {}]
  %s16 = inlined_call_operand.vmem [shape: bf16[56,125], index: 16, kind: input, shape index: {}]
  %s17 = inlined_call_operand.vmem [shape: f32[238,1], index: 17, kind: input, shape index: {}]
  %s18 = inlined_call_operand.vmem [shape: f32[126,1], index: 18, kind: input, shape index: {}]
  %s19 = inlined_call_operand.hbm [shape: f32[2,8,128], index: 19, kind: output, shape index: {}]
  %s20 = sld [smem:[#allocation0]]
  $region109: #{tinyvgg_forward.1} parent=0
    _
  %s22 = ssub.s32 1, %s20
  %s23 = scalar_select 0, %s22, %s20
  $region1: #{tinyvgg_forward.1} parent=0
    #allocation8 [shape = 'u8[8192]{0}', space=vmem, size = 0x2000, scoped, tag = 'output window, operand 0']
    #allocation9 [shape = 's32[2]{0}', space=sflag, size = 0x8, scoped, tag = 'scoped memory for tinyvgg_forward.1']
    %24 = vsyncpa [#allocation9], 0
    %s25 = scalar_lea.sflag [#allocation9], 1
    %26 = vsyncpa %s25, 0
    loop: start=0, step=1, limit=4
    $region2: #{tinyvgg_forward.1} parent=1 // loop_pre_header
      _
    $region3: #{tinyvgg_forward.1} parent=1 // loop_header
      %s28 = sphi 0, %s32
      %p29 = scmp.ge.s32.totalorder %s28, 4
      %s38 = sphi 0, %s40
      %s41 = sphi 0, %s38
      %s42 = sphi 0, %s41
      %s58 = sphi 0, %s42
      %s62 = sphi 0, %s62
      %s64 = sphi 0, %s62
      %s65 = sphi 0, %s64
      %s79 = sphi 0, %s65
      %s83 = sphi 0, %s83
      %s85 = sphi 0, %s83
      %s86 = sphi 0, %s85
      %s100 = sphi 0, %s86
      %s104 = sphi 0, %s104
      %s106 = sphi 0, %s104
      %s107 = sphi 0, %s106
      %s121 = sphi 0, %s107
      %s125 = sphi 0, %s125
      %s127 = sphi 0, %s125
      %s128 = sphi 0, %s127
      %s142 = sphi 0, %s128
      %s146 = sphi 0, %s146
      %s148 = sphi 0, %s146
      %s149 = sphi 0, %s148
      %s163 = sphi 0, %s149
      %s167 = sphi 0, %s167
      %s169 = sphi 0, %s167
      %s170 = sphi 0, %s169
      %s184 = sphi 0, %s170
      %s188 = sphi 0, %s188
      %s190 = sphi 0, %s188
      %s191 = sphi 0, %s190
      %s205 = sphi 0, %s191
      %s209 = sphi 0, %s209
      %s211 = sphi 0, %s209
      %s212 = sphi 0, %s211
      %s226 = sphi 0, %s212
      %s230 = sphi 0, %s230
      %s232 = sphi 0, %s230
      %s233 = sphi 0, %s232
      %s247 = sphi 0, %s233
      %s251 = sphi 0, %s251
      %s253 = sphi 0, %s251
      %s254 = sphi 0, %s253
      %s268 = sphi 0, %s254
      %s272 = sphi 0, %s272
      %s274 = sphi 0, %s272
      %s275 = sphi 0, %s274
      %s289 = sphi 0, %s275
      %s293 = sphi 0, %s293
      %s295 = sphi 0, %s293
      %s296 = sphi 0, %s295
      %s310 = sphi 0, %s296
      %s314 = sphi 0, %s314
      %s316 = sphi 0, %s314
      %s317 = sphi 0, %s316
      %s331 = sphi 0, %s317
      %s335 = sphi 0, %s335
      %s337 = sphi 0, %s335
      %s338 = sphi 0, %s337
      %s352 = sphi 0, %s338
      %s356 = sphi 0, %s356
      %s358 = sphi 0, %s356
      %s359 = sphi 0, %s358
      %s373 = sphi 0, %s359
      %s377 = sphi 0, %s377
      %s379 = sphi 0, %s377
      %s380 = sphi 0, %s379
      %s394 = sphi 0, %s380
      %s398 = sphi 0, %s398
      %s400 = sphi 0, %s398
      %s401 = sphi 0, %s400
      %s415 = sphi 0, %s401
      %s419 = sphi 0, %s419
      %s421 = sphi 0, %s419
      %s422 = sphi 0, %s421
      %s436 = sphi 0, %s422
      %s442 = sphi 0, %s444
      %s445 = sphi 0, %s442
      %s446 = sphi 0, %s445
      %s462 = sphi 0, %s446
    $region4: #{tinyvgg_forward.1} parent=1 // loop_header_branch
      %31 = sbr.rel (%p29) target = $region8
    $region5: #{tinyvgg_forward.1} parent=1 // loop_body
      %s33 = ssub.s32 %s28, 1
      %s34 = ssub.s32 %s28, 2
      %s35 = sadd.s32 %s28, 1
      %s36 = ssub.s32 %s28, %s35
      %p37 = scmp.eq.s32.totalorder %s36, 0
      %s39 = sadd.s32 %s38, 1
      %s40 = scalar_select %p37, %s38, %s39
      %p43 = pneg %p37
      %p44 = scmp.eq.s32.totalorder %s28, 1
      %p45 = por %p43, %p44
      %p46 = scmp.ne.s32.totalorder %s38, %s41
      %p47 = scmp.eq.s32.totalorder %s28, 0
      %p48 = por %p46, %p47
      %p49 = scmp.ne.s32.totalorder %s38, %s41
      %p50 = scmp.eq.s32.totalorder %s33, 1
      %p51 = por %p49, %p50
      %p52 = scmp.ne.s32.totalorder %s41, %s42
      %p53 = scmp.eq.s32.totalorder %s33, 0
      %p54 = por %p52, %p53
      %p55 = scmp.ne.s32.totalorder %s41, %s42
      %p56 = scmp.eq.s32.totalorder %s34, 1
      %p57 = por %p55, %p56
      %p59 = scmp.ne.s32.totalorder %s42, %s58
      %p60 = scmp.eq.s32.totalorder %s34, 0
      %p61 = por %p59, %p60
      %s63 = sadd.s32 %s62, 1
      %p66 = scmp.eq.s32.totalorder %s28, 1
      %p67 = scmp.ne.s32.totalorder %s62, %s64
      %p68 = scmp.eq.s32.totalorder %s28, 0
      %p69 = por %p67, %p68
      %p70 = scmp.ne.s32.totalorder %s62, %s64
      %p71 = scmp.eq.s32.totalorder %s33, 1
      %p72 = por %p70, %p71
      %p73 = scmp.ne.s32.totalorder %s64, %s65
      %p74 = scmp.eq.s32.totalorder %s33, 0
      %p75 = por %p73, %p74
      %p76 = scmp.ne.s32.totalorder %s64, %s65
      %p77 = scmp.eq.s32.totalorder %s34, 1
      %p78 = por %p76, %p77
      %p80 = scmp.ne.s32.totalorder %s65, %s79
      %p81 = scmp.eq.s32.totalorder %s34, 0
      %p82 = por %p80, %p81
      %s84 = sadd.s32 %s83, 1
      %p87 = scmp.eq.s32.totalorder %s28, 1
      %p88 = scmp.ne.s32.totalorder %s83, %s85
      %p89 = scmp.eq.s32.totalorder %s28, 0
      %p90 = por %p88, %p89
      %p91 = scmp.ne.s32.totalorder %s83, %s85
      %p92 = scmp.eq.s32.totalorder %s33, 1
      %p93 = por %p91, %p92
      %p94 = scmp.ne.s32.totalorder %s85, %s86
      %p95 = scmp.eq.s32.totalorder %s33, 0
      %p96 = por %p94, %p95
      %p97 = scmp.ne.s32.totalorder %s85, %s86
      %p98 = scmp.eq.s32.totalorder %s34, 1
      %p99 = por %p97, %p98
      %p101 = scmp.ne.s32.totalorder %s86, %s100
      %p102 = scmp.eq.s32.totalorder %s34, 0
      %p103 = por %p101, %p102
      %s105 = sadd.s32 %s104, 1
      %p108 = scmp.eq.s32.totalorder %s28, 1
      %p109 = scmp.ne.s32.totalorder %s104, %s106
      %p110 = scmp.eq.s32.totalorder %s28, 0
      %p111 = por %p109, %p110
      %p112 = scmp.ne.s32.totalorder %s104, %s106
      %p113 = scmp.eq.s32.totalorder %s33, 1
      %p114 = por %p112, %p113
      %p115 = scmp.ne.s32.totalorder %s106, %s107
      %p116 = scmp.eq.s32.totalorder %s33, 0
      %p117 = por %p115, %p116
      %p118 = scmp.ne.s32.totalorder %s106, %s107
      %p119 = scmp.eq.s32.totalorder %s34, 1
      %p120 = por %p118, %p119
      %p122 = scmp.ne.s32.totalorder %s107, %s121
      %p123 = scmp.eq.s32.totalorder %s34, 0
      %p124 = por %p122, %p123
      %s126 = sadd.s32 %s125, 1
      %p129 = scmp.eq.s32.totalorder %s28, 1
      %p130 = scmp.ne.s32.totalorder %s125, %s127
      %p131 = scmp.eq.s32.totalorder %s28, 0
      %p132 = por %p130, %p131
      %p133 = scmp.ne.s32.totalorder %s125, %s127
      %p134 = scmp.eq.s32.totalorder %s33, 1
      %p135 = por %p133, %p134
      %p136 = scmp.ne.s32.totalorder %s127, %s128
      %p137 = scmp.eq.s32.totalorder %s33, 0
      %p138 = por %p136, %p137
      %p139 = scmp.ne.s32.totalorder %s127, %s128
      %p140 = scmp.eq.s32.totalorder %s34, 1
      %p141 = por %p139, %p140
      %p143 = scmp.ne.s32.totalorder %s128, %s142
      %p144 = scmp.eq.s32.totalorder %s34, 0
      %p145 = por %p143, %p144
      %s147 = sadd.s32 %s146, 1
      %p150 = scmp.eq.s32.totalorder %s28, 1
      %p151 = scmp.ne.s32.totalorder %s146, %s148
      %p152 = scmp.eq.s32.totalorder %s28, 0
      %p153 = por %p151, %p152
      %p154 = scmp.ne.s32.totalorder %s146, %s148
      %p155 = scmp.eq.s32.totalorder %s33, 1
      %p156 = por %p154, %p155
      %p157 = scmp.ne.s32.totalorder %s148, %s149
      %p158 = scmp.eq.s32.totalorder %s33, 0
      %p159 = por %p157, %p158
      %p160 = scmp.ne.s32.totalorder %s148, %s149
      %p161 = scmp.eq.s32.totalorder %s34, 1
      %p162 = por %p160, %p161
      %p164 = scmp.ne.s32.totalorder %s149, %s163
      %p165 = scmp.eq.s32.totalorder %s34, 0
      %p166 = por %p164, %p165
      %s168 = sadd.s32 %s167, 1
      %p171 = scmp.eq.s32.totalorder %s28, 1
      %p172 = scmp.ne.s32.totalorder %s167, %s169
      %p173 = scmp.eq.s32.totalorder %s28, 0
      %p174 = por %p172, %p173
      %p175 = scmp.ne.s32.totalorder %s167, %s169
      %p176 = scmp.eq.s32.totalorder %s33, 1
      %p177 = por %p175, %p176
      %p178 = scmp.ne.s32.totalorder %s169, %s170
      %p179 = scmp.eq.s32.totalorder %s33, 0
      %p180 = por %p178, %p179
      %p181 = scmp.ne.s32.totalorder %s169, %s170
      %p182 = scmp.eq.s32.totalorder %s34, 1
      %p183 = por %p181, %p182
      %p185 = scmp.ne.s32.totalorder %s170, %s184
      %p186 = scmp.eq.s32.totalorder %s34, 0
      %p187 = por %p185, %p186
      %s189 = sadd.s32 %s188, 1
      %p192 = scmp.eq.s32.totalorder %s28, 1
      %p193 = scmp.ne.s32.totalorder %s188, %s190
      %p194 = scmp.eq.s32.totalorder %s28, 0
      %p195 = por %p193, %p194
      %p196 = scmp.ne.s32.totalorder %s188, %s190
      %p197 = scmp.eq.s32.totalorder %s33, 1
      %p198 = por %p196, %p197
      %p199 = scmp.ne.s32.totalorder %s190, %s191
      %p200 = scmp.eq.s32.totalorder %s33, 0
      %p201 = por %p199, %p200
      %p202 = scmp.ne.s32.totalorder %s190, %s191
      %p203 = scmp.eq.s32.totalorder %s34, 1
      %p204 = por %p202, %p203
      %p206 = scmp.ne.s32.totalorder %s191, %s205
      %p207 = scmp.eq.s32.totalorder %s34, 0
      %p208 = por %p206, %p207
      %s210 = sadd.s32 %s209, 1
      %p213 = scmp.eq.s32.totalorder %s28, 1
      %p214 = scmp.ne.s32.totalorder %s209, %s211
      %p215 = scmp.eq.s32.totalorder %s28, 0
      %p216 = por %p214, %p215
      %p217 = scmp.ne.s32.totalorder %s209, %s211
      %p218 = scmp.eq.s32.totalorder %s33, 1
      %p219 = por %p217, %p218
      %p220 = scmp.ne.s32.totalorder %s211, %s212
      %p221 = scmp.eq.s32.totalorder %s33, 0
      %p222 = por %p220, %p221
      %p223 = scmp.ne.s32.totalorder %s211, %s212
      %p224 = scmp.eq.s32.totalorder %s34, 1
      %p225 = por %p223, %p224
      %p227 = scmp.ne.s32.totalorder %s212, %s226
      %p228 = scmp.eq.s32.totalorder %s34, 0
      %p229 = por %p227, %p228
      %s231 = sadd.s32 %s230, 1
      %p234 = scmp.eq.s32.totalorder %s28, 1
      %p235 = scmp.ne.s32.totalorder %s230, %s232
      %p236 = scmp.eq.s32.totalorder %s28, 0
      %p237 = por %p235, %p236
      %p238 = scmp.ne.s32.totalorder %s230, %s232
      %p239 = scmp.eq.s32.totalorder %s33, 1
      %p240 = por %p238, %p239
      %p241 = scmp.ne.s32.totalorder %s232, %s233
      %p242 = scmp.eq.s32.totalorder %s33, 0
      %p243 = por %p241, %p242
      %p244 = scmp.ne.s32.totalorder %s232, %s233
      %p245 = scmp.eq.s32.totalorder %s34, 1
      %p246 = por %p244, %p245
      %p248 = scmp.ne.s32.totalorder %s233, %s247
      %p249 = scmp.eq.s32.totalorder %s34, 0
      %p250 = por %p248, %p249
      %s252 = sadd.s32 %s251, 1
      %p255 = scmp.eq.s32.totalorder %s28, 1
      %p256 = scmp.ne.s32.totalorder %s251, %s253
      %p257 = scmp.eq.s32.totalorder %s28, 0
      %p258 = por %p256, %p257
      %p259 = scmp.ne.s32.totalorder %s251, %s253
      %p260 = scmp.eq.s32.totalorder %s33, 1
      %p261 = por %p259, %p260
      %p262 = scmp.ne.s32.totalorder %s253, %s254
      %p263 = scmp.eq.s32.totalorder %s33, 0
      %p264 = por %p262, %p263
      %p265 = scmp.ne.s32.totalorder %s253, %s254
      %p266 = scmp.eq.s32.totalorder %s34, 1
      %p267 = por %p265, %p266
      %p269 = scmp.ne.s32.totalorder %s254, %s268
      %p270 = scmp.eq.s32.totalorder %s34, 0
      %p271 = por %p269, %p270
      %s273 = sadd.s32 %s272, 1
      %p276 = scmp.eq.s32.totalorder %s28, 1
      %p277 = scmp.ne.s32.totalorder %s272, %s274
      %p278 = scmp.eq.s32.totalorder %s28, 0
      %p279 = por %p277, %p278
      %p280 = scmp.ne.s32.totalorder %s272, %s274
      %p281 = scmp.eq.s32.totalorder %s33, 1
      %p282 = por %p280, %p281
      %p283 = scmp.ne.s32.totalorder %s274, %s275
      %p284 = scmp.eq.s32.totalorder %s33, 0
      %p285 = por %p283, %p284
      %p286 = scmp.ne.s32.totalorder %s274, %s275
      %p287 = scmp.eq.s32.totalorder %s34, 1
      %p288 = por %p286, %p287
      %p290 = scmp.ne.s32.totalorder %s275, %s289
      %p291 = scmp.eq.s32.totalorder %s34, 0
      %p292 = por %p290, %p291
      %s294 = sadd.s32 %s293, 1
      %p297 = scmp.eq.s32.totalorder %s28, 1
      %p298 = scmp.ne.s32.totalorder %s293, %s295
      %p299 = scmp.eq.s32.totalorder %s28, 0
      %p300 = por %p298, %p299
      %p301 = scmp.ne.s32.totalorder %s293, %s295
      %p302 = scmp.eq.s32.totalorder %s33, 1
      %p303 = por %p301, %p302
      %p304 = scmp.ne.s32.totalorder %s295, %s296
      %p305 = scmp.eq.s32.totalorder %s33, 0
      %p306 = por %p304, %p305
      %p307 = scmp.ne.s32.totalorder %s295, %s296
      %p308 = scmp.eq.s32.totalorder %s34, 1
      %p309 = por %p307, %p308
      %p311 = scmp.ne.s32.totalorder %s296, %s310
      %p312 = scmp.eq.s32.totalorder %s34, 0
      %p313 = por %p311, %p312
      %s315 = sadd.s32 %s314, 1
      %p318 = scmp.eq.s32.totalorder %s28, 1
      %p319 = scmp.ne.s32.totalorder %s314, %s316
      %p320 = scmp.eq.s32.totalorder %s28, 0
      %p321 = por %p319, %p320
      %p322 = scmp.ne.s32.totalorder %s314, %s316
      %p323 = scmp.eq.s32.totalorder %s33, 1
      %p324 = por %p322, %p323
      %p325 = scmp.ne.s32.totalorder %s316, %s317
      %p326 = scmp.eq.s32.totalorder %s33, 0
      %p327 = por %p325, %p326
      %p328 = scmp.ne.s32.totalorder %s316, %s317
      %p329 = scmp.eq.s32.totalorder %s34, 1
      %p330 = por %p328, %p329
      %p332 = scmp.ne.s32.totalorder %s317, %s331
      %p333 = scmp.eq.s32.totalorder %s34, 0
      %p334 = por %p332, %p333
      %s336 = sadd.s32 %s335, 1
      %p339 = scmp.eq.s32.totalorder %s28, 1
      %p340 = scmp.ne.s32.totalorder %s335, %s337
      %p341 = scmp.eq.s32.totalorder %s28, 0
      %p342 = por %p340, %p341
      %p343 = scmp.ne.s32.totalorder %s335, %s337
      %p344 = scmp.eq.s32.totalorder %s33, 1
      %p345 = por %p343, %p344
      %p346 = scmp.ne.s32.totalorder %s337, %s338
      %p347 = scmp.eq.s32.totalorder %s33, 0
      %p348 = por %p346, %p347
      %p349 = scmp.ne.s32.totalorder %s337, %s338
      %p350 = scmp.eq.s32.totalorder %s34, 1
      %p351 = por %p349, %p350
      %p353 = scmp.ne.s32.totalorder %s338, %s352
      %p354 = scmp.eq.s32.totalorder %s34, 0
      %p355 = por %p353, %p354
      %s357 = sadd.s32 %s356, 1
      %p360 = scmp.eq.s32.totalorder %s28, 1
      %p361 = scmp.ne.s32.totalorder %s356, %s358
      %p362 = scmp.eq.s32.totalorder %s28, 0
      %p363 = por %p361, %p362
      %p364 = scmp.ne.s32.totalorder %s356, %s358
      %p365 = scmp.eq.s32.totalorder %s33, 1
      %p366 = por %p364, %p365
      %p367 = scmp.ne.s32.totalorder %s358, %s359
      %p368 = scmp.eq.s32.totalorder %s33, 0
      %p369 = por %p367, %p368
      %p370 = scmp.ne.s32.totalorder %s358, %s359
      %p371 = scmp.eq.s32.totalorder %s34, 1
      %p372 = por %p370, %p371
      %p374 = scmp.ne.s32.totalorder %s359, %s373
      %p375 = scmp.eq.s32.totalorder %s34, 0
      %p376 = por %p374, %p375
      %s378 = sadd.s32 %s377, 1
      %p381 = scmp.eq.s32.totalorder %s28, 1
      %p382 = scmp.ne.s32.totalorder %s377, %s379
      %p383 = scmp.eq.s32.totalorder %s28, 0
      %p384 = por %p382, %p383
      %p385 = scmp.ne.s32.totalorder %s377, %s379
      %p386 = scmp.eq.s32.totalorder %s33, 1
      %p387 = por %p385, %p386
      %p388 = scmp.ne.s32.totalorder %s379, %s380
      %p389 = scmp.eq.s32.totalorder %s33, 0
      %p390 = por %p388, %p389
      %p391 = scmp.ne.s32.totalorder %s379, %s380
      %p392 = scmp.eq.s32.totalorder %s34, 1
      %p393 = por %p391, %p392
      %p395 = scmp.ne.s32.totalorder %s380, %s394
      %p396 = scmp.eq.s32.totalorder %s34, 0
      %p397 = por %p395, %p396
      %s399 = sadd.s32 %s398, 1
      %p402 = scmp.eq.s32.totalorder %s28, 1
      %p403 = scmp.ne.s32.totalorder %s398, %s400
      %p404 = scmp.eq.s32.totalorder %s28, 0
      %p405 = por %p403, %p404
      %p406 = scmp.ne.s32.totalorder %s398, %s400
      %p407 = scmp.eq.s32.totalorder %s33, 1
      %p408 = por %p406, %p407
      %p409 = scmp.ne.s32.totalorder %s400, %s401
      %p410 = scmp.eq.s32.totalorder %s33, 0
      %p411 = por %p409, %p410
      %p412 = scmp.ne.s32.totalorder %s400, %s401
      %p413 = scmp.eq.s32.totalorder %s34, 1
      %p414 = por %p412, %p413
      %p416 = scmp.ne.s32.totalorder %s401, %s415
      %p417 = scmp.eq.s32.totalorder %s34, 0
      %p418 = por %p416, %p417
      %s420 = sadd.s32 %s419, 1
      %p423 = scmp.eq.s32.totalorder %s28, 1
      %p424 = scmp.ne.s32.totalorder %s419, %s421
      %p425 = scmp.eq.s32.totalorder %s28, 0
      %p426 = por %p424, %p425
      %p427 = scmp.ne.s32.totalorder %s419, %s421
      %p428 = scmp.eq.s32.totalorder %s33, 1
      %p429 = por %p427, %p428
      %p430 = scmp.ne.s32.totalorder %s421, %s422
      %p431 = scmp.eq.s32.totalorder %s33, 0
      %p432 = por %p430, %p431
      %p433 = scmp.ne.s32.totalorder %s421, %s422
      %p434 = scmp.eq.s32.totalorder %s34, 1
      %p435 = por %p433, %p434
      %p437 = scmp.ne.s32.totalorder %s422, %s436
      %p438 = scmp.eq.s32.totalorder %s34, 0
      %p439 = por %p437, %p438
      %s440 = ssub.s32 %s28, %s35
      %p441 = scmp.eq.s32.totalorder %s440, 0
      %s443 = sadd.s32 %s442, 1
      %s444 = scalar_select %p441, %s442, %s443
      %p447 = pneg %p441
      %p448 = scmp.eq.s32.totalorder %s28, 1
      %p449 = por %p447, %p448
      %p450 = scmp.ne.s32.totalorder %s442, %s445
      %p451 = scmp.eq.s32.totalorder %s28, 0
      %p452 = por %p450, %p451
      %p453 = scmp.ne.s32.totalorder %s442, %s445
      %p454 = scmp.eq.s32.totalorder %s33, 1
      %p455 = por %p453, %p454
      %p456 = scmp.ne.s32.totalorder %s445, %s446
      %p457 = scmp.eq.s32.totalorder %s33, 0
      %p458 = por %p456, %p457
      %p459 = scmp.ne.s32.totalorder %s445, %s446
      %p460 = scmp.eq.s32.totalorder %s34, 1
      %p461 = por %p459, %p460
      %p463 = scmp.ne.s32.totalorder %s446, %s462
      %p464 = scmp.eq.s32.totalorder %s34, 0
      %p465 = por %p463, %p464
      %p466 = scmp.le.s32.totalorder 1, %s28
      %p467 = scmp.lt.s32.totalorder %s28, 3
      %p468 = pnand %p466, %p467
      %p469 = pneg %p468
      // Predicated region
      $region9: #{tinyvgg_forward.1} parent=5 // pred_check
        _
      $region10: #{tinyvgg_forward.1} parent=5 // pred_check_branch
        %471 = sbr.rel (%p468) target = $region12
      $region11: #{tinyvgg_forward.1} parent=5 // pred_region
        %s472 = ssub.s32 %s28, 1
        // Predicated region
        $region13: #{tinyvgg_forward.1} parent=11 // pred_check
          %p473 = pneg %p75
        $region14: #{tinyvgg_forward.1} parent=11 // pred_check_branch
          %475 = sbr.rel (%p473) target = $region16
        $region15: #{tinyvgg_forward.1} parent=11 // pred_region
          _
        $region16: #{tinyvgg_forward.1} parent=11 // pred_fallthru
          _
        // Predicated region
        $region17: #{tinyvgg_forward.1} parent=11 // pred_check
          %p476 = pneg %p96
        $region18: #{tinyvgg_forward.1} parent=11 // pred_check_branch
          %478 = sbr.rel (%p476) target = $region20
        $region19: #{tinyvgg_forward.1} parent=11 // pred_region
          _
        $region20: #{tinyvgg_forward.1} parent=11 // pred_fallthru
          _
        // Predicated region
        $region21: #{tinyvgg_forward.1} parent=11 // pred_check
          %p479 = pneg %p117
        $region22: #{tinyvgg_forward.1} parent=11 // pred_check_branch
          %481 = sbr.rel (%p479) target = $region24
        $region23: #{tinyvgg_forward.1} parent=11 // pred_region
          _
        $region24: #{tinyvgg_forward.1} parent=11 // pred_fallthru
          _
        // Predicated region
        $region25: #{tinyvgg_forward.1} parent=11 // pred_check
          %p482 = pneg %p138
        $region26: #{tinyvgg_forward.1} parent=11 // pred_check_branch
          %484 = sbr.rel (%p482) target = $region28
        $region27: #{tinyvgg_forward.1} parent=11 // pred_region
          _
        $region28: #{tinyvgg_forward.1} parent=11 // pred_fallthru
          _
        // Predicated region
        $region29: #{tinyvgg_forward.1} parent=11 // pred_check
          %p485 = pneg %p159
        $region30: #{tinyvgg_forward.1} parent=11 // pred_check_branch
          %487 = sbr.rel (%p485) target = $region32
        $region31: #{tinyvgg_forward.1} parent=11 // pred_region
          _
        $region32: #{tinyvgg_forward.1} parent=11 // pred_fallthru
          _
        // Predicated region
        $region33: #{tinyvgg_forward.1} parent=11 // pred_check
          %p488 = pneg %p180
        $region34: #{tinyvgg_forward.1} parent=11 // pred_check_branch
          %490 = sbr.rel (%p488) target = $region36
        $region35: #{tinyvgg_forward.1} parent=11 // pred_region
          _
        $region36: #{tinyvgg_forward.1} parent=11 // pred_fallthru
          _
        // Predicated region
        $region37: #{tinyvgg_forward.1} parent=11 // pred_check
          %p491 = pneg %p201
        $region38: #{tinyvgg_forward.1} parent=11 // pred_check_branch
          %493 = sbr.rel (%p491) target = $region40
        $region39: #{tinyvgg_forward.1} parent=11 // pred_region
          _
        $region40: #{tinyvgg_forward.1} parent=11 // pred_fallthru
          _
        // Predicated region
        $region41: #{tinyvgg_forward.1} parent=11 // pred_check
          %p494 = pneg %p222
        $region42: #{tinyvgg_forward.1} parent=11 // pred_check_branch
          %496 = sbr.rel (%p494) target = $region44
        $region43: #{tinyvgg_forward.1} parent=11 // pred_region
          _
        $region44: #{tinyvgg_forward.1} parent=11 // pred_fallthru
          _
        // Predicated region
        $region45: #{tinyvgg_forward.1} parent=11 // pred_check
          %p497 = pneg %p243
        $region46: #{tinyvgg_forward.1} parent=11 // pred_check_branch
          %499 = sbr.rel (%p497) target = $region48
        $region47: #{tinyvgg_forward.1} parent=11 // pred_region
          _
        $region48: #{tinyvgg_forward.1} parent=11 // pred_fallthru
          _
        // Predicated region
        $region49: #{tinyvgg_forward.1} parent=11 // pred_check
          %p500 = pneg %p264
        $region50: #{tinyvgg_forward.1} parent=11 // pred_check_branch
          %502 = sbr.rel (%p500) target = $region52
        $region51: #{tinyvgg_forward.1} parent=11 // pred_region
          _
        $region52: #{tinyvgg_forward.1} parent=11 // pred_fallthru
          _
        // Predicated region
        $region53: #{tinyvgg_forward.1} parent=11 // pred_check
          %p503 = pneg %p285
        $region54: #{tinyvgg_forward.1} parent=11 // pred_check_branch
          %505 = sbr.rel (%p503) target = $region56
        $region55: #{tinyvgg_forward.1} parent=11 // pred_region
          _
        $region56: #{tinyvgg_forward.1} parent=11 // pred_fallthru
          _
        // Predicated region
        $region57: #{tinyvgg_forward.1} parent=11 // pred_check
          %p506 = pneg %p306
        $region58: #{tinyvgg_forward.1} parent=11 // pred_check_branch
          %508 = sbr.rel (%p506) target = $region60
        $region59: #{tinyvgg_forward.1} parent=11 // pred_region
          _
        $region60: #{tinyvgg_forward.1} parent=11 // pred_fallthru
          _
        // Predicated region
        $region61: #{tinyvgg_forward.1} parent=11 // pred_check
          %p509 = pneg %p327
        $region62: #{tinyvgg_forward.1} parent=11 // pred_check_branch
          %511 = sbr.rel (%p509) target = $region64
        $region63: #{tinyvgg_forward.1} parent=11 // pred_region
          _
        $region64: #{tinyvgg_forward.1} parent=11 // pred_fallthru
          _
        // Predicated region
        $region65: #{tinyvgg_forward.1} parent=11 // pred_check
          %p512 = pneg %p348
        $region66: #{tinyvgg_forward.1} parent=11 // pred_check_branch
          %514 = sbr.rel (%p512) target = $region68
        $region67: #{tinyvgg_forward.1} parent=11 // pred_region
          _
        $region68: #{tinyvgg_forward.1} parent=11 // pred_fallthru
          _
        // Predicated region
        $region69: #{tinyvgg_forward.1} parent=11 // pred_check
          %p515 = pneg %p369
        $region70: #{tinyvgg_forward.1} parent=11 // pred_check_branch
          %517 = sbr.rel (%p515) target = $region72
        $region71: #{tinyvgg_forward.1} parent=11 // pred_region
          _
        $region72: #{tinyvgg_forward.1} parent=11 // pred_fallthru
          _
        // Predicated region
        $region73: #{tinyvgg_forward.1} parent=11 // pred_check
          %p518 = pneg %p390
        $region74: #{tinyvgg_forward.1} parent=11 // pred_check_branch
          %520 = sbr.rel (%p518) target = $region76
        $region75: #{tinyvgg_forward.1} parent=11 // pred_region
          _
        $region76: #{tinyvgg_forward.1} parent=11 // pred_fallthru
          _
        // Predicated region
        $region77: #{tinyvgg_forward.1} parent=11 // pred_check
          %p521 = pneg %p411
        $region78: #{tinyvgg_forward.1} parent=11 // pred_check_branch
          %523 = sbr.rel (%p521) target = $region80
        $region79: #{tinyvgg_forward.1} parent=11 // pred_region
          _
        $region80: #{tinyvgg_forward.1} parent=11 // pred_fallthru
          _
        // Predicated region
        $region81: #{tinyvgg_forward.1} parent=11 // pred_check
          %p524 = pneg %p432
        $region82: #{tinyvgg_forward.1} parent=11 // pred_check_branch
          %526 = sbr.rel (%p524) target = $region84
        $region83: #{tinyvgg_forward.1} parent=11 // pred_region
          _
        $region84: #{tinyvgg_forward.1} parent=11 // pred_fallthru
          _
      $region12: #{tinyvgg_forward.1} parent=5 // pred_fallthru
        _
      %p527 = scmp.lt.s32.totalorder %s28, 2
      // Predicated region
      $region85: #{tinyvgg_forward.1} parent=5 // pred_check
        %p528 = pneg %p527
      $region86: #{tinyvgg_forward.1} parent=5 // pred_check_branch
        %530 = sbr.rel (%p528) target = $region88
      $region87: #{tinyvgg_forward.1} parent=5 // pred_region
        // Predicated region
        $region89: #{tinyvgg_forward.1} parent=87 // pred_check
          %p531 = pneg %p48
        $region90: #{tinyvgg_forward.1} parent=87 // pred_check_branch
          %533 = sbr.rel (%p531) target = $region92
        $region91: #{tinyvgg_forward.1} parent=87 // pred_region
          %p534 = scmp.lt.s32.totalorder %s28, 1
          %s535 = scalar_select %p534, %s28, 1
          %s536 = smul.addr %s535, 30
          %s537 = smul.addr %s536, 8
          %s538 = scalar_lea.vmem %s0, %s537
        $region92: #{tinyvgg_forward.1} parent=87 // pred_fallthru
          _
      $region88: #{tinyvgg_forward.1} parent=5 // pred_fallthru
        _
      %p539 = scmp.le.s32.totalorder 1, %s28
      %p540 = scmp.lt.s32.totalorder %s28, 3
      %p541 = pnand %p539, %p540
      %p542 = pneg %p541
      // Predicated region
      $region93: #{tinyvgg_forward.1} parent=5 // pred_check
        _
      $region94: #{tinyvgg_forward.1} parent=5 // pred_check_branch
        %544 = sbr.rel (%p541) target = $region96
      $region95: #{tinyvgg_forward.1} parent=5 // pred_region
        %s545 = ssub.s32 %s28, 1
        %p546 = scmp.lt.s32.totalorder %s33, 1
        %s547 = scalar_select %p546, %s33, 1
        %s548 = smul.addr %s547, 30
        %s549 = smul.addr %s548, 8
        %s550 = scalar_lea.vmem %s0, %s549
        %p551 = pneg %p54
        %p552 = pneg %p51
        %p553 = pneg %p75
        %p554 = pneg %p72
        %p555 = pneg %p96
        %p556 = pneg %p93
        %p557 = pneg %p117
        %p558 = pneg %p114
        %p559 = pneg %p138
        %p560 = pneg %p135
        %p561 = pneg %p159
        %p562 = pneg %p156
        %p563 = pneg %p180
        %p564 = pneg %p177
        %p565 = pneg %p201
        %p566 = pneg %p198
        %p567 = pneg %p222
        %p568 = pneg %p219
        %p569 = pneg %p243
        %p570 = pneg %p240
        %p571 = pneg %p264
        %p572 = pneg %p261
        %p573 = pneg %p285
        %p574 = pneg %p282
        %p575 = pneg %p306
        %p576 = pneg %p303
        %p577 = pneg %p327
        %p578 = pneg %p324
        %p579 = pneg %p348
        %p580 = pneg %p345
        %p581 = pneg %p369
        %p582 = pneg %p366
        %p583 = pneg %p390
        %p584 = pneg %p387
        %p585 = pneg %p411
        %p586 = pneg %p408
        %p587 = pneg %p432
        %p588 = pneg %p429
        %p589 = pneg %p458
        %p590 = pneg %p455
        %s591 = sand.u32 %s445, 1
        %s592 = scalar_lea.sflag [#allocation9], %s591
        %s593 = sand.u32 %s445, 1
        %s594 = smul.addr %s593, 8
        %s595 = scalar_lea.vmem [#allocation8], %s594
        %p596 = scmp.lt.s32.totalorder %s33, 1
        %s597 = scalar_select %p596, %s33, 1
        %s598 = smul.addr %s597, 30
        %s599 = smul.addr %s598, 8
        %s600 = scalar_lea.vmem %s0, %s599
        %v602 = vld [vmem:[%s600] sm:$0xff]
        %v603 = vld [vmem:[%s600 + $0x8] sm:$0xff]
        %v604 = vld [vmem:[%s600 + $0x10] sm:$0xff]
        %v605 = vld [vmem:[%s600 + $0x18] sm:$0xff]
        %v606 = vld [vmem:[%s600 + $0x20] sm:$0xff]
        %v607 = vld [vmem:[%s600 + $0x28] sm:$0xff]
        %v608 = vld [vmem:[%s600 + $0x30] sm:$0xff]
        %v609 = vld [vmem:[%s600 + $0x38] sm:$0xff]
        %v610 = vld [vmem:[%s600 + $0x40] sm:$0xff]
        %v611 = vld [vmem:[%s600 + $0x48] sm:$0xff]
        %v612 = vld [vmem:[%s600 + $0x50] sm:$0xff]
        %v613 = vld [vmem:[%s600 + $0x58] sm:$0xff]
        %v614 = vld [vmem:[%s600 + $0x60] sm:$0xff]
        %v615 = vld [vmem:[%s600 + $0x68] sm:$0xff]
        %v616 = vld [vmem:[%s600 + $0x70] sm:$0xff]
        %v617 = vld [vmem:[%s600 + $0x78] sm:$0xff]
        %v618 = vld [vmem:[%s600 + $0x80] sm:$0xff]
        %v619 = vld [vmem:[%s600 + $0x88] sm:$0xff]
        %v620 = vld [vmem:[%s600 + $0x90] sm:$0xff]
        %v621 = vld [vmem:[%s600 + $0x98] sm:$0xff]
        %v622 = vld [vmem:[%s600 + $0xa0] sm:$0xff]
        %v623 = vld [vmem:[%s600 + $0xa8] sm:$0xff]
        %v624 = vld [vmem:[%s600 + $0xb0] sm:$0xff]
        %v625 = vld [vmem:[%s600 + $0xb8] sm:$0xff]
        %v626 = vld [vmem:[%s600 + $0xc0] sm:$0xff]
        %v627 = vld [vmem:[%s600 + $0xc8] sm:$0xff]
        %v628 = vld [vmem:[%s600 + $0xd0] sm:$0xff]
        %v629 = vld [vmem:[%s600 + $0xd8] sm:$0xff]
        %v630 = vld [vmem:[%s600 + $0xe0] sm:$0xff]
        %v631 = vld [vmem:[%s600 + $0xe8] sm:$0x3f]
        %v632 = vpack.c.bf16 %v603, %v602
        %v633 = vpack.c.bf16 %v605, %v604
        %v634 = vpack.c.bf16 %v607, %v606
        %v635 = vpack.c.bf16 %v609, %v608
        %v636 = vpack.c.bf16 %v611, %v610
        %v637 = vpack.c.bf16 %v613, %v612
        %v638 = vpack.c.bf16 %v615, %v614
        %v639 = vpack.c.bf16 %v617, %v616
        %v640 = vpack.c.bf16 %v619, %v618
        %v641 = vpack.c.bf16 %v621, %v620
        %v642 = vpack.c.bf16 %v623, %v622
        %v643 = vpack.c.bf16 %v625, %v624
        %v644 = vpack.c.bf16 %v627, %v626
        %v645 = vpack.c.bf16 %v629, %v628
        %v646 = vpack.c.bf16 %v631, %v630
        %v647 = vld [vmem:[%s1] sm:$0xff]
        %v648 = vld [vmem:[%s1 + $0x8] sm:$0xff]
        %v649 = vld [vmem:[%s1 + $0x10] sm:$0xff]
        %v650 = vld [vmem:[%s1 + $0x18] sm:$0x33]
        %v651 = vld [vmem:[%s600 + $0x1] sm:$0xff]
        %v652 = vld [vmem:[%s600 + $0x9] sm:$0xff]
        %v653 = vld [vmem:[%s600 + $0x11] sm:$0xff]
        %v654 = vld [vmem:[%s600 + $0x19] sm:$0xff]
        %v655 = vld [vmem:[%s600 + $0x21] sm:$0xff]
        %v656 = vld [vmem:[%s600 + $0x29] sm:$0xff]
        %v657 = vld [vmem:[%s600 + $0x31] sm:$0xff]
        %v658 = vld [vmem:[%s600 + $0x39] sm:$0xff]
        %v659 = vld [vmem:[%s600 + $0x41] sm:$0xff]
        %v660 = vld [vmem:[%s600 + $0x49] sm:$0xff]
        %v661 = vld [vmem:[%s600 + $0x51] sm:$0xff]
        %v662 = vld [vmem:[%s600 + $0x59] sm:$0xff]
        %v663 = vld [vmem:[%s600 + $0x61] sm:$0xff]
        %v664 = vld [vmem:[%s600 + $0x69] sm:$0xff]
        %v665 = vld [vmem:[%s600 + $0x71] sm:$0xff]
        %v666 = vld [vmem:[%s600 + $0x79] sm:$0xff]
        %v667 = vld [vmem:[%s600 + $0x81] sm:$0xff]
        %v668 = vld [vmem:[%s600 + $0x89] sm:$0xff]
        %v669 = vld [vmem:[%s600 + $0x91] sm:$0xff]
        %v670 = vld [vmem:[%s600 + $0x99] sm:$0xff]
        %v671 = vld [vmem:[%s600 + $0xa1] sm:$0xff]
        %v672 = vld [vmem:[%s600 + $0xa9] sm:$0xff]
        %v673 = vld [vmem:[%s600 + $0xb1] sm:$0xff]
        %v674 = vld [vmem:[%s600 + $0xb9] sm:$0xff]
        %v675 = vld [vmem:[%s600 + $0xc1] sm:$0xff]
        %v676 = vld [vmem:[%s600 + $0xc9] sm:$0xff]
        %v677 = vld [vmem:[%s600 + $0xd1] sm:$0xff]
        %v678 = vld [vmem:[%s600 + $0xd9] sm:$0xff]
        %v679 = vld [vmem:[%s600 + $0xe1] sm:$0xff]
        %v680 = vld [vmem:[%s600 + $0xe9] sm:$0x3f]
        %v681 = vpack.c.bf16 %v652, %v651
        %v682 = vpack.c.bf16 %v654, %v653
        %v683 = vpack.c.bf16 %v656, %v655
        %v684 = vpack.c.bf16 %v658, %v657
        %v685 = vpack.c.bf16 %v660, %v659
        %v686 = vpack.c.bf16 %v662, %v661
        %v687 = vpack.c.bf16 %v664, %v663
        %v688 = vpack.c.bf16 %v666, %v665
        %v689 = vpack.c.bf16 %v668, %v667
        %v690 = vpack.c.bf16 %v670, %v669
        %v691 = vpack.c.bf16 %v672, %v671
        %v692 = vpack.c.bf16 %v674, %v673
        %v693 = vpack.c.bf16 %v676, %v675
        %v694 = vpack.c.bf16 %v678, %v677
        %v695 = vpack.c.bf16 %v680, %v679
        %s696 = scalar_lea.vmem %s1, 32
        %v697 = vld [vmem:[%s696] sm:$0xff]
        %v698 = vld [vmem:[%s696 + $0x8] sm:$0xff]
        %v699 = vld [vmem:[%s696 + $0x10] sm:$0xff]
        %v700 = vld [vmem:[%s696 + $0x18] sm:$0x33]
        %v705 = vunpack.c.l.b16 %v697
        %v706 = vunpack.c.h.b16 %v697
        %v707 = vunpack.c.l.b16 %v698
        %v708 = vunpack.c.h.b16 %v698
        %v709 = vunpack.c.l.b16 %v699
        %v710 = vunpack.c.h.b16 %v699
        %v711 = vunpack.c.l.b16 %v700
        %v712 = vunpack.c.h.b16 %v700
        %v713 = vpack.c.b16 %v707, %v705
        %v714 = vpack.c.b16 %v708, %v706
        %v715 = vpack.c.b16 %v711, %v709
        %v716 = vpack.c.b16 %v712, %v710
        %vm719 = vcmask 228352
        %v721 = vsel %vm719, %v681, 0
        %v724 = vsel %vm719, %v682, 0
        %v727 = vsel %vm719, %v683, 0
        %v730 = vsel %vm719, %v684, 0
        %v733 = vsel %vm719, %v685, 0
        %v736 = vsel %vm719, %v686, 0
        %v739 = vsel %vm719, %v687, 0
        %v742 = vsel %vm719, %v688, 0
        %v745 = vsel %vm719, %v689, 0
        %v748 = vsel %vm719, %v690, 0
        %v751 = vsel %vm719, %v691, 0
        %v754 = vsel %vm719, %v692, 0
        %v757 = vsel %vm719, %v693, 0
        %v760 = vsel %vm719, %v694, 0
        %v763 = vsel %vm719, %v695, 0
        %vm765 = vcmask 1045504
        %v767 = vsel %vm765, %v715, 0
        %v770 = vsel %vm765, %v716, 0
        %772 = vmatprep.subr.bf16.mxu0 %v714
        %773 = vmatpush1.bf16.msra.mxu0 %v713
        %774 = vmatprep.subr.bf16.mxu0 %v770
        %775 = vmatpush1.bf16.msra.mxu0 %v767
        %776 = vmatprep.subr.bf16.mxu0 0
        %777 = vmatpush1.bf16.msra.mxu0 0
        %778 = vmatprep.subr.bf16.mxu0 0
        %779 = vmatpush1.bf16.msra.mxu0 0
        %780 = vmatprep.subr.bf16.mxu0 0
        %781 = vmatpush1.bf16.msra.mxu0 0
        %782 = vmatprep.subr.bf16.mxu0 0
        %783 = vmatpush1.bf16.msra.mxu0 0
        %784 = vmatprep.subr.bf16.mxu0 0
        %785 = vmatpush1.bf16.msra.mxu0 0
        %786 = vmatprep.subr.bf16.mxu0 0
        %787 = vmatpush1.bf16.msra.mxu0 0
        %788 = vmatprep.subr.bf16.mxu0 0
        %789 = vmatpush1.bf16.msra.mxu0 0
        %790 = vmatprep.subr.bf16.mxu0 0
        %791 = vmatpush1.bf16.msra.mxu0 0
        %792 = vmatprep.subr.bf16.mxu0 0
        %793 = vmatpush1.bf16.msra.mxu0 0
        %794 = vmatprep.subr.bf16.mxu0 0
        %795 = vmatpush1.bf16.msra.mxu0 0
        %796 = vmatprep.subr.bf16.mxu0 0
        %797 = vmatpush1.bf16.msra.mxu0 0
        %798 = vmatprep.subr.bf16.mxu0 0
        %799 = vmatpush1.bf16.msra.mxu0 0
        %800 = vmatprep.subr.bf16.mxu0 0
        %801 = vmatpush1.bf16.msra.mxu0 0
        %802 = vmatprep.subr.bf16.mxu0 0
        %803 = vmatpush1.bf16.msra.mxu0 0
        %804 = vmatprep.mubr.bf16.mxu0 0
        %805 = vmatmul.mubr.bf16.gmra.mrb[0].mxu0 %v721
        %v806 = vpop.f32.mrb[0].mxu0
        %v807 = vadd.f32 0.0, %v806
        %v808 = vpop.f32.mrb[0].mxu0
        %v809 = vadd.f32 0.0, %v808
        %v810 = vpop.f32.mrb[0].mxu0
        %v811 = vadd.f32 0.0, %v810
        %v812 = vpop.f32.mrb[0].mxu0
        %v813 = vadd.f32 0.0, %v812
        %814 = vmatprep.mubr.bf16.mxu0 0
        %815 = vmatmul.mubr.bf16.gmra.mrb[0].mxu0 %v724
        %v816 = vpop.f32.mrb[0].mxu0
        %v817 = vadd.f32 0.0, %v816
        %v818 = vpop.f32.mrb[0].mxu0
        %v819 = vadd.f32 0.0, %v818
        %v820 = vpop.f32.mrb[0].mxu0
        %v821 = vadd.f32 0.0, %v820
        %v822 = vpop.f32.mrb[0].mxu0
        %v823 = vadd.f32 0.0, %v822
        %824 = vmatprep.mubr.bf16.mxu0 0
        %825 = vmatmul.mubr.bf16.gmra.mrb[0].mxu0 %v727
        %v826 = vpop.f32.mrb[0].mxu0
        %v827 = vadd.f32 0.0, %v826
        %v828 = vpop.f32.mrb[0].mxu0
        %v829 = vadd.f32 0.0, %v828
        %v830 = vpop.f32.mrb[0].mxu0
        %v831 = vadd.f32 0.0, %v830
        %v832 = vpop.f32.mrb[0].mxu0
        %v833 = vadd.f32 0.0, %v832
        %834 = vmatprep.mubr.bf16.mxu0 0
        %835 = vmatmul.mubr.bf16.gmra.mrb[0].mxu0 %v730
        %v836 = vpop.f32.mrb[0].mxu0
        %v837 = vadd.f32 0.0, %v836
        %v838 = vpop.f32.mrb[0].mxu0
        %v839 = vadd.f32 0.0, %v838
        %v840 = vpop.f32.mrb[0].mxu0
        %v841 = vadd.f32 0.0, %v840
        %v842 = vpop.f32.mrb[0].mxu0
        %v843 = vadd.f32 0.0, %v842
        %844 = vmatprep.mubr.bf16.mxu0 0
        %845 = vmatmul.mubr.bf16.gmra.mrb[0].mxu0 %v733
        %v846 = vpop.f32.mrb[0].mxu0
        %v847 = vadd.f32 0.0, %v846
        %v848 = vpop.f32.mrb[0].mxu0
        %v849 = vadd.f32 0.0, %v848
        %v850 = vpop.f32.mrb[0].mxu0
        %v851 = vadd.f32 0.0, %v850
        %v852 = vpop.f32.mrb[0].mxu0
        %v853 = vadd.f32 0.0, %v852
        %854 = vmatprep.mubr.bf16.mxu0 0
        %855 = vmatmul.mubr.bf16.gmra.mrb[0].mxu0 %v736
        %v856 = vpop.f32.mrb[0].mxu0
        %v857 = vadd.f32 0.0, %v856
        %v858 = vpop.f32.mrb[0].mxu0
        %v859 = vadd.f32 0.0, %v858
        %v860 = vpop.f32.mrb[0].mxu0
        %v861 = vadd.f32 0.0, %v860
        %v862 = vpop.f32.mrb[0].mxu0
        %v863 = vadd.f32 0.0, %v862
        %864 = vmatprep.mubr.bf16.mxu0 0
        %865 = vmatmul.mubr.bf16.gmra.mrb[0].mxu0 %v739
        %v866 = vpop.f32.mrb[0].mxu0
        %v867 = vadd.f32 0.0, %v866
        %v868 = vpop.f32.mrb[0].mxu0
        %v869 = vadd.f32 0.0, %v868
        %v870 = vpop.f32.mrb[0].mxu0
        %v871 = vadd.f32 0.0, %v870
        %v872 = vpop.f32.mrb[0].mxu0
        %v873 = vadd.f32 0.0, %v872
        %874 = vmatprep.mubr.bf16.mxu0 0
        %875 = vmatmul.mubr.bf16.gmra.mrb[0].mxu0 %v742
        %v876 = vpop.f32.mrb[0].mxu0
        %v877 = vadd.f32 0.0, %v876
        %v878 = vpop.f32.mrb[0].mxu0
        %v879 = vadd.f32 0.0, %v878
        %v880 = vpop.f32.mrb[0].mxu0
        %v881 = vadd.f32 0.0, %v880
        %v882 = vpop.f32.mrb[0].mxu0
        %v883 = vadd.f32 0.0, %v882
        %884 = vmatprep.mubr.bf16.mxu0 0
        %885 = vmatmul.mubr.bf16.gmra.mrb[0].mxu0 %v745
        %v886 = vpop.f32.mrb[0].mxu0
        %v887 = vadd.f32 0.0, %v886
        %v888 = vpop.f32.mrb[0].mxu0
        %v889 = vadd.f32 0.0, %v888
        %v890 = vpop.f32.mrb[0].mxu0
        %v891 = vadd.f32 0.0, %v890
        %v892 = vpop.f32.mrb[0].mxu0
        %v893 = vadd.f32 0.0, %v892
        %894 = vmatprep.mubr.bf16.mxu0 0
        %895 = vmatmul.mubr.bf16.gmra.mrb[0].mxu0 %v748
        %v896 = vpop.f32.mrb[0].mxu0
        %v897 = vadd.f32 0.0, %v896
        %v898 = vpop.f32.mrb[0].mxu0
        %v899 = vadd.f32 0.0, %v898
        %v900 = vpop.f32.mrb[0].mxu0
        %v901 = vadd.f32 0.0, %v900
        %v902 = vpop.f32.mrb[0].mxu0
        %v903 = vadd.f32 0.0, %v902
        %904 = vmatprep.mubr.bf16.mxu0 0
        %905 = vmatmul.mubr.bf16.gmra.mrb[0].mxu0 %v751
        %v906 = vpop.f32.mrb[0].mxu0
        %v907 = vadd.f32 0.0, %v906
        %v908 = vpop.f32.mrb[0].mxu0
        %v909 = vadd.f32 0.0, %v908
        %v910 = vpop.f32.mrb[0].mxu0
        %v911 = vadd.f32 0.0, %v910
        %v912 = vpop.f32.mrb[0].mxu0
        %v913 = vadd.f32 0.0, %v912
        %914 = vmatprep.mubr.bf16.mxu0 0
        %915 = vmatmul.mubr.bf16.gmra.mrb[0].mxu0 %v754
        %v916 = vpop.f32.mrb[0].mxu0
        %v917 = vadd.f32 0.0, %v916
        %v918 = vpop.f32.mrb[0].mxu0
        %v919 = vadd.f32 0.0, %v918
        %v920 = vpop.f32.mrb[0].mxu0
        %v921 = vadd.f32 0.0, %v920
        %v922 = vpop.f32.mrb[0].mxu0
        %v923 = vadd.f32 0.0, %v922
        %924 = vmatprep.mubr.bf16.mxu0 0
        %925 = vmatmul.mubr.bf16.gmra.mrb[0].mxu0 %v757
        %v926 = vpop.f32.mrb[0].mxu0
        %v927 = vadd.f32 0.0, %v926
        %v928 = vpop.f32.mrb[0].mxu0
        %v929 = vadd.f32 0.0, %v928
        %v930 = vpop.f32.mrb[0].mxu0
        %v931 = vadd.f32 0.0, %v930
        %v932 = vpop.f32.mrb[0].mxu0
        %v933 = vadd.f32 0.0, %v932
        %934 = vmatprep.mubr.bf16.mxu0 0
        %935 = vmatmul.mubr.bf16.gmra.mrb[0].mxu0 %v760
        %v936 = vpop.f32.mrb[0].mxu0
        %v937 = vadd.f32 0.0, %v936
        %v938 = vpop.f32.mrb[0].mxu0
        %v939 = vadd.f32 0.0, %v938
        %v940 = vpop.f32.mrb[0].mxu0
        %v941 = vadd.f32 0.0, %v940
        %v942 = vpop.f32.mrb[0].mxu0
        %v943 = vadd.f32 0.0, %v942
        %944 = vmatprep.mubr.bf16.mxu0 0
        %945 = vmatmul.mubr.bf16.gmra.mrb[0].mxu0 %v763
        %v946 = vpop.f32.mrb[0].mxu0
        %v947 = vadd.f32 0.0, %v946
        %v948 = vpop.f32.mrb[0].mxu0
        %v949 = vadd.f32 0.0, %v948
        %v950 = vpop.f32.mrb[0].mxu0
        %v951 = vadd.f32 0.0, %v950
        %v952 = vpop.f32.mrb[0].mxu0
        %v953 = vadd.f32 0.0, %v952
        %954 = vdwg.mxu0
        %v959 = vunpack.c.l.b16 %v647
        %v960 = vunpack.c.h.b16 %v647
        %v961 = vunpack.c.l.b16 %v648
        %v962 = vunpack.c.h.b16 %v648
        %v963 = vunpack.c.l.b16 %v649
        %v964 = vunpack.c.h.b16 %v649
        %v965 = vunpack.c.l.b16 %v650
        %v966 = vunpack.c.h.b16 %v650
        %v967 = vpack.c.b16 %v961, %v959
        %v968 = vpack.c.b16 %v962, %v960
        %v969 = vpack.c.b16 %v965, %v963
        %v970 = vpack.c.b16 %v966, %v964
        %v974 = vsel %vm719, %v632, 0
        %v977 = vsel %vm719, %v633, 0
        %v980 = vsel %vm719, %v634, 0
        %v983 = vsel %vm719, %v635, 0
        %v986 = vsel %vm719, %v636, 0
        %v989 = vsel %vm719, %v637, 0
        %v992 = vsel %vm719, %v638, 0
        %v995 = vsel %vm719, %v639, 0
        %v998 = vsel %vm719, %v640, 0
        %v1001 = vsel %vm719, %v641, 0
        %v1004 = vsel %vm719, %v642, 0
        %v1007 = vsel %vm719, %v643, 0
        %v1010 = vsel %vm719, %v644, 0
        %v1013 = vsel %vm719, %v645, 0
        %v1016 = vsel %vm719, %v646, 0
        %v1019 = vsel %vm765, %v969, 0
        %v1022 = vsel %vm765, %v970, 0
        %1024 = vmatprep.subr.bf16.mxu0 %v968
        %1025 = vmatpush1.bf16.msra.mxu0 %v967
        %1026 = vmatprep.subr.bf16.mxu0 %v1022
        %1027 = vmatpush1.bf16.msra.mxu0 %v1019
        %1028 = vmatprep.subr.bf16.mxu0 0
        %1029 = vmatpush1.bf16.msra.mxu0 0
        %1030 = vmatprep.subr.bf16.mxu0 0
        %1031 = vmatpush1.bf16.msra.mxu0 0
        %1032 = vmatprep.subr.bf16.mxu0 0
        %1033 = vmatpush1.bf16.msra.mxu0 0
        %1034 = vmatprep.subr.bf16.mxu0 0
        %1035 = vmatpush1.bf16.msra.mxu0 0
        %1036 = vmatprep.subr.bf16.mxu0 0
        %1037 = vmatpush1.bf16.msra.mxu0 0
        %1038 = vmatprep.subr.bf16.mxu0 0
        %1039 = vmatpush1.bf16.msra.mxu0 0
        %1040 = vmatprep.subr.bf16.mxu0 0
        %1041 = vmatpush1.bf16.msra.mxu0 0
        %1042 = vmatprep.subr.bf16.mxu0 0
        %1043 = vmatpush1.bf16.msra.mxu0 0
        %1044 = vmatprep.subr.bf16.mxu0 0
        %1045 = vmatpush1.bf16.msra.mxu0 0
        %1046 = vmatprep.subr.bf16.mxu0 0
        %1047 = vmatpush1.bf16.msra.mxu0 0
        %1048 = vmatprep.subr.bf16.mxu0 0
        %1049 = vmatpush1.bf16.msra.mxu0 0
        %1050 = vmatprep.subr.bf16.mxu0 0
        %1051 = vmatpush1.bf16.msra.mxu0 0
        %1052 = vmatprep.subr.bf16.mxu0 0
        %1053 = vmatpush1.bf16.msra.mxu0 0
        %1054 = vmatprep.subr.bf16.mxu0 0
        %1055 = vmatpush1.bf16.msra.mxu0 0
        %1056 = vmatprep.mubr.bf16.mxu0 0
        %1057 = vmatmul.mubr.bf16.gmra.mrb[0].mxu0 %v974
        %v1058 = vpop.f32.mrb[0].mxu0
        %v1059 = vadd.f32 %v807, %v1058
        %v1060 = vpop.f32.mrb[0].mxu0
        %v1061 = vadd.f32 %v809, %v1060
        %v1062 = vpop.f32.mrb[0].mxu0
        %v1063 = vadd.f32 %v811, %v1062
        %v1064 = vpop.f32.mrb[0].mxu0
        %v1065 = vadd.f32 %v813, %v1064
        %1066 = vmatprep.mubr.bf16.mxu0 0
        %1067 = vmatmul.mubr.bf16.gmra.mrb[0].mxu0 %v977
        %v1068 = vpop.f32.mrb[0].mxu0
        %v1069 = vadd.f32 %v817, %v1068
        %v1070 = vpop.f32.mrb[0].mxu0
        %v1071 = vadd.f32 %v819, %v1070
        %v1072 = vpop.f32.mrb[0].mxu0
        %v1073 = vadd.f32 %v821, %v1072
        %v1074 = vpop.f32.mrb[0].mxu0
        %v1075 = vadd.f32 %v823, %v1074
        %1076 = vmatprep.mubr.bf16.mxu0 0
        %1077 = vmatmul.mubr.bf16.gmra.mrb[0].mxu0 %v980
        %v1078 = vpop.f32.mrb[0].mxu0
        %v1079 = vadd.f32 %v827, %v1078
        %v1080 = vpop.f32.mrb[0].mxu0
        %v1081 = vadd.f32 %v829, %v1080
        %v1082 = vpop.f32.mrb[0].mxu0
        %v1083 = vadd.f32 %v831, %v1082
        %v1084 = vpop.f32.mrb[0].mxu0
        %v1085 = vadd.f32 %v833, %v1084
        %1086 = vmatprep.mubr.bf16.mxu0 0
        %1087 = vmatmul.mubr.bf16.gmra.mrb[0].mxu0 %v983
        %v1088 = vpop.f32.mrb[0].mxu0
        %v1089 = vadd.f32 %v837, %v1088
        %v1090 = vpop.f32.mrb[0].mxu0
        %v1091 = vadd.f32 %v839, %v1090
        %v1092 = vpop.f32.mrb[0].mxu0
        %v1093 = vadd.f32 %v841, %v1092
        %v1094 = vpop.f32.mrb[0].mxu0
        %v1095 = vadd.f32 %v843, %v1094
        %1096 = vmatprep.mubr.bf16.mxu0 0
        %1097 = vmatmul.mubr.bf16.gmra.mrb[0].mxu0 %v986
        %v1098 = vpop.f32.mrb[0].mxu0
        %v1099 = vadd.f32 %v847, %v1098
        %v1100 = vpop.f32.mrb[0].mxu0
        %v1101 = vadd.f32 %v849, %v1100
        %v1102 = vpop.f32.mrb[0].mxu0
        %v1103 = vadd.f32 %v851, %v1102
        %v1104 = vpop.f32.mrb[0].mxu0
        %v1105 = vadd.f32 %v853, %v1104
        %1106 = vmatprep.mubr.bf16.mxu0 0
        %1107 = vmatmul.mubr.bf16.gmra.mrb[0].mxu0 %v989
        %v1108 = vpop.f32.mrb[0].mxu0
        %v1109 = vadd.f32 %v857, %v1108
        %v1110 = vpop.f32.mrb[0].mxu0
        %v1111 = vadd.f32 %v859, %v1110
        %v1112 = vpop.f32.mrb[0].mxu0
        %v1113 = vadd.f32 %v861, %v1112
        %v1114 = vpop.f32.mrb[0].mxu0
        %v1115 = vadd.f32 %v863, %v1114
        %1116 = vmatprep.mubr.bf16.mxu0 0
        %1117 = vmatmul.mubr.bf16.gmra.mrb[0].mxu0 %v992
        %v1118 = vpop.f32.mrb[0].mxu0
        %v1119 = vadd.f32 %v867, %v1118
        %v1120 = vpop.f32.mrb[0].mxu0
        %v1121 = vadd.f32 %v869, %v1120
        %v1122 = vpop.f32.mrb[0].mxu0
        %v1123 = vadd.f32 %v871, %v1122
        %v1124 = vpop.f32.mrb[0].mxu0
        %v1125 = vadd.f32 %v873, %v1124
        %1126 = vmatprep.mubr.bf16.mxu0 0
        %1127 = vmatmul.mubr.bf16.gmra.mrb[0].mxu0 %v995
        %v1128 = vpop.f32.mrb[0].mxu0
        %v1129 = vadd.f32 %v877, %v1128
        %v1130 = vpop.f32.mrb[0].mxu0
        %v1131 = vadd.f32 %v879, %v1130
        %v1132 = vpop.f32.mrb[0].mxu0
        %v1133 = vadd.f32 %v881, %v1132
        %v1134 = vpop.f32.mrb[0].mxu0
        %v1135 = vadd.f32 %v883, %v1134
        %1136 = vmatprep.mubr.bf16.mxu0 0
        %1137 = vmatmul.mubr.bf16.gmra.mrb[0].mxu0 %v998
        %v1138 = vpop.f32.mrb[0].mxu0
        %v1139 = vadd.f32 %v887, %v1138
        %v1140 = vpop.f32.mrb[0].mxu0
        %v1141 = vadd.f32 %v889, %v1140
        %v1142 = vpop.f32.mrb[0].mxu0
        %v1143 = vadd.f32 %v891, %v1142
        %v1144 = vpop.f32.mrb[0].mxu0
        %v1145 = vadd.f32 %v893, %v1144
        %1146 = vmatprep.mubr.bf16.mxu0 0
        %1147 = vmatmul.mubr.bf16.gmra.mrb[0].mxu0 %v1001
        %v1148 = vpop.f32.mrb[0].mxu0
        %v1149 = vadd.f32 %v897, %v1148
        %v1150 = vpop.f32.mrb[0].mxu0
        %v1151 = vadd.f32 %v899, %v1150
        %v1152 = vpop.f32.mrb[0].mxu0
        %v1153 = vadd.f32 %v901, %v1152
        %v1154 = vpop.f32.mrb[0].mxu0
        %v1155 = vadd.f32 %v903, %v1154
        %1156 = vmatprep.mubr.bf16.mxu0 0
        %1157 = vmatmul.mubr.bf16.gmra.mrb[0].mxu0 %v1004
        %v1158 = vpop.f32.mrb[0].mxu0
        %v1159 = vadd.f32 %v907, %v1158
        %v1160 = vpop.f32.mrb[0].mxu0
        %v1161 = vadd.f32 %v909, %v1160
        %v1162 = vpop.f32.mrb[0].mxu0
        %v1163 = vadd.f32 %v911, %v1162
        %v1164 = vpop.f32.mrb[0].mxu0
        %v1165 = vadd.f32 %v913, %v1164
        %1166 = vmatprep.mubr.bf16.mxu0 0
        %1167 = vmatmul.mubr.bf16.gmra.mrb[0].mxu0 %v1007
        %v1168 = vpop.f32.mrb[0].mxu0
        %v1169 = vadd.f32 %v917, %v1168
        %v1170 = vpop.f32.mrb[0].mxu0
        %v1171 = vadd.f32 %v919, %v1170
        %v1172 = vpop.f32.mrb[0].mxu0
        %v1173 = vadd.f32 %v921, %v1172
        %v1174 = vpop.f32.mrb[0].mxu0
        %v1175 = vadd.f32 %v923, %v1174
        %1176 = vmatprep.mubr.bf16.mxu0 0
        %1177 = vmatmul.mubr.bf16.gmra.mrb[0].mxu0 %v1010
        %v1178 = vpop.f32.mrb[0].mxu0
        %v1179 = vadd.f32 %v927, %v1178
        %v1180 = vpop.f32.mrb[0].mxu0
        %v1181 = vadd.f32 %v929, %v1180
        %v1182 = vpop.f32.mrb[0].mxu0
        %v1183 = vadd.f32 %v931, %v1182
        %v1184 = vpop.f32.mrb[0].mxu0
        %v1185 = vadd.f32 %v933, %v1184
        %1186 = vmatprep.mubr.bf16.mxu0 0
        %1187 = vmatmul.mubr.bf16.gmra.mrb[0].mxu0 %v1013
        %v1188 = vpop.f32.mrb[0].mxu0
        %v1189 = vadd.f32 %v937, %v1188
        %v1190 = vpop.f32.mrb[0].mxu0
        %v1191 = vadd.f32 %v939, %v1190
        %v1192 = vpop.f32.mrb[0].mxu0
        %v1193 = vadd.f32 %v941, %v1192
        %v1194 = vpop.f32.mrb[0].mxu0
        %v1195 = vadd.f32 %v943, %v1194
        %1196 = vmatprep.mubr.bf16.mxu0 0
        %1197 = vmatmul.mubr.bf16.gmra.mrb[0].mxu0 %v1016
        %v1198 = vpop.f32.mrb[0].mxu0
        %v1199 = vadd.f32 %v947, %v1198
        %v1200 = vpop.f32.mrb[0].mxu0
        %v1201 = vadd.f32 %v949, %v1200
        %v1202 = vpop.f32.mrb[0].mxu0
        %v1203 = vadd.f32 %v951, %v1202
        %v1204 = vpop.f32.mrb[0].mxu0
        %v1205 = vadd.f32 %v953, %v1204
        %1206 = vdwg.mxu0
        %v1207 = vld [vmem:[%s600 + $0x2] sm:$0xff]
        %v1208 = vld [vmem:[%s600 + $0xa] sm:$0xff]
        %v1209 = vld [vmem:[%s600 + $0x12] sm:$0xff]
        %v1210 = vld [vmem:[%s600 + $0x1a] sm:$0xff]
        %v1211 = vld [vmem:[%s600 + $0x22] sm:$0xff]
        %v1212 = vld [vmem:[%s600 + $0x2a] sm:$0xff]
        %v1213 = vld [vmem:[%s600 + $0x32] sm:$0xff]
        %v1214 = vld [vmem:[%s600 + $0x3a] sm:$0xff]
        %v1215 = vld [vmem:[%s600 + $0x42] sm:$0xff]
        %v1216 = vld [vmem:[%s600 + $0x4a] sm:$0xff]
        %v1217 = vld [vmem:[%s600 + $0x52] sm:$0xff]
        %v1218 = vld [vmem:[%s600 + $0x5a] sm:$0xff]
        %v1219 = vld [vmem:[%s600 + $0x62] sm:$0xff]
        %v1220 = vld [vmem:[%s600 + $0x6a] sm:$0xff]
        %v1221 = vld [vmem:[%s600 + $0x72] sm:$0xff]
        %v1222 = vld [vmem:[%s600 + $0x7a] sm:$0xff]
        %v1223 = vld [vmem:[%s600 + $0x82] sm:$0xff]
        %v1224 = vld [vmem:[%s600 + $0x8a] sm:$0xff]
        %v1225 = vld [vmem:[%s600 + $0x92] sm:$0xff]
        %v1226 = vld [vmem:[%s600 + $0x9a] sm:$0xff]
        %v1227 = vld [vmem:[%s600 + $0xa2] sm:$0xff]
        %v1228 = vld [vmem:[%s600 + $0xaa] sm:$0xff]
        %v1229 = vld [vmem:[%s600 + $0xb2] sm:$0xff]
        %v1230 = vld [vmem:[%s600 + $0xba] sm:$0xff]
        %v1231 = vld [vmem:[%s600 + $0xc2] sm:$0xff]
        %v1232 = vld [vmem:[%s600 + $0xca] sm:$0xff]
        %v1233 = vld [vmem:[%s600 + $0xd2] sm:$0xff]
        %v1234 = vld [vmem:[%s600 + $0xda] sm:$0xff]
        %v1235 = vld [vmem:[%s600 + $0xe2] sm:$0xff]
        %v1236 = vld [vmem:[%s600 + $0xea] sm:$0x3f]
        %v1237 = vpack.c.bf16 %v1208, %v1207
        %v1238 = vpack.c.bf16 %v1210, %v1209
        %v1239 = vpack.c.bf16 %v1212, %v1211
        %v1240 = vpack.c.bf16 %v1214, %v1213
        %v1241 = vpack.c.bf16 %v1216, %v1215
        %v1242 = vpack.c.bf16 %v1218, %v1217
        %v1243 = vpack.c.bf16 %v1220, %v1219
        %v1244 = vpack.c.bf16 %v1222, %v1221
        %v1245 = vpack.c.bf16 %v1224, %v1223
        %v1246 = vpack.c.bf16 %v1226, %v1225
        %v1247 = vpack.c.bf16 %v1228, %v1227
        %v1248 = vpack.c.bf16 %v1230, %v1229
        %v1249 = vpack.c.bf16 %v1232, %v1231
        %v1250 = vpack.c.bf16 %v1234, %v1233
        %v1251 = vpack.c.bf16 %v1236, %v1235
        %s1252 = scalar_lea.vmem %s1, 64
        %v1253 = vld [vmem:[%s1252] sm:$0xff]
        %v1254 = vld [vmem:[%s1252 + $0x8] sm:$0xff]
        %v1255 = vld [vmem:[%s1252 + $0x10] sm:$0xff]
        %v1256 = vld [vmem:[%s1252 + $0x18] sm:$0x33]
        %v1261 = vunpack.c.l.b16 %v1253
        %v1262 = vunpack.c.h.b16 %v1253
        %v1263 = vunpack.c.l.b16 %v1254
        %v1264 = vunpack.c.h.b16 %v1254
        %v1265 = vunpack.c.l.b16 %v1255
        %v1266 = vunpack.c.h.b16 %v1255
        %v1267 = vunpack.c.l.b16 %v1256
        %v1268 = vunpack.c.h.b16 %v1256
        %v1269 = vpack.c.b16 %v1263, %v1261
        %v1270 = vpack.c.b16 %v1264, %v1262
        %v1271 = vpack.c.b16 %v1267, %v1265
        %v1272 = vpack.c.b16 %v1268, %v1266
        %v1276 = vsel %vm719, %v1237, 0
        %v1279 = vsel %vm719, %v1238, 0
        %v1282 = vsel %vm719, %v1239, 0
        %v1285 = vsel %vm719, %v1240, 0
        %v1288 = vsel %vm719, %v1241, 0
        %v1291 = vsel %vm719, %v1242, 0
        %v1294 = vsel %vm719, %v1243, 0
        %v1297 = vsel %vm719, %v1244, 0
        %v1300 = vsel %vm719, %v1245, 0
        %v1303 = vsel %vm719, %v1246, 0
        %v1306 = vsel %vm719, %v1247, 0
        %v1309 = vsel %vm719, %v1248, 0
        %v1312 = vsel %vm719, %v1249, 0
        %v1315 = vsel %vm719, %v1250, 0
        %v1318 = vsel %vm719, %v1251, 0
        %v1321 = vsel %vm765, %v1271, 0
        %v1324 = vsel %vm765, %v1272, 0
        %1326 = vmatprep.subr.bf16.mxu0 %v1270
        %1327 = vmatpush1.bf16.msra.mxu0 %v1269
        %1328 = vmatprep.subr.bf16.mxu0 %v1324
        %1329 = vmatpush1.bf16.msra.mxu0 %v1321
        %1330 = vmatprep.subr.bf16.mxu0 0
        %1331 = vmatpush1.bf16.msra.mxu0 0
        %1332 = vmatprep.subr.bf16.mxu0 0
        %1333 = vmatpush1.bf16.msra.mxu0 0
        %1334 = vmatprep.subr.bf16.mxu0 0
        %1335 = vmatpush1.bf16.msra.mxu0 0
        %1336 = vmatprep.subr.bf16.mxu0 0
        %1337 = vmatpush1.bf16.msra.mxu0 0
        %1338 = vmatprep.subr.bf16.mxu0 0
        %1339 = vmatpush1.bf16.msra.mxu0 0
        %1340 = vmatprep.subr.bf16.mxu0 0
        %1341 = vmatpush1.bf16.msra.mxu0 0
        %1342 = vmatprep.subr.bf16.mxu0 0
        %1343 = vmatpush1.bf16.msra.mxu0 0
        %1344 = vmatprep.subr.bf16.mxu0 0
        %1345 = vmatpush1.bf16.msra.mxu0 0
        %1346 = vmatprep.subr.bf16.mxu0 0
        %1347 = vmatpush1.bf16.msra.mxu0 0
        %1348 = vmatprep.subr.bf16.mxu0 0
        %1349 = vmatpush1.bf16.msra.mxu0 0
        %1350 = vmatprep.subr.bf16.mxu0 0
        %1351 = vmatpush1.bf16.msra.mxu0 0
        %1352 = vmatprep.subr.bf16.mxu0 0
        %1353 = vmatpush1.bf16.msra.mxu0 0
        %1354 = vmatprep.subr.bf16.mxu0 0
        %1355 = vmatpush1.bf16.msra.mxu0 0
        %1356 = vmatprep.subr.bf16.mxu0 0
        %1357 = vmatpush1.bf16.msra.mxu0 0
        %1358 = vmatprep.mubr.bf16.mxu0 0
        %1359 = vmatmul.mubr.bf16.gmra.mrb[0].mxu0 %v1276
        %v1360 = vpop.f32.mrb[0].mxu0
        %v1361 = vadd.f32 0.0, %v1360
        %v1362 = vpop.f32.mrb[0].mxu0
        %v1363 = vadd.f32 0.0, %v1362
        %v1364 = vpop.f32.mrb[0].mxu0
        %v1365 = vadd.f32 0.0, %v1364
        %v1366 = vpop.f32.mrb[0].mxu0
        %v1367 = vadd.f32 0.0, %v1366
        %1368 = vmatprep.mubr.bf16.mxu0 0
        %1369 = vmatmul.mubr.bf16.gmra.mrb[0].mxu0 %v1279
        %v1370 = vpop.f32.mrb[0].mxu0
        %v1371 = vadd.f32 0.0, %v1370
        %v1372 = vpop.f32.mrb[0].mxu0
        %v1373 = vadd.f32 0.0, %v1372
        %v1374 = vpop.f32.mrb[0].mxu0
        %v1375 = vadd.f32 0.0, %v1374
        %v1376 = vpop.f32.mrb[0].mxu0
        %v1377 = vadd.f32 0.0, %v1376
        %1378 = vmatprep.mubr.bf16.mxu0 0
        %1379 = vmatmul.mubr.bf16.gmra.mrb[0].mxu0 %v1282
        %v1380 = vpop.f32.mrb[0].mxu0
        %v1381 = vadd.f32 0.0, %v1380
        %v1382 = vpop.f32.mrb[0].mxu0
        %v1383 = vadd.f32 0.0, %v1382
        %v1384 = vpop.f32.mrb[0].mxu0
        %v1385 = vadd.f32 0.0, %v1384
        %v1386 = vpop.f32.mrb[0].mxu0
        %v1387 = vadd.f32 0.0, %v1386
        %1388 = vmatprep.mubr.bf16.mxu0 0
        %1389 = vmatmul.mubr.bf16.gmra.mrb[0].mxu0 %v1285
        %v1390 = vpop.f32.mrb[0].mxu0
        %v1391 = vadd.f32 0.0, %v1390
        %v1392 = vpop.f32.mrb[0].mxu0
        %v1393 = vadd.f32 0.0, %v1392
        %v1394 = vpop.f32.mrb[0].mxu0
        %v1395 = vadd.f32 0.0, %v1394
        %v1396 = vpop.f32.mrb[0].mxu0
        %v1397 = vadd.f32 0.0, %v1396
        %1398 = vmatprep.mubr.bf16.mxu0 0
        %1399 = vmatmul.mubr.bf16.gmra.mrb[0].mxu0 %v1288
        %v1400 = vpop.f32.mrb[0].mxu0
        %v1401 = vadd.f32 0.0, %v1400
        %v1402 = vpop.f32.mrb[0].mxu0
        %v1403 = vadd.f32 0.0, %v1402
        %v1404 = vpop.f32.mrb[0].mxu0
        %v1405 = vadd.f32 0.0, %v1404
        %v1406 = vpop.f32.mrb[0].mxu0
        %v1407 = vadd.f32 0.0, %v1406
        %1408 = vmatprep.mubr.bf16.mxu0 0
        %1409 = vmatmul.mubr.bf16.gmra.mrb[0].mxu0 %v1291
        %v1410 = vpop.f32.mrb[0].mxu0
        %v1411 = vadd.f32 0.0, %v1410
        %v1412 = vpop.f32.mrb[0].mxu0
        %v1413 = vadd.f32 0.0, %v1412
        %v1414 = vpop.f32.mrb[0].mxu0
        %v1415 = vadd.f32 0.0, %v1414
        %v1416 = vpop.f32.mrb[0].mxu0
        %v1417 = vadd.f32 0.0, %v1416
        %1418 = vmatprep.mubr.bf16.mxu0 0
        %1419 = vmatmul.mubr.bf16.gmra.mrb[0].mxu0 %v1294
        %v1420 = vpop.f32.mrb[0].mxu0
        %v1421 = vadd.f32 0.0, %v1420
        %v1422 = vpop.f32.mrb[0].mxu0
        %v1423 = vadd.f32 0.0, %v1422
        %v1424 = vpop.f32.mrb[0].mxu0
        %v1425 = vadd.f32 0.0, %v1424
        %v1426 = vpop.f32.mrb[0].mxu0
        %v1427 = vadd.f32 0.0, %v1426
        %1428 = vmatprep.mubr.bf16.mxu0 0
        %1429 = vmatmul.mubr.bf16.gmra.mrb[0].mxu0 %v1297
        %v1430 = vpop.f32.mrb[0].mxu0
        %v1431 = vadd.f32 0.0, %v1430
        %v1432 = vpop.f32.mrb[0].mxu0
        %v1433 = vadd.f32 0.0, %v1432
        %v1434 = vpop.f32.mrb[0].mxu0
        %v1435 = vadd.f32 0.0, %v1434
        %v1436 = vpop.f32.mrb[0].mxu0
        %v1437 = vadd.f32 0.0, %v1436
        %1438 = vmatprep.mubr.bf16.mxu0 0
        %1439 = vmatmul.mubr.bf16.gmra.mrb[0].mxu0 %v1300
        %v1440 = vpop.f32.mrb[0].mxu0
        %v1441 = vadd.f32 0.0, %v1440
        %v1442 = vpop.f32.mrb[0].mxu0
        %v1443 = vadd.f32 0.0, %v1442
        %v1444 = vpop.f32.mrb[0].mxu0
        %v1445 = vadd.f32 0.0, %v1444
        %v1446 = vpop.f32.mrb[0].mxu0
        %v1447 = vadd.f32 0.0, %v1446
        %1448 = vmatprep.mubr.bf16.mxu0 0
        %1449 = vmatmul.mubr.bf16.gmra.mrb[0].mxu0 %v1303
        %v1450 = vpop.f32.mrb[0].mxu0
        %v1451 = vadd.f32 0.0, %v1450
        %v1452 = vpop.f32.mrb[0].mxu0
        %v1453 = vadd.f32 0.0, %v1452
        %v1454 = vpop.f32.mrb[0].mxu0
        %v1455 = vadd.f32 0.0, %v1454
        %v1456 = vpop.f32.mrb[0].mxu0
        %v1457 = vadd.f32 0.0, %v1456
        %1458 = vmatprep.mubr.bf16.mxu0 0
        %1459 = vmatmul.mubr.bf16.gmra.mrb[0].mxu0 %v1306
        %v1460 = vpop.f32.mrb[0].mxu0
        %v1461 = vadd.f32 0.0, %v1460
        %v1462 = vpop.f32.mrb[0].mxu0
        %v1463 = vadd.f32 0.0, %v1462
        %v1464 = vpop.f32.mrb[0].mxu0
        %v1465 = vadd.f32 0.0, %v1464
        %v1466 = vpop.f32.mrb[0].mxu0
        %v1467 = vadd.f32 0.0, %v1466
        %1468 = vmatprep.mubr.bf16.mxu0 0
        %1469 = vmatmul.mubr.bf16.gmra.mrb[0].mxu0 %v1309
        %v1470 = vpop.f32.mrb[0].mxu0
        %v1471 = vadd.f32 0.0, %v1470
        %v1472 = vpop.f32.mrb[0].mxu0
        %v1473 = vadd.f32 0.0, %v1472
        %v1474 = vpop.f32.mrb[0].mxu0
        %v1475 = vadd.f32 0.0, %v1474
        %v1476 = vpop.f32.mrb[0].mxu0
        %v1477 = vadd.f32 0.0, %v1476
        %1478 = vmatprep.mubr.bf16.mxu0 0
        %1479 = vmatmul.mubr.bf16.gmra.mrb[0].mxu0 %v1312
        %v1480 = vpop.f32.mrb[0].mxu0
        %v1481 = vadd.f32 0.0, %v1480
        %v1482 = vpop.f32.mrb[0].mxu0
        %v1483 = vadd.f32 0.0, %v1482
        %v1484 = vpop.f32.mrb[0].mxu0
        %v1485 = vadd.f32 0.0, %v1484
        %v1486 = vpop.f32.mrb[0].mxu0
        %v1487 = vadd.f32 0.0, %v1486
        %1488 = vmatprep.mubr.bf16.mxu0 0
        %1489 = vmatmul.mubr.bf16.gmra.mrb[0].mxu0 %v1315
        %v1490 = vpop.f32.mrb[0].mxu0
        %v1491 = vadd.f32 0.0, %v1490
        %v1492 = vpop.f32.mrb[0].mxu0
        %v1493 = vadd.f32 0.0, %v1492
        %v1494 = vpop.f32.mrb[0].mxu0
        %v1495 = vadd.f32 0.0, %v1494
        %v1496 = vpop.f32.mrb[0].mxu0
        %v1497 = vadd.f32 0.0, %v1496
        %1498 = vmatprep.mubr.bf16.mxu0 0
        %1499 = vmatmul.mubr.bf16.gmra.mrb[0].mxu0 %v1318
        %v1500 = vpop.f32.mrb[0].mxu0
        %v1501 = vadd.f32 0.0, %v1500
        %v1502 = vpop.f32.mrb[0].mxu0
        %v1503 = vadd.f32 0.0, %v1502
        %v1504 = vpop.f32.mrb[0].mxu0
        %v1505 = vadd.f32 0.0, %v1504
        %v1506 = vpop.f32.mrb[0].mxu0
        %v1507 = vadd.f32 0.0, %v1506
        %1508 = vdwg.mxu0
        %v1509 = vadd.f32 %v1059, %v1361
        %v1510 = vadd.f32 %v1061, %v1363
        %v1511 = vadd.f32 %v1063, %v1365
        %v1512 = vadd.f32 %v1065, %v1367
        %v1513 = vadd.f32 %v1069, %v1371
        %v1514 = vadd.f32 %v1071, %v1373
        %v1515 = vadd.f32 %v1073, %v1375
        %v1516 = vadd.f32 %v1075, %v1377
        %v1517 = vadd.f32 %v1079, %v1381
        %v1518 = vadd.f32 %v1081, %v1383
        %v1519 = vadd.f32 %v1083, %v1385
        %v1520 = vadd.f32 %v1085, %v1387
        %v1521 = vadd.f32 %v1089, %v1391
        %v1522 = vadd.f32 %v1091, %v1393
        %v1523 = vadd.f32 %v1093, %v1395
        %v1524 = vadd.f32 %v1095, %v1397
        %v1525 = vadd.f32 %v1099, %v1401
        %v1526 = vadd.f32 %v1101, %v1403
        %v1527 = vadd.f32 %v1103, %v1405
        %v1528 = vadd.f32 %v1105, %v1407
        %v1529 = vadd.f32 %v1109, %v1411
        %v1530 = vadd.f32 %v1111, %v1413
        %v1531 = vadd.f32 %v1113, %v1415
        %v1532 = vadd.f32 %v1115, %v1417
        %v1533 = vadd.f32 %v1119, %v1421
        %v1534 = vadd.f32 %v1121, %v1423
        %v1535 = vadd.f32 %v1123, %v1425
        %v1536 = vadd.f32 %v1125, %v1427
        %v1537 = vadd.f32 %v1129, %v1431
        %v1538 = vadd.f32 %v1131, %v1433
        %v1539 = vadd.f32 %v1133, %v1435
        %v1540 = vadd.f32 %v1135, %v1437
        %v1541 = vadd.f32 %v1139, %v1441
        %v1542 = vadd.f32 %v1141, %v1443
        %v1543 = vadd.f32 %v1143, %v1445
        %v1544 = vadd.f32 %v1145, %v1447
        %v1545 = vadd.f32 %v1149, %v1451
        %v1546 = vadd.f32 %v1151, %v1453
        %v1547 = vadd.f32 %v1153, %v1455
        %v1548 = vadd.f32 %v1155, %v1457
        %v1549 = vadd.f32 %v1159, %v1461
        %v1550 = vadd.f32 %v1161, %v1463
        %v1551 = vadd.f32 %v1163, %v1465
        %v1552 = vadd.f32 %v1165, %v1467
        %v1553 = vadd.f32 %v1169, %v1471
        %v1554 = vadd.f32 %v1171, %v1473
        %v1555 = vadd.f32 %v1173, %v1475
        %v1556 = vadd.f32 %v1175, %v1477
        %v1557 = vadd.f32 %v1179, %v1481
        %v1558 = vadd.f32 %v1181, %v1483
        %v1559 = vadd.f32 %v1183, %v1485
        %v1560 = vadd.f32 %v1185, %v1487
        %v1561 = vadd.f32 %v1189, %v1491
        %v1562 = vadd.f32 %v1191, %v1493
        %v1563 = vadd.f32 %v1193, %v1495
        %v1564 = vadd.f32 %v1195, %v1497
        %v1565 = vadd.f32 %v1199, %v1501
        %v1566 = vadd.f32 %v1201, %v1503
        %v1567 = vadd.f32 %v1203, %v1505
        %v1568 = vadd.f32 %v1205, %v1507
        %v1569 = vld [vmem:[%s2] sm:$0x3]
        %v1571 = vlaneseq
        %v1572 = vshrl.u32 %v1571, 7
        %v1573 = vsub.s32 0, %v1572
        %v1574 = vrot.slane %v1569, %v1573
        %v1575 = vlaneseq
        %v1576 = vshrl.u32 %v1575, 7
        %v1577 = vsub.s32 1, %v1576
        %v1578 = vrot.slane %v1569, %v1577
        %v1581 = vadd.f32 %v1509, %v1574
        %v1582 = vadd.f32 %v1510, %v1578
        %v1583 = vadd.f32 %v1511, %v1574
        %v1584 = vadd.f32 %v1512, %v1578
        %v1585 = vadd.f32 %v1513, %v1574
        %v1586 = vadd.f32 %v1514, %v1578
        %v1587 = vadd.f32 %v1515, %v1574
        %v1588 = vadd.f32 %v1516, %v1578
        %v1589 = vadd.f32 %v1517, %v1574
        %v1590 = vadd.f32 %v1518, %v1578
        %v1591 = vadd.f32 %v1519, %v1574
        %v1592 = vadd.f32 %v1520, %v1578
        %v1593 = vadd.f32 %v1521, %v1574
        %v1594 = vadd.f32 %v1522, %v1578
        %v1595 = vadd.f32 %v1523, %v1574
        %v1596 = vadd.f32 %v1524, %v1578
        %v1597 = vadd.f32 %v1525, %v1574
        %v1598 = vadd.f32 %v1526, %v1578
        %v1599 = vadd.f32 %v1527, %v1574
        %v1600 = vadd.f32 %v1528, %v1578
        %v1601 = vadd.f32 %v1529, %v1574
        %v1602 = vadd.f32 %v1530, %v1578
        %v1603 = vadd.f32 %v1531, %v1574
        %v1604 = vadd.f32 %v1532, %v1578
        %v1605 = vadd.f32 %v1533, %v1574
        %v1606 = vadd.f32 %v1534, %v1578
        %v1607 = vadd.f32 %v1535, %v1574
        %v1608 = vadd.f32 %v1536, %v1578
        %v1609 = vadd.f32 %v1537, %v1574
        %v1610 = vadd.f32 %v1538, %v1578
        %v1611 = vadd.f32 %v1539, %v1574
        %v1612 = vadd.f32 %v1540, %v1578
        %v1613 = vadd.f32 %v1541, %v1574
        %v1614 = vadd.f32 %v1542, %v1578
        %v1615 = vadd.f32 %v1543, %v1574
        %v1616 = vadd.f32 %v1544, %v1578
        %v1617 = vadd.f32 %v1545, %v1574
        %v1618 = vadd.f32 %v1546, %v1578
        %v1619 = vadd.f32 %v1547, %v1574
        %v1620 = vadd.f32 %v1548, %v1578
        %v1621 = vadd.f32 %v1549, %v1574
        %v1622 = vadd.f32 %v1550, %v1578
        %v1623 = vadd.f32 %v1551, %v1574
        %v1624 = vadd.f32 %v1552, %v1578
        %v1625 = vadd.f32 %v1553, %v1574
        %v1626 = vadd.f32 %v1554, %v1578
        %v1627 = vadd.f32 %v1555, %v1574
        %v1628 = vadd.f32 %v1556, %v1578
        %v1629 = vadd.f32 %v1557, %v1574
        %v1630 = vadd.f32 %v1558, %v1578
        %v1631 = vadd.f32 %v1559, %v1574
        %v1632 = vadd.f32 %v1560, %v1578
        %v1633 = vadd.f32 %v1561, %v1574
        %v1634 = vadd.f32 %v1562, %v1578
        %v1635 = vadd.f32 %v1563, %v1574
        %v1636 = vadd.f32 %v1564, %v1578
        %v1637 = vadd.f32 %v1565, %v1574
        %v1638 = vadd.f32 %v1566, %v1578
        %v1639 = vadd.f32 %v1567, %v1574
        %v1640 = vadd.f32 %v1568, %v1578
        %v1641 = vmax.f32 %v1581, 0.0
        %v1642 = vmax.f32 %v1582, 0.0
        %v1643 = vmax.f32 %v1583, 0.0
        %v1644 = vmax.f32 %v1584, 0.0
        %v1645 = vmax.f32 %v1585, 0.0
        %v1646 = vmax.f32 %v1586, 0.0
        %v1647 = vmax.f32 %v1587, 0.0
        %v1648 = vmax.f32 %v1588, 0.0
        %v1649 = vmax.f32 %v1589, 0.0
        %v1650 = vmax.f32 %v1590, 0.0
        %v1651 = vmax.f32 %v1591, 0.0
        %v1652 = vmax.f32 %v1592, 0.0
        %v1653 = vmax.f32 %v1593, 0.0
        %v1654 = vmax.f32 %v1594, 0.0
        %v1655 = vmax.f32 %v1595, 0.0
        %v1656 = vmax.f32 %v1596, 0.0
        %v1657 = vmax.f32 %v1597, 0.0
        %v1658 = vmax.f32 %v1598, 0.0
        %v1659 = vmax.f32 %v1599, 0.0
        %v1660 = vmax.f32 %v1600, 0.0
        %v1661 = vmax.f32 %v1601, 0.0
        %v1662 = vmax.f32 %v1602, 0.0
        %v1663 = vmax.f32 %v1603, 0.0
        %v1664 = vmax.f32 %v1604, 0.0
        %v1665 = vmax.f32 %v1605, 0.0
        %v1666 = vmax.f32 %v1606, 0.0
        %v1667 = vmax.f32 %v1607, 0.0
        %v1668 = vmax.f32 %v1608, 0.0
        %v1669 = vmax.f32 %v1609, 0.0
        %v1670 = vmax.f32 %v1610, 0.0
        %v1671 = vmax.f32 %v1611, 0.0
        %v1672 = vmax.f32 %v1612, 0.0
        %v1673 = vmax.f32 %v1613, 0.0
        %v1674 = vmax.f32 %v1614, 0.0
        %v1675 = vmax.f32 %v1615, 0.0
        %v1676 = vmax.f32 %v1616, 0.0
        %v1677 = vmax.f32 %v1617, 0.0
        %v1678 = vmax.f32 %v1618, 0.0
        %v1679 = vmax.f32 %v1619, 0.0
        %v1680 = vmax.f32 %v1620, 0.0
        %v1681 = vmax.f32 %v1621, 0.0
        %v1682 = vmax.f32 %v1622, 0.0
        %v1683 = vmax.f32 %v1623, 0.0
        %v1684 = vmax.f32 %v1624, 0.0
        %v1685 = vmax.f32 %v1625, 0.0
        %v1686 = vmax.f32 %v1626, 0.0
        %v1687 = vmax.f32 %v1627, 0.0
        %v1688 = vmax.f32 %v1628, 0.0
        %v1689 = vmax.f32 %v1629, 0.0
        %v1690 = vmax.f32 %v1630, 0.0
        %v1691 = vmax.f32 %v1631, 0.0
        %v1692 = vmax.f32 %v1632, 0.0
        %v1693 = vmax.f32 %v1633, 0.0
        %v1694 = vmax.f32 %v1634, 0.0
        %v1695 = vmax.f32 %v1635, 0.0
        %v1696 = vmax.f32 %v1636, 0.0
        %v1697 = vmax.f32 %v1637, 0.0
        %v1698 = vmax.f32 %v1638, 0.0
        %v1699 = vmax.f32 %v1639, 0.0
        %v1700 = vmax.f32 %v1640, 0.0
        %v1701 = vld [vmem:[%s17] sm:$0xff]
        %v1702 = vld [vmem:[%s17 + $0x8] sm:$0xff]
        %v1703 = vld [vmem:[%s17 + $0x10] sm:$0xff]
        %v1704 = vld [vmem:[%s17 + $0x18] sm:$0xff]
        %v1705 = vld [vmem:[%s17 + $0x20] sm:$0xff]
        %v1706 = vld [vmem:[%s17 + $0x28] sm:$0xff]
        %v1707 = vld [vmem:[%s17 + $0x30] sm:$0xff]
        %v1708 = vld [vmem:[%s17 + $0x38] sm:$0xff]
        %v1709 = vld [vmem:[%s17 + $0x40] sm:$0xff]
        %v1710 = vld [vmem:[%s17 + $0x48] sm:$0xff]
        %v1711 = vld [vmem:[%s17 + $0x50] sm:$0xff]
        %v1712 = vld [vmem:[%s17 + $0x58] sm:$0xff]
        %v1713 = vld [vmem:[%s17 + $0x60] sm:$0xff]
        %v1714 = vld [vmem:[%s17 + $0x68] sm:$0xff]
        %v1715 = vld [vmem:[%s17 + $0x70] sm:$0xff]
        %v1716 = vld [vmem:[%s17 + $0x78] sm:$0xff]
        %v1717 = vld [vmem:[%s17 + $0x80] sm:$0xff]
        %v1718 = vld [vmem:[%s17 + $0x88] sm:$0xff]
        %v1719 = vld [vmem:[%s17 + $0x90] sm:$0xff]
        %v1720 = vld [vmem:[%s17 + $0x98] sm:$0xff]
        %v1721 = vld [vmem:[%s17 + $0xa0] sm:$0xff]
        %v1722 = vld [vmem:[%s17 + $0xa8] sm:$0xff]
        %v1723 = vld [vmem:[%s17 + $0xb0] sm:$0xff]
        %v1724 = vld [vmem:[%s17 + $0xb8] sm:$0xff]
        %v1725 = vld [vmem:[%s17 + $0xc0] sm:$0xff]
        %v1726 = vld [vmem:[%s17 + $0xc8] sm:$0xff]
        %v1727 = vld [vmem:[%s17 + $0xd0] sm:$0xff]
        %v1728 = vld [vmem:[%s17 + $0xd8] sm:$0xff]
        %v1729 = vld [vmem:[%s17 + $0xe0] sm:$0xff]
        %v1730 = vld [vmem:[%s17 + $0xe8] sm:$0x3f]
        %1732 = vset.pattern.permute.xlu0 0
        %1733 = vperm.xlu0 %1732, %v1701
        %v1734 = vpop.permute.xlu0 %1733
        %1737 = vset.pattern.permute.xlu0 0
        %1738 = vperm.xlu0 %1737, %v1702
        %v1739 = vpop.permute.xlu0 %1738
        %1742 = vset.pattern.permute.xlu0 0
        %1743 = vperm.xlu0 %1742, %v1703
        %v1744 = vpop.permute.xlu0 %1743
        %1747 = vset.pattern.permute.xlu0 0
        %1748 = vperm.xlu0 %1747, %v1704
        %v1749 = vpop.permute.xlu0 %1748
        %1752 = vset.pattern.permute.xlu0 0
        %1753 = vperm.xlu0 %1752, %v1705
        %v1754 = vpop.permute.xlu0 %1753
        %1757 = vset.pattern.permute.xlu0 0
        %1758 = vperm.xlu0 %1757, %v1706
        %v1759 = vpop.permute.xlu0 %1758
        %1762 = vset.pattern.permute.xlu0 0
        %1763 = vperm.xlu0 %1762, %v1707
        %v1764 = vpop.permute.xlu0 %1763
        %1767 = vset.pattern.permute.xlu0 0
        %1768 = vperm.xlu0 %1767, %v1708
        %v1769 = vpop.permute.xlu0 %1768
        %1772 = vset.pattern.permute.xlu0 0
        %1773 = vperm.xlu0 %1772, %v1709
        %v1774 = vpop.permute.xlu0 %1773
        %1777 = vset.pattern.permute.xlu0 0
        %1778 = vperm.xlu0 %1777, %v1710
        %v1779 = vpop.permute.xlu0 %1778
        %1782 = vset.pattern.permute.xlu0 0
        %1783 = vperm.xlu0 %1782, %v1711
        %v1784 = vpop.permute.xlu0 %1783
        %1787 = vset.pattern.permute.xlu0 0
        %1788 = vperm.xlu0 %1787, %v1712
        %v1789 = vpop.permute.xlu0 %1788
        %1792 = vset.pattern.permute.xlu0 0
        %1793 = vperm.xlu0 %1792, %v1713
        %v1794 = vpop.permute.xlu0 %1793
        %1797 = vset.pattern.permute.xlu0 0
        %1798 = vperm.xlu0 %1797, %v1714
        %v1799 = vpop.permute.xlu0 %1798
        %1802 = vset.pattern.permute.xlu0 0
        %1803 = vperm.xlu0 %1802, %v1715
        %v1804 = vpop.permute.xlu0 %1803
        %1807 = vset.pattern.permute.xlu0 0
        %1808 = vperm.xlu0 %1807, %v1716
        %v1809 = vpop.permute.xlu0 %1808
        %1812 = vset.pattern.permute.xlu0 0
        %1813 = vperm.xlu0 %1812, %v1717
        %v1814 = vpop.permute.xlu0 %1813
        %1817 = vset.pattern.permute.xlu0 0
        %1818 = vperm.xlu0 %1817, %v1718
        %v1819 = vpop.permute.xlu0 %1818
        %1822 = vset.pattern.permute.xlu0 0
        %1823 = vperm.xlu0 %1822, %v1719
        %v1824 = vpop.permute.xlu0 %1823
        %1827 = vset.pattern.permute.xlu0 0
        %1828 = vperm.xlu0 %1827, %v1720
        %v1829 = vpop.permute.xlu0 %1828
        %1832 = vset.pattern.permute.xlu0 0
        %1833 = vperm.xlu0 %1832, %v1721
        %v1834 = vpop.permute.xlu0 %1833
        %1837 = vset.pattern.permute.xlu0 0
        %1838 = vperm.xlu0 %1837, %v1722
        %v1839 = vpop.permute.xlu0 %1838
        %1842 = vset.pattern.permute.xlu0 0
        %1843 = vperm.xlu0 %1842, %v1723
        %v1844 = vpop.permute.xlu0 %1843
        %1847 = vset.pattern.permute.xlu0 0
        %1848 = vperm.xlu0 %1847, %v1724
        %v1849 = vpop.permute.xlu0 %1848
        %1852 = vset.pattern.permute.xlu0 0
        %1853 = vperm.xlu0 %1852, %v1725
        %v1854 = vpop.permute.xlu0 %1853
        %1857 = vset.pattern.permute.xlu0 0
        %1858 = vperm.xlu0 %1857, %v1726
        %v1859 = vpop.permute.xlu0 %1858
        %1862 = vset.pattern.permute.xlu0 0
        %1863 = vperm.xlu0 %1862, %v1727
        %v1864 = vpop.permute.xlu0 %1863
        %1867 = vset.pattern.permute.xlu0 0
        %1868 = vperm.xlu0 %1867, %v1728
        %v1869 = vpop.permute.xlu0 %1868
        %1872 = vset.pattern.permute.xlu0 0
        %1873 = vperm.xlu0 %1872, %v1729
        %v1874 = vpop.permute.xlu0 %1873
        %1877 = vset.pattern.permute.xlu0 0
        %1878 = vperm.xlu0 %1877, %v1730
        %v1879 = vpop.permute.xlu0 %1878
        %v1881 = vmul.f32 %v1641, %v1734
        %v1882 = vmul.f32 %v1642, %v1734
        %v1883 = vmul.f32 %v1643, %v1739
        %v1884 = vmul.f32 %v1644, %v1739
        %v1885 = vmul.f32 %v1645, %v1744
        %v1886 = vmul.f32 %v1646, %v1744
        %v1887 = vmul.f32 %v1647, %v1749
        %v1888 = vmul.f32 %v1648, %v1749
        %v1889 = vmul.f32 %v1649, %v1754
        %v1890 = vmul.f32 %v1650, %v1754
        %v1891 = vmul.f32 %v1651, %v1759
        %v1892 = vmul.f32 %v1652, %v1759
        %v1893 = vmul.f32 %v1653, %v1764
        %v1894 = vmul.f32 %v1654, %v1764
        %v1895 = vmul.f32 %v1655, %v1769
        %v1896 = vmul.f32 %v1656, %v1769
        %v1897 = vmul.f32 %v1657, %v1774
        %v1898 = vmul.f32 %v1658, %v1774
        %v1899 = vmul.f32 %v1659, %v1779
        %v1900 = vmul.f32 %v1660, %v1779
        %v1901 = vmul.f32 %v1661, %v1784
        %v1902 = vmul.f32 %v1662, %v1784
        %v1903 = vmul.f32 %v1663, %v1789
        %v1904 = vmul.f32 %v1664, %v1789
        %v1905 = vmul.f32 %v1665, %v1794
        %v1906 = vmul.f32 %v1666, %v1794
        %v1907 = vmul.f32 %v1667, %v1799
        %v1908 = vmul.f32 %v1668, %v1799
        %v1909 = vmul.f32 %v1669, %v1804
        %v1910 = vmul.f32 %v1670, %v1804
        %v1911 = vmul.f32 %v1671, %v1809
        %v1912 = vmul.f32 %v1672, %v1809
        %v1913 = vmul.f32 %v1673, %v1814
        %v1914 = vmul.f32 %v1674, %v1814
        %v1915 = vmul.f32 %v1675, %v1819
        %v1916 = vmul.f32 %v1676, %v1819
        %v1917 = vmul.f32 %v1677, %v1824
        %v1918 = vmul.f32 %v1678, %v1824
        %v1919 = vmul.f32 %v1679, %v1829
        %v1920 = vmul.f32 %v1680, %v1829
        %v1921 = vmul.f32 %v1681, %v1834
        %v1922 = vmul.f32 %v1682, %v1834
        %v1923 = vmul.f32 %v1683, %v1839
        %v1924 = vmul.f32 %v1684, %v1839
        %v1925 = vmul.f32 %v1685, %v1844
        %v1926 = vmul.f32 %v1686, %v1844
        %v1927 = vmul.f32 %v1687, %v1849
        %v1928 = vmul.f32 %v1688, %v1849
        %v1929 = vmul.f32 %v1689, %v1854
        %v1930 = vmul.f32 %v1690, %v1854
        %v1931 = vmul.f32 %v1691, %v1859
        %v1932 = vmul.f32 %v1692, %v1859
        %v1933 = vmul.f32 %v1693, %v1864
        %v1934 = vmul.f32 %v1694, %v1864
        %v1935 = vmul.f32 %v1695, %v1869
        %v1936 = vmul.f32 %v1696, %v1869
        %v1937 = vmul.f32 %v1697, %v1874
        %v1938 = vmul.f32 %v1698, %v1874
        %v1939 = vmul.f32 %v1699, %v1879
        %v1940 = vmul.f32 %v1700, %v1879
        %vm2001 = vcmask 1040384
        %v2002 = vrot.slane %v1881, 7
        %v2003 = vrot.slane %v1882, 7
        %v2004 = vrot.slane %v1883, 7
        %v2005 = vsel %vm2001, %v2002, %v2004
        %v2006 = vrot.slane %v1884, 7
        %v2007 = vsel %vm2001, %v2003, %v2006
        %v2008 = vrot.slane %v1885, 7
        %v2009 = vsel %vm2001, %v2004, %v2008
        %v2010 = vrot.slane %v1886, 7
        %v2011 = vsel %vm2001, %v2006, %v2010
        %v2012 = vrot.slane %v1887, 7
        %v2013 = vsel %vm2001, %v2008, %v2012
        %v2014 = vrot.slane %v1888, 7
        %v2015 = vsel %vm2001, %v2010, %v2014
        %v2016 = vrot.slane %v1889, 7
        %v2017 = vsel %vm2001, %v2012, %v2016
        %v2018 = vrot.slane %v1890, 7
        %v2019 = vsel %vm2001, %v2014, %v2018
        %v2020 = vrot.slane %v1891, 7
        %v2021 = vsel %vm2001, %v2016, %v2020
        %v2022 = vrot.slane %v1892, 7
        %v2023 = vsel %vm2001, %v2018, %v2022
        %v2024 = vrot.slane %v1893, 7
        %v2025 = vsel %vm2001, %v2020, %v2024
        %v2026 = vrot.slane %v1894, 7
        %v2027 = vsel %vm2001, %v2022, %v2026
        %v2028 = vrot.slane %v1895, 7
        %v2029 = vsel %vm2001, %v2024, %v2028
        %v2030 = vrot.slane %v1896, 7
        %v2031 = vsel %vm2001, %v2026, %v2030
        %v2032 = vrot.slane %v1897, 7
        %v2033 = vsel %vm2001, %v2028, %v2032
        %v2034 = vrot.slane %v1898, 7
        %v2035 = vsel %vm2001, %v2030, %v2034
        %v2036 = vrot.slane %v1899, 7
        %v2037 = vsel %vm2001, %v2032, %v2036
        %v2038 = vrot.slane %v1900, 7
        %v2039 = vsel %vm2001, %v2034, %v2038
        %v2040 = vrot.slane %v1901, 7
        %v2041 = vsel %vm2001, %v2036, %v2040
        %v2042 = vrot.slane %v1902, 7
        %v2043 = vsel %vm2001, %v2038, %v2042
        %v2044 = vrot.slane %v1903, 7
        %v2045 = vsel %vm2001, %v2040, %v2044
        %v2046 = vrot.slane %v1904, 7
        %v2047 = vsel %vm2001, %v2042, %v2046
        %v2048 = vrot.slane %v1905, 7
        %v2049 = vsel %vm2001, %v2044, %v2048
        %v2050 = vrot.slane %v1906, 7
        %v2051 = vsel %vm2001, %v2046, %v2050
        %v2052 = vrot.slane %v1907, 7
        %v2053 = vsel %vm2001, %v2048, %v2052
        %v2054 = vrot.slane %v1908, 7
        %v2055 = vsel %vm2001, %v2050, %v2054
        %v2056 = vrot.slane %v1909, 7
        %v2057 = vsel %vm2001, %v2052, %v2056
        %v2058 = vrot.slane %v1910, 7
        %v2059 = vsel %vm2001, %v2054, %v2058
        %v2060 = vrot.slane %v1911, 7
        %v2061 = vsel %vm2001, %v2056, %v2060
        %v2062 = vrot.slane %v1912, 7
        %v2063 = vsel %vm2001, %v2058, %v2062
        %v2064 = vrot.slane %v1913, 7
        %v2065 = vsel %vm2001, %v2060, %v2064
        %v2066 = vrot.slane %v1914, 7
        %v2067 = vsel %vm2001, %v2062, %v2066
        %v2068 = vrot.slane %v1915, 7
        %v2069 = vsel %vm2001, %v2064, %v2068
        %v2070 = vrot.slane %v1916, 7
        %v2071 = vsel %vm2001, %v2066, %v2070
        %v2072 = vrot.slane %v1917, 7
        %v2073 = vsel %vm2001, %v2068, %v2072
        %v2074 = vrot.slane %v1918, 7
        %v2075 = vsel %vm2001, %v2070, %v2074
        %v2076 = vrot.slane %v1919, 7
        %v2077 = vsel %vm2001, %v2072, %v2076
        %v2078 = vrot.slane %v1920, 7
        %v2079 = vsel %vm2001, %v2074, %v2078
        %v2080 = vrot.slane %v1921, 7
        %v2081 = vsel %vm2001, %v2076, %v2080
        %v2082 = vrot.slane %v1922, 7
        %v2083 = vsel %vm2001, %v2078, %v2082
        %v2084 = vrot.slane %v1923, 7
        %v2085 = vsel %vm2001, %v2080, %v2084
        %v2086 = vrot.slane %v1924, 7
        %v2087 = vsel %vm2001, %v2082, %v2086
        %v2088 = vrot.slane %v1925, 7
        %v2089 = vsel %vm2001, %v2084, %v2088
        %v2090 = vrot.slane %v1926, 7
        %v2091 = vsel %vm2001, %v2086, %v2090
        %v2092 = vrot.slane %v1927, 7
        %v2093 = vsel %vm2001, %v2088, %v2092
        %v2094 = vrot.slane %v1928, 7
        %v2095 = vsel %vm2001, %v2090, %v2094
        %v2096 = vrot.slane %v1929, 7
        %v2097 = vsel %vm2001, %v2092, %v2096
        %v2098 = vrot.slane %v1930, 7
        %v2099 = vsel %vm2001, %v2094, %v2098
        %v2100 = vrot.slane %v1931, 7
        %v2101 = vsel %vm2001, %v2096, %v2100
        %v2102 = vrot.slane %v1932, 7
        %v2103 = vsel %vm2001, %v2098, %v2102
        %v2104 = vrot.slane %v1933, 7
        %v2105 = vsel %vm2001, %v2100, %v2104
        %v2106 = vrot.slane %v1934, 7
        %v2107 = vsel %vm2001, %v2102, %v2106
        %v2108 = vrot.slane %v1935, 7
        %v2109 = vsel %vm2001, %v2104, %v2108
        %v2110 = vrot.slane %v1936, 7
        %v2111 = vsel %vm2001, %v2106, %v2110
        %v2112 = vrot.slane %v1937, 7
        %v2113 = vsel %vm2001, %v2108, %v2112
        %v2114 = vrot.slane %v1938, 7
        %v2115 = vsel %vm2001, %v2110, %v2114
        %v2116 = vrot.slane %v1939, 7
        %v2117 = vsel %vm2001, %v2112, %v2116
        %v2118 = vrot.slane %v1940, 7
        %v2119 = vsel %vm2001, %v2114, %v2118
        %2180 = vst [vmem:[#allocation2] sm:$0xfe] %v2002
        %vm2181 = vcmask 785409
        %2182 = vst.msk [vmem:[#allocation2 + $0x8] sm:$0xfe] %vm2181, %v2003
        %2183 = vst [vmem:[#allocation2 + $0x10] sm:$0xff] %v2005
        %vm2184 = vcmask 785408
        %2185 = vst.msk [vmem:[#allocation2 + $0x18] sm:$0xff] %vm2184, %v2007
        %2186 = vst [vmem:[#allocation2 + $0x20] sm:$0xff] %v2009
        %2187 = vst.msk [vmem:[#allocation2 + $0x28] sm:$0xff] %vm2184, %v2011
        %2188 = vst [vmem:[#allocation2 + $0x30] sm:$0xff] %v2013
        %2189 = vst.msk [vmem:[#allocation2 + $0x38] sm:$0xff] %vm2184, %v2015
        %2190 = vst [vmem:[#allocation2 + $0x40] sm:$0xff] %v2017
        %2191 = vst.msk [vmem:[#allocation2 + $0x48] sm:$0xff] %vm2184, %v2019
        %2192 = vst [vmem:[#allocation2 + $0x50] sm:$0xff] %v2021
        %2193 = vst.msk [vmem:[#allocation2 + $0x58] sm:$0xff] %vm2184, %v2023
        %2194 = vst [vmem:[#allocation2 + $0x60] sm:$0xff] %v2025
        %2195 = vst.msk [vmem:[#allocation2 + $0x68] sm:$0xff] %vm2184, %v2027
        %2196 = vst [vmem:[#allocation2 + $0x70] sm:$0xff] %v2029
        %2197 = vst.msk [vmem:[#allocation2 + $0x78] sm:$0xff] %vm2184, %v2031
        %2198 = vst [vmem:[#allocation2 + $0x80] sm:$0xff] %v2033
        %2199 = vst.msk [vmem:[#allocation2 + $0x88] sm:$0xff] %vm2184, %v2035
        %2200 = vst [vmem:[#allocation2 + $0x90] sm:$0xff] %v2037
        %2201 = vst.msk [vmem:[#allocation2 + $0x98] sm:$0xff] %vm2184, %v2039
        %2202 = vst [vmem:[#allocation2 + $0xa0] sm:$0xff] %v2041
        %2203 = vst.msk [vmem:[#allocation2 + $0xa8] sm:$0xff] %vm2184, %v2043
        %2204 = vst [vmem:[#allocation2 + $0xb0] sm:$0xff] %v2045
        %2205 = vst.msk [vmem:[#allocation2 + $0xb8] sm:$0xff] %vm2184, %v2047
        %2206 = vst [vmem:[#allocation2 + $0xc0] sm:$0xff] %v2049
        %2207 = vst.msk [vmem:[#allocation2 + $0xc8] sm:$0xff] %vm2184, %v2051
        %2208 = vst [vmem:[#allocation2 + $0xd0] sm:$0xff] %v2053
        %2209 = vst.msk [vmem:[#allocation2 + $0xd8] sm:$0xff] %vm2184, %v2055
        %2210 = vst [vmem:[#allocation2 + $0xe0] sm:$0xff] %v2057
        %2211 = vst.msk [vmem:[#allocation2 + $0xe8] sm:$0xff] %vm2184, %v2059
        %2212 = vst [vmem:[#allocation2 + $0xf0] sm:$0xff] %v2061
        %2213 = vst.msk [vmem:[#allocation2 + $0xf8] sm:$0xff] %vm2184, %v2063
        %2214 = vst [vmem:[#allocation2 + $0x100] sm:$0xff] %v2065
        %2215 = vst.msk [vmem:[#allocation2 + $0x108] sm:$0xff] %vm2184, %v2067
        %2216 = vst [vmem:[#allocation2 + $0x110] sm:$0xff] %v2069
        %2217 = vst.msk [vmem:[#allocation2 + $0x118] sm:$0xff] %vm2184, %v2071
        %2218 = vst [vmem:[#allocation2 + $0x120] sm:$0xff] %v2073
        %2219 = vst.msk [vmem:[#allocation2 + $0x128] sm:$0xff] %vm2184, %v2075
        %2220 = vst [vmem:[#allocation2 + $0x130] sm:$0xff] %v2077
        %2221 = vst.msk [vmem:[#allocation2 + $0x138] sm:$0xff] %vm2184, %v2079
        %2222 = vst [vmem:[#allocation2 + $0x140] sm:$0xff] %v2081
        %2223 = vst.msk [vmem:[#allocation2 + $0x148] sm:$0xff] %vm2184, %v2083
        %2224 = vst [vmem:[#allocation2 + $0x150] sm:$0xff] %v2085
        %2225 = vst.msk [vmem:[#allocation2 + $0x158] sm:$0xff] %vm2184, %v2087
        %2226 = vst [vmem:[#allocation2 + $0x160] sm:$0xff] %v2089
        %2227 = vst.msk [vmem:[#allocation2 + $0x168] sm:$0xff] %vm2184, %v2091
        %2228 = vst [vmem:[#allocation2 + $0x170] sm:$0xff] %v2093
        %2229 = vst.msk [vmem:[#allocation2 + $0x178] sm:$0xff] %vm2184, %v2095
        %2230 = vst [vmem:[#allocation2 + $0x180] sm:$0xff] %v2097
        %2231 = vst.msk [vmem:[#allocation2 + $0x188] sm:$0xff] %vm2184, %v2099
        %2232 = vst [vmem:[#allocation2 + $0x190] sm:$0xff] %v2101
        %2233 = vst.msk [vmem:[#allocation2 + $0x198] sm:$0xff] %vm2184, %v2103
        %2234 = vst [vmem:[#allocation2 + $0x1a0] sm:$0xff] %v2105
        %2235 = vst.msk [vmem:[#allocation2 + $0x1a8] sm:$0xff] %vm2184, %v2107
        %2236 = vst [vmem:[#allocation2 + $0x1b0] sm:$0xff] %v2109
        %2237 = vst.msk [vmem:[#allocation2 + $0x1b8] sm:$0xff] %vm2184, %v2111
        %2238 = vst [vmem:[#allocation2 + $0x1c0] sm:$0xff] %v2113
        %2239 = vst.msk [vmem:[#allocation2 + $0x1c8] sm:$0xff] %vm2184, %v2115
        %2240 = vst [vmem:[#allocation2 + $0x1d0] sm:$0x7f] %v2117
        %vm2241 = vcmask 784384
        %2242 = vst.msk [vmem:[#allocation2 + $0x1d8] sm:$0x7f] %vm2241, %v2119
        %v2243 = vlaneseq
        %vm2244 = vcmp.ge.s32.totalorder %v2243, 0
        %vm2245 = vcmp.lt.s32.totalorder %v2243, 224
        %vm2246 = vmand %vm2244, %vm2245
        %2247 = vst.msk [vmem:[#allocation2] ss:$8 sm:$0x3] %vm2246, 0.0
        %2248 = vst.msk [vmem:[#allocation2] ss:$8 sm:$0x0] %vm2246, 0.0
        %s2249 = scalar_lea.vmem [#allocation2], 471
        %2250 = vst.msk [vmem:[%s2249] ss:$8 sm:$0x3] %vm2246, 0.0
        %2251 = vst.msk [vmem:[%s2249] ss:$8 sm:$0x0] %vm2246, 0.0
        %v2252 = vld [vmem:[#allocation2] sm:$0xff]
        %v2253 = vld [vmem:[#allocation2 + $0x8] sm:$0xff]
        %v2254 = vld [vmem:[#allocation2 + $0x10] sm:$0xff]
        %v2255 = vld [vmem:[#allocation2 + $0x18] sm:$0xff]
        %v2256 = vld [vmem:[#allocation2 + $0x20] sm:$0xff]
        %v2257 = vld [vmem:[#allocation2 + $0x28] sm:$0xff]
        %v2258 = vld [vmem:[#allocation2 + $0x30] sm:$0xff]
        %v2259 = vld [vmem:[#allocation2 + $0x38] sm:$0xff]
        %v2260 = vld [vmem:[#allocation2 + $0x40] sm:$0xff]
        %v2261 = vld [vmem:[#allocation2 + $0x48] sm:$0xff]
        %v2262 = vld [vmem:[#allocation2 + $0x50] sm:$0xff]
        %v2263 = vld [vmem:[#allocation2 + $0x58] sm:$0xff]
        %v2264 = vld [vmem:[#allocation2 + $0x60] sm:$0xff]
        %v2265 = vld [vmem:[#allocation2 + $0x68] sm:$0xff]
        %v2266 = vld [vmem:[#allocation2 + $0x70] sm:$0xff]
        %v2267 = vld [vmem:[#allocation2 + $0x78] sm:$0xff]
        %v2268 = vld [vmem:[#allocation2 + $0x80] sm:$0xff]
        %v2269 = vld [vmem:[#allocation2 + $0x88] sm:$0xff]
        %v2270 = vld [vmem:[#allocation2 + $0x90] sm:$0xff]
        %v2271 = vld [vmem:[#allocation2 + $0x98] sm:$0xff]
        %v2272 = vld [vmem:[#allocation2 + $0xa0] sm:$0xff]
        %v2273 = vld [vmem:[#allocation2 + $0xa8] sm:$0xff]
        %v2274 = vld [vmem:[#allocation2 + $0xb0] sm:$0xff]
        %v2275 = vld [vmem:[#allocation2 + $0xb8] sm:$0xff]
        %v2276 = vld [vmem:[#allocation2 + $0xc0] sm:$0xff]
        %v2277 = vld [vmem:[#allocation2 + $0xc8] sm:$0xff]
        %v2278 = vld [vmem:[#allocation2 + $0xd0] sm:$0xff]
        %v2279 = vld [vmem:[#allocation2 + $0xd8] sm:$0xff]
        %v2280 = vld [vmem:[#allocation2 + $0xe0] sm:$0xff]
        %v2281 = vld [vmem:[#allocation2 + $0xe8] sm:$0xff]
        %v2282 = vld [vmem:[#allocation2 + $0xf0] sm:$0xff]
        %v2283 = vld [vmem:[#allocation2 + $0xf8] sm:$0xff]
        %v2284 = vld [vmem:[#allocation2 + $0x100] sm:$0xff]
        %v2285 = vld [vmem:[#allocation2 + $0x108] sm:$0xff]
        %v2286 = vld [vmem:[#allocation2 + $0x110] sm:$0xff]
        %v2287 = vld [vmem:[#allocation2 + $0x118] sm:$0xff]
        %v2288 = vld [vmem:[#allocation2 + $0x120] sm:$0xff]
        %v2289 = vld [vmem:[#allocation2 + $0x128] sm:$0xff]
        %v2290 = vld [vmem:[#allocation2 + $0x130] sm:$0xff]
        %v2291 = vld [vmem:[#allocation2 + $0x138] sm:$0xff]
        %v2292 = vld [vmem:[#allocation2 + $0x140] sm:$0xff]
        %v2293 = vld [vmem:[#allocation2 + $0x148] sm:$0xff]
        %v2294 = vld [vmem:[#allocation2 + $0x150] sm:$0xff]
        %v2295 = vld [vmem:[#allocation2 + $0x158] sm:$0xff]
        %v2296 = vld [vmem:[#allocation2 + $0x160] sm:$0xff]
        %v2297 = vld [vmem:[#allocation2 + $0x168] sm:$0xff]
        %v2298 = vld [vmem:[#allocation2 + $0x170] sm:$0xff]
        %v2299 = vld [vmem:[#allocation2 + $0x178] sm:$0xff]
        %v2300 = vld [vmem:[#allocation2 + $0x180] sm:$0xff]
        %v2301 = vld [vmem:[#allocation2 + $0x188] sm:$0xff]
        %v2302 = vld [vmem:[#allocation2 + $0x190] sm:$0xff]
        %v2303 = vld [vmem:[#allocation2 + $0x198] sm:$0xff]
        %v2304 = vld [vmem:[#allocation2 + $0x1a0] sm:$0xff]
        %v2305 = vld [vmem:[#allocation2 + $0x1a8] sm:$0xff]
        %v2306 = vld [vmem:[#allocation2 + $0x1b0] sm:$0xff]
        %v2307 = vld [vmem:[#allocation2 + $0x1b8] sm:$0xff]
        %v2308 = vld [vmem:[#allocation2 + $0x1c0] sm:$0xff]
        %v2309 = vld [vmem:[#allocation2 + $0x1c8] sm:$0xff]
        %v2310 = vld [vmem:[#allocation2 + $0x1d0] sm:$0x3f]
        %v2311 = vld [vmem:[#allocation2 + $0x1d8] sm:$0x3f]
        %v2312 = vpack.c.bf16 %v2254, %v2252
        %v2313 = vpack.c.bf16 %v2255, %v2253
        %v2314 = vpack.c.bf16 %v2258, %v2256
        %v2315 = vpack.c.bf16 %v2259, %v2257
        %v2316 = vpack.c.bf16 %v2262, %v2260
        %v2317 = vpack.c.bf16 %v2263, %v2261
        %v2318 = vpack.c.bf16 %v2266, %v2264
        %v2319 = vpack.c.bf16 %v2267, %v2265
        %v2320 = vpack.c.bf16 %v2270, %v2268
        %v2321 = vpack.c.bf16 %v2271, %v2269
        %v2322 = vpack.c.bf16 %v2274, %v2272
        %v2323 = vpack.c.bf16 %v2275, %v2273
        %v2324 = vpack.c.bf16 %v2278, %v2276
        %v2325 = vpack.c.bf16 %v2279, %v2277
        %v2326 = vpack.c.bf16 %v2282, %v2280
        %v2327 = vpack.c.bf16 %v2283, %v2281
        %v2328 = vpack.c.bf16 %v2286, %v2284
        %v2329 = vpack.c.bf16 %v2287, %v2285
        %v2330 = vpack.c.bf16 %v2290, %v2288
        %v2331 = vpack.c.bf16 %v2291, %v2289
        %v2332 = vpack.c.bf16 %v2294, %v2292
        %v2333 = vpack.c.bf16 %v2295, %v2293
        %v2334 = vpack.c.bf16 %v2298, %v2296
        %v2335 = vpack.c.bf16 %v2299, %v2297
        %v2336 = vpack.c.bf16 %v2302, %v2300
        %v2337 = vpack.c.bf16 %v2303, %v2301
        %v2338 = vpack.c.bf16 %v2306, %v2304
        %v2339 = vpack.c.bf16 %v2307, %v2305
        %v2340 = vpack.c.bf16 %v2310, %v2308
        %v2341 = vpack.c.bf16 %v2311, %v2309
        %v2342 = vld [vmem:[%s3] sm:$0xff]
        %v2343 = vld [vmem:[%s3 + $0x8] sm:$0xff]
        %v2344 = vld [vmem:[%s3 + $0x10] sm:$0xff]
        %v2345 = vld [vmem:[%s3 + $0x18] sm:$0xff]
        %v2346 = vld [vmem:[%s3 + $0x20] sm:$0xff]
        %v2347 = vld [vmem:[%s3 + $0x28] sm:$0xff]
        %v2348 = vld [vmem:[%s3 + $0x30] sm:$0xff]
        %v2349 = vld [vmem:[%s3 + $0x38] sm:$0xff]
        %v2350 = vld [vmem:[%s3 + $0x40] sm:$0xff]
        %v2351 = vld [vmem:[%s3 + $0x48] sm:$0xff]
        %v2352 = vld [vmem:[%s3 + $0x50] sm:$0xff]
        %v2353 = vld [vmem:[%s3 + $0x58] sm:$0xff]
        %v2354 = vld [vmem:[%s3 + $0x60] sm:$0xff]
        %v2355 = vld [vmem:[%s3 + $0x68] sm:$0xff]
        %v2356 = vld [vmem:[%s3 + $0x70] sm:$0xff]
        %v2357 = vld [vmem:[%s3 + $0x78] sm:$0xff]
        %v2358 = vld [vmem:[%s3 + $0x80] sm:$0xff]
        %v2359 = vld [vmem:[%s3 + $0x88] sm:$0xff]
        %v2360 = vld [vmem:[%s3 + $0x90] sm:$0xff]
        %v2361 = vld [vmem:[%s3 + $0x98] sm:$0xff]
        %v2362 = vld [vmem:[%s3 + $0xa0] sm:$0xff]
        %v2363 = vld [vmem:[%s3 + $0xa8] sm:$0xff]
        %v2364 = vld [vmem:[%s3 + $0xb0] sm:$0xff]
        %v2365 = vld [vmem:[%s3 + $0xb8] sm:$0xff]
        %v2366 = vld [vmem:[%s3 + $0xc0] sm:$0xff]
        %v2367 = vld [vmem:[%s3 + $0xc8] sm:$0xff]
        %v2368 = vld [vmem:[%s3 + $0xd0] sm:$0xff]
        %v2369 = vld [vmem:[%s3 + $0xd8] sm:$0xff]
        %v2370 = vld [vmem:[#allocation2] sm:$0xfe]
        %v2371 = vld [vmem:[#allocation2 + $0x8] sm:$0xfe]
        %v2372 = vld [vmem:[#allocation2 + $0x1d0] sm:$0x7f]
        %v2373 = vld [vmem:[#allocation2 + $0x1d8] sm:$0x7f]
        %v2374 = vpack.c.bf16 %v2254, %v2370
        %v2375 = vpack.c.bf16 %v2255, %v2371
        %v2376 = vpack.c.bf16 %v2372, %v2308
        %v2377 = vpack.c.bf16 %v2373, %v2309
        %s2378 = scalar_lea.vmem %s3, 224
        %v2379 = vld [vmem:[%s2378] sm:$0xff]
        %v2380 = vld [vmem:[%s2378 + $0x8] sm:$0xff]
        %v2381 = vld [vmem:[%s2378 + $0x10] sm:$0xff]
        %v2382 = vld [vmem:[%s2378 + $0x18] sm:$0xff]
        %v2383 = vld [vmem:[%s2378 + $0x20] sm:$0xff]
        %v2384 = vld [vmem:[%s2378 + $0x28] sm:$0xff]
        %v2385 = vld [vmem:[%s2378 + $0x30] sm:$0xff]
        %v2386 = vld [vmem:[%s2378 + $0x38] sm:$0xff]
        %v2387 = vld [vmem:[%s2378 + $0x40] sm:$0xff]
        %v2388 = vld [vmem:[%s2378 + $0x48] sm:$0xff]
        %v2389 = vld [vmem:[%s2378 + $0x50] sm:$0xff]
        %v2390 = vld [vmem:[%s2378 + $0x58] sm:$0xff]
        %v2391 = vld [vmem:[%s2378 + $0x60] sm:$0xff]
        %v2392 = vld [vmem:[%s2378 + $0x68] sm:$0xff]
        %v2393 = vld [vmem:[%s2378 + $0x70] sm:$0xff]
        %v2394 = vld [vmem:[%s2378 + $0x78] sm:$0xff]
        %v2395 = vld [vmem:[%s2378 + $0x80] sm:$0xff]
        %v2396 = vld [vmem:[%s2378 + $0x88] sm:$0xff]
        %v2397 = vld [vmem:[%s2378 + $0x90] sm:$0xff]
        %v2398 = vld [vmem:[%s2378 + $0x98] sm:$0xff]
        %v2399 = vld [vmem:[%s2378 + $0xa0] sm:$0xff]
        %v2400 = vld [vmem:[%s2378 + $0xa8] sm:$0xff]
        %v2401 = vld [vmem:[%s2378 + $0xb0] sm:$0xff]
        %v2402 = vld [vmem:[%s2378 + $0xb8] sm:$0xff]
        %v2403 = vld [vmem:[%s2378 + $0xc0] sm:$0xff]
        %v2404 = vld [vmem:[%s2378 + $0xc8] sm:$0xff]
        %v2405 = vld [vmem:[%s2378 + $0xd0] sm:$0xff]
        %v2406 = vld [vmem:[%s2378 + $0xd8] sm:$0xff]
        %vm2407 = vsmask.f32 7424
        %v2409 = vshrl.u32 %v2374, 16
        %v2411 = vshll.u32 %v2374, 16
        %v2413 = vrot.slane %v2411, 1
        %v2414 = vor.u32 %v2409, %v2413
        %v2416 = vshll.u32 %v2314, 16
        %v2418 = vrot.slane %v2416, 1
        %v2419 = vsel %vm2407, %v2414, %v2418
        %v2421 = vshrl.u32 %v2375, 16
        %v2423 = vshll.u32 %v2375, 16
        %v2425 = vrot.slane %v2423, 1
        %v2426 = vor.u32 %v2421, %v2425
        %v2428 = vshll.u32 %v2315, 16
        %v2430 = vrot.slane %v2428, 1
        %v2431 = vsel %vm2407, %v2426, %v2430
        %v2432 = vshrl.u32 %v2314, 16
        %v2434 = vor.u32 %v2432, %v2418
        %v2436 = vshll.u32 %v2316, 16
        %v2438 = vrot.slane %v2436, 1
        %v2439 = vsel %vm2407, %v2434, %v2438
        %v2440 = vshrl.u32 %v2315, 16
        %v2442 = vor.u32 %v2440, %v2430
        %v2444 = vshll.u32 %v2317, 16
        %v2446 = vrot.slane %v2444, 1
        %v2447 = vsel %vm2407, %v2442, %v2446
        %v2448 = vshrl.u32 %v2316, 16
        %v2450 = vor.u32 %v2448, %v2438
        %v2452 = vshll.u32 %v2318, 16
        %v2454 = vrot.slane %v2452, 1
        %v2455 = vsel %vm2407, %v2450, %v2454
        %v2456 = vshrl.u32 %v2317, 16
        %v2458 = vor.u32 %v2456, %v2446
        %v2460 = vshll.u32 %v2319, 16
        %v2462 = vrot.slane %v2460, 1
        %v2463 = vsel %vm2407, %v2458, %v2462
        %v2464 = vshrl.u32 %v2318, 16
        %v2466 = vor.u32 %v2464, %v2454
        %v2468 = vshll.u32 %v2320, 16
        %v2470 = vrot.slane %v2468, 1
        %v2471 = vsel %vm2407, %v2466, %v2470
        %v2472 = vshrl.u32 %v2319, 16
        %v2474 = vor.u32 %v2472, %v2462
        %v2476 = vshll.u32 %v2321, 16
        %v2478 = vrot.slane %v2476, 1
        %v2479 = vsel %vm2407, %v2474, %v2478
        %v2480 = vshrl.u32 %v2320, 16
        %v2482 = vor.u32 %v2480, %v2470
        %v2484 = vshll.u32 %v2322, 16
        %v2486 = vrot.slane %v2484, 1
        %v2487 = vsel %vm2407, %v2482, %v2486
        %v2488 = vshrl.u32 %v2321, 16
        %v2490 = vor.u32 %v2488, %v2478
        %v2492 = vshll.u32 %v2323, 16
        %v2494 = vrot.slane %v2492, 1
        %v2495 = vsel %vm2407, %v2490, %v2494
        %v2496 = vshrl.u32 %v2322, 16
        %v2498 = vor.u32 %v2496, %v2486
        %v2500 = vshll.u32 %v2324, 16
        %v2502 = vrot.slane %v2500, 1
        %v2503 = vsel %vm2407, %v2498, %v2502
        %v2504 = vshrl.u32 %v2323, 16
        %v2506 = vor.u32 %v2504, %v2494
        %v2508 = vshll.u32 %v2325, 16
        %v2510 = vrot.slane %v2508, 1
        %v2511 = vsel %vm2407, %v2506, %v2510
        %v2512 = vshrl.u32 %v2324, 16
        %v2514 = vor.u32 %v2512, %v2502
        %v2516 = vshll.u32 %v2326, 16
        %v2518 = vrot.slane %v2516, 1
        %v2519 = vsel %vm2407, %v2514, %v2518
        %v2520 = vshrl.u32 %v2325, 16
        %v2522 = vor.u32 %v2520, %v2510
        %v2524 = vshll.u32 %v2327, 16
        %v2526 = vrot.slane %v2524, 1
        %v2527 = vsel %vm2407, %v2522, %v2526
        %v2528 = vshrl.u32 %v2326, 16
        %v2530 = vor.u32 %v2528, %v2518
        %v2532 = vshll.u32 %v2328, 16
        %v2534 = vrot.slane %v2532, 1
        %v2535 = vsel %vm2407, %v2530, %v2534
        %v2536 = vshrl.u32 %v2327, 16
        %v2538 = vor.u32 %v2536, %v2526
        %v2540 = vshll.u32 %v2329, 16
        %v2542 = vrot.slane %v2540, 1
        %v2543 = vsel %vm2407, %v2538, %v2542
        %v2544 = vshrl.u32 %v2328, 16
        %v2546 = vor.u32 %v2544, %v2534
        %v2548 = vshll.u32 %v2330, 16
        %v2550 = vrot.slane %v2548, 1
        %v2551 = vsel %vm2407, %v2546, %v2550
        %v2552 = vshrl.u32 %v2329, 16
        %v2554 = vor.u32 %v2552, %v2542
        %v2556 = vshll.u32 %v2331, 16
        %v2558 = vrot.slane %v2556, 1
        %v2559 = vsel %vm2407, %v2554, %v2558
        %v2560 = vshrl.u32 %v2330, 16
        %v2562 = vor.u32 %v2560, %v2550
        %v2564 = vshll.u32 %v2332, 16
        %v2566 = vrot.slane %v2564, 1
        %v2567 = vsel %vm2407, %v2562, %v2566
        %v2568 = vshrl.u32 %v2331, 16
        %v2570 = vor.u32 %v2568, %v2558
        %v2572 = vshll.u32 %v2333, 16
        %v2574 = vrot.slane %v2572, 1
        %v2575 = vsel %vm2407, %v2570, %v2574
        %v2576 = vshrl.u32 %v2332, 16
        %v2578 = vor.u32 %v2576, %v2566
        %v2580 = vshll.u32 %v2334, 16
        %v2582 = vrot.slane %v2580, 1
        %v2583 = vsel %vm2407, %v2578, %v2582
        %v2584 = vshrl.u32 %v2333, 16
        %v2586 = vor.u32 %v2584, %v2574
        %v2588 = vshll.u32 %v2335, 16
        %v2590 = vrot.slane %v2588, 1
        %v2591 = vsel %vm2407, %v2586, %v2590
        %v2592 = vshrl.u32 %v2334, 16
        %v2594 = vor.u32 %v2592, %v2582
        %v2596 = vshll.u32 %v2336, 16
        %v2598 = vrot.slane %v2596, 1
        %v2599 = vsel %vm2407, %v2594, %v2598
        %v2600 = vshrl.u32 %v2335, 16
        %v2602 = vor.u32 %v2600, %v2590
        %v2604 = vshll.u32 %v2337, 16
        %v2606 = vrot.slane %v2604, 1
        %v2607 = vsel %vm2407, %v2602, %v2606
        %v2608 = vshrl.u32 %v2336, 16
        %v2610 = vor.u32 %v2608, %v2598
        %v2612 = vshll.u32 %v2338, 16
        %v2614 = vrot.slane %v2612, 1
        %v2615 = vsel %vm2407, %v2610, %v2614
        %v2616 = vshrl.u32 %v2337, 16
        %v2618 = vor.u32 %v2616, %v2606
        %v2620 = vshll.u32 %v2339, 16
        %v2622 = vrot.slane %v2620, 1
        %v2623 = vsel %vm2407, %v2618, %v2622
        %v2624 = vshrl.u32 %v2338, 16
        %v2626 = vor.u32 %v2624, %v2614
        %v2628 = vshll.u32 %v2376, 16
        %v2630 = vrot.slane %v2628, 1
        %v2631 = vsel %vm2407, %v2626, %v2630
        %v2632 = vshrl.u32 %v2339, 16
        %v2634 = vor.u32 %v2632, %v2622
        %v2636 = vshll.u32 %v2377, 16
        %v2638 = vrot.slane %v2636, 1
        %v2639 = vsel %vm2407, %v2634, %v2638
        %v2640 = vshrl.u32 %v2376, 16
        %v2642 = vor.u32 %v2640, %v2630
        %v2643 = vshrl.u32 %v2377, 16
        %v2645 = vor.u32 %v2643, %v2638
        %v2689 = vunpack.c.l.b16 %v2379
        %v2690 = vunpack.c.h.b16 %v2379
        %v2691 = vunpack.c.l.b16 %v2380
        %v2692 = vunpack.c.h.b16 %v2380
        %v2693 = vunpack.c.l.b16 %v2381
        %v2694 = vunpack.c.h.b16 %v2381
        %v2695 = vunpack.c.l.b16 %v2382
        %v2696 = vunpack.c.h.b16 %v2382
        %v2697 = vunpack.c.l.b16 %v2383
        %v2698 = vunpack.c.h.b16 %v2383
        %v2699 = vunpack.c.l.b16 %v2384
        %v2700 = vunpack.c.h.b16 %v2384
        %v2701 = vunpack.c.l.b16 %v2385
        %v2702 = vunpack.c.h.b16 %v2385
        %v2703 = vunpack.c.l.b16 %v2386
        %v2704 = vunpack.c.h.b16 %v2386
        %v2705 = vunpack.c.l.b16 %v2387
        %v2706 = vunpack.c.h.b16 %v2387
        %v2707 = vunpack.c.l.b16 %v2388
        %v2708 = vunpack.c.h.b16 %v2388
        %v2709 = vunpack.c.l.b16 %v2389
        %v2710 = vunpack.c.h.b16 %v2389
        %v2711 = vunpack.c.l.b16 %v2390
        %v2712 = vunpack.c.h.b16 %v2390
        %v2713 = vunpack.c.l.b16 %v2391
        %v2714 = vunpack.c.h.b16 %v2391
        %v2715 = vunpack.c.l.b16 %v2392
        %v2716 = vunpack.c.h.b16 %v2392
        %v2717 = vunpack.c.l.b16 %v2393
        %v2718 = vunpack.c.h.b16 %v2393
        %v2719 = vunpack.c.l.b16 %v2394
        %v2720 = vunpack.c.h.b16 %v2394
        %v2721 = vunpack.c.l.b16 %v2395
        %v2722 = vunpack.c.h.b16 %v2395
        %v2723 = vunpack.c.l.b16 %v2396
        %v2724 = vunpack.c.h.b16 %v2396
        %v2725 = vunpack.c.l.b16 %v2397
        %v2726 = vunpack.c.h.b16 %v2397
        %v2727 = vunpack.c.l.b16 %v2398
        %v2728 = vunpack.c.h.b16 %v2398
        %v2729 = vunpack.c.l.b16 %v2399
        %v2730 = vunpack.c.h.b16 %v2399
        %v2731 = vunpack.c.l.b16 %v2400
        %v2732 = vunpack.c.h.b16 %v2400
        %v2733 = vunpack.c.l.b16 %v2401
        %v2734 = vunpack.c.h.b16 %v2401
        %v2735 = vunpack.c.l.b16 %v2402
        %v2736 = vunpack.c.h.b16 %v2402
        %v2737 = vunpack.c.l.b16 %v2403
        %v2738 = vunpack.c.h.b16 %v2403
        %v2739 = vunpack.c.l.b16 %v2404
        %v2740 = vunpack.c.h.b16 %v2404
        %v2741 = vunpack.c.l.b16 %v2405
        %v2742 = vunpack.c.h.b16 %v2405
        %v2743 = vunpack.c.l.b16 %v2406
        %v2744 = vunpack.c.h.b16 %v2406
        %v2745 = vpack.c.b16 %v2691, %v2689
        %v2746 = vpack.c.b16 %v2692, %v2690
        %v2747 = vpack.c.b16 %v2695, %v2693
        %v2748 = vpack.c.b16 %v2696, %v2694
        %v2749 = vpack.c.b16 %v2699, %v2697
        %v2750 = vpack.c.b16 %v2700, %v2698
        %v2751 = vpack.c.b16 %v2703, %v2701
        %v2752 = vpack.c.b16 %v2704, %v2702
        %v2753 = vpack.c.b16 %v2707, %v2705
        %v2754 = vpack.c.b16 %v2708, %v2706
        %v2755 = vpack.c.b16 %v2711, %v2709
        %v2756 = vpack.c.b16 %v2712, %v2710
        %v2757 = vpack.c.b16 %v2715, %v2713
        %v2758 = vpack.c.b16 %v2716, %v2714
        %v2759 = vpack.c.b16 %v2719, %v2717
        %v2760 = vpack.c.b16 %v2720, %v2718
        %v2761 = vpack.c.b16 %v2723, %v2721
        %v2762 = vpack.c.b16 %v2724, %v2722
        %v2763 = vpack.c.b16 %v2727, %v2725
        %v2764 = vpack.c.b16 %v2728, %v2726
        %v2765 = vpack.c.b16 %v2731, %v2729
        %v2766 = vpack.c.b16 %v2732, %v2730
        %v2767 = vpack.c.b16 %v2735, %v2733
        %v2768 = vpack.c.b16 %v2736, %v2734
        %v2769 = vpack.c.b16 %v2739, %v2737
        %v2770 = vpack.c.b16 %v2740, %v2738
        %v2771 = vpack.c.b16 %v2743, %v2741
        %v2772 = vpack.c.b16 %v2744, %v2742
        %v2802 = vsel %vm2184, %v2431, 0
        %v2805 = vsel %vm2184, %v2447, 0
        %v2808 = vsel %vm2184, %v2463, 0
        %v2811 = vsel %vm2184, %v2479, 0
        %v2814 = vsel %vm2184, %v2495, 0
        %v2817 = vsel %vm2184, %v2511, 0
        %v2820 = vsel %vm2184, %v2527, 0
        %v2823 = vsel %vm2184, %v2543, 0
        %v2826 = vsel %vm2184, %v2559, 0
        %v2829 = vsel %vm2184, %v2575, 0
        %v2832 = vsel %vm2184, %v2591, 0
        %v2835 = vsel %vm2184, %v2607, 0
        %v2838 = vsel %vm2184, %v2623, 0
        %v2841 = vsel %vm2184, %v2639, 0
        %v2844 = vsel %vm2184, %v2645, 0
        %2846 = vmatprep.subr.bf16.mxu0 %v2746
        %2847 = vmatpush1.bf16.msra.mxu0 %v2745
        %2848 = vmatprep.subr.bf16.mxu0 %v2748
        %2849 = vmatpush1.bf16.msra.mxu0 %v2747
        %2850 = vmatprep.subr.bf16.mxu0 %v2750
        %2851 = vmatpush1.bf16.msra.mxu0 %v2749
        %2852 = vmatprep.subr.bf16.mxu0 %v2752
        %2853 = vmatpush1.bf16.msra.mxu0 %v2751
        %2854 = vmatprep.subr.bf16.mxu0 %v2754
        %2855 = vmatpush1.bf16.msra.mxu0 %v2753
        %2856 = vmatprep.subr.bf16.mxu0 %v2756
        %2857 = vmatpush1.bf16.msra.mxu0 %v2755
        %2858 = vmatprep.subr.bf16.mxu0 %v2758
        %2859 = vmatpush1.bf16.msra.mxu0 %v2757
        %2860 = vmatprep.subr.bf16.mxu0 %v2760
        %2861 = vmatpush1.bf16.msra.mxu0 %v2759
        %2862 = vmatprep.subr.bf16.mxu0 %v2762
        %2863 = vmatpush1.bf16.msra.mxu0 %v2761
        %2864 = vmatprep.subr.bf16.mxu0 %v2764
        %2865 = vmatpush1.bf16.msra.mxu0 %v2763
        %2866 = vmatprep.subr.bf16.mxu0 %v2766
        %2867 = vmatpush1.bf16.msra.mxu0 %v2765
        %2868 = vmatprep.subr.bf16.mxu0 %v2768
        %2869 = vmatpush1.bf16.msra.mxu0 %v2767
        %2870 = vmatprep.subr.bf16.mxu0 %v2770
        %2871 = vmatpush1.bf16.msra.mxu0 %v2769
        %2872 = vmatprep.subr.bf16.mxu0 %v2772
        %2873 = vmatpush1.bf16.msra.mxu0 %v2771
        %2874 = vmatprep.subr.bf16.mxu0 0
        %2875 = vmatpush1.bf16.msra.mxu0 0
        %2876 = vmatprep.subr.bf16.mxu0 0
        %2877 = vmatpush1.bf16.msra.mxu0 0
        %2878 = vmatprep.mubr.bf16.mxu0 %v2802
        %2879 = vmatmul.mubr.bf16.gmra.mrb[0].mxu0 %v2419
        %v2880 = vpop.f32.mrb[0].mxu0
        %v2881 = vadd.f32 0.0, %v2880
        %v2882 = vpop.f32.mrb[0].mxu0
        %v2883 = vadd.f32 0.0, %v2882
        %v2884 = vpop.f32.mrb[0].mxu0
        %v2885 = vadd.f32 0.0, %v2884
        %v2886 = vpop.f32.mrb[0].mxu0
        %v2887 = vadd.f32 0.0, %v2886
        %2888 = vmatprep.mubr.bf16.mxu0 %v2805
        %2889 = vmatmul.mubr.bf16.gmra.mrb[0].mxu0 %v2439
        %v2890 = vpop.f32.mrb[0].mxu0
        %v2891 = vadd.f32 0.0, %v2890
        %v2892 = vpop.f32.mrb[0].mxu0
        %v2893 = vadd.f32 0.0, %v2892
        %v2894 = vpop.f32.mrb[0].mxu0
        %v2895 = vadd.f32 0.0, %v2894
        %v2896 = vpop.f32.mrb[0].mxu0
        %v2897 = vadd.f32 0.0, %v2896
        %2898 = vmatprep.mubr.bf16.mxu0 %v2808
        %2899 = vmatmul.mubr.bf16.gmra.mrb[0].mxu0 %v2455
        %v2900 = vpop.f32.mrb[0].mxu0
        %v2901 = vadd.f32 0.0, %v2900
        %v2902 = vpop.f32.mrb[0].mxu0
        %v2903 = vadd.f32 0.0, %v2902
        %v2904 = vpop.f32.mrb[0].mxu0
        %v2905 = vadd.f32 0.0, %v2904
        %v2906 = vpop.f32.mrb[0].mxu0
        %v2907 = vadd.f32 0.0, %v2906
        %2908 = vmatprep.mubr.bf16.mxu0 %v2811
        %2909 = vmatmul.mubr.bf16.gmra.mrb[0].mxu0 %v2471
        %v2910 = vpop.f32.mrb[0].mxu0
        %v2911 = vadd.f32 0.0, %v2910
        %v2912 = vpop.f32.mrb[0].mxu0
        %v2913 = vadd.f32 0.0, %v2912
        %v2914 = vpop.f32.mrb[0].mxu0
        %v2915 = vadd.f32 0.0, %v2914
        %v2916 = vpop.f32.mrb[0].mxu0
        %v2917 = vadd.f32 0.0, %v2916
        %2918 = vmatprep.mubr.bf16.mxu0 %v2814
        %2919 = vmatmul.mubr.bf16.gmra.mrb[0].mxu0 %v2487
        %v2920 = vpop.f32.mrb[0].mxu0
        %v2921 = vadd.f32 0.0, %v2920
        %v2922 = vpop.f32.mrb[0].mxu0
        %v2923 = vadd.f32 0.0, %v2922
        %v2924 = vpop.f32.mrb[0].mxu0
        %v2925 = vadd.f32 0.0, %v2924
        %v2926 = vpop.f32.mrb[0].mxu0
        %v2927 = vadd.f32 0.0, %v2926
        %2928 = vmatprep.mubr.bf16.mxu0 %v2817
        %2929 = vmatmul.mubr.bf16.gmra.mrb[0].mxu0 %v2503
        %v2930 = vpop.f32.mrb[0].mxu0
        %v2931 = vadd.f32 0.0, %v2930
        %v2932 = vpop.f32.mrb[0].mxu0
        %v2933 = vadd.f32 0.0, %v2932
        %v2934 = vpop.f32.mrb[0].mxu0
        %v2935 = vadd.f32 0.0, %v2934
        %v2936 = vpop.f32.mrb[0].mxu0
        %v2937 = vadd.f32 0.0, %v2936
        %2938 = vmatprep.mubr.bf16.mxu0 %v2820
        %2939 = vmatmul.mubr.bf16.gmra.mrb[0].mxu0 %v2519
        %v2940 = vpop.f32.mrb[0].mxu0
        %v2941 = vadd.f32 0.0, %v2940
        %v2942 = vpop.f32.mrb[0].mxu0
        %v2943 = vadd.f32 0.0, %v2942
        %v2944 = vpop.f32.mrb[0].mxu0
        %v2945 = vadd.f32 0.0, %v2944
        %v2946 = vpop.f32.mrb[0].mxu0
        %v2947 = vadd.f32 0.0, %v2946
        %2948 = vmatprep.mubr.bf16.mxu0 %v2823
        %2949 = vmatmul.mubr.bf16.gmra.mrb[0].mxu0 %v2535
        %v2950 = vpop.f32.mrb[0].mxu0
        %v2951 = vadd.f32 0.0, %v2950
        %v2952 = vpop.f32.mrb[0].mxu0
        %v2953 = vadd.f32 0.0, %v2952
        %v2954 = vpop.f32.mrb[0].mxu0
        %v2955 = vadd.f32 0.0, %v2954
        %v2956 = vpop.f32.mrb[0].mxu0
        %v2957 = vadd.f32 0.0, %v2956
        %2958 = vmatprep.mubr.bf16.mxu0 %v2826
        %2959 = vmatmul.mubr.bf16.gmra.mrb[0].mxu0 %v2551
        %v2960 = vpop.f32.mrb[0].mxu0
        %v2961 = vadd.f32 0.0, %v2960
        %v2962 = vpop.f32.mrb[0].mxu0
        %v2963 = vadd.f32 0.0, %v2962
        %v2964 = vpop.f32.mrb[0].mxu0
        %v2965 = vadd.f32 0.0, %v2964
        %v2966 = vpop.f32.mrb[0].mxu0
        %v2967 = vadd.f32 0.0, %v2966
        %2968 = vmatprep.mubr.bf16.mxu0 %v2829
        %2969 = vmatmul.mubr.bf16.gmra.mrb[0].mxu0 %v2567
        %v2970 = vpop.f32.mrb[0].mxu0
        %v2971 = vadd.f32 0.0, %v2970
        %v2972 = vpop.f32.mrb[0].mxu0
        %v2973 = vadd.f32 0.0, %v2972
        %v2974 = vpop.f32.mrb[0].mxu0
        %v2975 = vadd.f32 0.0, %v2974
        %v2976 = vpop.f32.mrb[0].mxu0
        %v2977 = vadd.f32 0.0, %v2976
        %2978 = vmatprep.mubr.bf16.mxu0 %v2832
        %2979 = vmatmul.mubr.bf16.gmra.mrb[0].mxu0 %v2583
        %v2980 = vpop.f32.mrb[0].mxu0
        %v2981 = vadd.f32 0.0, %v2980
        %v2982 = vpop.f32.mrb[0].mxu0
        %v2983 = vadd.f32 0.0, %v2982
        %v2984 = vpop.f32.mrb[0].mxu0
        %v2985 = vadd.f32 0.0, %v2984
        %v2986 = vpop.f32.mrb[0].mxu0
        %v2987 = vadd.f32 0.0, %v2986
        %2988 = vmatprep.mubr.bf16.mxu0 %v2835
        %2989 = vmatmul.mubr.bf16.gmra.mrb[0].mxu0 %v2599
        %v2990 = vpop.f32.mrb[0].mxu0
        %v2991 = vadd.f32 0.0, %v2990
        %v2992 = vpop.f32.mrb[0].mxu0
        %v2993 = vadd.f32 0.0, %v2992
        %v2994 = vpop.f32.mrb[0].mxu0
        %v2995 = vadd.f32 0.0, %v2994
        %v2996 = vpop.f32.mrb[0].mxu0
        %v2997 = vadd.f32 0.0, %v2996
        %2998 = vmatprep.mubr.bf16.mxu0 %v2838
        %2999 = vmatmul.mubr.bf16.gmra.mrb[0].mxu0 %v2615
        %v3000 = vpop.f32.mrb[0].mxu0
        %v3001 = vadd.f32 0.0, %v3000
        %v3002 = vpop.f32.mrb[0].mxu0
        %v3003 = vadd.f32 0.0, %v3002
        %v3004 = vpop.f32.mrb[0].mxu0
        %v3005 = vadd.f32 0.0, %v3004
        %v3006 = vpop.f32.mrb[0].mxu0
        %v3007 = vadd.f32 0.0, %v3006
        %3008 = vmatprep.mubr.bf16.mxu0 %v2841
        %3009 = vmatmul.mubr.bf16.gmra.mrb[0].mxu0 %v2631
        %v3010 = vpop.f32.mrb[0].mxu0
        %v3011 = vadd.f32 0.0, %v3010
        %v3012 = vpop.f32.mrb[0].mxu0
        %v3013 = vadd.f32 0.0, %v3012
        %v3014 = vpop.f32.mrb[0].mxu0
        %v3015 = vadd.f32 0.0, %v3014
        %v3016 = vpop.f32.mrb[0].mxu0
        %v3017 = vadd.f32 0.0, %v3016
        %3018 = vmatprep.mubr.bf16.mxu0 %v2844
        %3019 = vmatmul.mubr.bf16.gmra.mrb[0].mxu0 %v2642
        %v3020 = vpop.f32.mrb[0].mxu0
        %v3021 = vadd.f32 0.0, %v3020
        %v3022 = vpop.f32.mrb[0].mxu0
        %v3023 = vadd.f32 0.0, %v3022
        %v3024 = vpop.f32.mrb[0].mxu0
        %v3025 = vadd.f32 0.0, %v3024
        %v3026 = vpop.f32.mrb[0].mxu0
        %v3027 = vadd.f32 0.0, %v3026
        %3028 = vdwg.mxu0
        %v3057 = vunpack.c.l.b16 %v2342
        %v3058 = vunpack.c.h.b16 %v2342
        %v3059 = vunpack.c.l.b16 %v2343
        %v3060 = vunpack.c.h.b16 %v2343
        %v3061 = vunpack.c.l.b16 %v2344
        %v3062 = vunpack.c.h.b16 %v2344
        %v3063 = vunpack.c.l.b16 %v2345
        %v3064 = vunpack.c.h.b16 %v2345
        %v3065 = vunpack.c.l.b16 %v2346
        %v3066 = vunpack.c.h.b16 %v2346
        %v3067 = vunpack.c.l.b16 %v2347
        %v3068 = vunpack.c.h.b16 %v2347
        %v3069 = vunpack.c.l.b16 %v2348
        %v3070 = vunpack.c.h.b16 %v2348
        %v3071 = vunpack.c.l.b16 %v2349
        %v3072 = vunpack.c.h.b16 %v2349
        %v3073 = vunpack.c.l.b16 %v2350
        %v3074 = vunpack.c.h.b16 %v2350
        %v3075 = vunpack.c.l.b16 %v2351
        %v3076 = vunpack.c.h.b16 %v2351
        %v3077 = vunpack.c.l.b16 %v2352
        %v3078 = vunpack.c.h.b16 %v2352
        %v3079 = vunpack.c.l.b16 %v2353
        %v3080 = vunpack.c.h.b16 %v2353
        %v3081 = vunpack.c.l.b16 %v2354
        %v3082 = vunpack.c.h.b16 %v2354
        %v3083 = vunpack.c.l.b16 %v2355
        %v3084 = vunpack.c.h.b16 %v2355
        %v3085 = vunpack.c.l.b16 %v2356
        %v3086 = vunpack.c.h.b16 %v2356
        %v3087 = vunpack.c.l.b16 %v2357
        %v3088 = vunpack.c.h.b16 %v2357
        %v3089 = vunpack.c.l.b16 %v2358
        %v3090 = vunpack.c.h.b16 %v2358
        %v3091 = vunpack.c.l.b16 %v2359
        %v3092 = vunpack.c.h.b16 %v2359
        %v3093 = vunpack.c.l.b16 %v2360
        %v3094 = vunpack.c.h.b16 %v2360
        %v3095 = vunpack.c.l.b16 %v2361
        %v3096 = vunpack.c.h.b16 %v2361
        %v3097 = vunpack.c.l.b16 %v2362
        %v3098 = vunpack.c.h.b16 %v2362
        %v3099 = vunpack.c.l.b16 %v2363
        %v3100 = vunpack.c.h.b16 %v2363
        %v3101 = vunpack.c.l.b16 %v2364
        %v3102 = vunpack.c.h.b16 %v2364
        %v3103 = vunpack.c.l.b16 %v2365
        %v3104 = vunpack.c.h.b16 %v2365
        %v3105 = vunpack.c.l.b16 %v2366
        %v3106 = vunpack.c.h.b16 %v2366
        %v3107 = vunpack.c.l.b16 %v2367
        %v3108 = vunpack.c.h.b16 %v2367
        %v3109 = vunpack.c.l.b16 %v2368
        %v3110 = vunpack.c.h.b16 %v2368
        %v3111 = vunpack.c.l.b16 %v2369
        %v3112 = vunpack.c.h.b16 %v2369
        %v3113 = vpack.c.b16 %v3059, %v3057
        %v3114 = vpack.c.b16 %v3060, %v3058
        %v3115 = vpack.c.b16 %v3063, %v3061
        %v3116 = vpack.c.b16 %v3064, %v3062
        %v3117 = vpack.c.b16 %v3067, %v3065
        %v3118 = vpack.c.b16 %v3068, %v3066
        %v3119 = vpack.c.b16 %v3071, %v3069
        %v3120 = vpack.c.b16 %v3072, %v3070
        %v3121 = vpack.c.b16 %v3075, %v3073
        %v3122 = vpack.c.b16 %v3076, %v3074
        %v3123 = vpack.c.b16 %v3079, %v3077
        %v3124 = vpack.c.b16 %v3080, %v3078
        %v3125 = vpack.c.b16 %v3083, %v3081
        %v3126 = vpack.c.b16 %v3084, %v3082
        %v3127 = vpack.c.b16 %v3087, %v3085
        %v3128 = vpack.c.b16 %v3088, %v3086
        %v3129 = vpack.c.b16 %v3091, %v3089
        %v3130 = vpack.c.b16 %v3092, %v3090
        %v3131 = vpack.c.b16 %v3095, %v3093
        %v3132 = vpack.c.b16 %v3096, %v3094
        %v3133 = vpack.c.b16 %v3099, %v3097
        %v3134 = vpack.c.b16 %v3100, %v3098
        %v3135 = vpack.c.b16 %v3103, %v3101
        %v3136 = vpack.c.b16 %v3104, %v3102
        %v3137 = vpack.c.b16 %v3107, %v3105
        %v3138 = vpack.c.b16 %v3108, %v3106
        %v3139 = vpack.c.b16 %v3111, %v3109
        %v3140 = vpack.c.b16 %v3112, %v3110
        %v3170 = vsel %vm2184, %v2313, 0
        %v3172 = vsel %vm2184, %v2315, 0
        %v3174 = vsel %vm2184, %v2317, 0
        %v3176 = vsel %vm2184, %v2319, 0
        %v3178 = vsel %vm2184, %v2321, 0
        %v3180 = vsel %vm2184, %v2323, 0
        %v3182 = vsel %vm2184, %v2325, 0
        %v3184 = vsel %vm2184, %v2327, 0
        %v3186 = vsel %vm2184, %v2329, 0
        %v3188 = vsel %vm2184, %v2331, 0
        %v3190 = vsel %vm2184, %v2333, 0
        %v3192 = vsel %vm2184, %v2335, 0
        %v3194 = vsel %vm2184, %v2337, 0
        %v3196 = vsel %vm2184, %v2339, 0
        %v3199 = vsel %vm2184, %v2341, 0
        %3201 = vmatprep.subr.bf16.mxu0 %v3114
        %3202 = vmatpush1.bf16.msra.mxu0 %v3113
        %3203 = vmatprep.subr.bf16.mxu0 %v3116
        %3204 = vmatpush1.bf16.msra.mxu0 %v3115
        %3205 = vmatprep.subr.bf16.mxu0 %v3118
        %3206 = vmatpush1.bf16.msra.mxu0 %v3117
        %3207 = vmatprep.subr.bf16.mxu0 %v3120
        %3208 = vmatpush1.bf16.msra.mxu0 %v3119
        %3209 = vmatprep.subr.bf16.mxu0 %v3122
        %3210 = vmatpush1.bf16.msra.mxu0 %v3121
        %3211 = vmatprep.subr.bf16.mxu0 %v3124
        %3212 = vmatpush1.bf16.msra.mxu0 %v3123
        %3213 = vmatprep.subr.bf16.mxu0 %v3126
        %3214 = vmatpush1.bf16.msra.mxu0 %v3125
        %3215 = vmatprep.subr.bf16.mxu0 %v3128
        %3216 = vmatpush1.bf16.msra.mxu0 %v3127
        %3217 = vmatprep.subr.bf16.mxu0 %v3130
        %3218 = vmatpush1.bf16.msra.mxu0 %v3129
        %3219 = vmatprep.subr.bf16.mxu0 %v3132
        %3220 = vmatpush1.bf16.msra.mxu0 %v3131
        %3221 = vmatprep.subr.bf16.mxu0 %v3134
        %3222 = vmatpush1.bf16.msra.mxu0 %v3133
        %3223 = vmatprep.subr.bf16.mxu0 %v3136
        %3224 = vmatpush1.bf16.msra.mxu0 %v3135
        %3225 = vmatprep.subr.bf16.mxu0 %v3138
        %3226 = vmatpush1.bf16.msra.mxu0 %v3137
        %3227 = vmatprep.subr.bf16.mxu0 %v3140
        %3228 = vmatpush1.bf16.msra.mxu0 %v3139
        %3229 = vmatprep.subr.bf16.mxu0 0
        %3230 = vmatpush1.bf16.msra.mxu0 0
        %3231 = vmatprep.subr.bf16.mxu0 0
        %3232 = vmatpush1.bf16.msra.mxu0 0
        %3233 = vmatprep.mubr.bf16.mxu0 %v3170
        %3234 = vmatmul.mubr.bf16.gmra.mrb[0].mxu0 %v2312
        %v3235 = vpop.f32.mrb[0].mxu0
        %v3236 = vadd.f32 %v2881, %v3235
        %v3237 = vpop.f32.mrb[0].mxu0
        %v3238 = vadd.f32 %v2883, %v3237
        %v3239 = vpop.f32.mrb[0].mxu0
        %v3240 = vadd.f32 %v2885, %v3239
        %v3241 = vpop.f32.mrb[0].mxu0
        %v3242 = vadd.f32 %v2887, %v3241
        %3243 = vmatprep.mubr.bf16.mxu0 %v3172
        %3244 = vmatmul.mubr.bf16.gmra.mrb[0].mxu0 %v2314
        %v3245 = vpop.f32.mrb[0].mxu0
        %v3246 = vadd.f32 %v2891, %v3245
        %v3247 = vpop.f32.mrb[0].mxu0
        %v3248 = vadd.f32 %v2893, %v3247
        %v3249 = vpop.f32.mrb[0].mxu0
        %v3250 = vadd.f32 %v2895, %v3249
        %v3251 = vpop.f32.mrb[0].mxu0
        %v3252 = vadd.f32 %v2897, %v3251
        %3253 = vmatprep.mubr.bf16.mxu0 %v3174
        %3254 = vmatmul.mubr.bf16.gmra.mrb[0].mxu0 %v2316
        %v3255 = vpop.f32.mrb[0].mxu0
        %v3256 = vadd.f32 %v2901, %v3255
        %v3257 = vpop.f32.mrb[0].mxu0
        %v3258 = vadd.f32 %v2903, %v3257
        %v3259 = vpop.f32.mrb[0].mxu0
        %v3260 = vadd.f32 %v2905, %v3259
        %v3261 = vpop.f32.mrb[0].mxu0
        %v3262 = vadd.f32 %v2907, %v3261
        %3263 = vmatprep.mubr.bf16.mxu0 %v3176
        %3264 = vmatmul.mubr.bf16.gmra.mrb[0].mxu0 %v2318
        %v3265 = vpop.f32.mrb[0].mxu0
        %v3266 = vadd.f32 %v2911, %v3265
        %v3267 = vpop.f32.mrb[0].mxu0
        %v3268 = vadd.f32 %v2913, %v3267
        %v3269 = vpop.f32.mrb[0].mxu0
        %v3270 = vadd.f32 %v2915, %v3269
        %v3271 = vpop.f32.mrb[0].mxu0
        %v3272 = vadd.f32 %v2917, %v3271
        %3273 = vmatprep.mubr.bf16.mxu0 %v3178
        %3274 = vmatmul.mubr.bf16.gmra.mrb[0].mxu0 %v2320
        %v3275 = vpop.f32.mrb[0].mxu0
        %v3276 = vadd.f32 %v2921, %v3275
        %v3277 = vpop.f32.mrb[0].mxu0
        %v3278 = vadd.f32 %v2923, %v3277
        %v3279 = vpop.f32.mrb[0].mxu0
        %v3280 = vadd.f32 %v2925, %v3279
        %v3281 = vpop.f32.mrb[0].mxu0
        %v3282 = vadd.f32 %v2927, %v3281
        %3283 = vmatprep.mubr.bf16.mxu0 %v3180
        %3284 = vmatmul.mubr.bf16.gmra.mrb[0].mxu0 %v2322
        %v3285 = vpop.f32.mrb[0].mxu0
        %v3286 = vadd.f32 %v2931, %v3285
        %v3287 = vpop.f32.mrb[0].mxu0
        %v3288 = vadd.f32 %v2933, %v3287
        %v3289 = vpop.f32.mrb[0].mxu0
        %v3290 = vadd.f32 %v2935, %v3289
        %v3291 = vpop.f32.mrb[0].mxu0
        %v3292 = vadd.f32 %v2937, %v3291
        %3293 = vmatprep.mubr.bf16.mxu0 %v3182
        %3294 = vmatmul.mubr.bf16.gmra.mrb[0].mxu0 %v2324
        %v3295 = vpop.f32.mrb[0].mxu0
        %v3296 = vadd.f32 %v2941, %v3295
        %v3297 = vpop.f32.mrb[0].mxu0
        %v3298 = vadd.f32 %v2943, %v3297
        %v3299 = vpop.f32.mrb[0].mxu0
        %v3300 = vadd.f32 %v2945, %v3299
        %v3301 = vpop.f32.mrb[0].mxu0
        %v3302 = vadd.f32 %v2947, %v3301
        %3303 = vmatprep.mubr.bf16.mxu0 %v3184
        %3304 = vmatmul.mubr.bf16.gmra.mrb[0].mxu0 %v2326
        %v3305 = vpop.f32.mrb[0].mxu0
        %v3306 = vadd.f32 %v2951, %v3305
        %v3307 = vpop.f32.mrb[0].mxu0
        %v3308 = vadd.f32 %v2953, %v3307
        %v3309 = vpop.f32.mrb[0].mxu0
        %v3310 = vadd.f32 %v2955, %v3309
        %v3311 = vpop.f32.mrb[0].mxu0
        %v3312 = vadd.f32 %v2957, %v3311
        %3313 = vmatprep.mubr.bf16.mxu0 %v3186
        %3314 = vmatmul.mubr.bf16.gmra.mrb[0].mxu0 %v2328
        %v3315 = vpop.f32.mrb[0].mxu0
        %v3316 = vadd.f32 %v2961, %v3315
        %v3317 = vpop.f32.mrb[0].mxu0
        %v3318 = vadd.f32 %v2963, %v3317
        %v3319 = vpop.f32.mrb[0].mxu0
        %v3320 = vadd.f32 %v2965, %v3319
        %v3321 = vpop.f32.mrb[0].mxu0
        %v3322 = vadd.f32 %v2967, %v3321
        %3323 = vmatprep.mubr.bf16.mxu0 %v3188
        %3324 = vmatmul.mubr.bf16.gmra.mrb[0].mxu0 %v2330
        %v3325 = vpop.f32.mrb[0].mxu0
        %v3326 = vadd.f32 %v2971, %v3325
        %v3327 = vpop.f32.mrb[0].mxu0
        %v3328 = vadd.f32 %v2973, %v3327
        %v3329 = vpop.f32.mrb[0].mxu0
        %v3330 = vadd.f32 %v2975, %v3329
        %v3331 = vpop.f32.mrb[0].mxu0
        %v3332 = vadd.f32 %v2977, %v3331
        %3333 = vmatprep.mubr.bf16.mxu0 %v3190
        %3334 = vmatmul.mubr.bf16.gmra.mrb[0].mxu0 %v2332
        %v3335 = vpop.f32.mrb[0].mxu0
        %v3336 = vadd.f32 %v2981, %v3335
        %v3337 = vpop.f32.mrb[0].mxu0
        %v3338 = vadd.f32 %v2983, %v3337
        %v3339 = vpop.f32.mrb[0].mxu0
        %v3340 = vadd.f32 %v2985, %v3339
        %v3341 = vpop.f32.mrb[0].mxu0
        %v3342 = vadd.f32 %v2987, %v3341
        %3343 = vmatprep.mubr.bf16.mxu0 %v3192
        %3344 = vmatmul.mubr.bf16.gmra.mrb[0].mxu0 %v2334
        %v3345 = vpop.f32.mrb[0].mxu0
        %v3346 = vadd.f32 %v2991, %v3345
        %v3347 = vpop.f32.mrb[0].mxu0
        %v3348 = vadd.f32 %v2993, %v3347
        %v3349 = vpop.f32.mrb[0].mxu0
        %v3350 = vadd.f32 %v2995, %v3349
        %v3351 = vpop.f32.mrb[0].mxu0
        %v3352 = vadd.f32 %v2997, %v3351
        %3353 = vmatprep.mubr.bf16.mxu0 %v3194
        %3354 = vmatmul.mubr.bf16.gmra.mrb[0].mxu0 %v2336
        %v3355 = vpop.f32.mrb[0].mxu0
        %v3356 = vadd.f32 %v3001, %v3355
        %v3357 = vpop.f32.mrb[0].mxu0
        %v3358 = vadd.f32 %v3003, %v3357
        %v3359 = vpop.f32.mrb[0].mxu0
        %v3360 = vadd.f32 %v3005, %v3359
        %v3361 = vpop.f32.mrb[0].mxu0
        %v3362 = vadd.f32 %v3007, %v3361
        %3363 = vmatprep.mubr.bf16.mxu0 %v3196
        %3364 = vmatmul.mubr.bf16.gmra.mrb[0].mxu0 %v2338
        %v3365 = vpop.f32.mrb[0].mxu0
        %v3366 = vadd.f32 %v3011, %v3365
        %v3367 = vpop.f32.mrb[0].mxu0
        %v3368 = vadd.f32 %v3013, %v3367
        %v3369 = vpop.f32.mrb[0].mxu0
        %v3370 = vadd.f32 %v3015, %v3369
        %v3371 = vpop.f32.mrb[0].mxu0
        %v3372 = vadd.f32 %v3017, %v3371
        %3373 = vmatprep.mubr.bf16.mxu0 %v3199
        %3374 = vmatmul.mubr.bf16.gmra.mrb[0].mxu0 %v2340
        %v3375 = vpop.f32.mrb[0].mxu0
        %v3376 = vadd.f32 %v3021, %v3375
        %v3377 = vpop.f32.mrb[0].mxu0
        %v3378 = vadd.f32 %v3023, %v3377
        %v3379 = vpop.f32.mrb[0].mxu0
        %v3380 = vadd.f32 %v3025, %v3379
        %v3381 = vpop.f32.mrb[0].mxu0
        %v3382 = vadd.f32 %v3027, %v3381
        %3383 = vdwg.mxu0
        %v3384 = vld [vmem:[#allocation2] sm:$0xfc]
        %v3385 = vld [vmem:[#allocation2 + $0x8] sm:$0xfc]
        %v3386 = vld [vmem:[#allocation2 + $0x1d0] sm:$0xff]
        %v3387 = vld [vmem:[#allocation2 + $0x1d8] sm:$0xff]
        %v3388 = vpack.c.bf16 %v2254, %v3384
        %v3389 = vpack.c.bf16 %v2255, %v3385
        %v3390 = vpack.c.bf16 %v3386, %v2308
        %v3391 = vpack.c.bf16 %v3387, %v2309
        %s3392 = scalar_lea.vmem %s3, 448
        %v3393 = vld [vmem:[%s3392] sm:$0xff]
        %v3394 = vld [vmem:[%s3392 + $0x8] sm:$0xff]
        %v3395 = vld [vmem:[%s3392 + $0x10] sm:$0xff]
        %v3396 = vld [vmem:[%s3392 + $0x18] sm:$0xff]
        %v3397 = vld [vmem:[%s3392 + $0x20] sm:$0xff]
        %v3398 = vld [vmem:[%s3392 + $0x28] sm:$0xff]
        %v3399 = vld [vmem:[%s3392 + $0x30] sm:$0xff]
        %v3400 = vld [vmem:[%s3392 + $0x38] sm:$0xff]
        %v3401 = vld [vmem:[%s3392 + $0x40] sm:$0xff]
        %v3402 = vld [vmem:[%s3392 + $0x48] sm:$0xff]
        %v3403 = vld [vmem:[%s3392 + $0x50] sm:$0xff]
        %v3404 = vld [vmem:[%s3392 + $0x58] sm:$0xff]
        %v3405 = vld [vmem:[%s3392 + $0x60] sm:$0xff]
        %v3406 = vld [vmem:[%s3392 + $0x68] sm:$0xff]
        %v3407 = vld [vmem:[%s3392 + $0x70] sm:$0xff]
        %v3408 = vld [vmem:[%s3392 + $0x78] sm:$0xff]
        %v3409 = vld [vmem:[%s3392 + $0x80] sm:$0xff]
        %v3410 = vld [vmem:[%s3392 + $0x88] sm:$0xff]
        %v3411 = vld [vmem:[%s3392 + $0x90] sm:$0xff]
        %v3412 = vld [vmem:[%s3392 + $0x98] sm:$0xff]
        %v3413 = vld [vmem:[%s3392 + $0xa0] sm:$0xff]
        %v3414 = vld [vmem:[%s3392 + $0xa8] sm:$0xff]
        %v3415 = vld [vmem:[%s3392 + $0xb0] sm:$0xff]
        %v3416 = vld [vmem:[%s3392 + $0xb8] sm:$0xff]
        %v3417 = vld [vmem:[%s3392 + $0xc0] sm:$0xff]
        %v3418 = vld [vmem:[%s3392 + $0xc8] sm:$0xff]
        %v3419 = vld [vmem:[%s3392 + $0xd0] sm:$0xff]
        %v3420 = vld [vmem:[%s3392 + $0xd8] sm:$0xff]
        %vm3451 = vcmask 1046528
        %v3452 = vrot.slane %v3388, 1
        %v3453 = vrot.slane %v2314, 1
        %v3454 = vsel %vm3451, %v3452, %v3453
        %v3455 = vrot.slane %v3389, 1
        %v3456 = vrot.slane %v2315, 1
        %v3457 = vsel %vm3451, %v3455, %v3456
        %v3458 = vrot.slane %v2316, 1
        %v3459 = vsel %vm3451, %v3453, %v3458
        %v3460 = vrot.slane %v2317, 1
        %v3461 = vsel %vm3451, %v3456, %v3460
        %v3462 = vrot.slane %v2318, 1
        %v3463 = vsel %vm3451, %v3458, %v3462
        %v3464 = vrot.slane %v2319, 1
        %v3465 = vsel %vm3451, %v3460, %v3464
        %v3466 = vrot.slane %v2320, 1
        %v3467 = vsel %vm3451, %v3462, %v3466
        %v3468 = vrot.slane %v2321, 1
        %v3469 = vsel %vm3451, %v3464, %v3468
        %v3470 = vrot.slane %v2322, 1
        %v3471 = vsel %vm3451, %v3466, %v3470
        %v3472 = vrot.slane %v2323, 1
        %v3473 = vsel %vm3451, %v3468, %v3472
        %v3474 = vrot.slane %v2324, 1
        %v3475 = vsel %vm3451, %v3470, %v3474
        %v3476 = vrot.slane %v2325, 1
        %v3477 = vsel %vm3451, %v3472, %v3476
        %v3478 = vrot.slane %v2326, 1
        %v3479 = vsel %vm3451, %v3474, %v3478
        %v3480 = vrot.slane %v2327, 1
        %v3481 = vsel %vm3451, %v3476, %v3480
        %v3482 = vrot.slane %v2328, 1
        %v3483 = vsel %vm3451, %v3478, %v3482
        %v3484 = vrot.slane %v2329, 1
        %v3485 = vsel %vm3451, %v3480, %v3484
        %v3486 = vrot.slane %v2330, 1
        %v3487 = vsel %vm3451, %v3482, %v3486
        %v3488 = vrot.slane %v2331, 1
        %v3489 = vsel %vm3451, %v3484, %v3488
        %v3490 = vrot.slane %v2332, 1
        %v3491 = vsel %vm3451, %v3486, %v3490
        %v3492 = vrot.slane %v2333, 1
        %v3493 = vsel %vm3451, %v3488, %v3492
        %v3494 = vrot.slane %v2334, 1
        %v3495 = vsel %vm3451, %v3490, %v3494
        %v3496 = vrot.slane %v2335, 1
        %v3497 = vsel %vm3451, %v3492, %v3496
        %v3498 = vrot.slane %v2336, 1
        %v3499 = vsel %vm3451, %v3494, %v3498
        %v3500 = vrot.slane %v2337, 1
        %v3501 = vsel %vm3451, %v3496, %v3500
        %v3502 = vrot.slane %v2338, 1
        %v3503 = vsel %vm3451, %v3498, %v3502
        %v3504 = vrot.slane %v2339, 1
        %v3505 = vsel %vm3451, %v3500, %v3504
        %v3506 = vrot.slane %v3390, 1
        %v3507 = vsel %vm3451, %v3502, %v3506
        %v3508 = vrot.slane %v3391, 1
        %v3509 = vsel %vm3451, %v3504, %v3508
        %v3553 = vunpack.c.l.b16 %v3393
        %v3554 = vunpack.c.h.b16 %v3393
        %v3555 = vunpack.c.l.b16 %v3394
        %v3556 = vunpack.c.h.b16 %v3394
        %v3557 = vunpack.c.l.b16 %v3395
        %v3558 = vunpack.c.h.b16 %v3395
        %v3559 = vunpack.c.l.b16 %v3396
        %v3560 = vunpack.c.h.b16 %v3396
        %v3561 = vunpack.c.l.b16 %v3397
        %v3562 = vunpack.c.h.b16 %v3397
        %v3563 = vunpack.c.l.b16 %v3398
        %v3564 = vunpack.c.h.b16 %v3398
        %v3565 = vunpack.c.l.b16 %v3399
        %v3566 = vunpack.c.h.b16 %v3399
        %v3567 = vunpack.c.l.b16 %v3400
        %v3568 = vunpack.c.h.b16 %v3400
        %v3569 = vunpack.c.l.b16 %v3401
        %v3570 = vunpack.c.h.b16 %v3401
        %v3571 = vunpack.c.l.b16 %v3402
        %v3572 = vunpack.c.h.b16 %v3402
        %v3573 = vunpack.c.l.b16 %v3403
        %v3574 = vunpack.c.h.b16 %v3403
        %v3575 = vunpack.c.l.b16 %v3404
        %v3576 = vunpack.c.h.b16 %v3404
        %v3577 = vunpack.c.l.b16 %v3405
        %v3578 = vunpack.c.h.b16 %v3405
        %v3579 = vunpack.c.l.b16 %v3406
        %v3580 = vunpack.c.h.b16 %v3406
        %v3581 = vunpack.c.l.b16 %v3407
        %v3582 = vunpack.c.h.b16 %v3407
        %v3583 = vunpack.c.l.b16 %v3408
        %v3584 = vunpack.c.h.b16 %v3408
        %v3585 = vunpack.c.l.b16 %v3409
        %v3586 = vunpack.c.h.b16 %v3409
        %v3587 = vunpack.c.l.b16 %v3410
        %v3588 = vunpack.c.h.b16 %v3410
        %v3589 = vunpack.c.l.b16 %v3411
        %v3590 = vunpack.c.h.b16 %v3411
        %v3591 = vunpack.c.l.b16 %v3412
        %v3592 = vunpack.c.h.b16 %v3412
        %v3593 = vunpack.c.l.b16 %v3413
        %v3594 = vunpack.c.h.b16 %v3413
        %v3595 = vunpack.c.l.b16 %v3414
        %v3596 = vunpack.c.h.b16 %v3414
        %v3597 = vunpack.c.l.b16 %v3415
        %v3598 = vunpack.c.h.b16 %v3415
        %v3599 = vunpack.c.l.b16 %v3416
        %v3600 = vunpack.c.h.b16 %v3416
        %v3601 = vunpack.c.l.b16 %v3417
        %v3602 = vunpack.c.h.b16 %v3417
        %v3603 = vunpack.c.l.b16 %v3418
        %v3604 = vunpack.c.h.b16 %v3418
        %v3605 = vunpack.c.l.b16 %v3419
        %v3606 = vunpack.c.h.b16 %v3419
        %v3607 = vunpack.c.l.b16 %v3420
        %v3608 = vunpack.c.h.b16 %v3420
        %v3609 = vpack.c.b16 %v3555, %v3553
        %v3610 = vpack.c.b16 %v3556, %v3554
        %v3611 = vpack.c.b16 %v3559, %v3557
        %v3612 = vpack.c.b16 %v3560, %v3558
        %v3613 = vpack.c.b16 %v3563, %v3561
        %v3614 = vpack.c.b16 %v3564, %v3562
        %v3615 = vpack.c.b16 %v3567, %v3565
        %v3616 = vpack.c.b16 %v3568, %v3566
        %v3617 = vpack.c.b16 %v3571, %v3569
        %v3618 = vpack.c.b16 %v3572, %v3570
        %v3619 = vpack.c.b16 %v3575, %v3573
        %v3620 = vpack.c.b16 %v3576, %v3574
        %v3621 = vpack.c.b16 %v3579, %v3577
        %v3622 = vpack.c.b16 %v3580, %v3578
        %v3623 = vpack.c.b16 %v3583, %v3581
        %v3624 = vpack.c.b16 %v3584, %v3582
        %v3625 = vpack.c.b16 %v3587, %v3585
        %v3626 = vpack.c.b16 %v3588, %v3586
        %v3627 = vpack.c.b16 %v3591, %v3589
        %v3628 = vpack.c.b16 %v3592, %v3590
        %v3629 = vpack.c.b16 %v3595, %v3593
        %v3630 = vpack.c.b16 %v3596, %v3594
        %v3631 = vpack.c.b16 %v3599, %v3597
        %v3632 = vpack.c.b16 %v3600, %v3598
        %v3633 = vpack.c.b16 %v3603, %v3601
        %v3634 = vpack.c.b16 %v3604, %v3602
        %v3635 = vpack.c.b16 %v3607, %v3605
        %v3636 = vpack.c.b16 %v3608, %v3606
        %v3666 = vsel %vm2184, %v3457, 0
        %v3669 = vsel %vm2184, %v3461, 0
        %v3672 = vsel %vm2184, %v3465, 0
        %v3675 = vsel %vm2184, %v3469, 0
        %v3678 = vsel %vm2184, %v3473, 0
        %v3681 = vsel %vm2184, %v3477, 0
        %v3684 = vsel %vm2184, %v3481, 0
        %v3687 = vsel %vm2184, %v3485, 0
        %v3690 = vsel %vm2184, %v3489, 0
        %v3693 = vsel %vm2184, %v3493, 0
        %v3696 = vsel %vm2184, %v3497, 0
        %v3699 = vsel %vm2184, %v3501, 0
        %v3702 = vsel %vm2184, %v3505, 0
        %v3705 = vsel %vm2184, %v3509, 0
        %v3708 = vsel %vm2184, %v3508, 0
        %3710 = vmatprep.subr.bf16.mxu0 %v3610
        %3711 = vmatpush1.bf16.msra.mxu0 %v3609
        %3712 = vmatprep.subr.bf16.mxu0 %v3612
        %3713 = vmatpush1.bf16.msra.mxu0 %v3611
        %3714 = vmatprep.subr.bf16.mxu0 %v3614
        %3715 = vmatpush1.bf16.msra.mxu0 %v3613
        %3716 = vmatprep.subr.bf16.mxu0 %v3616
        %3717 = vmatpush1.bf16.msra.mxu0 %v3615
        %3718 = vmatprep.subr.bf16.mxu0 %v3618
        %3719 = vmatpush1.bf16.msra.mxu0 %v3617
        %3720 = vmatprep.subr.bf16.mxu0 %v3620
        %3721 = vmatpush1.bf16.msra.mxu0 %v3619
        %3722 = vmatprep.subr.bf16.mxu0 %v3622
        %3723 = vmatpush1.bf16.msra.mxu0 %v3621
        %3724 = vmatprep.subr.bf16.mxu0 %v3624
        %3725 = vmatpush1.bf16.msra.mxu0 %v3623
        %3726 = vmatprep.subr.bf16.mxu0 %v3626
        %3727 = vmatpush1.bf16.msra.mxu0 %v3625
        %3728 = vmatprep.subr.bf16.mxu0 %v3628
        %3729 = vmatpush1.bf16.msra.mxu0 %v3627
        %3730 = vmatprep.subr.bf16.mxu0 %v3630
        %3731 = vmatpush1.bf16.msra.mxu0 %v3629
        %3732 = vmatprep.subr.bf16.mxu0 %v3632
        %3733 = vmatpush1.bf16.msra.mxu0 %v3631
        %3734 = vmatprep.subr.bf16.mxu0 %v3634
        %3735 = vmatpush1.bf16.msra.mxu0 %v3633
        %3736 = vmatprep.subr.bf16.mxu0 %v3636
        %3737 = vmatpush1.bf16.msra.mxu0 %v3635
        %3738 = vmatprep.subr.bf16.mxu0 0
        %3739 = vmatpush1.bf16.msra.mxu0 0
        %3740 = vmatprep.subr.bf16.mxu0 0
        %3741 = vmatpush1.bf16.msra.mxu0 0
        %3742 = vmatprep.mubr.bf16.mxu0 %v3666
        %3743 = vmatmul.mubr.bf16.gmra.mrb[0].mxu0 %v3454
        %v3744 = vpop.f32.mrb[0].mxu0
        %v3745 = vadd.f32 0.0, %v3744
        %v3746 = vpop.f32.mrb[0].mxu0
        %v3747 = vadd.f32 0.0, %v3746
        %v3748 = vpop.f32.mrb[0].mxu0
        %v3749 = vadd.f32 0.0, %v3748
        %v3750 = vpop.f32.mrb[0].mxu0
        %v3751 = vadd.f32 0.0, %v3750
        %3752 = vmatprep.mubr.bf16.mxu0 %v3669
        %3753 = vmatmul.mubr.bf16.gmra.mrb[0].mxu0 %v3459
        %v3754 = vpop.f32.mrb[0].mxu0
        %v3755 = vadd.f32 0.0, %v3754
        %v3756 = vpop.f32.mrb[0].mxu0
        %v3757 = vadd.f32 0.0, %v3756
        %v3758 = vpop.f32.mrb[0].mxu0
        %v3759 = vadd.f32 0.0, %v3758
        %v3760 = vpop.f32.mrb[0].mxu0
        %v3761 = vadd.f32 0.0, %v3760
        %3762 = vmatprep.mubr.bf16.mxu0 %v3672
        %3763 = vmatmul.mubr.bf16.gmra.mrb[0].mxu0 %v3463
        %v3764 = vpop.f32.mrb[0].mxu0
        %v3765 = vadd.f32 0.0, %v3764
        %v3766 = vpop.f32.mrb[0].mxu0
        %v3767 = vadd.f32 0.0, %v3766
        %v3768 = vpop.f32.mrb[0].mxu0
        %v3769 = vadd.f32 0.0, %v3768
        %v3770 = vpop.f32.mrb[0].mxu0
        %v3771 = vadd.f32 0.0, %v3770
        %3772 = vmatprep.mubr.bf16.mxu0 %v3675
        %3773 = vmatmul.mubr.bf16.gmra.mrb[0].mxu0 %v3467
        %v3774 = vpop.f32.mrb[0].mxu0
        %v3775 = vadd.f32 0.0, %v3774
        %v3776 = vpop.f32.mrb[0].mxu0
        %v3777 = vadd.f32 0.0, %v3776
        %v3778 = vpop.f32.mrb[0].mxu0
        %v3779 = vadd.f32 0.0, %v3778
        %v3780 = vpop.f32.mrb[0].mxu0
        %v3781 = vadd.f32 0.0, %v3780
        %3782 = vmatprep.mubr.bf16.mxu0 %v3678
        %3783 = vmatmul.mubr.bf16.gmra.mrb[0].mxu0 %v3471
        %v3784 = vpop.f32.mrb[0].mxu0
        %v3785 = vadd.f32 0.0, %v3784
        %v3786 = vpop.f32.mrb[0].mxu0
        %v3787 = vadd.f32 0.0, %v3786
        %v3788 = vpop.f32.mrb[0].mxu0
        %v3789 = vadd.f32 0.0, %v3788
        %v3790 = vpop.f32.mrb[0].mxu0
        %v3791 = vadd.f32 0.0, %v3790
        %3792 = vmatprep.mubr.bf16.mxu0 %v3681
        %3793 = vmatmul.mubr.bf16.gmra.mrb[0].mxu0 %v3475
        %v3794 = vpop.f32.mrb[0].mxu0
        %v3795 = vadd.f32 0.0, %v3794
        %v3796 = vpop.f32.mrb[0].mxu0
        %v3797 = vadd.f32 0.0, %v3796
        %v3798 = vpop.f32.mrb[0].mxu0
        %v3799 = vadd.f32 0.0, %v3798
        %v3800 = vpop.f32.mrb[0].mxu0
        %v3801 = vadd.f32 0.0, %v3800
        %3802 = vmatprep.mubr.bf16.mxu0 %v3684
        %3803 = vmatmul.mubr.bf16.gmra.mrb[0].mxu0 %v3479
        %v3804 = vpop.f32.mrb[0].mxu0
        %v3805 = vadd.f32 0.0, %v3804
        %v3806 = vpop.f32.mrb[0].mxu0
        %v3807 = vadd.f32 0.0, %v3806
        %v3808 = vpop.f32.mrb[0].mxu0
        %v3809 = vadd.f32 0.0, %v3808
        %v3810 = vpop.f32.mrb[0].mxu0
        %v3811 = vadd.f32 0.0, %v3810
        %3812 = vmatprep.mubr.bf16.mxu0 %v3687
        %3813 = vmatmul.mubr.bf16.gmra.mrb[0].mxu0 %v3483
        %v3814 = vpop.f32.mrb[0].mxu0
        %v3815 = vadd.f32 0.0, %v3814
        %v3816 = vpop.f32.mrb[0].mxu0
        %v3817 = vadd.f32 0.0, %v3816
        %v3818 = vpop.f32.mrb[0].mxu0
        %v3819 = vadd.f32 0.0, %v3818
        %v3820 = vpop.f32.mrb[0].mxu0
        %v3821 = vadd.f32 0.0, %v3820
        %3822 = vmatprep.mubr.bf16.mxu0 %v3690
        %3823 = vmatmul.mubr.bf16.gmra.mrb[0].mxu0 %v3487
        %v3824 = vpop.f32.mrb[0].mxu0
        %v3825 = vadd.f32 0.0, %v3824
        %v3826 = vpop.f32.mrb[0].mxu0
        %v3827 = vadd.f32 0.0, %v3826
        %v3828 = vpop.f32.mrb[0].mxu0
        %v3829 = vadd.f32 0.0, %v3828
        %v3830 = vpop.f32.mrb[0].mxu0
        %v3831 = vadd.f32 0.0, %v3830
        %3832 = vmatprep.mubr.bf16.mxu0 %v3693
        %3833 = vmatmul.mubr.bf16.gmra.mrb[0].mxu0 %v3491
        %v3834 = vpop.f32.mrb[0].mxu0
        %v3835 = vadd.f32 0.0, %v3834
        %v3836 = vpop.f32.mrb[0].mxu0
        %v3837 = vadd.f32 0.0, %v3836
        %v3838 = vpop.f32.mrb[0].mxu0
        %v3839 = vadd.f32 0.0, %v3838
        %v3840 = vpop.f32.mrb[0].mxu0
        %v3841 = vadd.f32 0.0, %v3840
        %3842 = vmatprep.mubr.bf16.mxu0 %v3696
        %3843 = vmatmul.mubr.bf16.gmra.mrb[0].mxu0 %v3495
        %v3844 = vpop.f32.mrb[0].mxu0
        %v3845 = vadd.f32 0.0, %v3844
        %v3846 = vpop.f32.mrb[0].mxu0
        %v3847 = vadd.f32 0.0, %v3846
        %v3848 = vpop.f32.mrb[0].mxu0
        %v3849 = vadd.f32 0.0, %v3848
        %v3850 = vpop.f32.mrb[0].mxu0
        %v3851 = vadd.f32 0.0, %v3850
        %3852 = vmatprep.mubr.bf16.mxu0 %v3699
        %3853 = vmatmul.mubr.bf16.gmra.mrb[0].mxu0 %v3499
        %v3854 = vpop.f32.mrb[0].mxu0
        %v3855 = vadd.f32 0.0, %v3854
        %v3856 = vpop.f32.mrb[0].mxu0
        %v3857 = vadd.f32 0.0, %v3856
        %v3858 = vpop.f32.mrb[0].mxu0
        %v3859 = vadd.f32 0.0, %v3858
        %v3860 = vpop.f32.mrb[0].mxu0
        %v3861 = vadd.f32 0.0, %v3860
        %3862 = vmatprep.mubr.bf16.mxu0 %v3702
        %3863 = vmatmul.mubr.bf16.gmra.mrb[0].mxu0 %v3503
        %v3864 = vpop.f32.mrb[0].mxu0
        %v3865 = vadd.f32 0.0, %v3864
        %v3866 = vpop.f32.mrb[0].mxu0
        %v3867 = vadd.f32 0.0, %v3866
        %v3868 = vpop.f32.mrb[0].mxu0
        %v3869 = vadd.f32 0.0, %v3868
        %v3870 = vpop.f32.mrb[0].mxu0
        %v3871 = vadd.f32 0.0, %v3870
        %3872 = vmatprep.mubr.bf16.mxu0 %v3705
        %3873 = vmatmul.mubr.bf16.gmra.mrb[0].mxu0 %v3507
        %v3874 = vpop.f32.mrb[0].mxu0
        %v3875 = vadd.f32 0.0, %v3874
        %v3876 = vpop.f32.mrb[0].mxu0
        %v3877 = vadd.f32 0.0, %v3876
        %v3878 = vpop.f32.mrb[0].mxu0
        %v3879 = vadd.f32 0.0, %v3878
        %v3880 = vpop.f32.mrb[0].mxu0
        %v3881 = vadd.f32 0.0, %v3880
        %3882 = vmatprep.mubr.bf16.mxu0 %v3708
        %3883 = vmatmul.mubr.bf16.gmra.mrb[0].mxu0 %v3506
        %v3884 = vpop.f32.mrb[0].mxu0
        %v3885 = vadd.f32 0.0, %v3884
        %v3886 = vpop.f32.mrb[0].mxu0
        %v3887 = vadd.f32 0.0, %v3886
        %v3888 = vpop.f32.mrb[0].mxu0
        %v3889 = vadd.f32 0.0, %v3888
        %v3890 = vpop.f32.mrb[0].mxu0
        %v3891 = vadd.f32 0.0, %v3890
        %3892 = vdwg.mxu0
        %v3893 = vadd.f32 %v3236, %v3745
        %v3894 = vadd.f32 %v3238, %v3747
        %v3895 = vadd.f32 %v3240, %v3749
        %v3896 = vadd.f32 %v3242, %v3751
        %v3897 = vadd.f32 %v3246, %v3755
        %v3898 = vadd.f32 %v3248, %v3757
        %v3899 = vadd.f32 %v3250, %v3759
        %v3900 = vadd.f32 %v3252, %v3761
        %v3901 = vadd.f32 %v3256, %v3765
        %v3902 = vadd.f32 %v3258, %v3767
        %v3903 = vadd.f32 %v3260, %v3769
        %v3904 = vadd.f32 %v3262, %v3771
        %v3905 = vadd.f32 %v3266, %v3775
        %v3906 = vadd.f32 %v3268, %v3777
        %v3907 = vadd.f32 %v3270, %v3779
        %v3908 = vadd.f32 %v3272, %v3781
        %v3909 = vadd.f32 %v3276, %v3785
        %v3910 = vadd.f32 %v3278, %v3787
        %v3911 = vadd.f32 %v3280, %v3789
        %v3912 = vadd.f32 %v3282, %v3791
        %v3913 = vadd.f32 %v3286, %v3795
        %v3914 = vadd.f32 %v3288, %v3797
        %v3915 = vadd.f32 %v3290, %v3799
        %v3916 = vadd.f32 %v3292, %v3801
        %v3917 = vadd.f32 %v3296, %v3805
        %v3918 = vadd.f32 %v3298, %v3807
        %v3919 = vadd.f32 %v3300, %v3809
        %v3920 = vadd.f32 %v3302, %v3811
        %v3921 = vadd.f32 %v3306, %v3815
        %v3922 = vadd.f32 %v3308, %v3817
        %v3923 = vadd.f32 %v3310, %v3819
        %v3924 = vadd.f32 %v3312, %v3821
        %v3925 = vadd.f32 %v3316, %v3825
        %v3926 = vadd.f32 %v3318, %v3827
        %v3927 = vadd.f32 %v3320, %v3829
        %v3928 = vadd.f32 %v3322, %v3831
        %v3929 = vadd.f32 %v3326, %v3835
        %v3930 = vadd.f32 %v3328, %v3837
        %v3931 = vadd.f32 %v3330, %v3839
        %v3932 = vadd.f32 %v3332, %v3841
        %v3933 = vadd.f32 %v3336, %v3845
        %v3934 = vadd.f32 %v3338, %v3847
        %v3935 = vadd.f32 %v3340, %v3849
        %v3936 = vadd.f32 %v3342, %v3851
        %v3937 = vadd.f32 %v3346, %v3855
        %v3938 = vadd.f32 %v3348, %v3857
        %v3939 = vadd.f32 %v3350, %v3859
        %v3940 = vadd.f32 %v3352, %v3861
        %v3941 = vadd.f32 %v3356, %v3865
        %v3942 = vadd.f32 %v3358, %v3867
        %v3943 = vadd.f32 %v3360, %v3869
        %v3944 = vadd.f32 %v3362, %v3871
        %v3945 = vadd.f32 %v3366, %v3875
        %v3946 = vadd.f32 %v3368, %v3877
        %v3947 = vadd.f32 %v3370, %v3879
        %v3948 = vadd.f32 %v3372, %v3881
        %v3949 = vadd.f32 %v3376, %v3885
        %v3950 = vadd.f32 %v3378, %v3887
        %v3951 = vadd.f32 %v3380, %v3889
        %v3952 = vadd.f32 %v3382, %v3891
        %v3953 = vld [vmem:[%s4] sm:$0x3]
        %v3955 = vlaneseq
        %v3956 = vshrl.u32 %v3955, 7
        %v3957 = vsub.s32 0, %v3956
        %v3958 = vrot.slane %v3953, %v3957
        %v3959 = vlaneseq
        %v3960 = vshrl.u32 %v3959, 7
        %v3961 = vsub.s32 1, %v3960
        %v3962 = vrot.slane %v3953, %v3961
        %v3965 = vadd.f32 %v3893, %v3958
        %v3966 = vadd.f32 %v3894, %v3962
        %v3967 = vadd.f32 %v3895, %v3958
        %v3968 = vadd.f32 %v3896, %v3962
        %v3969 = vadd.f32 %v3897, %v3958
        %v3970 = vadd.f32 %v3898, %v3962
        %v3971 = vadd.f32 %v3899, %v3958
        %v3972 = vadd.f32 %v3900, %v3962
        %v3973 = vadd.f32 %v3901, %v3958
        %v3974 = vadd.f32 %v3902, %v3962
        %v3975 = vadd.f32 %v3903, %v3958
        %v3976 = vadd.f32 %v3904, %v3962
        %v3977 = vadd.f32 %v3905, %v3958
        %v3978 = vadd.f32 %v3906, %v3962
        %v3979 = vadd.f32 %v3907, %v3958
        %v3980 = vadd.f32 %v3908, %v3962
        %v3981 = vadd.f32 %v3909, %v3958
        %v3982 = vadd.f32 %v3910, %v3962
        %v3983 = vadd.f32 %v3911, %v3958
        %v3984 = vadd.f32 %v3912, %v3962
        %v3985 = vadd.f32 %v3913, %v3958
        %v3986 = vadd.f32 %v3914, %v3962
        %v3987 = vadd.f32 %v3915, %v3958
        %v3988 = vadd.f32 %v3916, %v3962
        %v3989 = vadd.f32 %v3917, %v3958
        %v3990 = vadd.f32 %v3918, %v3962
        %v3991 = vadd.f32 %v3919, %v3958
        %v3992 = vadd.f32 %v3920, %v3962
        %v3993 = vadd.f32 %v3921, %v3958
        %v3994 = vadd.f32 %v3922, %v3962
        %v3995 = vadd.f32 %v3923, %v3958
        %v3996 = vadd.f32 %v3924, %v3962
        %v3997 = vadd.f32 %v3925, %v3958
        %v3998 = vadd.f32 %v3926, %v3962
        %v3999 = vadd.f32 %v3927, %v3958
        %v4000 = vadd.f32 %v3928, %v3962
        %v4001 = vadd.f32 %v3929, %v3958
        %v4002 = vadd.f32 %v3930, %v3962
        %v4003 = vadd.f32 %v3931, %v3958
        %v4004 = vadd.f32 %v3932, %v3962
        %v4005 = vadd.f32 %v3933, %v3958
        %v4006 = vadd.f32 %v3934, %v3962
        %v4007 = vadd.f32 %v3935, %v3958
        %v4008 = vadd.f32 %v3936, %v3962
        %v4009 = vadd.f32 %v3937, %v3958
        %v4010 = vadd.f32 %v3938, %v3962
        %v4011 = vadd.f32 %v3939, %v3958
        %v4012 = vadd.f32 %v3940, %v3962
        %v4013 = vadd.f32 %v3941, %v3958
        %v4014 = vadd.f32 %v3942, %v3962
        %v4015 = vadd.f32 %v3943, %v3958
        %v4016 = vadd.f32 %v3944, %v3962
        %v4017 = vadd.f32 %v3945, %v3958
        %v4018 = vadd.f32 %v3946, %v3962
        %v4019 = vadd.f32 %v3947, %v3958
        %v4020 = vadd.f32 %v3948, %v3962
        %v4021 = vadd.f32 %v3949, %v3958
        %v4022 = vadd.f32 %v3950, %v3962
        %v4023 = vadd.f32 %v3951, %v3958
        %v4024 = vadd.f32 %v3952, %v3962
        %v4025 = vmax.f32 %v3965, 0.0
        %v4026 = vmax.f32 %v3966, 0.0
        %v4027 = vmax.f32 %v3967, 0.0
        %v4028 = vmax.f32 %v3968, 0.0
        %v4029 = vmax.f32 %v3969, 0.0
        %v4030 = vmax.f32 %v3970, 0.0
        %v4031 = vmax.f32 %v3971, 0.0
        %v4032 = vmax.f32 %v3972, 0.0
        %v4033 = vmax.f32 %v3973, 0.0
        %v4034 = vmax.f32 %v3974, 0.0
        %v4035 = vmax.f32 %v3975, 0.0
        %v4036 = vmax.f32 %v3976, 0.0
        %v4037 = vmax.f32 %v3977, 0.0
        %v4038 = vmax.f32 %v3978, 0.0
        %v4039 = vmax.f32 %v3979, 0.0
        %v4040 = vmax.f32 %v3980, 0.0
        %v4041 = vmax.f32 %v3981, 0.0
        %v4042 = vmax.f32 %v3982, 0.0
        %v4043 = vmax.f32 %v3983, 0.0
        %v4044 = vmax.f32 %v3984, 0.0
        %v4045 = vmax.f32 %v3985, 0.0
        %v4046 = vmax.f32 %v3986, 0.0
        %v4047 = vmax.f32 %v3987, 0.0
        %v4048 = vmax.f32 %v3988, 0.0
        %v4049 = vmax.f32 %v3989, 0.0
        %v4050 = vmax.f32 %v3990, 0.0
        %v4051 = vmax.f32 %v3991, 0.0
        %v4052 = vmax.f32 %v3992, 0.0
        %v4053 = vmax.f32 %v3993, 0.0
        %v4054 = vmax.f32 %v3994, 0.0
        %v4055 = vmax.f32 %v3995, 0.0
        %v4056 = vmax.f32 %v3996, 0.0
        %v4057 = vmax.f32 %v3997, 0.0
        %v4058 = vmax.f32 %v3998, 0.0
        %v4059 = vmax.f32 %v3999, 0.0
        %v4060 = vmax.f32 %v4000, 0.0
        %v4061 = vmax.f32 %v4001, 0.0
        %v4062 = vmax.f32 %v4002, 0.0
        %v4063 = vmax.f32 %v4003, 0.0
        %v4064 = vmax.f32 %v4004, 0.0
        %v4065 = vmax.f32 %v4005, 0.0
        %v4066 = vmax.f32 %v4006, 0.0
        %v4067 = vmax.f32 %v4007, 0.0
        %v4068 = vmax.f32 %v4008, 0.0
        %v4069 = vmax.f32 %v4009, 0.0
        %v4070 = vmax.f32 %v4010, 0.0
        %v4071 = vmax.f32 %v4011, 0.0
        %v4072 = vmax.f32 %v4012, 0.0
        %v4073 = vmax.f32 %v4013, 0.0
        %v4074 = vmax.f32 %v4014, 0.0
        %v4075 = vmax.f32 %v4015, 0.0
        %v4076 = vmax.f32 %v4016, 0.0
        %v4077 = vmax.f32 %v4017, 0.0
        %v4078 = vmax.f32 %v4018, 0.0
        %v4079 = vmax.f32 %v4019, 0.0
        %v4080 = vmax.f32 %v4020, 0.0
        %v4081 = vmax.f32 %v4021, 0.0
        %v4082 = vmax.f32 %v4022, 0.0
        %v4083 = vmax.f32 %v4023, 0.0
        %v4084 = vmax.f32 %v4024, 0.0
        %4085 = vst [vmem:[#allocation5] sm:$0xff] %v4025
        %4086 = vst.msk [vmem:[#allocation5 + $0x8] sm:$0xff] %vm2184, %v4026
        %4087 = vst [vmem:[#allocation5 + $0x10] sm:$0xff] %v4027
        %4088 = vst.msk [vmem:[#allocation5 + $0x18] sm:$0xff] %vm2184, %v4028
        %4089 = vst [vmem:[#allocation5 + $0x20] sm:$0xff] %v4029
        %4090 = vst.msk [vmem:[#allocation5 + $0x28] sm:$0xff] %vm2184, %v4030
        %4091 = vst [vmem:[#allocation5 + $0x30] sm:$0xff] %v4031
        %4092 = vst.msk [vmem:[#allocation5 + $0x38] sm:$0xff] %vm2184, %v4032
        %4093 = vst [vmem:[#allocation5 + $0x40] sm:$0xff] %v4033
        %4094 = vst.msk [vmem:[#allocation5 + $0x48] sm:$0xff] %vm2184, %v4034
        %4095 = vst [vmem:[#allocation5 + $0x50] sm:$0xff] %v4035
        %4096 = vst.msk [vmem:[#allocation5 + $0x58] sm:$0xff] %vm2184, %v4036
        %4097 = vst [vmem:[#allocation5 + $0x60] sm:$0xff] %v4037
        %4098 = vst.msk [vmem:[#allocation5 + $0x68] sm:$0xff] %vm2184, %v4038
        %4099 = vst [vmem:[#allocation5 + $0x70] sm:$0xff] %v4039
        %4100 = vst.msk [vmem:[#allocation5 + $0x78] sm:$0xff] %vm2184, %v4040
        %4101 = vst [vmem:[#allocation5 + $0x80] sm:$0xff] %v4041
        %4102 = vst.msk [vmem:[#allocation5 + $0x88] sm:$0xff] %vm2184, %v4042
        %4103 = vst [vmem:[#allocation5 + $0x90] sm:$0xff] %v4043
        %4104 = vst.msk [vmem:[#allocation5 + $0x98] sm:$0xff] %vm2184, %v4044
        %4105 = vst [vmem:[#allocation5 + $0xa0] sm:$0xff] %v4045
        %4106 = vst.msk [vmem:[#allocation5 + $0xa8] sm:$0xff] %vm2184, %v4046
        %4107 = vst [vmem:[#allocation5 + $0xb0] sm:$0xff] %v4047
        %4108 = vst.msk [vmem:[#allocation5 + $0xb8] sm:$0xff] %vm2184, %v4048
        %4109 = vst [vmem:[#allocation5 + $0xc0] sm:$0xff] %v4049
        %4110 = vst.msk [vmem:[#allocation5 + $0xc8] sm:$0xff] %vm2184, %v4050
        %4111 = vst [vmem:[#allocation5 + $0xd0] sm:$0xff] %v4051
        %4112 = vst.msk [vmem:[#allocation5 + $0xd8] sm:$0xff] %vm2184, %v4052
        %4113 = vst [vmem:[#allocation5 + $0xe0] sm:$0xff] %v4053
        %4114 = vst.msk [vmem:[#allocation5 + $0xe8] sm:$0xff] %vm2184, %v4054
        %4115 = vst [vmem:[#allocation5 + $0xf0] sm:$0xff] %v4055
        %4116 = vst.msk [vmem:[#allocation5 + $0xf8] sm:$0xff] %vm2184, %v4056
        %4117 = vst [vmem:[#allocation5 + $0x100] sm:$0xff] %v4057
        %4118 = vst.msk [vmem:[#allocation5 + $0x108] sm:$0xff] %vm2184, %v4058
        %4119 = vst [vmem:[#allocation5 + $0x110] sm:$0xff] %v4059
        %4120 = vst.msk [vmem:[#allocation5 + $0x118] sm:$0xff] %vm2184, %v4060
        %4121 = vst [vmem:[#allocation5 + $0x120] sm:$0xff] %v4061
        %4122 = vst.msk [vmem:[#allocation5 + $0x128] sm:$0xff] %vm2184, %v4062
        %4123 = vst [vmem:[#allocation5 + $0x130] sm:$0xff] %v4063
        %4124 = vst.msk [vmem:[#allocation5 + $0x138] sm:$0xff] %vm2184, %v4064
        %4125 = vst [vmem:[#allocation5 + $0x140] sm:$0xff] %v4065
        %4126 = vst.msk [vmem:[#allocation5 + $0x148] sm:$0xff] %vm2184, %v4066
        %4127 = vst [vmem:[#allocation5 + $0x150] sm:$0xff] %v4067
        %4128 = vst.msk [vmem:[#allocation5 + $0x158] sm:$0xff] %vm2184, %v4068
        %4129 = vst [vmem:[#allocation5 + $0x160] sm:$0xff] %v4069
        %4130 = vst.msk [vmem:[#allocation5 + $0x168] sm:$0xff] %vm2184, %v4070
        %4131 = vst [vmem:[#allocation5 + $0x170] sm:$0xff] %v4071
        %4132 = vst.msk [vmem:[#allocation5 + $0x178] sm:$0xff] %vm2184, %v4072
        %4133 = vst [vmem:[#allocation5 + $0x180] sm:$0xff] %v4073
        %4134 = vst.msk [vmem:[#allocation5 + $0x188] sm:$0xff] %vm2184, %v4074
        %4135 = vst [vmem:[#allocation5 + $0x190] sm:$0xff] %v4075
        %4136 = vst.msk [vmem:[#allocation5 + $0x198] sm:$0xff] %vm2184, %v4076
        %4137 = vst [vmem:[#allocation5 + $0x1a0] sm:$0xff] %v4077
        %4138 = vst.msk [vmem:[#allocation5 + $0x1a8] sm:$0xff] %vm2184, %v4078
        %4139 = vst [vmem:[#allocation5 + $0x1b0] sm:$0xff] %v4079
        %4140 = vst.msk [vmem:[#allocation5 + $0x1b8] sm:$0xff] %vm2184, %v4080
        %4141 = vst [vmem:[#allocation5 + $0x1c0] sm:$0xff] %v4081
        %4142 = vst.msk [vmem:[#allocation5 + $0x1c8] sm:$0xff] %vm2184, %v4082
        %4143 = vst [vmem:[#allocation5 + $0x1d0] sm:$0x3f] %v4083
        %vm4144 = vcmask 783360
        %4145 = vst.msk [vmem:[#allocation5 + $0x1d8] sm:$0x3f] %vm4144, %v4084
        %v4146 = vld [vmem:[#allocation5] sm:$0xff]
        %v4147 = vld [vmem:[#allocation5 + $0x8] sm:$0xff]
        %v4148 = vld [vmem:[#allocation5 + $0x10] sm:$0xff]
        %v4149 = vld [vmem:[#allocation5 + $0x18] sm:$0xff]
        %v4150 = vld [vmem:[#allocation5 + $0x20] sm:$0xff]
        %v4151 = vld [vmem:[#allocation5 + $0x28] sm:$0xff]
        %v4152 = vld [vmem:[#allocation5 + $0x30] sm:$0xff]
        %v4153 = vld [vmem:[#allocation5 + $0x38] sm:$0xff]
        %v4154 = vld [vmem:[#allocation5 + $0x40] sm:$0xff]
        %v4155 = vld [vmem:[#allocation5 + $0x48] sm:$0xff]
        %v4156 = vld [vmem:[#allocation5 + $0x50] sm:$0xff]
        %v4157 = vld [vmem:[#allocation5 + $0x58] sm:$0xff]
        %v4158 = vld [vmem:[#allocation5 + $0x60] sm:$0xff]
        %v4159 = vld [vmem:[#allocation5 + $0x68] sm:$0xff]
        %v4160 = vld [vmem:[#allocation5 + $0x70] sm:$0xff]
        %v4161 = vld [vmem:[#allocation5 + $0x78] sm:$0xff]
        %v4162 = vld [vmem:[#allocation5 + $0x80] sm:$0xff]
        %v4163 = vld [vmem:[#allocation5 + $0x88] sm:$0xff]
        %v4164 = vld [vmem:[#allocation5 + $0x90] sm:$0xff]
        %v4165 = vld [vmem:[#allocation5 + $0x98] sm:$0xff]
        %v4166 = vld [vmem:[#allocation5 + $0xa0] sm:$0xff]
        %v4167 = vld [vmem:[#allocation5 + $0xa8] sm:$0xff]
        %v4168 = vld [vmem:[#allocation5 + $0xb0] sm:$0xff]
        %v4169 = vld [vmem:[#allocation5 + $0xb8] sm:$0xff]
        %v4170 = vld [vmem:[#allocation5 + $0xc0] sm:$0xff]
        %v4171 = vld [vmem:[#allocation5 + $0xc8] sm:$0xff]
        %v4172 = vld [vmem:[#allocation5 + $0xd0] sm:$0xff]
        %v4173 = vld [vmem:[#allocation5 + $0xd8] sm:$0xff]
        %v4174 = vld [vmem:[#allocation5 + $0xe0] sm:$0xff]
        %v4175 = vld [vmem:[#allocation5 + $0xe8] sm:$0xff]
        %v4176 = vld [vmem:[#allocation5 + $0xf0] sm:$0xff]
        %v4177 = vld [vmem:[#allocation5 + $0xf8] sm:$0xff]
        %v4178 = vld [vmem:[#allocation5 + $0x100] sm:$0xff]
        %v4179 = vld [vmem:[#allocation5 + $0x108] sm:$0xff]
        %v4180 = vld [vmem:[#allocation5 + $0x110] sm:$0xff]
        %v4181 = vld [vmem:[#allocation5 + $0x118] sm:$0xff]
        %v4182 = vld [vmem:[#allocation5 + $0x120] sm:$0xff]
        %v4183 = vld [vmem:[#allocation5 + $0x128] sm:$0xff]
        %v4184 = vld [vmem:[#allocation5 + $0x130] sm:$0xff]
        %v4185 = vld [vmem:[#allocation5 + $0x138] sm:$0xff]
        %v4186 = vld [vmem:[#allocation5 + $0x140] sm:$0xff]
        %v4187 = vld [vmem:[#allocation5 + $0x148] sm:$0xff]
        %v4188 = vld [vmem:[#allocation5 + $0x150] sm:$0xff]
        %v4189 = vld [vmem:[#allocation5 + $0x158] sm:$0xff]
        %v4190 = vld [vmem:[#allocation5 + $0x160] sm:$0xff]
        %v4191 = vld [vmem:[#allocation5 + $0x168] sm:$0xff]
        %v4192 = vld [vmem:[#allocation5 + $0x170] sm:$0xff]
        %v4193 = vld [vmem:[#allocation5 + $0x178] sm:$0xff]
        %v4194 = vld [vmem:[#allocation5 + $0x180] sm:$0xff]
        %v4195 = vld [vmem:[#allocation5 + $0x188] sm:$0xff]
        %v4196 = vld [vmem:[#allocation5 + $0x190] sm:$0xff]
        %v4197 = vld [vmem:[#allocation5 + $0x198] sm:$0xff]
        %v4198 = vld [vmem:[#allocation5 + $0x1a0] sm:$0xff]
        %v4199 = vld [vmem:[#allocation5 + $0x1a8] sm:$0xff]
        %v4200 = vld [vmem:[#allocation5 + $0x1b0] sm:$0xff]
        %v4201 = vld [vmem:[#allocation5 + $0x1b8] sm:$0xff]
        %v4202 = vld [vmem:[#allocation5 + $0x1c0] sm:$0xff]
        %v4203 = vld [vmem:[#allocation5 + $0x1c8] sm:$0xff]
        %v4204 = vld [vmem:[#allocation5 + $0x1d0] sm:$0x1f]
        %v4205 = vld [vmem:[#allocation5 + $0x1d8] sm:$0x1f]
        %v4206 = vld [vmem:[#allocation5] sm:$0xfe]
        %v4207 = vld [vmem:[#allocation5 + $0x8] sm:$0xfe]
        %v4208 = vld [vmem:[#allocation5 + $0x1d0] sm:$0x3f]
        %v4209 = vld [vmem:[#allocation5 + $0x1d8] sm:$0x3f]
        %vm4270 = vcmask 1046528
        %v4271 = vrot.slane %v4206, 1
        %v4272 = vrot.slane %v4148, 1
        %v4273 = vsel %vm4270, %v4271, %v4272
        %v4274 = vrot.slane %v4207, 1
        %v4275 = vrot.slane %v4149, 1
        %v4276 = vsel %vm4270, %v4274, %v4275
        %v4277 = vrot.slane %v4150, 1
        %v4278 = vsel %vm4270, %v4272, %v4277
        %v4279 = vrot.slane %v4151, 1
        %v4280 = vsel %vm4270, %v4275, %v4279
        %v4281 = vrot.slane %v4152, 1
        %v4282 = vsel %vm4270, %v4277, %v4281
        %v4283 = vrot.slane %v4153, 1
        %v4284 = vsel %vm4270, %v4279, %v4283
        %v4285 = vrot.slane %v4154, 1
        %v4286 = vsel %vm4270, %v4281, %v4285
        %v4287 = vrot.slane %v4155, 1
        %v4288 = vsel %vm4270, %v4283, %v4287
        %v4289 = vrot.slane %v4156, 1
        %v4290 = vsel %vm4270, %v4285, %v4289
        %v4291 = vrot.slane %v4157, 1
        %v4292 = vsel %vm4270, %v4287, %v4291
        %v4293 = vrot.slane %v4158, 1
        %v4294 = vsel %vm4270, %v4289, %v4293
        %v4295 = vrot.slane %v4159, 1
        %v4296 = vsel %vm4270, %v4291, %v4295
        %v4297 = vrot.slane %v4160, 1
        %v4298 = vsel %vm4270, %v4293, %v4297
        %v4299 = vrot.slane %v4161, 1
        %v4300 = vsel %vm4270, %v4295, %v4299
        %v4301 = vrot.slane %v4162, 1
        %v4302 = vsel %vm4270, %v4297, %v4301
        %v4303 = vrot.slane %v4163, 1
        %v4304 = vsel %vm4270, %v4299, %v4303
        %v4305 = vrot.slane %v4164, 1
        %v4306 = vsel %vm4270, %v4301, %v4305
        %v4307 = vrot.slane %v4165, 1
        %v4308 = vsel %vm4270, %v4303, %v4307
        %v4309 = vrot.slane %v4166, 1
        %v4310 = vsel %vm4270, %v4305, %v4309
        %v4311 = vrot.slane %v4167, 1
        %v4312 = vsel %vm4270, %v4307, %v4311
        %v4313 = vrot.slane %v4168, 1
        %v4314 = vsel %vm4270, %v4309, %v4313
        %v4315 = vrot.slane %v4169, 1
        %v4316 = vsel %vm4270, %v4311, %v4315
        %v4317 = vrot.slane %v4170, 1
        %v4318 = vsel %vm4270, %v4313, %v4317
        %v4319 = vrot.slane %v4171, 1
        %v4320 = vsel %vm4270, %v4315, %v4319
        %v4321 = vrot.slane %v4172, 1
        %v4322 = vsel %vm4270, %v4317, %v4321
        %v4323 = vrot.slane %v4173, 1
        %v4324 = vsel %vm4270, %v4319, %v4323
        %v4325 = vrot.slane %v4174, 1
        %v4326 = vsel %vm4270, %v4321, %v4325
        %v4327 = vrot.slane %v4175, 1
        %v4328 = vsel %vm4270, %v4323, %v4327
        %v4329 = vrot.slane %v4176, 1
        %v4330 = vsel %vm4270, %v4325, %v4329
        %v4331 = vrot.slane %v4177, 1
        %v4332 = vsel %vm4270, %v4327, %v4331
        %v4333 = vrot.slane %v4178, 1
        %v4334 = vsel %vm4270, %v4329, %v4333
        %v4335 = vrot.slane %v4179, 1
        %v4336 = vsel %vm4270, %v4331, %v4335
        %v4337 = vrot.slane %v4180, 1
        %v4338 = vsel %vm4270, %v4333, %v4337
        %v4339 = vrot.slane %v4181, 1
        %v4340 = vsel %vm4270, %v4335, %v4339
        %v4341 = vrot.slane %v4182, 1
        %v4342 = vsel %vm4270, %v4337, %v4341
        %v4343 = vrot.slane %v4183, 1
        %v4344 = vsel %vm4270, %v4339, %v4343
        %v4345 = vrot.slane %v4184, 1
        %v4346 = vsel %vm4270, %v4341, %v4345
        %v4347 = vrot.slane %v4185, 1
        %v4348 = vsel %vm4270, %v4343, %v4347
        %v4349 = vrot.slane %v4186, 1
        %v4350 = vsel %vm4270, %v4345, %v4349
        %v4351 = vrot.slane %v4187, 1
        %v4352 = vsel %vm4270, %v4347, %v4351
        %v4353 = vrot.slane %v4188, 1
        %v4354 = vsel %vm4270, %v4349, %v4353
        %v4355 = vrot.slane %v4189, 1
        %v4356 = vsel %vm4270, %v4351, %v4355
        %v4357 = vrot.slane %v4190, 1
        %v4358 = vsel %vm4270, %v4353, %v4357
        %v4359 = vrot.slane %v4191, 1
        %v4360 = vsel %vm4270, %v4355, %v4359
        %v4361 = vrot.slane %v4192, 1
        %v4362 = vsel %vm4270, %v4357, %v4361
        %v4363 = vrot.slane %v4193, 1
        %v4364 = vsel %vm4270, %v4359, %v4363
        %v4365 = vrot.slane %v4194, 1
        %v4366 = vsel %vm4270, %v4361, %v4365
        %v4367 = vrot.slane %v4195, 1
        %v4368 = vsel %vm4270, %v4363, %v4367
        %v4369 = vrot.slane %v4196, 1
        %v4370 = vsel %vm4270, %v4365, %v4369
        %v4371 = vrot.slane %v4197, 1
        %v4372 = vsel %vm4270, %v4367, %v4371
        %v4373 = vrot.slane %v4198, 1
        %v4374 = vsel %vm4270, %v4369, %v4373
        %v4375 = vrot.slane %v4199, 1
        %v4376 = vsel %vm4270, %v4371, %v4375
        %v4377 = vrot.slane %v4200, 1
        %v4378 = vsel %vm4270, %v4373, %v4377
        %v4379 = vrot.slane %v4201, 1
        %v4380 = vsel %vm4270, %v4375, %v4379
        %v4381 = vrot.slane %v4202, 1
        %v4382 = vsel %vm4270, %v4377, %v4381
        %v4383 = vrot.slane %v4203, 1
        %v4384 = vsel %vm4270, %v4379, %v4383
        %v4385 = vrot.slane %v4208, 1
        %v4386 = vsel %vm4270, %v4381, %v4385
        %v4387 = vrot.slane %v4209, 1
        %v4388 = vsel %vm4270, %v4383, %v4387
        %v4449 = vmax.f32 %v4146, %v4273
        %v4450 = vmax.f32 %v4147, %v4276
        %v4451 = vmax.f32 %v4148, %v4278
        %v4452 = vmax.f32 %v4149, %v4280
        %v4453 = vmax.f32 %v4150, %v4282
        %v4454 = vmax.f32 %v4151, %v4284
        %v4455 = vmax.f32 %v4152, %v4286
        %v4456 = vmax.f32 %v4153, %v4288
        %v4457 = vmax.f32 %v4154, %v4290
        %v4458 = vmax.f32 %v4155, %v4292
        %v4459 = vmax.f32 %v4156, %v4294
        %v4460 = vmax.f32 %v4157, %v4296
        %v4461 = vmax.f32 %v4158, %v4298
        %v4462 = vmax.f32 %v4159, %v4300
        %v4463 = vmax.f32 %v4160, %v4302
        %v4464 = vmax.f32 %v4161, %v4304
        %v4465 = vmax.f32 %v4162, %v4306
        %v4466 = vmax.f32 %v4163, %v4308
        %v4467 = vmax.f32 %v4164, %v4310
        %v4468 = vmax.f32 %v4165, %v4312
        %v4469 = vmax.f32 %v4166, %v4314
        %v4470 = vmax.f32 %v4167, %v4316
        %v4471 = vmax.f32 %v4168, %v4318
        %v4472 = vmax.f32 %v4169, %v4320
        %v4473 = vmax.f32 %v4170, %v4322
        %v4474 = vmax.f32 %v4171, %v4324
        %v4475 = vmax.f32 %v4172, %v4326
        %v4476 = vmax.f32 %v4173, %v4328
        %v4477 = vmax.f32 %v4174, %v4330
        %v4478 = vmax.f32 %v4175, %v4332
        %v4479 = vmax.f32 %v4176, %v4334
        %v4480 = vmax.f32 %v4177, %v4336
        %v4481 = vmax.f32 %v4178, %v4338
        %v4482 = vmax.f32 %v4179, %v4340
        %v4483 = vmax.f32 %v4180, %v4342
        %v4484 = vmax.f32 %v4181, %v4344
        %v4485 = vmax.f32 %v4182, %v4346
        %v4486 = vmax.f32 %v4183, %v4348
        %v4487 = vmax.f32 %v4184, %v4350
        %v4488 = vmax.f32 %v4185, %v4352
        %v4489 = vmax.f32 %v4186, %v4354
        %v4490 = vmax.f32 %v4187, %v4356
        %v4491 = vmax.f32 %v4188, %v4358
        %v4492 = vmax.f32 %v4189, %v4360
        %v4493 = vmax.f32 %v4190, %v4362
        %v4494 = vmax.f32 %v4191, %v4364
        %v4495 = vmax.f32 %v4192, %v4366
        %v4496 = vmax.f32 %v4193, %v4368
        %v4497 = vmax.f32 %v4194, %v4370
        %v4498 = vmax.f32 %v4195, %v4372
        %v4499 = vmax.f32 %v4196, %v4374
        %v4500 = vmax.f32 %v4197, %v4376
        %v4501 = vmax.f32 %v4198, %v4378
        %v4502 = vmax.f32 %v4199, %v4380
        %v4503 = vmax.f32 %v4200, %v4382
        %v4504 = vmax.f32 %v4201, %v4384
        %v4505 = vmax.f32 %v4202, %v4386
        %v4506 = vmax.f32 %v4203, %v4388
        %v4507 = vmax.f32 %v4204, %v4385
        %v4508 = vmax.f32 %v4205, %v4387
        %v4509 = vpack.c.bf16 %v4451, %v4449
        %v4510 = vpack.c.bf16 %v4452, %v4450
        %v4511 = vpack.c.bf16 %v4455, %v4453
        %v4512 = vpack.c.bf16 %v4456, %v4454
        %v4513 = vpack.c.bf16 %v4459, %v4457
        %v4514 = vpack.c.bf16 %v4460, %v4458
        %v4515 = vpack.c.bf16 %v4463, %v4461
        %v4516 = vpack.c.bf16 %v4464, %v4462
        %v4517 = vpack.c.bf16 %v4467, %v4465
        %v4518 = vpack.c.bf16 %v4468, %v4466
        %v4519 = vpack.c.bf16 %v4471, %v4469
        %v4520 = vpack.c.bf16 %v4472, %v4470
        %v4521 = vpack.c.bf16 %v4475, %v4473
        %v4522 = vpack.c.bf16 %v4476, %v4474
        %v4523 = vpack.c.bf16 %v4479, %v4477
        %v4524 = vpack.c.bf16 %v4480, %v4478
        %v4525 = vpack.c.bf16 %v4483, %v4481
        %v4526 = vpack.c.bf16 %v4484, %v4482
        %v4527 = vpack.c.bf16 %v4487, %v4485
        %v4528 = vpack.c.bf16 %v4488, %v4486
        %v4529 = vpack.c.bf16 %v4491, %v4489
        %v4530 = vpack.c.bf16 %v4492, %v4490
        %v4531 = vpack.c.bf16 %v4495, %v4493
        %v4532 = vpack.c.bf16 %v4496, %v4494
        %v4533 = vpack.c.bf16 %v4499, %v4497
        %v4534 = vpack.c.bf16 %v4500, %v4498
        %v4535 = vpack.c.bf16 %v4503, %v4501
        %v4536 = vpack.c.bf16 %v4504, %v4502
        %v4537 = vpack.c.bf16 %v4507, %v4505
        %v4538 = vpack.c.bf16 %v4508, %v4506
        %v4539 = vld [vmem:[%s11] sm:$0xf]
        %v4540 = vld [vmem:[%s11 + $0x4] sm:$0xf]
        %v4541 = vld [vmem:[%s11 + $0x8] sm:$0xf]
        %v4542 = vld [vmem:[%s11 + $0xc] sm:$0xf]
        %v4543 = vld [vmem:[%s11 + $0x10] sm:$0xf]
        %v4544 = vld [vmem:[%s11 + $0x14] sm:$0xf]
        %v4545 = vld [vmem:[%s11 + $0x18] sm:$0xf]
        %v4546 = vld [vmem:[%s11 + $0x1c] sm:$0xf]
        %v4547 = vld [vmem:[%s11 + $0x20] sm:$0xf]
        %v4548 = vld [vmem:[%s11 + $0x24] sm:$0xf]
        %v4549 = vld [vmem:[%s11 + $0x28] sm:$0xf]
        %v4550 = vld [vmem:[%s11 + $0x2c] sm:$0xf]
        %v4551 = vld [vmem:[%s11 + $0x30] sm:$0xf]
        %v4552 = vld [vmem:[%s11 + $0x34] sm:$0xf]
        %v4553 = vld [vmem:[%s11 + $0x38] sm:$0xf]
        %v4554 = vld [vmem:[%s11 + $0x3c] sm:$0xf]
        %v4555 = vld [vmem:[%s11 + $0x40] sm:$0xf]
        %v4556 = vld [vmem:[%s11 + $0x44] sm:$0xf]
        %v4557 = vld [vmem:[%s11 + $0x48] sm:$0xf]
        %v4558 = vld [vmem:[%s11 + $0x4c] sm:$0xf]
        %v4559 = vld [vmem:[%s11 + $0x50] sm:$0xf]
        %v4560 = vld [vmem:[%s11 + $0x54] sm:$0xf]
        %v4561 = vld [vmem:[%s11 + $0x58] sm:$0xf]
        %v4562 = vld [vmem:[%s11 + $0x5c] sm:$0xf]
        %v4563 = vld [vmem:[%s11 + $0x60] sm:$0xf]
        %v4564 = vld [vmem:[%s11 + $0x64] sm:$0xf]
        %v4565 = vld [vmem:[%s11 + $0x68] sm:$0xf]
        %v4566 = vld [vmem:[%s11 + $0x6c] sm:$0xf]
        %v4595 = vunpack.c.l.b16 %v4539
        %v4596 = vunpack.c.l.b16 %v4540
        %v4597 = vunpack.c.l.b16 %v4541
        %v4598 = vunpack.c.l.b16 %v4542
        %v4599 = vunpack.c.l.b16 %v4543
        %v4600 = vunpack.c.l.b16 %v4544
        %v4601 = vunpack.c.l.b16 %v4545
        %v4602 = vunpack.c.l.b16 %v4546
        %v4603 = vunpack.c.l.b16 %v4547
        %v4604 = vunpack.c.l.b16 %v4548
        %v4605 = vunpack.c.l.b16 %v4549
        %v4606 = vunpack.c.l.b16 %v4550
        %v4607 = vunpack.c.l.b16 %v4551
        %v4608 = vunpack.c.l.b16 %v4552
        %v4609 = vunpack.c.l.b16 %v4553
        %v4610 = vunpack.c.l.b16 %v4554
        %v4611 = vunpack.c.l.b16 %v4555
        %v4612 = vunpack.c.l.b16 %v4556
        %v4613 = vunpack.c.l.b16 %v4557
        %v4614 = vunpack.c.l.b16 %v4558
        %v4615 = vunpack.c.l.b16 %v4559
        %v4616 = vunpack.c.l.b16 %v4560
        %v4617 = vunpack.c.l.b16 %v4561
        %v4618 = vunpack.c.l.b16 %v4562
        %v4619 = vunpack.c.l.b16 %v4563
        %v4620 = vunpack.c.l.b16 %v4564
        %v4621 = vunpack.c.l.b16 %v4565
        %v4622 = vunpack.c.l.b16 %v4566
        %v4623 = vpack.c.b16 %v4596, %v4595
        %v4624 = vpack.c.b16 %v4598, %v4597
        %v4625 = vpack.c.b16 %v4600, %v4599
        %v4626 = vpack.c.b16 %v4602, %v4601
        %v4627 = vpack.c.b16 %v4604, %v4603
        %v4628 = vpack.c.b16 %v4606, %v4605
        %v4629 = vpack.c.b16 %v4608, %v4607
        %v4630 = vpack.c.b16 %v4610, %v4609
        %v4631 = vpack.c.b16 %v4612, %v4611
        %v4632 = vpack.c.b16 %v4614, %v4613
        %v4633 = vpack.c.b16 %v4616, %v4615
        %v4634 = vpack.c.b16 %v4618, %v4617
        %v4635 = vpack.c.b16 %v4620, %v4619
        %v4636 = vpack.c.b16 %v4622, %v4621
        %v4652 = vsel %vm2184, %v4510, 0
        %v4655 = vsel %vm2184, %v4512, 0
        %v4658 = vsel %vm2184, %v4514, 0
        %v4661 = vsel %vm2184, %v4516, 0
        %v4664 = vsel %vm2184, %v4518, 0
        %v4667 = vsel %vm2184, %v4520, 0
        %v4670 = vsel %vm2184, %v4522, 0
        %v4673 = vsel %vm2184, %v4524, 0
        %v4676 = vsel %vm2184, %v4526, 0
        %v4679 = vsel %vm2184, %v4528, 0
        %v4682 = vsel %vm2184, %v4530, 0
        %v4685 = vsel %vm2184, %v4532, 0
        %v4688 = vsel %vm2184, %v4534, 0
        %v4691 = vsel %vm2184, %v4536, 0
        %v4694 = vsel %vm2184, %v4538, 0
        %4696 = vmatprep.subr.bf16.mxu0 0
        %4697 = vmatpush1.bf16.msra.mxu0 %v4623
        %4698 = vmatprep.subr.bf16.mxu0 0
        %4699 = vmatpush1.bf16.msra.mxu0 %v4624
        %4700 = vmatprep.subr.bf16.mxu0 0
        %4701 = vmatpush1.bf16.msra.mxu0 %v4625
        %4702 = vmatprep.subr.bf16.mxu0 0
        %4703 = vmatpush1.bf16.msra.mxu0 %v4626
        %4704 = vmatprep.subr.bf16.mxu0 0
        %4705 = vmatpush1.bf16.msra.mxu0 %v4627
        %4706 = vmatprep.subr.bf16.mxu0 0
        %4707 = vmatpush1.bf16.msra.mxu0 %v4628
        %4708 = vmatprep.subr.bf16.mxu0 0
        %4709 = vmatpush1.bf16.msra.mxu0 %v4629
        %4710 = vmatprep.subr.bf16.mxu0 0
        %4711 = vmatpush1.bf16.msra.mxu0 %v4630
        %4712 = vmatprep.subr.bf16.mxu0 0
        %4713 = vmatpush1.bf16.msra.mxu0 %v4631
        %4714 = vmatprep.subr.bf16.mxu0 0
        %4715 = vmatpush1.bf16.msra.mxu0 %v4632
        %4716 = vmatprep.subr.bf16.mxu0 0
        %4717 = vmatpush1.bf16.msra.mxu0 %v4633
        %4718 = vmatprep.subr.bf16.mxu0 0
        %4719 = vmatpush1.bf16.msra.mxu0 %v4634
        %4720 = vmatprep.subr.bf16.mxu0 0
        %4721 = vmatpush1.bf16.msra.mxu0 %v4635
        %4722 = vmatprep.subr.bf16.mxu0 0
        %4723 = vmatpush1.bf16.msra.mxu0 %v4636
        %4724 = vmatprep.subr.bf16.mxu0 0
        %4725 = vmatpush1.bf16.msra.mxu0 0
        %4726 = vmatprep.subr.bf16.mxu0 0
        %4727 = vmatpush1.bf16.msra.mxu0 0
        %4728 = vmatprep.mubr.bf16.mxu0 %v4652
        %4729 = vmatmul.mubr.bf16.gmra.mrb[0].mxu0 %v4509
        %v4730 = vpop.f32.mrb[0].mxu0
        %v4731 = vadd.f32 0.0, %v4730
        %v4732 = vpop.f32.mrb[0].mxu0
        %v4733 = vpop.f32.mrb[0].mxu0
        %v4734 = vadd.f32 0.0, %v4733
        %v4735 = vpop.f32.mrb[0].mxu0
        %4736 = vmatprep.mubr.bf16.mxu0 %v4655
        %4737 = vmatmul.mubr.bf16.gmra.mrb[0].mxu0 %v4511
        %v4738 = vpop.f32.mrb[0].mxu0
        %v4739 = vadd.f32 0.0, %v4738
        %v4740 = vpop.f32.mrb[0].mxu0
        %v4741 = vpop.f32.mrb[0].mxu0
        %v4742 = vadd.f32 0.0, %v4741
        %v4743 = vpop.f32.mrb[0].mxu0
        %4744 = vmatprep.mubr.bf16.mxu0 %v4658
        %4745 = vmatmul.mubr.bf16.gmra.mrb[0].mxu0 %v4513
        %v4746 = vpop.f32.mrb[0].mxu0
        %v4747 = vadd.f32 0.0, %v4746
        %v4748 = vpop.f32.mrb[0].mxu0
        %v4749 = vpop.f32.mrb[0].mxu0
        %v4750 = vadd.f32 0.0, %v4749
        %v4751 = vpop.f32.mrb[0].mxu0
        %4752 = vmatprep.mubr.bf16.mxu0 %v4661
        %4753 = vmatmul.mubr.bf16.gmra.mrb[0].mxu0 %v4515
        %v4754 = vpop.f32.mrb[0].mxu0
        %v4755 = vadd.f32 0.0, %v4754
        %v4756 = vpop.f32.mrb[0].mxu0
        %v4757 = vpop.f32.mrb[0].mxu0
        %v4758 = vadd.f32 0.0, %v4757
        %v4759 = vpop.f32.mrb[0].mxu0
        %4760 = vmatprep.mubr.bf16.mxu0 %v4664
        %4761 = vmatmul.mubr.bf16.gmra.mrb[0].mxu0 %v4517
        %v4762 = vpop.f32.mrb[0].mxu0
        %v4763 = vadd.f32 0.0, %v4762
        %v4764 = vpop.f32.mrb[0].mxu0
        %v4765 = vpop.f32.mrb[0].mxu0
        %v4766 = vadd.f32 0.0, %v4765
        %v4767 = vpop.f32.mrb[0].mxu0
        %4768 = vmatprep.mubr.bf16.mxu0 %v4667
        %4769 = vmatmul.mubr.bf16.gmra.mrb[0].mxu0 %v4519
        %v4770 = vpop.f32.mrb[0].mxu0
        %v4771 = vadd.f32 0.0, %v4770
        %v4772 = vpop.f32.mrb[0].mxu0
        %v4773 = vpop.f32.mrb[0].mxu0
        %v4774 = vadd.f32 0.0, %v4773
        %v4775 = vpop.f32.mrb[0].mxu0
        %4776 = vmatprep.mubr.bf16.mxu0 %v4670
        %4777 = vmatmul.mubr.bf16.gmra.mrb[0].mxu0 %v4521
        %v4778 = vpop.f32.mrb[0].mxu0
        %v4779 = vadd.f32 0.0, %v4778
        %v4780 = vpop.f32.mrb[0].mxu0
        %v4781 = vpop.f32.mrb[0].mxu0
        %v4782 = vadd.f32 0.0, %v4781
        %v4783 = vpop.f32.mrb[0].mxu0
        %4784 = vmatprep.mubr.bf16.mxu0 %v4673
        %4785 = vmatmul.mubr.bf16.gmra.mrb[0].mxu0 %v4523
        %v4786 = vpop.f32.mrb[0].mxu0
        %v4787 = vadd.f32 0.0, %v4786
        %v4788 = vpop.f32.mrb[0].mxu0
        %v4789 = vpop.f32.mrb[0].mxu0
        %v4790 = vadd.f32 0.0, %v4789
        %v4791 = vpop.f32.mrb[0].mxu0
        %4792 = vmatprep.mubr.bf16.mxu0 %v4676
        %4793 = vmatmul.mubr.bf16.gmra.mrb[0].mxu0 %v4525
        %v4794 = vpop.f32.mrb[0].mxu0
        %v4795 = vadd.f32 0.0, %v4794
        %v4796 = vpop.f32.mrb[0].mxu0
        %v4797 = vpop.f32.mrb[0].mxu0
        %v4798 = vadd.f32 0.0, %v4797
        %v4799 = vpop.f32.mrb[0].mxu0
        %4800 = vmatprep.mubr.bf16.mxu0 %v4679
        %4801 = vmatmul.mubr.bf16.gmra.mrb[0].mxu0 %v4527
        %v4802 = vpop.f32.mrb[0].mxu0
        %v4803 = vadd.f32 0.0, %v4802
        %v4804 = vpop.f32.mrb[0].mxu0
        %v4805 = vpop.f32.mrb[0].mxu0
        %v4806 = vadd.f32 0.0, %v4805
        %v4807 = vpop.f32.mrb[0].mxu0
        %4808 = vmatprep.mubr.bf16.mxu0 %v4682
        %4809 = vmatmul.mubr.bf16.gmra.mrb[0].mxu0 %v4529
        %v4810 = vpop.f32.mrb[0].mxu0
        %v4811 = vadd.f32 0.0, %v4810
        %v4812 = vpop.f32.mrb[0].mxu0
        %v4813 = vpop.f32.mrb[0].mxu0
        %v4814 = vadd.f32 0.0, %v4813
        %v4815 = vpop.f32.mrb[0].mxu0
        %4816 = vmatprep.mubr.bf16.mxu0 %v4685
        %4817 = vmatmul.mubr.bf16.gmra.mrb[0].mxu0 %v4531
        %v4818 = vpop.f32.mrb[0].mxu0
        %v4819 = vadd.f32 0.0, %v4818
        %v4820 = vpop.f32.mrb[0].mxu0
        %v4821 = vpop.f32.mrb[0].mxu0
        %v4822 = vadd.f32 0.0, %v4821
        %v4823 = vpop.f32.mrb[0].mxu0
        %4824 = vmatprep.mubr.bf16.mxu0 %v4688
        %4825 = vmatmul.mubr.bf16.gmra.mrb[0].mxu0 %v4533
        %v4826 = vpop.f32.mrb[0].mxu0
        %v4827 = vadd.f32 0.0, %v4826
        %v4828 = vpop.f32.mrb[0].mxu0
        %v4829 = vpop.f32.mrb[0].mxu0
        %v4830 = vadd.f32 0.0, %v4829
        %v4831 = vpop.f32.mrb[0].mxu0
        %4832 = vmatprep.mubr.bf16.mxu0 %v4691
        %4833 = vmatmul.mubr.bf16.gmra.mrb[0].mxu0 %v4535
        %v4834 = vpop.f32.mrb[0].mxu0
        %v4835 = vadd.f32 0.0, %v4834
        %v4836 = vpop.f32.mrb[0].mxu0
        %v4837 = vpop.f32.mrb[0].mxu0
        %v4838 = vadd.f32 0.0, %v4837
        %v4839 = vpop.f32.mrb[0].mxu0
        %4840 = vmatprep.mubr.bf16.mxu0 %v4694
        %4841 = vmatmul.mubr.bf16.gmra.mrb[0].mxu0 %v4537
        %v4842 = vpop.f32.mrb[0].mxu0
        %v4843 = vadd.f32 0.0, %v4842
        %v4844 = vpop.f32.mrb[0].mxu0
        %v4845 = vpop.f32.mrb[0].mxu0
        %v4846 = vadd.f32 0.0, %v4845
        %v4847 = vpop.f32.mrb[0].mxu0
        %4848 = vdwg.mxu0
        %v4849 = vld [vmem:[%s12] sm:$0xf]
        %v4850 = vld [vmem:[%s12 + $0x4] sm:$0xf]
        %v4851 = vld [vmem:[%s12 + $0x8] sm:$0xf]
        %v4852 = vld [vmem:[%s12 + $0xc] sm:$0xf]
        %v4853 = vld [vmem:[%s12 + $0x10] sm:$0xf]
        %v4854 = vld [vmem:[%s12 + $0x14] sm:$0xf]
        %v4855 = vld [vmem:[%s12 + $0x18] sm:$0xf]
        %v4856 = vld [vmem:[%s12 + $0x1c] sm:$0xf]
        %v4857 = vld [vmem:[%s12 + $0x20] sm:$0xf]
        %v4858 = vld [vmem:[%s12 + $0x24] sm:$0xf]
        %v4859 = vld [vmem:[%s12 + $0x28] sm:$0xf]
        %v4860 = vld [vmem:[%s12 + $0x2c] sm:$0xf]
        %v4861 = vld [vmem:[%s12 + $0x30] sm:$0xf]
        %v4862 = vld [vmem:[%s12 + $0x34] sm:$0xf]
        %v4863 = vld [vmem:[%s12 + $0x38] sm:$0xf]
        %v4864 = vld [vmem:[%s12 + $0x3c] sm:$0xf]
        %v4865 = vld [vmem:[%s12 + $0x40] sm:$0xf]
        %v4866 = vld [vmem:[%s12 + $0x44] sm:$0xf]
        %v4867 = vld [vmem:[%s12 + $0x48] sm:$0xf]
        %v4868 = vld [vmem:[%s12 + $0x4c] sm:$0xf]
        %v4869 = vld [vmem:[%s12 + $0x50] sm:$0xf]
        %v4870 = vld [vmem:[%s12 + $0x54] sm:$0xf]
        %v4871 = vld [vmem:[%s12 + $0x58] sm:$0xf]
        %v4872 = vld [vmem:[%s12 + $0x5c] sm:$0xf]
        %v4873 = vld [vmem:[%s12 + $0x60] sm:$0xf]
        %v4874 = vld [vmem:[%s12 + $0x64] sm:$0xf]
        %v4875 = vld [vmem:[%s12 + $0x68] sm:$0xf]
        %v4876 = vld [vmem:[%s12 + $0x6c] sm:$0xf]
        %v4905 = vunpack.c.l.b16 %v4849
        %v4906 = vunpack.c.l.b16 %v4850
        %v4907 = vunpack.c.l.b16 %v4851
        %v4908 = vunpack.c.l.b16 %v4852
        %v4909 = vunpack.c.l.b16 %v4853
        %v4910 = vunpack.c.l.b16 %v4854
        %v4911 = vunpack.c.l.b16 %v4855
        %v4912 = vunpack.c.l.b16 %v4856
        %v4913 = vunpack.c.l.b16 %v4857
        %v4914 = vunpack.c.l.b16 %v4858
        %v4915 = vunpack.c.l.b16 %v4859
        %v4916 = vunpack.c.l.b16 %v4860
        %v4917 = vunpack.c.l.b16 %v4861
        %v4918 = vunpack.c.l.b16 %v4862
        %v4919 = vunpack.c.l.b16 %v4863
        %v4920 = vunpack.c.l.b16 %v4864
        %v4921 = vunpack.c.l.b16 %v4865
        %v4922 = vunpack.c.l.b16 %v4866
        %v4923 = vunpack.c.l.b16 %v4867
        %v4924 = vunpack.c.l.b16 %v4868
        %v4925 = vunpack.c.l.b16 %v4869
        %v4926 = vunpack.c.l.b16 %v4870
        %v4927 = vunpack.c.l.b16 %v4871
        %v4928 = vunpack.c.l.b16 %v4872
        %v4929 = vunpack.c.l.b16 %v4873
        %v4930 = vunpack.c.l.b16 %v4874
        %v4931 = vunpack.c.l.b16 %v4875
        %v4932 = vunpack.c.l.b16 %v4876
        %v4933 = vpack.c.b16 %v4906, %v4905
        %v4934 = vpack.c.b16 %v4908, %v4907
        %v4935 = vpack.c.b16 %v4910, %v4909
        %v4936 = vpack.c.b16 %v4912, %v4911
        %v4937 = vpack.c.b16 %v4914, %v4913
        %v4938 = vpack.c.b16 %v4916, %v4915
        %v4939 = vpack.c.b16 %v4918, %v4917
        %v4940 = vpack.c.b16 %v4920, %v4919
        %v4941 = vpack.c.b16 %v4922, %v4921
        %v4942 = vpack.c.b16 %v4924, %v4923
        %v4943 = vpack.c.b16 %v4926, %v4925
        %v4944 = vpack.c.b16 %v4928, %v4927
        %v4945 = vpack.c.b16 %v4930, %v4929
        %v4946 = vpack.c.b16 %v4932, %v4931
        %4961 = vmatprep.subr.bf16.mxu0 0
        %4962 = vmatpush1.bf16.msra.mxu0 %v4933
        %4963 = vmatprep.subr.bf16.mxu0 0
        %4964 = vmatpush1.bf16.msra.mxu0 %v4934
        %4965 = vmatprep.subr.bf16.mxu0 0
        %4966 = vmatpush1.bf16.msra.mxu0 %v4935
        %4967 = vmatprep.subr.bf16.mxu0 0
        %4968 = vmatpush1.bf16.msra.mxu0 %v4936
        %4969 = vmatprep.subr.bf16.mxu0 0
        %4970 = vmatpush1.bf16.msra.mxu0 %v4937
        %4971 = vmatprep.subr.bf16.mxu0 0
        %4972 = vmatpush1.bf16.msra.mxu0 %v4938
        %4973 = vmatprep.subr.bf16.mxu0 0
        %4974 = vmatpush1.bf16.msra.mxu0 %v4939
        %4975 = vmatprep.subr.bf16.mxu0 0
        %4976 = vmatpush1.bf16.msra.mxu0 %v4940
        %4977 = vmatprep.subr.bf16.mxu0 0
        %4978 = vmatpush1.bf16.msra.mxu0 %v4941
        %4979 = vmatprep.subr.bf16.mxu0 0
        %4980 = vmatpush1.bf16.msra.mxu0 %v4942
        %4981 = vmatprep.subr.bf16.mxu0 0
        %4982 = vmatpush1.bf16.msra.mxu0 %v4943
        %4983 = vmatprep.subr.bf16.mxu0 0
        %4984 = vmatpush1.bf16.msra.mxu0 %v4944
        %4985 = vmatprep.subr.bf16.mxu0 0
        %4986 = vmatpush1.bf16.msra.mxu0 %v4945
        %4987 = vmatprep.subr.bf16.mxu0 0
        %4988 = vmatpush1.bf16.msra.mxu0 %v4946
        %4989 = vmatprep.subr.bf16.mxu0 0
        %4990 = vmatpush1.bf16.msra.mxu0 0
        %4991 = vmatprep.subr.bf16.mxu0 0
        %4992 = vmatpush1.bf16.msra.mxu0 0
        %4993 = vmatprep.mubr.bf16.mxu0 %v4652
        %4994 = vmatmul.mubr.bf16.gmra.mrb[0].mxu0 %v4509
        %v4995 = vpop.f32.mrb[0].mxu0
        %v4996 = vadd.f32 0.0, %v4995
        %v4997 = vpop.f32.mrb[0].mxu0
        %v4998 = vpop.f32.mrb[0].mxu0
        %v4999 = vadd.f32 0.0, %v4998
        %v5000 = vpop.f32.mrb[0].mxu0
        %5001 = vmatprep.mubr.bf16.mxu0 %v4655
        %5002 = vmatmul.mubr.bf16.gmra.mrb[0].mxu0 %v4511
        %v5003 = vpop.f32.mrb[0].mxu0
        %v5004 = vadd.f32 0.0, %v5003
        %v5005 = vpop.f32.mrb[0].mxu0
        %v5006 = vpop.f32.mrb[0].mxu0
        %v5007 = vadd.f32 0.0, %v5006
        %v5008 = vpop.f32.mrb[0].mxu0
        %5009 = vmatprep.mubr.bf16.mxu0 %v4658
        %5010 = vmatmul.mubr.bf16.gmra.mrb[0].mxu0 %v4513
        %v5011 = vpop.f32.mrb[0].mxu0
        %v5012 = vadd.f32 0.0, %v5011
        %v5013 = vpop.f32.mrb[0].mxu0
        %v5014 = vpop.f32.mrb[0].mxu0
        %v5015 = vadd.f32 0.0, %v5014
        %v5016 = vpop.f32.mrb[0].mxu0
        %5017 = vmatprep.mubr.bf16.mxu0 %v4661
        %5018 = vmatmul.mubr.bf16.gmra.mrb[0].mxu0 %v4515
        %v5019 = vpop.f32.mrb[0].mxu0
        %v5020 = vadd.f32 0.0, %v5019
        %v5021 = vpop.f32.mrb[0].mxu0
        %v5022 = vpop.f32.mrb[0].mxu0
        %v5023 = vadd.f32 0.0, %v5022
        %v5024 = vpop.f32.mrb[0].mxu0
        %5025 = vmatprep.mubr.bf16.mxu0 %v4664
        %5026 = vmatmul.mubr.bf16.gmra.mrb[0].mxu0 %v4517
        %v5027 = vpop.f32.mrb[0].mxu0
        %v5028 = vadd.f32 0.0, %v5027
        %v5029 = vpop.f32.mrb[0].mxu0
        %v5030 = vpop.f32.mrb[0].mxu0
        %v5031 = vadd.f32 0.0, %v5030
        %v5032 = vpop.f32.mrb[0].mxu0
        %5033 = vmatprep.mubr.bf16.mxu0 %v4667
        %5034 = vmatmul.mubr.bf16.gmra.mrb[0].mxu0 %v4519
        %v5035 = vpop.f32.mrb[0].mxu0
        %v5036 = vadd.f32 0.0, %v5035
        %v5037 = vpop.f32.mrb[0].mxu0
        %v5038 = vpop.f32.mrb[0].mxu0
        %v5039 = vadd.f32 0.0, %v5038
        %v5040 = vpop.f32.mrb[0].mxu0
        %5041 = vmatprep.mubr.bf16.mxu0 %v4670
        %5042 = vmatmul.mubr.bf16.gmra.mrb[0].mxu0 %v4521
        %v5043 = vpop.f32.mrb[0].mxu0
        %v5044 = vadd.f32 0.0, %v5043
        %v5045 = vpop.f32.mrb[0].mxu0
        %v5046 = vpop.f32.mrb[0].mxu0
        %v5047 = vadd.f32 0.0, %v5046
        %v5048 = vpop.f32.mrb[0].mxu0
        %5049 = vmatprep.mubr.bf16.mxu0 %v4673
        %5050 = vmatmul.mubr.bf16.gmra.mrb[0].mxu0 %v4523
        %v5051 = vpop.f32.mrb[0].mxu0
        %v5052 = vadd.f32 0.0, %v5051
        %v5053 = vpop.f32.mrb[0].mxu0
        %v5054 = vpop.f32.mrb[0].mxu0
        %v5055 = vadd.f32 0.0, %v5054
        %v5056 = vpop.f32.mrb[0].mxu0
        %5057 = vmatprep.mubr.bf16.mxu0 %v4676
        %5058 = vmatmul.mubr.bf16.gmra.mrb[0].mxu0 %v4525
        %v5059 = vpop.f32.mrb[0].mxu0
        %v5060 = vadd.f32 0.0, %v5059
        %v5061 = vpop.f32.mrb[0].mxu0
        %v5062 = vpop.f32.mrb[0].mxu0
        %v5063 = vadd.f32 0.0, %v5062
        %v5064 = vpop.f32.mrb[0].mxu0
        %5065 = vmatprep.mubr.bf16.mxu0 %v4679
        %5066 = vmatmul.mubr.bf16.gmra.mrb[0].mxu0 %v4527
        %v5067 = vpop.f32.mrb[0].mxu0
        %v5068 = vadd.f32 0.0, %v5067
        %v5069 = vpop.f32.mrb[0].mxu0
        %v5070 = vpop.f32.mrb[0].mxu0
        %v5071 = vadd.f32 0.0, %v5070
        %v5072 = vpop.f32.mrb[0].mxu0
        %5073 = vmatprep.mubr.bf16.mxu0 %v4682
        %5074 = vmatmul.mubr.bf16.gmra.mrb[0].mxu0 %v4529
        %v5075 = vpop.f32.mrb[0].mxu0
        %v5076 = vadd.f32 0.0, %v5075
        %v5077 = vpop.f32.mrb[0].mxu0
        %v5078 = vpop.f32.mrb[0].mxu0
        %v5079 = vadd.f32 0.0, %v5078
        %v5080 = vpop.f32.mrb[0].mxu0
        %5081 = vmatprep.mubr.bf16.mxu0 %v4685
        %5082 = vmatmul.mubr.bf16.gmra.mrb[0].mxu0 %v4531
        %v5083 = vpop.f32.mrb[0].mxu0
        %v5084 = vadd.f32 0.0, %v5083
        %v5085 = vpop.f32.mrb[0].mxu0
        %v5086 = vpop.f32.mrb[0].mxu0
        %v5087 = vadd.f32 0.0, %v5086
        %v5088 = vpop.f32.mrb[0].mxu0
        %5089 = vmatprep.mubr.bf16.mxu0 %v4688
        %5090 = vmatmul.mubr.bf16.gmra.mrb[0].mxu0 %v4533
        %v5091 = vpop.f32.mrb[0].mxu0
        %v5092 = vadd.f32 0.0, %v5091
        %v5093 = vpop.f32.mrb[0].mxu0
        %v5094 = vpop.f32.mrb[0].mxu0
        %v5095 = vadd.f32 0.0, %v5094
        %v5096 = vpop.f32.mrb[0].mxu0
        %5097 = vmatprep.mubr.bf16.mxu0 %v4691
        %5098 = vmatmul.mubr.bf16.gmra.mrb[0].mxu0 %v4535
        %v5099 = vpop.f32.mrb[0].mxu0
        %v5100 = vadd.f32 0.0, %v5099
        %v5101 = vpop.f32.mrb[0].mxu0
        %v5102 = vpop.f32.mrb[0].mxu0
        %v5103 = vadd.f32 0.0, %v5102
        %v5104 = vpop.f32.mrb[0].mxu0
        %5105 = vmatprep.mubr.bf16.mxu0 %v4694
        %5106 = vmatmul.mubr.bf16.gmra.mrb[0].mxu0 %v4537
        %v5107 = vpop.f32.mrb[0].mxu0
        %v5108 = vadd.f32 0.0, %v5107
        %v5109 = vpop.f32.mrb[0].mxu0
        %v5110 = vpop.f32.mrb[0].mxu0
        %v5111 = vadd.f32 0.0, %v5110
        %v5112 = vpop.f32.mrb[0].mxu0
        %5113 = vdwg.mxu0
        %v5114 = vmax.f32 %v4731, %v4996
        %v5115 = vmax.f32 %v4734, %v4999
        %v5116 = vmax.f32 %v4739, %v5004
        %v5117 = vmax.f32 %v4742, %v5007
        %v5118 = vmax.f32 %v4747, %v5012
        %v5119 = vmax.f32 %v4750, %v5015
        %v5120 = vmax.f32 %v4755, %v5020
        %v5121 = vmax.f32 %v4758, %v5023
        %v5122 = vmax.f32 %v4763, %v5028
        %v5123 = vmax.f32 %v4766, %v5031
        %v5124 = vmax.f32 %v4771, %v5036
        %v5125 = vmax.f32 %v4774, %v5039
        %v5126 = vmax.f32 %v4779, %v5044
        %v5127 = vmax.f32 %v4782, %v5047
        %v5128 = vmax.f32 %v4787, %v5052
        %v5129 = vmax.f32 %v4790, %v5055
        %v5130 = vmax.f32 %v4795, %v5060
        %v5131 = vmax.f32 %v4798, %v5063
        %v5132 = vmax.f32 %v4803, %v5068
        %v5133 = vmax.f32 %v4806, %v5071
        %v5134 = vmax.f32 %v4811, %v5076
        %v5135 = vmax.f32 %v4814, %v5079
        %v5136 = vmax.f32 %v4819, %v5084
        %v5137 = vmax.f32 %v4822, %v5087
        %v5138 = vmax.f32 %v4827, %v5092
        %v5139 = vmax.f32 %v4830, %v5095
        %v5140 = vmax.f32 %v4835, %v5100
        %v5141 = vmax.f32 %v4838, %v5103
        %v5142 = vmax.f32 %v4843, %v5108
        %v5143 = vmax.f32 %v4846, %v5111
        %v5144 = vpack.c.bf16 %v5115, %v5114
        %v5145 = vpack.c.bf16 %v5117, %v5116
        %v5146 = vpack.c.bf16 %v5119, %v5118
        %v5147 = vpack.c.bf16 %v5121, %v5120
        %v5148 = vpack.c.bf16 %v5123, %v5122
        %v5149 = vpack.c.bf16 %v5125, %v5124
        %v5150 = vpack.c.bf16 %v5127, %v5126
        %v5151 = vpack.c.bf16 %v5129, %v5128
        %v5152 = vpack.c.bf16 %v5131, %v5130
        %v5153 = vpack.c.bf16 %v5133, %v5132
        %v5154 = vpack.c.bf16 %v5135, %v5134
        %v5155 = vpack.c.bf16 %v5137, %v5136
        %v5156 = vpack.c.bf16 %v5139, %v5138
        %v5157 = vpack.c.bf16 %v5141, %v5140
        %v5158 = vpack.c.bf16 %v5143, %v5142
        %v5159 = vld [vmem:[%s13] sm:$0xff]
        %v5160 = vld [vmem:[%s13 + $0x8] sm:$0xff]
        %v5161 = vld [vmem:[%s13 + $0x10] sm:$0xff]
        %v5162 = vld [vmem:[%s13 + $0x18] sm:$0xff]
        %v5163 = vld [vmem:[%s13 + $0x20] sm:$0xff]
        %v5164 = vld [vmem:[%s13 + $0x28] sm:$0xff]
        %v5165 = vld [vmem:[%s13 + $0x30] sm:$0xff]
        %v5166 = vld [vmem:[%s13 + $0x38] sm:$0xff]
        %v5167 = vld [vmem:[%s13 + $0x40] sm:$0xff]
        %v5168 = vld [vmem:[%s13 + $0x48] sm:$0xff]
        %v5169 = vld [vmem:[%s13 + $0x50] sm:$0xff]
        %v5170 = vld [vmem:[%s13 + $0x58] sm:$0xff]
        %v5171 = vld [vmem:[%s13 + $0x60] sm:$0xff]
        %v5172 = vld [vmem:[%s13 + $0x68] sm:$0xff]
        %v5173 = vld [vmem:[%s13 + $0x70] sm:$0xff]
        %v5174 = vld [vmem:[%s13 + $0x78] sm:$0xff]
        %v5191 = vunpack.c.l.b16 %v5159
        %v5192 = vunpack.c.h.b16 %v5159
        %v5193 = vunpack.c.l.b16 %v5160
        %v5194 = vunpack.c.h.b16 %v5160
        %v5195 = vunpack.c.l.b16 %v5161
        %v5196 = vunpack.c.h.b16 %v5161
        %v5197 = vunpack.c.l.b16 %v5162
        %v5198 = vunpack.c.h.b16 %v5162
        %v5199 = vunpack.c.l.b16 %v5163
        %v5200 = vunpack.c.h.b16 %v5163
        %v5201 = vunpack.c.l.b16 %v5164
        %v5202 = vunpack.c.h.b16 %v5164
        %v5203 = vunpack.c.l.b16 %v5165
        %v5204 = vunpack.c.h.b16 %v5165
        %v5205 = vunpack.c.l.b16 %v5166
        %v5206 = vunpack.c.h.b16 %v5166
        %v5207 = vunpack.c.l.b16 %v5167
        %v5208 = vunpack.c.h.b16 %v5167
        %v5209 = vunpack.c.l.b16 %v5168
        %v5210 = vunpack.c.h.b16 %v5168
        %v5211 = vunpack.c.l.b16 %v5169
        %v5212 = vunpack.c.h.b16 %v5169
        %v5213 = vunpack.c.l.b16 %v5170
        %v5214 = vunpack.c.h.b16 %v5170
        %v5215 = vunpack.c.l.b16 %v5171
        %v5216 = vunpack.c.h.b16 %v5171
        %v5217 = vunpack.c.l.b16 %v5172
        %v5218 = vunpack.c.h.b16 %v5172
        %v5219 = vunpack.c.l.b16 %v5173
        %v5220 = vunpack.c.h.b16 %v5173
        %v5221 = vunpack.c.l.b16 %v5174
        %v5222 = vunpack.c.h.b16 %v5174
        %v5223 = vpack.c.b16 %v5193, %v5191
        %v5224 = vpack.c.b16 %v5194, %v5192
        %v5225 = vpack.c.b16 %v5197, %v5195
        %v5226 = vpack.c.b16 %v5198, %v5196
        %v5227 = vpack.c.b16 %v5201, %v5199
        %v5228 = vpack.c.b16 %v5202, %v5200
        %v5229 = vpack.c.b16 %v5205, %v5203
        %v5230 = vpack.c.b16 %v5206, %v5204
        %v5231 = vpack.c.b16 %v5209, %v5207
        %v5232 = vpack.c.b16 %v5210, %v5208
        %v5233 = vpack.c.b16 %v5213, %v5211
        %v5234 = vpack.c.b16 %v5214, %v5212
        %v5235 = vpack.c.b16 %v5217, %v5215
        %v5236 = vpack.c.b16 %v5218, %v5216
        %v5237 = vpack.c.b16 %v5221, %v5219
        %v5238 = vpack.c.b16 %v5222, %v5220
        %vm5247 = vcmask 891904
        %v5249 = vsel %vm5247, %v5224, 0
        %v5252 = vsel %vm5247, %v5226, 0
        %v5255 = vsel %vm5247, %v5228, 0
        %v5258 = vsel %vm5247, %v5230, 0
        %v5261 = vsel %vm5247, %v5232, 0
        %v5264 = vsel %vm5247, %v5234, 0
        %v5267 = vsel %vm5247, %v5236, 0
        %v5270 = vsel %vm5247, %v5238, 0
        %v5272 = vsel %vm765, 4294967295, 65535
        %v5273 = vsel %vm4270, %v5272, 0
        %v5275 = vand.u32 %v5158, %v5273
        %5277 = vmatprep.subr.bf16.mxu0 0
        %5278 = vmatpush1.bf16.msra.mxu0 %v5144
        %5279 = vmatprep.subr.bf16.mxu0 0
        %5280 = vmatpush1.bf16.msra.mxu0 %v5145
        %5281 = vmatprep.subr.bf16.mxu0 0
        %5282 = vmatpush1.bf16.msra.mxu0 %v5146
        %5283 = vmatprep.subr.bf16.mxu0 0
        %5284 = vmatpush1.bf16.msra.mxu0 %v5147
        %5285 = vmatprep.subr.bf16.mxu0 0
        %5286 = vmatpush1.bf16.msra.mxu0 %v5148
        %5287 = vmatprep.subr.bf16.mxu0 0
        %5288 = vmatpush1.bf16.msra.mxu0 %v5149
        %5289 = vmatprep.subr.bf16.mxu0 0
        %5290 = vmatpush1.bf16.msra.mxu0 %v5150
        %5291 = vmatprep.subr.bf16.mxu0 0
        %5292 = vmatpush1.bf16.msra.mxu0 %v5151
        %5293 = vmatprep.subr.bf16.mxu0 0
        %5294 = vmatpush1.bf16.msra.mxu0 %v5152
        %5295 = vmatprep.subr.bf16.mxu0 0
        %5296 = vmatpush1.bf16.msra.mxu0 %v5153
        %5297 = vmatprep.subr.bf16.mxu0 0
        %5298 = vmatpush1.bf16.msra.mxu0 %v5154
        %5299 = vmatprep.subr.bf16.mxu0 0
        %5300 = vmatpush1.bf16.msra.mxu0 %v5155
        %5301 = vmatprep.subr.bf16.mxu0 0
        %5302 = vmatpush1.bf16.msra.mxu0 %v5156
        %5303 = vmatprep.subr.bf16.mxu0 0
        %5304 = vmatpush1.bf16.msra.mxu0 %v5157
        %5305 = vmatprep.subr.bf16.mxu0 0
        %5306 = vmatpush1.bf16.msra.mxu0 %v5275
        %5307 = vmatprep.subr.bf16.mxu0 0
        %5308 = vmatpush1.bf16.msra.mxu0 0
        %5309 = vmatprep.mubr.bf16.mxu0 %v5249
        %5310 = vmatmul.mubr.bf16.gmra.mrb[0].mxu0 %v5223
        %v5311 = vpop.f32.mrb[0].mxu0
        %v5312 = vadd.f32 0.0, %v5311
        %v5313 = vpop.f32.mrb[0].mxu0
        %v5314 = vpop.f32.mrb[0].mxu0
        %v5315 = vadd.f32 0.0, %v5314
        %v5316 = vpop.f32.mrb[0].mxu0
        %5317 = vmatprep.mubr.bf16.mxu0 %v5252
        %5318 = vmatmul.mubr.bf16.gmra.mrb[0].mxu0 %v5225
        %v5319 = vpop.f32.mrb[0].mxu0
        %v5320 = vadd.f32 0.0, %v5319
        %v5321 = vpop.f32.mrb[0].mxu0
        %v5322 = vpop.f32.mrb[0].mxu0
        %v5323 = vadd.f32 0.0, %v5322
        %v5324 = vpop.f32.mrb[0].mxu0
        %5325 = vmatprep.mubr.bf16.mxu0 %v5255
        %5326 = vmatmul.mubr.bf16.gmra.mrb[0].mxu0 %v5227
        %v5327 = vpop.f32.mrb[0].mxu0
        %v5328 = vadd.f32 0.0, %v5327
        %v5329 = vpop.f32.mrb[0].mxu0
        %v5330 = vpop.f32.mrb[0].mxu0
        %v5331 = vadd.f32 0.0, %v5330
        %v5332 = vpop.f32.mrb[0].mxu0
        %5333 = vmatprep.mubr.bf16.mxu0 %v5258
        %5334 = vmatmul.mubr.bf16.gmra.mrb[0].mxu0 %v5229
        %v5335 = vpop.f32.mrb[0].mxu0
        %v5336 = vadd.f32 0.0, %v5335
        %v5337 = vpop.f32.mrb[0].mxu0
        %v5338 = vpop.f32.mrb[0].mxu0
        %v5339 = vadd.f32 0.0, %v5338
        %v5340 = vpop.f32.mrb[0].mxu0
        %5341 = vmatprep.mubr.bf16.mxu0 %v5261
        %5342 = vmatmul.mubr.bf16.gmra.mrb[0].mxu0 %v5231
        %v5343 = vpop.f32.mrb[0].mxu0
        %v5344 = vadd.f32 0.0, %v5343
        %v5345 = vpop.f32.mrb[0].mxu0
        %v5346 = vpop.f32.mrb[0].mxu0
        %v5347 = vadd.f32 0.0, %v5346
        %v5348 = vpop.f32.mrb[0].mxu0
        %5349 = vmatprep.mubr.bf16.mxu0 %v5264
        %5350 = vmatmul.mubr.bf16.gmra.mrb[0].mxu0 %v5233
        %v5351 = vpop.f32.mrb[0].mxu0
        %v5352 = vadd.f32 0.0, %v5351
        %v5353 = vpop.f32.mrb[0].mxu0
        %v5354 = vpop.f32.mrb[0].mxu0
        %v5355 = vadd.f32 0.0, %v5354
        %v5356 = vpop.f32.mrb[0].mxu0
        %5357 = vmatprep.mubr.bf16.mxu0 %v5267
        %5358 = vmatmul.mubr.bf16.gmra.mrb[0].mxu0 %v5235
        %v5359 = vpop.f32.mrb[0].mxu0
        %v5360 = vadd.f32 0.0, %v5359
        %v5361 = vpop.f32.mrb[0].mxu0
        %v5362 = vpop.f32.mrb[0].mxu0
        %v5363 = vadd.f32 0.0, %v5362
        %v5364 = vpop.f32.mrb[0].mxu0
        %5365 = vmatprep.mubr.bf16.mxu0 %v5270
        %5366 = vmatmul.mubr.bf16.gmra.mrb[0].mxu0 %v5237
        %v5367 = vpop.f32.mrb[0].mxu0
        %v5368 = vadd.f32 0.0, %v5367
        %v5369 = vpop.f32.mrb[0].mxu0
        %v5370 = vpop.f32.mrb[0].mxu0
        %v5371 = vadd.f32 0.0, %v5370
        %v5372 = vpop.f32.mrb[0].mxu0
        %5373 = vdwg.mxu0
        %vm5374 = vcmask 916480
        %5375 = vst.msk [vmem:[#allocation3] sm:$0xff] %vm5374, %v5312
        %5376 = vst.msk [vmem:[#allocation3 + $0x8] sm:$0xff] %vm5374, %v5315
        %5377 = vst.msk [vmem:[#allocation3 + $0x10] sm:$0xff] %vm5374, %v5320
        %5378 = vst.msk [vmem:[#allocation3 + $0x18] sm:$0xff] %vm5374, %v5323
        %5379 = vst.msk [vmem:[#allocation3 + $0x20] sm:$0xff] %vm5374, %v5328
        %5380 = vst.msk [vmem:[#allocation3 + $0x28] sm:$0xff] %vm5374, %v5331
        %5381 = vst.msk [vmem:[#allocation3 + $0x30] sm:$0xff] %vm5374, %v5336
        %5382 = vst.msk [vmem:[#allocation3 + $0x38] sm:$0xff] %vm5374, %v5339
        %5383 = vst.msk [vmem:[#allocation3 + $0x40] sm:$0xff] %vm5374, %v5344
        %5384 = vst.msk [vmem:[#allocation3 + $0x48] sm:$0xff] %vm5374, %v5347
        %5385 = vst.msk [vmem:[#allocation3 + $0x50] sm:$0xff] %vm5374, %v5352
        %5386 = vst.msk [vmem:[#allocation3 + $0x58] sm:$0xff] %vm5374, %v5355
        %5387 = vst.msk [vmem:[#allocation3 + $0x60] sm:$0xff] %vm5374, %v5360
        %5388 = vst.msk [vmem:[#allocation3 + $0x68] sm:$0xff] %vm5374, %v5363
        %5389 = vst.msk [vmem:[#allocation3 + $0x70] sm:$0xff] %vm5374, %v5368
        %5390 = vst.msk [vmem:[#allocation3 + $0x78] sm:$0xff] %vm5374, %v5371
        %v5391 = vld [vmem:[#allocation3] sm:$0xff]
        %v5392 = vld [vmem:[#allocation3 + $0x8] sm:$0xff]
        %v5393 = vld [vmem:[#allocation3 + $0x10] sm:$0xff]
        %v5394 = vld [vmem:[#allocation3 + $0x18] sm:$0xff]
        %v5395 = vld [vmem:[#allocation3 + $0x20] sm:$0xff]
        %v5396 = vld [vmem:[#allocation3 + $0x28] sm:$0xff]
        %v5397 = vld [vmem:[#allocation3 + $0x30] sm:$0xff]
        %v5398 = vld [vmem:[#allocation3 + $0x38] sm:$0xff]
        %v5399 = vld [vmem:[#allocation3 + $0x40] sm:$0xff]
        %v5400 = vld [vmem:[#allocation3 + $0x48] sm:$0xff]
        %v5401 = vld [vmem:[#allocation3 + $0x50] sm:$0xff]
        %v5402 = vld [vmem:[#allocation3 + $0x58] sm:$0xff]
        %v5403 = vld [vmem:[#allocation3 + $0x60] sm:$0xff]
        %v5404 = vld [vmem:[#allocation3 + $0x68] sm:$0xff]
        %v5405 = vld [vmem:[#allocation3 + $0x70] sm:$0xff]
        %v5406 = vld [vmem:[#allocation3 + $0x78] sm:$0x3f]
        %v5407 = vpack.c.bf16 %v5392, %v5391
        %v5408 = vpack.c.bf16 %v5394, %v5393
        %v5409 = vpack.c.bf16 %v5396, %v5395
        %v5410 = vpack.c.bf16 %v5398, %v5397
        %v5411 = vpack.c.bf16 %v5400, %v5399
        %v5412 = vpack.c.bf16 %v5402, %v5401
        %v5413 = vpack.c.bf16 %v5404, %v5403
        %v5414 = vpack.c.bf16 %v5406, %v5405
        %v5415 = vld [vmem:[%s5] sm:$0xf]
        %v5416 = vld [vmem:[%s5 + $0x4] sm:$0xf]
        %v5417 = vld [vmem:[%s5 + $0x8] sm:$0xf]
        %v5418 = vld [vmem:[%s5 + $0xc] sm:$0xf]
        %v5419 = vld [vmem:[%s5 + $0x10] sm:$0xf]
        %v5420 = vld [vmem:[%s5 + $0x14] sm:$0xf]
        %v5421 = vld [vmem:[%s5 + $0x18] sm:$0xf]
        %v5422 = vld [vmem:[%s5 + $0x1c] sm:$0xf]
        %v5423 = vld [vmem:[%s5 + $0x20] sm:$0xf]
        %v5424 = vld [vmem:[%s5 + $0x24] sm:$0xf]
        %v5425 = vld [vmem:[%s5 + $0x28] sm:$0xf]
        %v5426 = vld [vmem:[%s5 + $0x2c] sm:$0xf]
        %v5427 = vld [vmem:[%s5 + $0x30] sm:$0xf]
        %v5428 = vld [vmem:[%s5 + $0x34] sm:$0xf]
        %v5429 = vld [vmem:[#allocation3 + $0x1] sm:$0xff]
        %v5430 = vld [vmem:[#allocation3 + $0x9] sm:$0xff]
        %v5431 = vld [vmem:[#allocation3 + $0x11] sm:$0xff]
        %v5432 = vld [vmem:[#allocation3 + $0x19] sm:$0xff]
        %v5433 = vld [vmem:[#allocation3 + $0x21] sm:$0xff]
        %v5434 = vld [vmem:[#allocation3 + $0x29] sm:$0xff]
        %v5435 = vld [vmem:[#allocation3 + $0x31] sm:$0xff]
        %v5436 = vld [vmem:[#allocation3 + $0x39] sm:$0xff]
        %v5437 = vld [vmem:[#allocation3 + $0x41] sm:$0xff]
        %v5438 = vld [vmem:[#allocation3 + $0x49] sm:$0xff]
        %v5439 = vld [vmem:[#allocation3 + $0x51] sm:$0xff]
        %v5440 = vld [vmem:[#allocation3 + $0x59] sm:$0xff]
        %v5441 = vld [vmem:[#allocation3 + $0x61] sm:$0xff]
        %v5442 = vld [vmem:[#allocation3 + $0x69] sm:$0xff]
        %v5443 = vld [vmem:[#allocation3 + $0x71] sm:$0xff]
        %v5444 = vld [vmem:[#allocation3 + $0x79] sm:$0x3f]
        %v5445 = vpack.c.bf16 %v5430, %v5429
        %v5446 = vpack.c.bf16 %v5432, %v5431
        %v5447 = vpack.c.bf16 %v5434, %v5433
        %v5448 = vpack.c.bf16 %v5436, %v5435
        %v5449 = vpack.c.bf16 %v5438, %v5437
        %v5450 = vpack.c.bf16 %v5440, %v5439
        %v5451 = vpack.c.bf16 %v5442, %v5441
        %v5452 = vpack.c.bf16 %v5444, %v5443
        %s5453 = scalar_lea.vmem %s5, 56
        %v5454 = vld [vmem:[%s5453] sm:$0xf]
        %v5455 = vld [vmem:[%s5453 + $0x4] sm:$0xf]
        %v5456 = vld [vmem:[%s5453 + $0x8] sm:$0xf]
        %v5457 = vld [vmem:[%s5453 + $0xc] sm:$0xf]
        %v5458 = vld [vmem:[%s5453 + $0x10] sm:$0xf]
        %v5459 = vld [vmem:[%s5453 + $0x14] sm:$0xf]
        %v5460 = vld [vmem:[%s5453 + $0x18] sm:$0xf]
        %v5461 = vld [vmem:[%s5453 + $0x1c] sm:$0xf]
        %v5462 = vld [vmem:[%s5453 + $0x20] sm:$0xf]
        %v5463 = vld [vmem:[%s5453 + $0x24] sm:$0xf]
        %v5464 = vld [vmem:[%s5453 + $0x28] sm:$0xf]
        %v5465 = vld [vmem:[%s5453 + $0x2c] sm:$0xf]
        %v5466 = vld [vmem:[%s5453 + $0x30] sm:$0xf]
        %v5467 = vld [vmem:[%s5453 + $0x34] sm:$0xf]
        %v5482 = vunpack.c.l.b16 %v5454
        %v5483 = vunpack.c.l.b16 %v5455
        %v5484 = vunpack.c.l.b16 %v5456
        %v5485 = vunpack.c.l.b16 %v5457
        %v5486 = vunpack.c.l.b16 %v5458
        %v5487 = vunpack.c.l.b16 %v5459
        %v5488 = vunpack.c.l.b16 %v5460
        %v5489 = vunpack.c.l.b16 %v5461
        %v5490 = vunpack.c.l.b16 %v5462
        %v5491 = vunpack.c.l.b16 %v5463
        %v5492 = vunpack.c.l.b16 %v5464
        %v5493 = vunpack.c.l.b16 %v5465
        %v5494 = vunpack.c.l.b16 %v5466
        %v5495 = vunpack.c.l.b16 %v5467
        %v5496 = vpack.c.b16 %v5483, %v5482
        %v5497 = vpack.c.b16 %v5485, %v5484
        %v5498 = vpack.c.b16 %v5487, %v5486
        %v5499 = vpack.c.b16 %v5489, %v5488
        %v5500 = vpack.c.b16 %v5491, %v5490
        %v5501 = vpack.c.b16 %v5493, %v5492
        %v5502 = vpack.c.b16 %v5495, %v5494
        %v5511 = vsel %vm5374, %v5445, 0
        %v5514 = vsel %vm5374, %v5446, 0
        %v5517 = vsel %vm5374, %v5447, 0
        %v5520 = vsel %vm5374, %v5448, 0
        %v5523 = vsel %vm5374, %v5449, 0
        %v5526 = vsel %vm5374, %v5450, 0
        %v5529 = vsel %vm5374, %v5451, 0
        %v5532 = vsel %vm5374, %v5452, 0
        %5534 = vmatprep.subr.bf16.mxu0 0
        %5535 = vmatpush1.bf16.msra.mxu0 %v5496
        %5536 = vmatprep.subr.bf16.mxu0 0
        %5537 = vmatpush1.bf16.msra.mxu0 %v5497
        %5538 = vmatprep.subr.bf16.mxu0 0
        %5539 = vmatpush1.bf16.msra.mxu0 %v5498
        %5540 = vmatprep.subr.bf16.mxu0 0
        %5541 = vmatpush1.bf16.msra.mxu0 %v5499
        %5542 = vmatprep.subr.bf16.mxu0 0
        %5543 = vmatpush1.bf16.msra.mxu0 %v5500
        %5544 = vmatprep.subr.bf16.mxu0 0
        %5545 = vmatpush1.bf16.msra.mxu0 %v5501
        %5546 = vmatprep.subr.bf16.mxu0 0
        %5547 = vmatpush1.bf16.msra.mxu0 %v5502
        %5548 = vmatprep.subr.bf16.mxu0 0
        %5549 = vmatpush1.bf16.msra.mxu0 0
        %5550 = vmatprep.subr.bf16.mxu0 0
        %5551 = vmatpush1.bf16.msra.mxu0 0
        %5552 = vmatprep.subr.bf16.mxu0 0
        %5553 = vmatpush1.bf16.msra.mxu0 0
        %5554 = vmatprep.subr.bf16.mxu0 0
        %5555 = vmatpush1.bf16.msra.mxu0 0
        %5556 = vmatprep.subr.bf16.mxu0 0
        %5557 = vmatpush1.bf16.msra.mxu0 0
        %5558 = vmatprep.subr.bf16.mxu0 0
        %5559 = vmatpush1.bf16.msra.mxu0 0
        %5560 = vmatprep.subr.bf16.mxu0 0
        %5561 = vmatpush1.bf16.msra.mxu0 0
        %5562 = vmatprep.subr.bf16.mxu0 0
        %5563 = vmatpush1.bf16.msra.mxu0 0
        %5564 = vmatprep.subr.bf16.mxu0 0
        %5565 = vmatpush1.bf16.msra.mxu0 0
        %5566 = vmatprep.mubr.bf16.mxu0 0
        %5567 = vmatmul.mubr.bf16.gmra.mrb[0].mxu0 %v5511
        %v5568 = vpop.f32.mrb[0].mxu0
        %v5569 = vadd.f32 0.0, %v5568
        %v5570 = vpop.f32.mrb[0].mxu0
        %v5571 = vpop.f32.mrb[0].mxu0
        %v5572 = vadd.f32 0.0, %v5571
        %v5573 = vpop.f32.mrb[0].mxu0
        %5574 = vmatprep.mubr.bf16.mxu0 0
        %5575 = vmatmul.mubr.bf16.gmra.mrb[0].mxu0 %v5514
        %v5576 = vpop.f32.mrb[0].mxu0
        %v5577 = vadd.f32 0.0, %v5576
        %v5578 = vpop.f32.mrb[0].mxu0
        %v5579 = vpop.f32.mrb[0].mxu0
        %v5580 = vadd.f32 0.0, %v5579
        %v5581 = vpop.f32.mrb[0].mxu0
        %5582 = vmatprep.mubr.bf16.mxu0 0
        %5583 = vmatmul.mubr.bf16.gmra.mrb[0].mxu0 %v5517
        %v5584 = vpop.f32.mrb[0].mxu0
        %v5585 = vadd.f32 0.0, %v5584
        %v5586 = vpop.f32.mrb[0].mxu0
        %v5587 = vpop.f32.mrb[0].mxu0
        %v5588 = vadd.f32 0.0, %v5587
        %v5589 = vpop.f32.mrb[0].mxu0
        %5590 = vmatprep.mubr.bf16.mxu0 0
        %5591 = vmatmul.mubr.bf16.gmra.mrb[0].mxu0 %v5520
        %v5592 = vpop.f32.mrb[0].mxu0
        %v5593 = vadd.f32 0.0, %v5592
        %v5594 = vpop.f32.mrb[0].mxu0
        %v5595 = vpop.f32.mrb[0].mxu0
        %v5596 = vadd.f32 0.0, %v5595
        %v5597 = vpop.f32.mrb[0].mxu0
        %5598 = vmatprep.mubr.bf16.mxu0 0
        %5599 = vmatmul.mubr.bf16.gmra.mrb[0].mxu0 %v5523
        %v5600 = vpop.f32.mrb[0].mxu0
        %v5601 = vadd.f32 0.0, %v5600
        %v5602 = vpop.f32.mrb[0].mxu0
        %v5603 = vpop.f32.mrb[0].mxu0
        %v5604 = vadd.f32 0.0, %v5603
        %v5605 = vpop.f32.mrb[0].mxu0
        %5606 = vmatprep.mubr.bf16.mxu0 0
        %5607 = vmatmul.mubr.bf16.gmra.mrb[0].mxu0 %v5526
        %v5608 = vpop.f32.mrb[0].mxu0
        %v5609 = vadd.f32 0.0, %v5608
        %v5610 = vpop.f32.mrb[0].mxu0
        %v5611 = vpop.f32.mrb[0].mxu0
        %v5612 = vadd.f32 0.0, %v5611
        %v5613 = vpop.f32.mrb[0].mxu0
        %5614 = vmatprep.mubr.bf16.mxu0 0
        %5615 = vmatmul.mubr.bf16.gmra.mrb[0].mxu0 %v5529
        %v5616 = vpop.f32.mrb[0].mxu0
        %v5617 = vadd.f32 0.0, %v5616
        %v5618 = vpop.f32.mrb[0].mxu0
        %v5619 = vpop.f32.mrb[0].mxu0
        %v5620 = vadd.f32 0.0, %v5619
        %v5621 = vpop.f32.mrb[0].mxu0
        %5622 = vmatprep.mubr.bf16.mxu0 0
        %5623 = vmatmul.mubr.bf16.gmra.mrb[0].mxu0 %v5532
        %v5624 = vpop.f32.mrb[0].mxu0
        %v5625 = vadd.f32 0.0, %v5624
        %v5626 = vpop.f32.mrb[0].mxu0
        %v5627 = vpop.f32.mrb[0].mxu0
        %v5628 = vadd.f32 0.0, %v5627
        %v5629 = vpop.f32.mrb[0].mxu0
        %5630 = vdwg.mxu0
        %v5645 = vunpack.c.l.b16 %v5415
        %v5646 = vunpack.c.l.b16 %v5416
        %v5647 = vunpack.c.l.b16 %v5417
        %v5648 = vunpack.c.l.b16 %v5418
        %v5649 = vunpack.c.l.b16 %v5419
        %v5650 = vunpack.c.l.b16 %v5420
        %v5651 = vunpack.c.l.b16 %v5421
        %v5652 = vunpack.c.l.b16 %v5422
        %v5653 = vunpack.c.l.b16 %v5423
        %v5654 = vunpack.c.l.b16 %v5424
        %v5655 = vunpack.c.l.b16 %v5425
        %v5656 = vunpack.c.l.b16 %v5426
        %v5657 = vunpack.c.l.b16 %v5427
        %v5658 = vunpack.c.l.b16 %v5428
        %v5659 = vpack.c.b16 %v5646, %v5645
        %v5660 = vpack.c.b16 %v5648, %v5647
        %v5661 = vpack.c.b16 %v5650, %v5649
        %v5662 = vpack.c.b16 %v5652, %v5651
        %v5663 = vpack.c.b16 %v5654, %v5653
        %v5664 = vpack.c.b16 %v5656, %v5655
        %v5665 = vpack.c.b16 %v5658, %v5657
        %v5674 = vsel %vm5374, %v5407, 0
        %v5677 = vsel %vm5374, %v5408, 0
        %v5680 = vsel %vm5374, %v5409, 0
        %v5683 = vsel %vm5374, %v5410, 0
        %v5686 = vsel %vm5374, %v5411, 0
        %v5689 = vsel %vm5374, %v5412, 0
        %v5692 = vsel %vm5374, %v5413, 0
        %v5695 = vsel %vm5374, %v5414, 0
        %5697 = vmatprep.subr.bf16.mxu0 0
        %5698 = vmatpush1.bf16.msra.mxu0 %v5659
        %5699 = vmatprep.subr.bf16.mxu0 0
        %5700 = vmatpush1.bf16.msra.mxu0 %v5660
        %5701 = vmatprep.subr.bf16.mxu0 0
        %5702 = vmatpush1.bf16.msra.mxu0 %v5661
        %5703 = vmatprep.subr.bf16.mxu0 0
        %5704 = vmatpush1.bf16.msra.mxu0 %v5662
        %5705 = vmatprep.subr.bf16.mxu0 0
        %5706 = vmatpush1.bf16.msra.mxu0 %v5663
        %5707 = vmatprep.subr.bf16.mxu0 0
        %5708 = vmatpush1.bf16.msra.mxu0 %v5664
        %5709 = vmatprep.subr.bf16.mxu0 0
        %5710 = vmatpush1.bf16.msra.mxu0 %v5665
        %5711 = vmatprep.subr.bf16.mxu0 0
        %5712 = vmatpush1.bf16.msra.mxu0 0
        %5713 = vmatprep.subr.bf16.mxu0 0
        %5714 = vmatpush1.bf16.msra.mxu0 0
        %5715 = vmatprep.subr.bf16.mxu0 0
        %5716 = vmatpush1.bf16.msra.mxu0 0
        %5717 = vmatprep.subr.bf16.mxu0 0
        %5718 = vmatpush1.bf16.msra.mxu0 0
        %5719 = vmatprep.subr.bf16.mxu0 0
        %5720 = vmatpush1.bf16.msra.mxu0 0
        %5721 = vmatprep.subr.bf16.mxu0 0
        %5722 = vmatpush1.bf16.msra.mxu0 0
        %5723 = vmatprep.subr.bf16.mxu0 0
        %5724 = vmatpush1.bf16.msra.mxu0 0
        %5725 = vmatprep.subr.bf16.mxu0 0
        %5726 = vmatpush1.bf16.msra.mxu0 0
        %5727 = vmatprep.subr.bf16.mxu0 0
        %5728 = vmatpush1.bf16.msra.mxu0 0
        %5729 = vmatprep.mubr.bf16.mxu0 0
        %5730 = vmatmul.mubr.bf16.gmra.mrb[0].mxu0 %v5674
        %v5731 = vpop.f32.mrb[0].mxu0
        %v5732 = vadd.f32 %v5569, %v5731
        %v5733 = vpop.f32.mrb[0].mxu0
        %v5734 = vpop.f32.mrb[0].mxu0
        %v5735 = vadd.f32 %v5572, %v5734
        %v5736 = vpop.f32.mrb[0].mxu0
        %5737 = vmatprep.mubr.bf16.mxu0 0
        %5738 = vmatmul.mubr.bf16.gmra.mrb[0].mxu0 %v5677
        %v5739 = vpop.f32.mrb[0].mxu0
        %v5740 = vadd.f32 %v5577, %v5739
        %v5741 = vpop.f32.mrb[0].mxu0
        %v5742 = vpop.f32.mrb[0].mxu0
        %v5743 = vadd.f32 %v5580, %v5742
        %v5744 = vpop.f32.mrb[0].mxu0
        %5745 = vmatprep.mubr.bf16.mxu0 0
        %5746 = vmatmul.mubr.bf16.gmra.mrb[0].mxu0 %v5680
        %v5747 = vpop.f32.mrb[0].mxu0
        %v5748 = vadd.f32 %v5585, %v5747
        %v5749 = vpop.f32.mrb[0].mxu0
        %v5750 = vpop.f32.mrb[0].mxu0
        %v5751 = vadd.f32 %v5588, %v5750
        %v5752 = vpop.f32.mrb[0].mxu0
        %5753 = vmatprep.mubr.bf16.mxu0 0
        %5754 = vmatmul.mubr.bf16.gmra.mrb[0].mxu0 %v5683
        %v5755 = vpop.f32.mrb[0].mxu0
        %v5756 = vadd.f32 %v5593, %v5755
        %v5757 = vpop.f32.mrb[0].mxu0
        %v5758 = vpop.f32.mrb[0].mxu0
        %v5759 = vadd.f32 %v5596, %v5758
        %v5760 = vpop.f32.mrb[0].mxu0
        %5761 = vmatprep.mubr.bf16.mxu0 0
        %5762 = vmatmul.mubr.bf16.gmra.mrb[0].mxu0 %v5686
        %v5763 = vpop.f32.mrb[0].mxu0
        %v5764 = vadd.f32 %v5601, %v5763
        %v5765 = vpop.f32.mrb[0].mxu0
        %v5766 = vpop.f32.mrb[0].mxu0
        %v5767 = vadd.f32 %v5604, %v5766
        %v5768 = vpop.f32.mrb[0].mxu0
        %5769 = vmatprep.mubr.bf16.mxu0 0
        %5770 = vmatmul.mubr.bf16.gmra.mrb[0].mxu0 %v5689
        %v5771 = vpop.f32.mrb[0].mxu0
        %v5772 = vadd.f32 %v5609, %v5771
        %v5773 = vpop.f32.mrb[0].mxu0
        %v5774 = vpop.f32.mrb[0].mxu0
        %v5775 = vadd.f32 %v5612, %v5774
        %v5776 = vpop.f32.mrb[0].mxu0
        %5777 = vmatprep.mubr.bf16.mxu0 0
        %5778 = vmatmul.mubr.bf16.gmra.mrb[0].mxu0 %v5692
        %v5779 = vpop.f32.mrb[0].mxu0
        %v5780 = vadd.f32 %v5617, %v5779
        %v5781 = vpop.f32.mrb[0].mxu0
        %v5782 = vpop.f32.mrb[0].mxu0
        %v5783 = vadd.f32 %v5620, %v5782
        %v5784 = vpop.f32.mrb[0].mxu0
        %5785 = vmatprep.mubr.bf16.mxu0 0
        %5786 = vmatmul.mubr.bf16.gmra.mrb[0].mxu0 %v5695
        %v5787 = vpop.f32.mrb[0].mxu0
        %v5788 = vadd.f32 %v5625, %v5787
        %v5789 = vpop.f32.mrb[0].mxu0
        %v5790 = vpop.f32.mrb[0].mxu0
        %v5791 = vadd.f32 %v5628, %v5790
        %v5792 = vpop.f32.mrb[0].mxu0
        %5793 = vdwg.mxu0
        %v5794 = vld [vmem:[#allocation3 + $0x2] sm:$0xff]
        %v5795 = vld [vmem:[#allocation3 + $0xa] sm:$0xff]
        %v5796 = vld [vmem:[#allocation3 + $0x12] sm:$0xff]
        %v5797 = vld [vmem:[#allocation3 + $0x1a] sm:$0xff]
        %v5798 = vld [vmem:[#allocation3 + $0x22] sm:$0xff]
        %v5799 = vld [vmem:[#allocation3 + $0x2a] sm:$0xff]
        %v5800 = vld [vmem:[#allocation3 + $0x32] sm:$0xff]
        %v5801 = vld [vmem:[#allocation3 + $0x3a] sm:$0xff]
        %v5802 = vld [vmem:[#allocation3 + $0x42] sm:$0xff]
        %v5803 = vld [vmem:[#allocation3 + $0x4a] sm:$0xff]
        %v5804 = vld [vmem:[#allocation3 + $0x52] sm:$0xff]
        %v5805 = vld [vmem:[#allocation3 + $0x5a] sm:$0xff]
        %v5806 = vld [vmem:[#allocation3 + $0x62] sm:$0xff]
        %v5807 = vld [vmem:[#allocation3 + $0x6a] sm:$0xff]
        %v5808 = vld [vmem:[#allocation3 + $0x72] sm:$0xff]
        %v5809 = vld [vmem:[#allocation3 + $0x7a] sm:$0x3f]
        %v5810 = vpack.c.bf16 %v5795, %v5794
        %v5811 = vpack.c.bf16 %v5797, %v5796
        %v5812 = vpack.c.bf16 %v5799, %v5798
        %v5813 = vpack.c.bf16 %v5801, %v5800
        %v5814 = vpack.c.bf16 %v5803, %v5802
        %v5815 = vpack.c.bf16 %v5805, %v5804
        %v5816 = vpack.c.bf16 %v5807, %v5806
        %v5817 = vpack.c.bf16 %v5809, %v5808
        %s5818 = scalar_lea.vmem %s5, 112
        %v5819 = vld [vmem:[%s5818] sm:$0xf]
        %v5820 = vld [vmem:[%s5818 + $0x4] sm:$0xf]
        %v5821 = vld [vmem:[%s5818 + $0x8] sm:$0xf]
        %v5822 = vld [vmem:[%s5818 + $0xc] sm:$0xf]
        %v5823 = vld [vmem:[%s5818 + $0x10] sm:$0xf]
        %v5824 = vld [vmem:[%s5818 + $0x14] sm:$0xf]
        %v5825 = vld [vmem:[%s5818 + $0x18] sm:$0xf]
        %v5826 = vld [vmem:[%s5818 + $0x1c] sm:$0xf]
        %v5827 = vld [vmem:[%s5818 + $0x20] sm:$0xf]
        %v5828 = vld [vmem:[%s5818 + $0x24] sm:$0xf]
        %v5829 = vld [vmem:[%s5818 + $0x28] sm:$0xf]
        %v5830 = vld [vmem:[%s5818 + $0x2c] sm:$0xf]
        %v5831 = vld [vmem:[%s5818 + $0x30] sm:$0xf]
        %v5832 = vld [vmem:[%s5818 + $0x34] sm:$0xf]
        %v5847 = vunpack.c.l.b16 %v5819
        %v5848 = vunpack.c.l.b16 %v5820
        %v5849 = vunpack.c.l.b16 %v5821
        %v5850 = vunpack.c.l.b16 %v5822
        %v5851 = vunpack.c.l.b16 %v5823
        %v5852 = vunpack.c.l.b16 %v5824
        %v5853 = vunpack.c.l.b16 %v5825
        %v5854 = vunpack.c.l.b16 %v5826
        %v5855 = vunpack.c.l.b16 %v5827
        %v5856 = vunpack.c.l.b16 %v5828
        %v5857 = vunpack.c.l.b16 %v5829
        %v5858 = vunpack.c.l.b16 %v5830
        %v5859 = vunpack.c.l.b16 %v5831
        %v5860 = vunpack.c.l.b16 %v5832
        %v5861 = vpack.c.b16 %v5848, %v5847
        %v5862 = vpack.c.b16 %v5850, %v5849
        %v5863 = vpack.c.b16 %v5852, %v5851
        %v5864 = vpack.c.b16 %v5854, %v5853
        %v5865 = vpack.c.b16 %v5856, %v5855
        %v5866 = vpack.c.b16 %v5858, %v5857
        %v5867 = vpack.c.b16 %v5860, %v5859
        %v5876 = vsel %vm5374, %v5810, 0
        %v5879 = vsel %vm5374, %v5811, 0
        %v5882 = vsel %vm5374, %v5812, 0
        %v5885 = vsel %vm5374, %v5813, 0
        %v5888 = vsel %vm5374, %v5814, 0
        %v5891 = vsel %vm5374, %v5815, 0
        %v5894 = vsel %vm5374, %v5816, 0
        %v5897 = vsel %vm5374, %v5817, 0
        %5899 = vmatprep.subr.bf16.mxu0 0
        %5900 = vmatpush1.bf16.msra.mxu0 %v5861
        %5901 = vmatprep.subr.bf16.mxu0 0
        %5902 = vmatpush1.bf16.msra.mxu0 %v5862
        %5903 = vmatprep.subr.bf16.mxu0 0
        %5904 = vmatpush1.bf16.msra.mxu0 %v5863
        %5905 = vmatprep.subr.bf16.mxu0 0
        %5906 = vmatpush1.bf16.msra.mxu0 %v5864
        %5907 = vmatprep.subr.bf16.mxu0 0
        %5908 = vmatpush1.bf16.msra.mxu0 %v5865
        %5909 = vmatprep.subr.bf16.mxu0 0
        %5910 = vmatpush1.bf16.msra.mxu0 %v5866
        %5911 = vmatprep.subr.bf16.mxu0 0
        %5912 = vmatpush1.bf16.msra.mxu0 %v5867
        %5913 = vmatprep.subr.bf16.mxu0 0
        %5914 = vmatpush1.bf16.msra.mxu0 0
        %5915 = vmatprep.subr.bf16.mxu0 0
        %5916 = vmatpush1.bf16.msra.mxu0 0
        %5917 = vmatprep.subr.bf16.mxu0 0
        %5918 = vmatpush1.bf16.msra.mxu0 0
        %5919 = vmatprep.subr.bf16.mxu0 0
        %5920 = vmatpush1.bf16.msra.mxu0 0
        %5921 = vmatprep.subr.bf16.mxu0 0
        %5922 = vmatpush1.bf16.msra.mxu0 0
        %5923 = vmatprep.subr.bf16.mxu0 0
        %5924 = vmatpush1.bf16.msra.mxu0 0
        %5925 = vmatprep.subr.bf16.mxu0 0
        %5926 = vmatpush1.bf16.msra.mxu0 0
        %5927 = vmatprep.subr.bf16.mxu0 0
        %5928 = vmatpush1.bf16.msra.mxu0 0
        %5929 = vmatprep.subr.bf16.mxu0 0
        %5930 = vmatpush1.bf16.msra.mxu0 0
        %5931 = vmatprep.mubr.bf16.mxu0 0
        %5932 = vmatmul.mubr.bf16.gmra.mrb[0].mxu0 %v5876
        %v5933 = vpop.f32.mrb[0].mxu0
        %v5934 = vadd.f32 0.0, %v5933
        %v5935 = vpop.f32.mrb[0].mxu0
        %v5936 = vpop.f32.mrb[0].mxu0
        %v5937 = vadd.f32 0.0, %v5936
        %v5938 = vpop.f32.mrb[0].mxu0
        %5939 = vmatprep.mubr.bf16.mxu0 0
        %5940 = vmatmul.mubr.bf16.gmra.mrb[0].mxu0 %v5879
        %v5941 = vpop.f32.mrb[0].mxu0
        %v5942 = vadd.f32 0.0, %v5941
        %v5943 = vpop.f32.mrb[0].mxu0
        %v5944 = vpop.f32.mrb[0].mxu0
        %v5945 = vadd.f32 0.0, %v5944
        %v5946 = vpop.f32.mrb[0].mxu0
        %5947 = vmatprep.mubr.bf16.mxu0 0
        %5948 = vmatmul.mubr.bf16.gmra.mrb[0].mxu0 %v5882
        %v5949 = vpop.f32.mrb[0].mxu0
        %v5950 = vadd.f32 0.0, %v5949
        %v5951 = vpop.f32.mrb[0].mxu0
        %v5952 = vpop.f32.mrb[0].mxu0
        %v5953 = vadd.f32 0.0, %v5952
        %v5954 = vpop.f32.mrb[0].mxu0
        %5955 = vmatprep.mubr.bf16.mxu0 0
        %5956 = vmatmul.mubr.bf16.gmra.mrb[0].mxu0 %v5885
        %v5957 = vpop.f32.mrb[0].mxu0
        %v5958 = vadd.f32 0.0, %v5957
        %v5959 = vpop.f32.mrb[0].mxu0
        %v5960 = vpop.f32.mrb[0].mxu0
        %v5961 = vadd.f32 0.0, %v5960
        %v5962 = vpop.f32.mrb[0].mxu0
        %5963 = vmatprep.mubr.bf16.mxu0 0
        %5964 = vmatmul.mubr.bf16.gmra.mrb[0].mxu0 %v5888
        %v5965 = vpop.f32.mrb[0].mxu0
        %v5966 = vadd.f32 0.0, %v5965
        %v5967 = vpop.f32.mrb[0].mxu0
        %v5968 = vpop.f32.mrb[0].mxu0
        %v5969 = vadd.f32 0.0, %v5968
        %v5970 = vpop.f32.mrb[0].mxu0
        %5971 = vmatprep.mubr.bf16.mxu0 0
        %5972 = vmatmul.mubr.bf16.gmra.mrb[0].mxu0 %v5891
        %v5973 = vpop.f32.mrb[0].mxu0
        %v5974 = vadd.f32 0.0, %v5973
        %v5975 = vpop.f32.mrb[0].mxu0
        %v5976 = vpop.f32.mrb[0].mxu0
        %v5977 = vadd.f32 0.0, %v5976
        %v5978 = vpop.f32.mrb[0].mxu0
        %5979 = vmatprep.mubr.bf16.mxu0 0
        %5980 = vmatmul.mubr.bf16.gmra.mrb[0].mxu0 %v5894
        %v5981 = vpop.f32.mrb[0].mxu0
        %v5982 = vadd.f32 0.0, %v5981
        %v5983 = vpop.f32.mrb[0].mxu0
        %v5984 = vpop.f32.mrb[0].mxu0
        %v5985 = vadd.f32 0.0, %v5984
        %v5986 = vpop.f32.mrb[0].mxu0
        %5987 = vmatprep.mubr.bf16.mxu0 0
        %5988 = vmatmul.mubr.bf16.gmra.mrb[0].mxu0 %v5897
        %v5989 = vpop.f32.mrb[0].mxu0
        %v5990 = vadd.f32 0.0, %v5989
        %v5991 = vpop.f32.mrb[0].mxu0
        %v5992 = vpop.f32.mrb[0].mxu0
        %v5993 = vadd.f32 0.0, %v5992
        %v5994 = vpop.f32.mrb[0].mxu0
        %5995 = vdwg.mxu0
        %v5996 = vadd.f32 %v5732, %v5934
        %v5997 = vadd.f32 %v5735, %v5937
        %v5998 = vadd.f32 %v5740, %v5942
        %v5999 = vadd.f32 %v5743, %v5945
        %v6000 = vadd.f32 %v5748, %v5950
        %v6001 = vadd.f32 %v5751, %v5953
        %v6002 = vadd.f32 %v5756, %v5958
        %v6003 = vadd.f32 %v5759, %v5961
        %v6004 = vadd.f32 %v5764, %v5966
        %v6005 = vadd.f32 %v5767, %v5969
        %v6006 = vadd.f32 %v5772, %v5974
        %v6007 = vadd.f32 %v5775, %v5977
        %v6008 = vadd.f32 %v5780, %v5982
        %v6009 = vadd.f32 %v5783, %v5985
        %v6010 = vadd.f32 %v5788, %v5990
        %v6011 = vadd.f32 %v5791, %v5993
        %v6012 = vld [vmem:[%s6] sm:$0x1]
        %v6014 = vlaneseq
        %v6015 = vshrl.u32 %v6014, 7
        %v6016 = vsub.s32 0, %v6015
        %v6017 = vrot.slane %v6012, %v6016
        %v6019 = vadd.f32 %v5996, %v6017
        %v6020 = vadd.f32 %v5997, %v6017
        %v6021 = vadd.f32 %v5998, %v6017
        %v6022 = vadd.f32 %v5999, %v6017
        %v6023 = vadd.f32 %v6000, %v6017
        %v6024 = vadd.f32 %v6001, %v6017
        %v6025 = vadd.f32 %v6002, %v6017
        %v6026 = vadd.f32 %v6003, %v6017
        %v6027 = vadd.f32 %v6004, %v6017
        %v6028 = vadd.f32 %v6005, %v6017
        %v6029 = vadd.f32 %v6006, %v6017
        %v6030 = vadd.f32 %v6007, %v6017
        %v6031 = vadd.f32 %v6008, %v6017
        %v6032 = vadd.f32 %v6009, %v6017
        %v6033 = vadd.f32 %v6010, %v6017
        %v6034 = vadd.f32 %v6011, %v6017
        %v6035 = vmax.f32 %v6019, 0.0
        %v6036 = vmax.f32 %v6020, 0.0
        %v6037 = vmax.f32 %v6021, 0.0
        %v6038 = vmax.f32 %v6022, 0.0
        %v6039 = vmax.f32 %v6023, 0.0
        %v6040 = vmax.f32 %v6024, 0.0
        %v6041 = vmax.f32 %v6025, 0.0
        %v6042 = vmax.f32 %v6026, 0.0
        %v6043 = vmax.f32 %v6027, 0.0
        %v6044 = vmax.f32 %v6028, 0.0
        %v6045 = vmax.f32 %v6029, 0.0
        %v6046 = vmax.f32 %v6030, 0.0
        %v6047 = vmax.f32 %v6031, 0.0
        %v6048 = vmax.f32 %v6032, 0.0
        %v6049 = vmax.f32 %v6033, 0.0
        %v6050 = vmax.f32 %v6034, 0.0
        %v6051 = vld [vmem:[%s18] sm:$0xff]
        %v6052 = vld [vmem:[%s18 + $0x8] sm:$0xff]
        %v6053 = vld [vmem:[%s18 + $0x10] sm:$0xff]
        %v6054 = vld [vmem:[%s18 + $0x18] sm:$0xff]
        %v6055 = vld [vmem:[%s18 + $0x20] sm:$0xff]
        %v6056 = vld [vmem:[%s18 + $0x28] sm:$0xff]
        %v6057 = vld [vmem:[%s18 + $0x30] sm:$0xff]
        %v6058 = vld [vmem:[%s18 + $0x38] sm:$0xff]
        %v6059 = vld [vmem:[%s18 + $0x40] sm:$0xff]
        %v6060 = vld [vmem:[%s18 + $0x48] sm:$0xff]
        %v6061 = vld [vmem:[%s18 + $0x50] sm:$0xff]
        %v6062 = vld [vmem:[%s18 + $0x58] sm:$0xff]
        %v6063 = vld [vmem:[%s18 + $0x60] sm:$0xff]
        %v6064 = vld [vmem:[%s18 + $0x68] sm:$0xff]
        %v6065 = vld [vmem:[%s18 + $0x70] sm:$0xff]
        %v6066 = vld [vmem:[%s18 + $0x78] sm:$0x3f]
        %6068 = vset.pattern.permute.xlu0 0
        %6069 = vperm.xlu0 %6068, %v6051
        %v6070 = vpop.permute.xlu0 %6069
        %6073 = vset.pattern.permute.xlu0 0
        %6074 = vperm.xlu0 %6073, %v6052
        %v6075 = vpop.permute.xlu0 %6074
        %6078 = vset.pattern.permute.xlu0 0
        %6079 = vperm.xlu0 %6078, %v6053
        %v6080 = vpop.permute.xlu0 %6079
        %6083 = vset.pattern.permute.xlu0 0
        %6084 = vperm.xlu0 %6083, %v6054
        %v6085 = vpop.permute.xlu0 %6084
        %6088 = vset.pattern.permute.xlu0 0
        %6089 = vperm.xlu0 %6088, %v6055
        %v6090 = vpop.permute.xlu0 %6089
        %6093 = vset.pattern.permute.xlu0 0
        %6094 = vperm.xlu0 %6093, %v6056
        %v6095 = vpop.permute.xlu0 %6094
        %6098 = vset.pattern.permute.xlu0 0
        %6099 = vperm.xlu0 %6098, %v6057
        %v6100 = vpop.permute.xlu0 %6099
        %6103 = vset.pattern.permute.xlu0 0
        %6104 = vperm.xlu0 %6103, %v6058
        %v6105 = vpop.permute.xlu0 %6104
        %6108 = vset.pattern.permute.xlu0 0
        %6109 = vperm.xlu0 %6108, %v6059
        %v6110 = vpop.permute.xlu0 %6109
        %6113 = vset.pattern.permute.xlu0 0
        %6114 = vperm.xlu0 %6113, %v6060
        %v6115 = vpop.permute.xlu0 %6114
        %6118 = vset.pattern.permute.xlu0 0
        %6119 = vperm.xlu0 %6118, %v6061
        %v6120 = vpop.permute.xlu0 %6119
        %6123 = vset.pattern.permute.xlu0 0
        %6124 = vperm.xlu0 %6123, %v6062
        %v6125 = vpop.permute.xlu0 %6124
        %6128 = vset.pattern.permute.xlu0 0
        %6129 = vperm.xlu0 %6128, %v6063
        %v6130 = vpop.permute.xlu0 %6129
        %6133 = vset.pattern.permute.xlu0 0
        %6134 = vperm.xlu0 %6133, %v6064
        %v6135 = vpop.permute.xlu0 %6134
        %6138 = vset.pattern.permute.xlu0 0
        %6139 = vperm.xlu0 %6138, %v6065
        %v6140 = vpop.permute.xlu0 %6139
        %6143 = vset.pattern.permute.xlu0 0
        %6144 = vperm.xlu0 %6143, %v6066
        %v6145 = vpop.permute.xlu0 %6144
        %v6147 = vmul.f32 %v6035, %v6070
        %v6148 = vmul.f32 %v6036, %v6075
        %v6149 = vmul.f32 %v6037, %v6080
        %v6150 = vmul.f32 %v6038, %v6085
        %v6151 = vmul.f32 %v6039, %v6090
        %v6152 = vmul.f32 %v6040, %v6095
        %v6153 = vmul.f32 %v6041, %v6100
        %v6154 = vmul.f32 %v6042, %v6105
        %v6155 = vmul.f32 %v6043, %v6110
        %v6156 = vmul.f32 %v6044, %v6115
        %v6157 = vmul.f32 %v6045, %v6120
        %v6158 = vmul.f32 %v6046, %v6125
        %v6159 = vmul.f32 %v6047, %v6130
        %v6160 = vmul.f32 %v6048, %v6135
        %v6161 = vmul.f32 %v6049, %v6140
        %v6162 = vmul.f32 %v6050, %v6145
        %6163 = vst.msk [vmem:[#allocation4 + $0x1] sm:$0xff] %vm5374, %v6147
        %6164 = vst.msk [vmem:[#allocation4 + $0x9] sm:$0xff] %vm5374, %v6148
        %6165 = vst.msk [vmem:[#allocation4 + $0x11] sm:$0xff] %vm5374, %v6149
        %6166 = vst.msk [vmem:[#allocation4 + $0x19] sm:$0xff] %vm5374, %v6150
        %6167 = vst.msk [vmem:[#allocation4 + $0x21] sm:$0xff] %vm5374, %v6151
        %6168 = vst.msk [vmem:[#allocation4 + $0x29] sm:$0xff] %vm5374, %v6152
        %6169 = vst.msk [vmem:[#allocation4 + $0x31] sm:$0xff] %vm5374, %v6153
        %6170 = vst.msk [vmem:[#allocation4 + $0x39] sm:$0xff] %vm5374, %v6154
        %6171 = vst.msk [vmem:[#allocation4 + $0x41] sm:$0xff] %vm5374, %v6155
        %6172 = vst.msk [vmem:[#allocation4 + $0x49] sm:$0xff] %vm5374, %v6156
        %6173 = vst.msk [vmem:[#allocation4 + $0x51] sm:$0xff] %vm5374, %v6157
        %6174 = vst.msk [vmem:[#allocation4 + $0x59] sm:$0xff] %vm5374, %v6158
        %6175 = vst.msk [vmem:[#allocation4 + $0x61] sm:$0xff] %vm5374, %v6159
        %6176 = vst.msk [vmem:[#allocation4 + $0x69] sm:$0xff] %vm5374, %v6160
        %6177 = vst.msk [vmem:[#allocation4 + $0x71] sm:$0xff] %vm5374, %v6161
        %vm6178 = vcmask 914432
        %6179 = vst.msk [vmem:[#allocation4 + $0x79] sm:$0x3f] %vm6178, %v6162
        %vm6180 = vcmask 909312
        %6181 = vst.msk [vmem:[#allocation4] sm:$0x1] %vm6180, 0.0
        %6182 = vst.msk [vmem:[#allocation4 + $0x7f] sm:$0x1] %vm6180, 0.0
        %v6183 = vld [vmem:[#allocation4] sm:$0xff]
        %v6184 = vld [vmem:[#allocation4 + $0x8] sm:$0xff]
        %v6185 = vld [vmem:[#allocation4 + $0x10] sm:$0xff]
        %v6186 = vld [vmem:[#allocation4 + $0x18] sm:$0xff]
        %v6187 = vld [vmem:[#allocation4 + $0x20] sm:$0xff]
        %v6188 = vld [vmem:[#allocation4 + $0x28] sm:$0xff]
        %v6189 = vld [vmem:[#allocation4 + $0x30] sm:$0xff]
        %v6190 = vld [vmem:[#allocation4 + $0x38] sm:$0xff]
        %v6191 = vld [vmem:[#allocation4 + $0x40] sm:$0xff]
        %v6192 = vld [vmem:[#allocation4 + $0x48] sm:$0xff]
        %v6193 = vld [vmem:[#allocation4 + $0x50] sm:$0xff]
        %v6194 = vld [vmem:[#allocation4 + $0x58] sm:$0xff]
        %v6195 = vld [vmem:[#allocation4 + $0x60] sm:$0xff]
        %v6196 = vld [vmem:[#allocation4 + $0x68] sm:$0xff]
        %v6197 = vld [vmem:[#allocation4 + $0x70] sm:$0xff]
        %v6198 = vld [vmem:[#allocation4 + $0x78] sm:$0x3f]
        %v6199 = vpack.c.bf16 %v6184, %v6183
        %v6200 = vpack.c.bf16 %v6186, %v6185
        %v6201 = vpack.c.bf16 %v6188, %v6187
        %v6202 = vpack.c.bf16 %v6190, %v6189
        %v6203 = vpack.c.bf16 %v6192, %v6191
        %v6204 = vpack.c.bf16 %v6194, %v6193
        %v6205 = vpack.c.bf16 %v6196, %v6195
        %v6206 = vpack.c.bf16 %v6198, %v6197
        %v6207 = vld [vmem:[%s7] sm:$0xf]
        %v6208 = vld [vmem:[%s7 + $0x4] sm:$0xf]
        %v6209 = vld [vmem:[%s7 + $0x8] sm:$0xf]
        %v6210 = vld [vmem:[%s7 + $0xc] sm:$0xf]
        %v6211 = vld [vmem:[%s7 + $0x10] sm:$0xf]
        %v6212 = vld [vmem:[%s7 + $0x14] sm:$0xf]
        %v6213 = vld [vmem:[%s7 + $0x18] sm:$0xf]
        %v6214 = vld [vmem:[%s7 + $0x1c] sm:$0xf]
        %v6215 = vld [vmem:[%s7 + $0x20] sm:$0xf]
        %v6216 = vld [vmem:[%s7 + $0x24] sm:$0xf]
        %v6217 = vld [vmem:[%s7 + $0x28] sm:$0xf]
        %v6218 = vld [vmem:[%s7 + $0x2c] sm:$0xf]
        %v6219 = vld [vmem:[%s7 + $0x30] sm:$0xf]
        %v6220 = vld [vmem:[%s7 + $0x34] sm:$0xf]
        %v6221 = vld [vmem:[#allocation4 + $0x1] sm:$0xff]
        %v6222 = vld [vmem:[#allocation4 + $0x9] sm:$0xff]
        %v6223 = vld [vmem:[#allocation4 + $0x11] sm:$0xff]
        %v6224 = vld [vmem:[#allocation4 + $0x19] sm:$0xff]
        %v6225 = vld [vmem:[#allocation4 + $0x21] sm:$0xff]
        %v6226 = vld [vmem:[#allocation4 + $0x29] sm:$0xff]
        %v6227 = vld [vmem:[#allocation4 + $0x31] sm:$0xff]
        %v6228 = vld [vmem:[#allocation4 + $0x39] sm:$0xff]
        %v6229 = vld [vmem:[#allocation4 + $0x41] sm:$0xff]
        %v6230 = vld [vmem:[#allocation4 + $0x49] sm:$0xff]
        %v6231 = vld [vmem:[#allocation4 + $0x51] sm:$0xff]
        %v6232 = vld [vmem:[#allocation4 + $0x59] sm:$0xff]
        %v6233 = vld [vmem:[#allocation4 + $0x61] sm:$0xff]
        %v6234 = vld [vmem:[#allocation4 + $0x69] sm:$0xff]
        %v6235 = vld [vmem:[#allocation4 + $0x71] sm:$0xff]
        %v6236 = vld [vmem:[#allocation4 + $0x79] sm:$0x3f]
        %v6237 = vpack.c.bf16 %v6222, %v6221
        %v6238 = vpack.c.bf16 %v6224, %v6223
        %v6239 = vpack.c.bf16 %v6226, %v6225
        %v6240 = vpack.c.bf16 %v6228, %v6227
        %v6241 = vpack.c.bf16 %v6230, %v6229
        %v6242 = vpack.c.bf16 %v6232, %v6231
        %v6243 = vpack.c.bf16 %v6234, %v6233
        %v6244 = vpack.c.bf16 %v6236, %v6235
        %s6245 = scalar_lea.vmem %s7, 56
        %v6246 = vld [vmem:[%s6245] sm:$0xf]
        %v6247 = vld [vmem:[%s6245 + $0x4] sm:$0xf]
        %v6248 = vld [vmem:[%s6245 + $0x8] sm:$0xf]
        %v6249 = vld [vmem:[%s6245 + $0xc] sm:$0xf]
        %v6250 = vld [vmem:[%s6245 + $0x10] sm:$0xf]
        %v6251 = vld [vmem:[%s6245 + $0x14] sm:$0xf]
        %v6252 = vld [vmem:[%s6245 + $0x18] sm:$0xf]
        %v6253 = vld [vmem:[%s6245 + $0x1c] sm:$0xf]
        %v6254 = vld [vmem:[%s6245 + $0x20] sm:$0xf]
        %v6255 = vld [vmem:[%s6245 + $0x24] sm:$0xf]
        %v6256 = vld [vmem:[%s6245 + $0x28] sm:$0xf]
        %v6257 = vld [vmem:[%s6245 + $0x2c] sm:$0xf]
        %v6258 = vld [vmem:[%s6245 + $0x30] sm:$0xf]
        %v6259 = vld [vmem:[%s6245 + $0x34] sm:$0xf]
        %v6274 = vunpack.c.l.b16 %v6246
        %v6275 = vunpack.c.l.b16 %v6247
        %v6276 = vunpack.c.l.b16 %v6248
        %v6277 = vunpack.c.l.b16 %v6249
        %v6278 = vunpack.c.l.b16 %v6250
        %v6279 = vunpack.c.l.b16 %v6251
        %v6280 = vunpack.c.l.b16 %v6252
        %v6281 = vunpack.c.l.b16 %v6253
        %v6282 = vunpack.c.l.b16 %v6254
        %v6283 = vunpack.c.l.b16 %v6255
        %v6284 = vunpack.c.l.b16 %v6256
        %v6285 = vunpack.c.l.b16 %v6257
        %v6286 = vunpack.c.l.b16 %v6258
        %v6287 = vunpack.c.l.b16 %v6259
        %v6288 = vpack.c.b16 %v6275, %v6274
        %v6289 = vpack.c.b16 %v6277, %v6276
        %v6290 = vpack.c.b16 %v6279, %v6278
        %v6291 = vpack.c.b16 %v6281, %v6280
        %v6292 = vpack.c.b16 %v6283, %v6282
        %v6293 = vpack.c.b16 %v6285, %v6284
        %v6294 = vpack.c.b16 %v6287, %v6286
        %v6303 = vsel %vm5374, %v6237, 0
        %v6306 = vsel %vm5374, %v6238, 0
        %v6309 = vsel %vm5374, %v6239, 0
        %v6312 = vsel %vm5374, %v6240, 0
        %v6315 = vsel %vm5374, %v6241, 0
        %v6318 = vsel %vm5374, %v6242, 0
        %v6321 = vsel %vm5374, %v6243, 0
        %v6324 = vsel %vm5374, %v6244, 0
        %6326 = vmatprep.subr.bf16.mxu0 0
        %6327 = vmatpush1.bf16.msra.mxu0 %v6288
        %6328 = vmatprep.subr.bf16.mxu0 0
        %6329 = vmatpush1.bf16.msra.mxu0 %v6289
        %6330 = vmatprep.subr.bf16.mxu0 0
        %6331 = vmatpush1.bf16.msra.mxu0 %v6290
        %6332 = vmatprep.subr.bf16.mxu0 0
        %6333 = vmatpush1.bf16.msra.mxu0 %v6291
        %6334 = vmatprep.subr.bf16.mxu0 0
        %6335 = vmatpush1.bf16.msra.mxu0 %v6292
        %6336 = vmatprep.subr.bf16.mxu0 0
        %6337 = vmatpush1.bf16.msra.mxu0 %v6293
        %6338 = vmatprep.subr.bf16.mxu0 0
        %6339 = vmatpush1.bf16.msra.mxu0 %v6294
        %6340 = vmatprep.subr.bf16.mxu0 0
        %6341 = vmatpush1.bf16.msra.mxu0 0
        %6342 = vmatprep.subr.bf16.mxu0 0
        %6343 = vmatpush1.bf16.msra.mxu0 0
        %6344 = vmatprep.subr.bf16.mxu0 0
        %6345 = vmatpush1.bf16.msra.mxu0 0
        %6346 = vmatprep.subr.bf16.mxu0 0
        %6347 = vmatpush1.bf16.msra.mxu0 0
        %6348 = vmatprep.subr.bf16.mxu0 0
        %6349 = vmatpush1.bf16.msra.mxu0 0
        %6350 = vmatprep.subr.bf16.mxu0 0
        %6351 = vmatpush1.bf16.msra.mxu0 0
        %6352 = vmatprep.subr.bf16.mxu0 0
        %6353 = vmatpush1.bf16.msra.mxu0 0
        %6354 = vmatprep.subr.bf16.mxu0 0
        %6355 = vmatpush1.bf16.msra.mxu0 0
        %6356 = vmatprep.subr.bf16.mxu0 0
        %6357 = vmatpush1.bf16.msra.mxu0 0
        %6358 = vmatprep.mubr.bf16.mxu0 0
        %6359 = vmatmul.mubr.bf16.gmra.mrb[0].mxu0 %v6303
        %v6360 = vpop.f32.mrb[0].mxu0
        %v6361 = vadd.f32 0.0, %v6360
        %v6362 = vpop.f32.mrb[0].mxu0
        %v6363 = vpop.f32.mrb[0].mxu0
        %v6364 = vadd.f32 0.0, %v6363
        %v6365 = vpop.f32.mrb[0].mxu0
        %6366 = vmatprep.mubr.bf16.mxu0 0
        %6367 = vmatmul.mubr.bf16.gmra.mrb[0].mxu0 %v6306
        %v6368 = vpop.f32.mrb[0].mxu0
        %v6369 = vadd.f32 0.0, %v6368
        %v6370 = vpop.f32.mrb[0].mxu0
        %v6371 = vpop.f32.mrb[0].mxu0
        %v6372 = vadd.f32 0.0, %v6371
        %v6373 = vpop.f32.mrb[0].mxu0
        %6374 = vmatprep.mubr.bf16.mxu0 0
        %6375 = vmatmul.mubr.bf16.gmra.mrb[0].mxu0 %v6309
        %v6376 = vpop.f32.mrb[0].mxu0
        %v6377 = vadd.f32 0.0, %v6376
        %v6378 = vpop.f32.mrb[0].mxu0
        %v6379 = vpop.f32.mrb[0].mxu0
        %v6380 = vadd.f32 0.0, %v6379
        %v6381 = vpop.f32.mrb[0].mxu0
        %6382 = vmatprep.mubr.bf16.mxu0 0
        %6383 = vmatmul.mubr.bf16.gmra.mrb[0].mxu0 %v6312
        %v6384 = vpop.f32.mrb[0].mxu0
        %v6385 = vadd.f32 0.0, %v6384
        %v6386 = vpop.f32.mrb[0].mxu0
        %v6387 = vpop.f32.mrb[0].mxu0
        %v6388 = vadd.f32 0.0, %v6387
        %v6389 = vpop.f32.mrb[0].mxu0
        %6390 = vmatprep.mubr.bf16.mxu0 0
        %6391 = vmatmul.mubr.bf16.gmra.mrb[0].mxu0 %v6315
        %v6392 = vpop.f32.mrb[0].mxu0
        %v6393 = vadd.f32 0.0, %v6392
        %v6394 = vpop.f32.mrb[0].mxu0
        %v6395 = vpop.f32.mrb[0].mxu0
        %v6396 = vadd.f32 0.0, %v6395
        %v6397 = vpop.f32.mrb[0].mxu0
        %6398 = vmatprep.mubr.bf16.mxu0 0
        %6399 = vmatmul.mubr.bf16.gmra.mrb[0].mxu0 %v6318
        %v6400 = vpop.f32.mrb[0].mxu0
        %v6401 = vadd.f32 0.0, %v6400
        %v6402 = vpop.f32.mrb[0].mxu0
        %v6403 = vpop.f32.mrb[0].mxu0
        %v6404 = vadd.f32 0.0, %v6403
        %v6405 = vpop.f32.mrb[0].mxu0
        %6406 = vmatprep.mubr.bf16.mxu0 0
        %6407 = vmatmul.mubr.bf16.gmra.mrb[0].mxu0 %v6321
        %v6408 = vpop.f32.mrb[0].mxu0
        %v6409 = vadd.f32 0.0, %v6408
        %v6410 = vpop.f32.mrb[0].mxu0
        %v6411 = vpop.f32.mrb[0].mxu0
        %v6412 = vadd.f32 0.0, %v6411
        %v6413 = vpop.f32.mrb[0].mxu0
        %6414 = vmatprep.mubr.bf16.mxu0 0
        %6415 = vmatmul.mubr.bf16.gmra.mrb[0].mxu0 %v6324
        %v6416 = vpop.f32.mrb[0].mxu0
        %v6417 = vadd.f32 0.0, %v6416
        %v6418 = vpop.f32.mrb[0].mxu0
        %v6419 = vpop.f32.mrb[0].mxu0
        %v6420 = vadd.f32 0.0, %v6419
        %v6421 = vpop.f32.mrb[0].mxu0
        %6422 = vdwg.mxu0
        %v6437 = vunpack.c.l.b16 %v6207
        %v6438 = vunpack.c.l.b16 %v6208
        %v6439 = vunpack.c.l.b16 %v6209
        %v6440 = vunpack.c.l.b16 %v6210
        %v6441 = vunpack.c.l.b16 %v6211
        %v6442 = vunpack.c.l.b16 %v6212
        %v6443 = vunpack.c.l.b16 %v6213
        %v6444 = vunpack.c.l.b16 %v6214
        %v6445 = vunpack.c.l.b16 %v6215
        %v6446 = vunpack.c.l.b16 %v6216
        %v6447 = vunpack.c.l.b16 %v6217
        %v6448 = vunpack.c.l.b16 %v6218
        %v6449 = vunpack.c.l.b16 %v6219
        %v6450 = vunpack.c.l.b16 %v6220
        %v6451 = vpack.c.b16 %v6438, %v6437
        %v6452 = vpack.c.b16 %v6440, %v6439
        %v6453 = vpack.c.b16 %v6442, %v6441
        %v6454 = vpack.c.b16 %v6444, %v6443
        %v6455 = vpack.c.b16 %v6446, %v6445
        %v6456 = vpack.c.b16 %v6448, %v6447
        %v6457 = vpack.c.b16 %v6450, %v6449
        %v6466 = vsel %vm5374, %v6199, 0
        %v6469 = vsel %vm5374, %v6200, 0
        %v6472 = vsel %vm5374, %v6201, 0
        %v6475 = vsel %vm5374, %v6202, 0
        %v6478 = vsel %vm5374, %v6203, 0
        %v6481 = vsel %vm5374, %v6204, 0
        %v6484 = vsel %vm5374, %v6205, 0
        %v6487 = vsel %vm5374, %v6206, 0
        %6489 = vmatprep.subr.bf16.mxu0 0
        %6490 = vmatpush1.bf16.msra.mxu0 %v6451
        %6491 = vmatprep.subr.bf16.mxu0 0
        %6492 = vmatpush1.bf16.msra.mxu0 %v6452
        %6493 = vmatprep.subr.bf16.mxu0 0
        %6494 = vmatpush1.bf16.msra.mxu0 %v6453
        %6495 = vmatprep.subr.bf16.mxu0 0
        %6496 = vmatpush1.bf16.msra.mxu0 %v6454
        %6497 = vmatprep.subr.bf16.mxu0 0
        %6498 = vmatpush1.bf16.msra.mxu0 %v6455
        %6499 = vmatprep.subr.bf16.mxu0 0
        %6500 = vmatpush1.bf16.msra.mxu0 %v6456
        %6501 = vmatprep.subr.bf16.mxu0 0
        %6502 = vmatpush1.bf16.msra.mxu0 %v6457
        %6503 = vmatprep.subr.bf16.mxu0 0
        %6504 = vmatpush1.bf16.msra.mxu0 0
        %6505 = vmatprep.subr.bf16.mxu0 0
        %6506 = vmatpush1.bf16.msra.mxu0 0
        %6507 = vmatprep.subr.bf16.mxu0 0
        %6508 = vmatpush1.bf16.msra.mxu0 0
        %6509 = vmatprep.subr.bf16.mxu0 0
        %6510 = vmatpush1.bf16.msra.mxu0 0
        %6511 = vmatprep.subr.bf16.mxu0 0
        %6512 = vmatpush1.bf16.msra.mxu0 0
        %6513 = vmatprep.subr.bf16.mxu0 0
        %6514 = vmatpush1.bf16.msra.mxu0 0
        %6515 = vmatprep.subr.bf16.mxu0 0
        %6516 = vmatpush1.bf16.msra.mxu0 0
        %6517 = vmatprep.subr.bf16.mxu0 0
        %6518 = vmatpush1.bf16.msra.mxu0 0
        %6519 = vmatprep.subr.bf16.mxu0 0
        %6520 = vmatpush1.bf16.msra.mxu0 0
        %6521 = vmatprep.mubr.bf16.mxu0 0
        %6522 = vmatmul.mubr.bf16.gmra.mrb[0].mxu0 %v6466
        %v6523 = vpop.f32.mrb[0].mxu0
        %v6524 = vadd.f32 %v6361, %v6523
        %v6525 = vpop.f32.mrb[0].mxu0
        %v6526 = vpop.f32.mrb[0].mxu0
        %v6527 = vadd.f32 %v6364, %v6526
        %v6528 = vpop.f32.mrb[0].mxu0
        %6529 = vmatprep.mubr.bf16.mxu0 0
        %6530 = vmatmul.mubr.bf16.gmra.mrb[0].mxu0 %v6469
        %v6531 = vpop.f32.mrb[0].mxu0
        %v6532 = vadd.f32 %v6369, %v6531
        %v6533 = vpop.f32.mrb[0].mxu0
        %v6534 = vpop.f32.mrb[0].mxu0
        %v6535 = vadd.f32 %v6372, %v6534
        %v6536 = vpop.f32.mrb[0].mxu0
        %6537 = vmatprep.mubr.bf16.mxu0 0
        %6538 = vmatmul.mubr.bf16.gmra.mrb[0].mxu0 %v6472
        %v6539 = vpop.f32.mrb[0].mxu0
        %v6540 = vadd.f32 %v6377, %v6539
        %v6541 = vpop.f32.mrb[0].mxu0
        %v6542 = vpop.f32.mrb[0].mxu0
        %v6543 = vadd.f32 %v6380, %v6542
        %v6544 = vpop.f32.mrb[0].mxu0
        %6545 = vmatprep.mubr.bf16.mxu0 0
        %6546 = vmatmul.mubr.bf16.gmra.mrb[0].mxu0 %v6475
        %v6547 = vpop.f32.mrb[0].mxu0
        %v6548 = vadd.f32 %v6385, %v6547
        %v6549 = vpop.f32.mrb[0].mxu0
        %v6550 = vpop.f32.mrb[0].mxu0
        %v6551 = vadd.f32 %v6388, %v6550
        %v6552 = vpop.f32.mrb[0].mxu0
        %6553 = vmatprep.mubr.bf16.mxu0 0
        %6554 = vmatmul.mubr.bf16.gmra.mrb[0].mxu0 %v6478
        %v6555 = vpop.f32.mrb[0].mxu0
        %v6556 = vadd.f32 %v6393, %v6555
        %v6557 = vpop.f32.mrb[0].mxu0
        %v6558 = vpop.f32.mrb[0].mxu0
        %v6559 = vadd.f32 %v6396, %v6558
        %v6560 = vpop.f32.mrb[0].mxu0
        %6561 = vmatprep.mubr.bf16.mxu0 0
        %6562 = vmatmul.mubr.bf16.gmra.mrb[0].mxu0 %v6481
        %v6563 = vpop.f32.mrb[0].mxu0
        %v6564 = vadd.f32 %v6401, %v6563
        %v6565 = vpop.f32.mrb[0].mxu0
        %v6566 = vpop.f32.mrb[0].mxu0
        %v6567 = vadd.f32 %v6404, %v6566
        %v6568 = vpop.f32.mrb[0].mxu0
        %6569 = vmatprep.mubr.bf16.mxu0 0
        %6570 = vmatmul.mubr.bf16.gmra.mrb[0].mxu0 %v6484
        %v6571 = vpop.f32.mrb[0].mxu0
        %v6572 = vadd.f32 %v6409, %v6571
        %v6573 = vpop.f32.mrb[0].mxu0
        %v6574 = vpop.f32.mrb[0].mxu0
        %v6575 = vadd.f32 %v6412, %v6574
        %v6576 = vpop.f32.mrb[0].mxu0
        %6577 = vmatprep.mubr.bf16.mxu0 0
        %6578 = vmatmul.mubr.bf16.gmra.mrb[0].mxu0 %v6487
        %v6579 = vpop.f32.mrb[0].mxu0
        %v6580 = vadd.f32 %v6417, %v6579
        %v6581 = vpop.f32.mrb[0].mxu0
        %v6582 = vpop.f32.mrb[0].mxu0
        %v6583 = vadd.f32 %v6420, %v6582
        %v6584 = vpop.f32.mrb[0].mxu0
        %6585 = vdwg.mxu0
        %v6586 = vld [vmem:[#allocation4 + $0x2] sm:$0xff]
        %v6587 = vld [vmem:[#allocation4 + $0xa] sm:$0xff]
        %v6588 = vld [vmem:[#allocation4 + $0x12] sm:$0xff]
        %v6589 = vld [vmem:[#allocation4 + $0x1a] sm:$0xff]
        %v6590 = vld [vmem:[#allocation4 + $0x22] sm:$0xff]
        %v6591 = vld [vmem:[#allocation4 + $0x2a] sm:$0xff]
        %v6592 = vld [vmem:[#allocation4 + $0x32] sm:$0xff]
        %v6593 = vld [vmem:[#allocation4 + $0x3a] sm:$0xff]
        %v6594 = vld [vmem:[#allocation4 + $0x42] sm:$0xff]
        %v6595 = vld [vmem:[#allocation4 + $0x4a] sm:$0xff]
        %v6596 = vld [vmem:[#allocation4 + $0x52] sm:$0xff]
        %v6597 = vld [vmem:[#allocation4 + $0x5a] sm:$0xff]
        %v6598 = vld [vmem:[#allocation4 + $0x62] sm:$0xff]
        %v6599 = vld [vmem:[#allocation4 + $0x6a] sm:$0xff]
        %v6600 = vld [vmem:[#allocation4 + $0x72] sm:$0xff]
        %v6601 = vld [vmem:[#allocation4 + $0x7a] sm:$0x3f]
        %v6602 = vpack.c.bf16 %v6587, %v6586
        %v6603 = vpack.c.bf16 %v6589, %v6588
        %v6604 = vpack.c.bf16 %v6591, %v6590
        %v6605 = vpack.c.bf16 %v6593, %v6592
        %v6606 = vpack.c.bf16 %v6595, %v6594
        %v6607 = vpack.c.bf16 %v6597, %v6596
        %v6608 = vpack.c.bf16 %v6599, %v6598
        %v6609 = vpack.c.bf16 %v6601, %v6600
        %s6610 = scalar_lea.vmem %s7, 112
        %v6611 = vld [vmem:[%s6610] sm:$0xf]
        %v6612 = vld [vmem:[%s6610 + $0x4] sm:$0xf]
        %v6613 = vld [vmem:[%s6610 + $0x8] sm:$0xf]
        %v6614 = vld [vmem:[%s6610 + $0xc] sm:$0xf]
        %v6615 = vld [vmem:[%s6610 + $0x10] sm:$0xf]
        %v6616 = vld [vmem:[%s6610 + $0x14] sm:$0xf]
        %v6617 = vld [vmem:[%s6610 + $0x18] sm:$0xf]
        %v6618 = vld [vmem:[%s6610 + $0x1c] sm:$0xf]
        %v6619 = vld [vmem:[%s6610 + $0x20] sm:$0xf]
        %v6620 = vld [vmem:[%s6610 + $0x24] sm:$0xf]
        %v6621 = vld [vmem:[%s6610 + $0x28] sm:$0xf]
        %v6622 = vld [vmem:[%s6610 + $0x2c] sm:$0xf]
        %v6623 = vld [vmem:[%s6610 + $0x30] sm:$0xf]
        %v6624 = vld [vmem:[%s6610 + $0x34] sm:$0xf]
        %v6639 = vunpack.c.l.b16 %v6611
        %v6640 = vunpack.c.l.b16 %v6612
        %v6641 = vunpack.c.l.b16 %v6613
        %v6642 = vunpack.c.l.b16 %v6614
        %v6643 = vunpack.c.l.b16 %v6615
        %v6644 = vunpack.c.l.b16 %v6616
        %v6645 = vunpack.c.l.b16 %v6617
        %v6646 = vunpack.c.l.b16 %v6618
        %v6647 = vunpack.c.l.b16 %v6619
        %v6648 = vunpack.c.l.b16 %v6620
        %v6649 = vunpack.c.l.b16 %v6621
        %v6650 = vunpack.c.l.b16 %v6622
        %v6651 = vunpack.c.l.b16 %v6623
        %v6652 = vunpack.c.l.b16 %v6624
        %v6653 = vpack.c.b16 %v6640, %v6639
        %v6654 = vpack.c.b16 %v6642, %v6641
        %v6655 = vpack.c.b16 %v6644, %v6643
        %v6656 = vpack.c.b16 %v6646, %v6645
        %v6657 = vpack.c.b16 %v6648, %v6647
        %v6658 = vpack.c.b16 %v6650, %v6649
        %v6659 = vpack.c.b16 %v6652, %v6651
        %v6668 = vsel %vm5374, %v6602, 0
        %v6671 = vsel %vm5374, %v6603, 0
        %v6674 = vsel %vm5374, %v6604, 0
        %v6677 = vsel %vm5374, %v6605, 0
        %v6680 = vsel %vm5374, %v6606, 0
        %v6683 = vsel %vm5374, %v6607, 0
        %v6686 = vsel %vm5374, %v6608, 0
        %v6689 = vsel %vm5374, %v6609, 0
        %6691 = vmatprep.subr.bf16.mxu0 0
        %6692 = vmatpush1.bf16.msra.mxu0 %v6653
        %6693 = vmatprep.subr.bf16.mxu0 0
        %6694 = vmatpush1.bf16.msra.mxu0 %v6654
        %6695 = vmatprep.subr.bf16.mxu0 0
        %6696 = vmatpush1.bf16.msra.mxu0 %v6655
        %6697 = vmatprep.subr.bf16.mxu0 0
        %6698 = vmatpush1.bf16.msra.mxu0 %v6656
        %6699 = vmatprep.subr.bf16.mxu0 0
        %6700 = vmatpush1.bf16.msra.mxu0 %v6657
        %6701 = vmatprep.subr.bf16.mxu0 0
        %6702 = vmatpush1.bf16.msra.mxu0 %v6658
        %6703 = vmatprep.subr.bf16.mxu0 0
        %6704 = vmatpush1.bf16.msra.mxu0 %v6659
        %6705 = vmatprep.subr.bf16.mxu0 0
        %6706 = vmatpush1.bf16.msra.mxu0 0
        %6707 = vmatprep.subr.bf16.mxu0 0
        %6708 = vmatpush1.bf16.msra.mxu0 0
        %6709 = vmatprep.subr.bf16.mxu0 0
        %6710 = vmatpush1.bf16.msra.mxu0 0
        %6711 = vmatprep.subr.bf16.mxu0 0
        %6712 = vmatpush1.bf16.msra.mxu0 0
        %6713 = vmatprep.subr.bf16.mxu0 0
        %6714 = vmatpush1.bf16.msra.mxu0 0
        %6715 = vmatprep.subr.bf16.mxu0 0
        %6716 = vmatpush1.bf16.msra.mxu0 0
        %6717 = vmatprep.subr.bf16.mxu0 0
        %6718 = vmatpush1.bf16.msra.mxu0 0
        %6719 = vmatprep.subr.bf16.mxu0 0
        %6720 = vmatpush1.bf16.msra.mxu0 0
        %6721 = vmatprep.subr.bf16.mxu0 0
        %6722 = vmatpush1.bf16.msra.mxu0 0
        %6723 = vmatprep.mubr.bf16.mxu0 0
        %6724 = vmatmul.mubr.bf16.gmra.mrb[0].mxu0 %v6668
        %v6725 = vpop.f32.mrb[0].mxu0
        %v6726 = vadd.f32 0.0, %v6725
        %v6727 = vpop.f32.mrb[0].mxu0
        %v6728 = vpop.f32.mrb[0].mxu0
        %v6729 = vadd.f32 0.0, %v6728
        %v6730 = vpop.f32.mrb[0].mxu0
        %6731 = vmatprep.mubr.bf16.mxu0 0
        %6732 = vmatmul.mubr.bf16.gmra.mrb[0].mxu0 %v6671
        %v6733 = vpop.f32.mrb[0].mxu0
        %v6734 = vadd.f32 0.0, %v6733
        %v6735 = vpop.f32.mrb[0].mxu0
        %v6736 = vpop.f32.mrb[0].mxu0
        %v6737 = vadd.f32 0.0, %v6736
        %v6738 = vpop.f32.mrb[0].mxu0
        %6739 = vmatprep.mubr.bf16.mxu0 0
        %6740 = vmatmul.mubr.bf16.gmra.mrb[0].mxu0 %v6674
        %v6741 = vpop.f32.mrb[0].mxu0
        %v6742 = vadd.f32 0.0, %v6741
        %v6743 = vpop.f32.mrb[0].mxu0
        %v6744 = vpop.f32.mrb[0].mxu0
        %v6745 = vadd.f32 0.0, %v6744
        %v6746 = vpop.f32.mrb[0].mxu0
        %6747 = vmatprep.mubr.bf16.mxu0 0
        %6748 = vmatmul.mubr.bf16.gmra.mrb[0].mxu0 %v6677
        %v6749 = vpop.f32.mrb[0].mxu0
        %v6750 = vadd.f32 0.0, %v6749
        %v6751 = vpop.f32.mrb[0].mxu0
        %v6752 = vpop.f32.mrb[0].mxu0
        %v6753 = vadd.f32 0.0, %v6752
        %v6754 = vpop.f32.mrb[0].mxu0
        %6755 = vmatprep.mubr.bf16.mxu0 0
        %6756 = vmatmul.mubr.bf16.gmra.mrb[0].mxu0 %v6680
        %v6757 = vpop.f32.mrb[0].mxu0
        %v6758 = vadd.f32 0.0, %v6757
        %v6759 = vpop.f32.mrb[0].mxu0
        %v6760 = vpop.f32.mrb[0].mxu0
        %v6761 = vadd.f32 0.0, %v6760
        %v6762 = vpop.f32.mrb[0].mxu0
        %6763 = vmatprep.mubr.bf16.mxu0 0
        %6764 = vmatmul.mubr.bf16.gmra.mrb[0].mxu0 %v6683
        %v6765 = vpop.f32.mrb[0].mxu0
        %v6766 = vadd.f32 0.0, %v6765
        %v6767 = vpop.f32.mrb[0].mxu0
        %v6768 = vpop.f32.mrb[0].mxu0
        %v6769 = vadd.f32 0.0, %v6768
        %v6770 = vpop.f32.mrb[0].mxu0
        %6771 = vmatprep.mubr.bf16.mxu0 0
        %6772 = vmatmul.mubr.bf16.gmra.mrb[0].mxu0 %v6686
        %v6773 = vpop.f32.mrb[0].mxu0
        %v6774 = vadd.f32 0.0, %v6773
        %v6775 = vpop.f32.mrb[0].mxu0
        %v6776 = vpop.f32.mrb[0].mxu0
        %v6777 = vadd.f32 0.0, %v6776
        %v6778 = vpop.f32.mrb[0].mxu0
        %6779 = vmatprep.mubr.bf16.mxu0 0
        %6780 = vmatmul.mubr.bf16.gmra.mrb[0].mxu0 %v6689
        %v6781 = vpop.f32.mrb[0].mxu0
        %v6782 = vadd.f32 0.0, %v6781
        %v6783 = vpop.f32.mrb[0].mxu0
        %v6784 = vpop.f32.mrb[0].mxu0
        %v6785 = vadd.f32 0.0, %v6784
        %v6786 = vpop.f32.mrb[0].mxu0
        %6787 = vdwg.mxu0
        %v6788 = vadd.f32 %v6524, %v6726
        %v6789 = vadd.f32 %v6527, %v6729
        %v6790 = vadd.f32 %v6532, %v6734
        %v6791 = vadd.f32 %v6535, %v6737
        %v6792 = vadd.f32 %v6540, %v6742
        %v6793 = vadd.f32 %v6543, %v6745
        %v6794 = vadd.f32 %v6548, %v6750
        %v6795 = vadd.f32 %v6551, %v6753
        %v6796 = vadd.f32 %v6556, %v6758
        %v6797 = vadd.f32 %v6559, %v6761
        %v6798 = vadd.f32 %v6564, %v6766
        %v6799 = vadd.f32 %v6567, %v6769
        %v6800 = vadd.f32 %v6572, %v6774
        %v6801 = vadd.f32 %v6575, %v6777
        %v6802 = vadd.f32 %v6580, %v6782
        %v6803 = vadd.f32 %v6583, %v6785
        %v6804 = vld [vmem:[%s8] sm:$0x1]
        %v6806 = vlaneseq
        %v6807 = vshrl.u32 %v6806, 7
        %v6808 = vsub.s32 0, %v6807
        %v6809 = vrot.slane %v6804, %v6808
        %v6811 = vadd.f32 %v6788, %v6809
        %v6812 = vadd.f32 %v6789, %v6809
        %v6813 = vadd.f32 %v6790, %v6809
        %v6814 = vadd.f32 %v6791, %v6809
        %v6815 = vadd.f32 %v6792, %v6809
        %v6816 = vadd.f32 %v6793, %v6809
        %v6817 = vadd.f32 %v6794, %v6809
        %v6818 = vadd.f32 %v6795, %v6809
        %v6819 = vadd.f32 %v6796, %v6809
        %v6820 = vadd.f32 %v6797, %v6809
        %v6821 = vadd.f32 %v6798, %v6809
        %v6822 = vadd.f32 %v6799, %v6809
        %v6823 = vadd.f32 %v6800, %v6809
        %v6824 = vadd.f32 %v6801, %v6809
        %v6825 = vadd.f32 %v6802, %v6809
        %v6826 = vadd.f32 %v6803, %v6809
        %v6827 = vmax.f32 %v6811, 0.0
        %v6828 = vmax.f32 %v6812, 0.0
        %v6829 = vmax.f32 %v6813, 0.0
        %v6830 = vmax.f32 %v6814, 0.0
        %v6831 = vmax.f32 %v6815, 0.0
        %v6832 = vmax.f32 %v6816, 0.0
        %v6833 = vmax.f32 %v6817, 0.0
        %v6834 = vmax.f32 %v6818, 0.0
        %v6835 = vmax.f32 %v6819, 0.0
        %v6836 = vmax.f32 %v6820, 0.0
        %v6837 = vmax.f32 %v6821, 0.0
        %v6838 = vmax.f32 %v6822, 0.0
        %v6839 = vmax.f32 %v6823, 0.0
        %v6840 = vmax.f32 %v6824, 0.0
        %v6841 = vmax.f32 %v6825, 0.0
        %v6842 = vmax.f32 %v6826, 0.0
        %6843 = vst.msk [vmem:[#allocation6] sm:$0xff] %vm5374, %v6827
        %6844 = vst.msk [vmem:[#allocation6 + $0x8] sm:$0xff] %vm5374, %v6828
        %6845 = vst.msk [vmem:[#allocation6 + $0x10] sm:$0xff] %vm5374, %v6829
        %6846 = vst.msk [vmem:[#allocation6 + $0x18] sm:$0xff] %vm5374, %v6830
        %6847 = vst.msk [vmem:[#allocation6 + $0x20] sm:$0xff] %vm5374, %v6831
        %6848 = vst.msk [vmem:[#allocation6 + $0x28] sm:$0xff] %vm5374, %v6832
        %6849 = vst.msk [vmem:[#allocation6 + $0x30] sm:$0xff] %vm5374, %v6833
        %6850 = vst.msk [vmem:[#allocation6 + $0x38] sm:$0xff] %vm5374, %v6834
        %6851 = vst.msk [vmem:[#allocation6 + $0x40] sm:$0xff] %vm5374, %v6835
        %6852 = vst.msk [vmem:[#allocation6 + $0x48] sm:$0xff] %vm5374, %v6836
        %6853 = vst.msk [vmem:[#allocation6 + $0x50] sm:$0xff] %vm5374, %v6837
        %6854 = vst.msk [vmem:[#allocation6 + $0x58] sm:$0xff] %vm5374, %v6838
        %6855 = vst.msk [vmem:[#allocation6 + $0x60] sm:$0xff] %vm5374, %v6839
        %6856 = vst.msk [vmem:[#allocation6 + $0x68] sm:$0xff] %vm5374, %v6840
        %6857 = vst.msk [vmem:[#allocation6 + $0x70] sm:$0xff] %vm5374, %v6841
        %6858 = vst.msk [vmem:[#allocation6 + $0x78] sm:$0x3f] %vm6178, %v6842
        %v6859 = vld [vmem:[#allocation6] sm:$0xff]
        %v6860 = vld [vmem:[#allocation6 + $0x8] sm:$0xff]
        %v6861 = vld [vmem:[#allocation6 + $0x10] sm:$0xff]
        %v6862 = vld [vmem:[#allocation6 + $0x18] sm:$0xff]
        %v6863 = vld [vmem:[#allocation6 + $0x20] sm:$0xff]
        %v6864 = vld [vmem:[#allocation6 + $0x28] sm:$0xff]
        %v6865 = vld [vmem:[#allocation6 + $0x30] sm:$0xff]
        %v6866 = vld [vmem:[#allocation6 + $0x38] sm:$0xff]
        %v6867 = vld [vmem:[#allocation6 + $0x40] sm:$0xff]
        %v6868 = vld [vmem:[#allocation6 + $0x48] sm:$0xff]
        %v6869 = vld [vmem:[#allocation6 + $0x50] sm:$0xff]
        %v6870 = vld [vmem:[#allocation6 + $0x58] sm:$0xff]
        %v6871 = vld [vmem:[#allocation6 + $0x60] sm:$0xff]
        %v6872 = vld [vmem:[#allocation6 + $0x68] sm:$0xff]
        %v6873 = vld [vmem:[#allocation6 + $0x70] sm:$0xff]
        %v6874 = vld [vmem:[#allocation6 + $0x78] sm:$0x1f]
        %v6875 = vld [vmem:[#allocation6 + $0x1] sm:$0xff]
        %v6876 = vld [vmem:[#allocation6 + $0x9] sm:$0xff]
        %v6877 = vld [vmem:[#allocation6 + $0x11] sm:$0xff]
        %v6878 = vld [vmem:[#allocation6 + $0x19] sm:$0xff]
        %v6879 = vld [vmem:[#allocation6 + $0x21] sm:$0xff]
        %v6880 = vld [vmem:[#allocation6 + $0x29] sm:$0xff]
        %v6881 = vld [vmem:[#allocation6 + $0x31] sm:$0xff]
        %v6882 = vld [vmem:[#allocation6 + $0x39] sm:$0xff]
        %v6883 = vld [vmem:[#allocation6 + $0x41] sm:$0xff]
        %v6884 = vld [vmem:[#allocation6 + $0x49] sm:$0xff]
        %v6885 = vld [vmem:[#allocation6 + $0x51] sm:$0xff]
        %v6886 = vld [vmem:[#allocation6 + $0x59] sm:$0xff]
        %v6887 = vld [vmem:[#allocation6 + $0x61] sm:$0xff]
        %v6888 = vld [vmem:[#allocation6 + $0x69] sm:$0xff]
        %v6889 = vld [vmem:[#allocation6 + $0x71] sm:$0xff]
        %v6890 = vld [vmem:[#allocation6 + $0x79] sm:$0x1f]
        %v6891 = vmax.f32 %v6859, %v6875
        %v6892 = vmax.f32 %v6860, %v6876
        %v6893 = vmax.f32 %v6861, %v6877
        %v6894 = vmax.f32 %v6862, %v6878
        %v6895 = vmax.f32 %v6863, %v6879
        %v6896 = vmax.f32 %v6864, %v6880
        %v6897 = vmax.f32 %v6865, %v6881
        %v6898 = vmax.f32 %v6866, %v6882
        %v6899 = vmax.f32 %v6867, %v6883
        %v6900 = vmax.f32 %v6868, %v6884
        %v6901 = vmax.f32 %v6869, %v6885
        %v6902 = vmax.f32 %v6870, %v6886
        %v6903 = vmax.f32 %v6871, %v6887
        %v6904 = vmax.f32 %v6872, %v6888
        %v6905 = vmax.f32 %v6873, %v6889
        %v6906 = vmax.f32 %v6874, %v6890
        %v6907 = vpack.c.bf16 %v6892, %v6891
        %v6908 = vpack.c.bf16 %v6894, %v6893
        %v6909 = vpack.c.bf16 %v6896, %v6895
        %v6910 = vpack.c.bf16 %v6898, %v6897
        %v6911 = vpack.c.bf16 %v6900, %v6899
        %v6912 = vpack.c.bf16 %v6902, %v6901
        %v6913 = vpack.c.bf16 %v6904, %v6903
        %v6914 = vpack.c.bf16 %v6906, %v6905
        %v6915 = vld [vmem:[%s14] sm:$0xf]
        %v6916 = vld [vmem:[%s14 + $0x4] sm:$0xf]
        %v6917 = vld [vmem:[%s14 + $0x8] sm:$0xf]
        %v6918 = vld [vmem:[%s14 + $0xc] sm:$0xf]
        %v6919 = vld [vmem:[%s14 + $0x10] sm:$0xf]
        %v6920 = vld [vmem:[%s14 + $0x14] sm:$0xf]
        %v6921 = vld [vmem:[%s14 + $0x18] sm:$0xf]
        %v6922 = vld [vmem:[%s14 + $0x1c] sm:$0xf]
        %v6923 = vld [vmem:[%s14 + $0x20] sm:$0xf]
        %v6924 = vld [vmem:[%s14 + $0x24] sm:$0xf]
        %v6925 = vld [vmem:[%s14 + $0x28] sm:$0xf]
        %v6926 = vld [vmem:[%s14 + $0x2c] sm:$0xf]
        %v6927 = vld [vmem:[%s14 + $0x30] sm:$0xf]
        %v6928 = vld [vmem:[%s14 + $0x34] sm:$0xf]
        %v6943 = vunpack.c.l.b16 %v6915
        %v6944 = vunpack.c.l.b16 %v6916
        %v6945 = vunpack.c.l.b16 %v6917
        %v6946 = vunpack.c.l.b16 %v6918
        %v6947 = vunpack.c.l.b16 %v6919
        %v6948 = vunpack.c.l.b16 %v6920
        %v6949 = vunpack.c.l.b16 %v6921
        %v6950 = vunpack.c.l.b16 %v6922
        %v6951 = vunpack.c.l.b16 %v6923
        %v6952 = vunpack.c.l.b16 %v6924
        %v6953 = vunpack.c.l.b16 %v6925
        %v6954 = vunpack.c.l.b16 %v6926
        %v6955 = vunpack.c.l.b16 %v6927
        %v6956 = vunpack.c.l.b16 %v6928
        %v6957 = vpack.c.b16 %v6944, %v6943
        %v6958 = vpack.c.b16 %v6946, %v6945
        %v6959 = vpack.c.b16 %v6948, %v6947
        %v6960 = vpack.c.b16 %v6950, %v6949
        %v6961 = vpack.c.b16 %v6952, %v6951
        %v6962 = vpack.c.b16 %v6954, %v6953
        %v6963 = vpack.c.b16 %v6956, %v6955
        %v6972 = vsel %vm5374, %v6907, 0
        %v6975 = vsel %vm5374, %v6908, 0
        %v6978 = vsel %vm5374, %v6909, 0
        %v6981 = vsel %vm5374, %v6910, 0
        %v6984 = vsel %vm5374, %v6911, 0
        %v6987 = vsel %vm5374, %v6912, 0
        %v6990 = vsel %vm5374, %v6913, 0
        %v6993 = vsel %vm5374, %v6914, 0
        %6995 = vmatprep.subr.bf16.mxu0 0
        %6996 = vmatpush1.bf16.msra.mxu0 %v6957
        %6997 = vmatprep.subr.bf16.mxu0 0
        %6998 = vmatpush1.bf16.msra.mxu0 %v6958
        %6999 = vmatprep.subr.bf16.mxu0 0
        %7000 = vmatpush1.bf16.msra.mxu0 %v6959
        %7001 = vmatprep.subr.bf16.mxu0 0
        %7002 = vmatpush1.bf16.msra.mxu0 %v6960
        %7003 = vmatprep.subr.bf16.mxu0 0
        %7004 = vmatpush1.bf16.msra.mxu0 %v6961
        %7005 = vmatprep.subr.bf16.mxu0 0
        %7006 = vmatpush1.bf16.msra.mxu0 %v6962
        %7007 = vmatprep.subr.bf16.mxu0 0
        %7008 = vmatpush1.bf16.msra.mxu0 %v6963
        %7009 = vmatprep.subr.bf16.mxu0 0
        %7010 = vmatpush1.bf16.msra.mxu0 0
        %7011 = vmatprep.subr.bf16.mxu0 0
        %7012 = vmatpush1.bf16.msra.mxu0 0
        %7013 = vmatprep.subr.bf16.mxu0 0
        %7014 = vmatpush1.bf16.msra.mxu0 0
        %7015 = vmatprep.subr.bf16.mxu0 0
        %7016 = vmatpush1.bf16.msra.mxu0 0
        %7017 = vmatprep.subr.bf16.mxu0 0
        %7018 = vmatpush1.bf16.msra.mxu0 0
        %7019 = vmatprep.subr.bf16.mxu0 0
        %7020 = vmatpush1.bf16.msra.mxu0 0
        %7021 = vmatprep.subr.bf16.mxu0 0
        %7022 = vmatpush1.bf16.msra.mxu0 0
        %7023 = vmatprep.subr.bf16.mxu0 0
        %7024 = vmatpush1.bf16.msra.mxu0 0
        %7025 = vmatprep.subr.bf16.mxu0 0
        %7026 = vmatpush1.bf16.msra.mxu0 0
        %7027 = vmatprep.mubr.bf16.mxu0 0
        %7028 = vmatmul.mubr.bf16.gmra.mrb[0].mxu0 %v6972
        %v7029 = vpop.f32.mrb[0].mxu0
        %v7030 = vadd.f32 0.0, %v7029
        %v7031 = vpop.f32.mrb[0].mxu0
        %v7032 = vpop.f32.mrb[0].mxu0
        %v7033 = vadd.f32 0.0, %v7032
        %v7034 = vpop.f32.mrb[0].mxu0
        %7035 = vmatprep.mubr.bf16.mxu0 0
        %7036 = vmatmul.mubr.bf16.gmra.mrb[0].mxu0 %v6975
        %v7037 = vpop.f32.mrb[0].mxu0
        %v7038 = vadd.f32 0.0, %v7037
        %v7039 = vpop.f32.mrb[0].mxu0
        %v7040 = vpop.f32.mrb[0].mxu0
        %v7041 = vadd.f32 0.0, %v7040
        %v7042 = vpop.f32.mrb[0].mxu0
        %7043 = vmatprep.mubr.bf16.mxu0 0
        %7044 = vmatmul.mubr.bf16.gmra.mrb[0].mxu0 %v6978
        %v7045 = vpop.f32.mrb[0].mxu0
        %v7046 = vadd.f32 0.0, %v7045
        %v7047 = vpop.f32.mrb[0].mxu0
        %v7048 = vpop.f32.mrb[0].mxu0
        %v7049 = vadd.f32 0.0, %v7048
        %v7050 = vpop.f32.mrb[0].mxu0
        %7051 = vmatprep.mubr.bf16.mxu0 0
        %7052 = vmatmul.mubr.bf16.gmra.mrb[0].mxu0 %v6981
        %v7053 = vpop.f32.mrb[0].mxu0
        %v7054 = vadd.f32 0.0, %v7053
        %v7055 = vpop.f32.mrb[0].mxu0
        %v7056 = vpop.f32.mrb[0].mxu0
        %v7057 = vadd.f32 0.0, %v7056
        %v7058 = vpop.f32.mrb[0].mxu0
        %7059 = vmatprep.mubr.bf16.mxu0 0
        %7060 = vmatmul.mubr.bf16.gmra.mrb[0].mxu0 %v6984
        %v7061 = vpop.f32.mrb[0].mxu0
        %v7062 = vadd.f32 0.0, %v7061
        %v7063 = vpop.f32.mrb[0].mxu0
        %v7064 = vpop.f32.mrb[0].mxu0
        %v7065 = vadd.f32 0.0, %v7064
        %v7066 = vpop.f32.mrb[0].mxu0
        %7067 = vmatprep.mubr.bf16.mxu0 0
        %7068 = vmatmul.mubr.bf16.gmra.mrb[0].mxu0 %v6987
        %v7069 = vpop.f32.mrb[0].mxu0
        %v7070 = vadd.f32 0.0, %v7069
        %v7071 = vpop.f32.mrb[0].mxu0
        %v7072 = vpop.f32.mrb[0].mxu0
        %v7073 = vadd.f32 0.0, %v7072
        %v7074 = vpop.f32.mrb[0].mxu0
        %7075 = vmatprep.mubr.bf16.mxu0 0
        %7076 = vmatmul.mubr.bf16.gmra.mrb[0].mxu0 %v6990
        %v7077 = vpop.f32.mrb[0].mxu0
        %v7078 = vadd.f32 0.0, %v7077
        %v7079 = vpop.f32.mrb[0].mxu0
        %v7080 = vpop.f32.mrb[0].mxu0
        %v7081 = vadd.f32 0.0, %v7080
        %v7082 = vpop.f32.mrb[0].mxu0
        %7083 = vmatprep.mubr.bf16.mxu0 0
        %7084 = vmatmul.mubr.bf16.gmra.mrb[0].mxu0 %v6993
        %v7085 = vpop.f32.mrb[0].mxu0
        %v7086 = vadd.f32 0.0, %v7085
        %v7087 = vpop.f32.mrb[0].mxu0
        %v7088 = vpop.f32.mrb[0].mxu0
        %v7089 = vadd.f32 0.0, %v7088
        %v7090 = vpop.f32.mrb[0].mxu0
        %7091 = vdwg.mxu0
        %v7092 = vld [vmem:[%s15] sm:$0xf]
        %v7093 = vld [vmem:[%s15 + $0x4] sm:$0xf]
        %v7094 = vld [vmem:[%s15 + $0x8] sm:$0xf]
        %v7095 = vld [vmem:[%s15 + $0xc] sm:$0xf]
        %v7096 = vld [vmem:[%s15 + $0x10] sm:$0xf]
        %v7097 = vld [vmem:[%s15 + $0x14] sm:$0xf]
        %v7098 = vld [vmem:[%s15 + $0x18] sm:$0xf]
        %v7099 = vld [vmem:[%s15 + $0x1c] sm:$0xf]
        %v7100 = vld [vmem:[%s15 + $0x20] sm:$0xf]
        %v7101 = vld [vmem:[%s15 + $0x24] sm:$0xf]
        %v7102 = vld [vmem:[%s15 + $0x28] sm:$0xf]
        %v7103 = vld [vmem:[%s15 + $0x2c] sm:$0xf]
        %v7104 = vld [vmem:[%s15 + $0x30] sm:$0xf]
        %v7105 = vld [vmem:[%s15 + $0x34] sm:$0xf]
        %v7120 = vunpack.c.l.b16 %v7092
        %v7121 = vunpack.c.l.b16 %v7093
        %v7122 = vunpack.c.l.b16 %v7094
        %v7123 = vunpack.c.l.b16 %v7095
        %v7124 = vunpack.c.l.b16 %v7096
        %v7125 = vunpack.c.l.b16 %v7097
        %v7126 = vunpack.c.l.b16 %v7098
        %v7127 = vunpack.c.l.b16 %v7099
        %v7128 = vunpack.c.l.b16 %v7100
        %v7129 = vunpack.c.l.b16 %v7101
        %v7130 = vunpack.c.l.b16 %v7102
        %v7131 = vunpack.c.l.b16 %v7103
        %v7132 = vunpack.c.l.b16 %v7104
        %v7133 = vunpack.c.l.b16 %v7105
        %v7134 = vpack.c.b16 %v7121, %v7120
        %v7135 = vpack.c.b16 %v7123, %v7122
        %v7136 = vpack.c.b16 %v7125, %v7124
        %v7137 = vpack.c.b16 %v7127, %v7126
        %v7138 = vpack.c.b16 %v7129, %v7128
        %v7139 = vpack.c.b16 %v7131, %v7130
        %v7140 = vpack.c.b16 %v7133, %v7132
        %7148 = vmatprep.subr.bf16.mxu0 0
        %7149 = vmatpush1.bf16.msra.mxu0 %v7134
        %7150 = vmatprep.subr.bf16.mxu0 0
        %7151 = vmatpush1.bf16.msra.mxu0 %v7135
        %7152 = vmatprep.subr.bf16.mxu0 0
        %7153 = vmatpush1.bf16.msra.mxu0 %v7136
        %7154 = vmatprep.subr.bf16.mxu0 0
        %7155 = vmatpush1.bf16.msra.mxu0 %v7137
        %7156 = vmatprep.subr.bf16.mxu0 0
        %7157 = vmatpush1.bf16.msra.mxu0 %v7138
        %7158 = vmatprep.subr.bf16.mxu0 0
        %7159 = vmatpush1.bf16.msra.mxu0 %v7139
        %7160 = vmatprep.subr.bf16.mxu0 0
        %7161 = vmatpush1.bf16.msra.mxu0 %v7140
        %7162 = vmatprep.subr.bf16.mxu0 0
        %7163 = vmatpush1.bf16.msra.mxu0 0
        %7164 = vmatprep.subr.bf16.mxu0 0
        %7165 = vmatpush1.bf16.msra.mxu0 0
        %7166 = vmatprep.subr.bf16.mxu0 0
        %7167 = vmatpush1.bf16.msra.mxu0 0
        %7168 = vmatprep.subr.bf16.mxu0 0
        %7169 = vmatpush1.bf16.msra.mxu0 0
        %7170 = vmatprep.subr.bf16.mxu0 0
        %7171 = vmatpush1.bf16.msra.mxu0 0
        %7172 = vmatprep.subr.bf16.mxu0 0
        %7173 = vmatpush1.bf16.msra.mxu0 0
        %7174 = vmatprep.subr.bf16.mxu0 0
        %7175 = vmatpush1.bf16.msra.mxu0 0
        %7176 = vmatprep.subr.bf16.mxu0 0
        %7177 = vmatpush1.bf16.msra.mxu0 0
        %7178 = vmatprep.subr.bf16.mxu0 0
        %7179 = vmatpush1.bf16.msra.mxu0 0
        %7180 = vmatprep.mubr.bf16.mxu0 0
        %7181 = vmatmul.mubr.bf16.gmra.mrb[0].mxu0 %v6972
        %v7182 = vpop.f32.mrb[0].mxu0
        %v7183 = vadd.f32 0.0, %v7182
        %v7184 = vpop.f32.mrb[0].mxu0
        %v7185 = vpop.f32.mrb[0].mxu0
        %v7186 = vadd.f32 0.0, %v7185
        %v7187 = vpop.f32.mrb[0].mxu0
        %7188 = vmatprep.mubr.bf16.mxu0 0
        %7189 = vmatmul.mubr.bf16.gmra.mrb[0].mxu0 %v6975
        %v7190 = vpop.f32.mrb[0].mxu0
        %v7191 = vadd.f32 0.0, %v7190
        %v7192 = vpop.f32.mrb[0].mxu0
        %v7193 = vpop.f32.mrb[0].mxu0
        %v7194 = vadd.f32 0.0, %v7193
        %v7195 = vpop.f32.mrb[0].mxu0
        %7196 = vmatprep.mubr.bf16.mxu0 0
        %7197 = vmatmul.mubr.bf16.gmra.mrb[0].mxu0 %v6978
        %v7198 = vpop.f32.mrb[0].mxu0
        %v7199 = vadd.f32 0.0, %v7198
        %v7200 = vpop.f32.mrb[0].mxu0
        %v7201 = vpop.f32.mrb[0].mxu0
        %v7202 = vadd.f32 0.0, %v7201
        %v7203 = vpop.f32.mrb[0].mxu0
        %7204 = vmatprep.mubr.bf16.mxu0 0
        %7205 = vmatmul.mubr.bf16.gmra.mrb[0].mxu0 %v6981
        %v7206 = vpop.f32.mrb[0].mxu0
        %v7207 = vadd.f32 0.0, %v7206
        %v7208 = vpop.f32.mrb[0].mxu0
        %v7209 = vpop.f32.mrb[0].mxu0
        %v7210 = vadd.f32 0.0, %v7209
        %v7211 = vpop.f32.mrb[0].mxu0
        %7212 = vmatprep.mubr.bf16.mxu0 0
        %7213 = vmatmul.mubr.bf16.gmra.mrb[0].mxu0 %v6984
        %v7214 = vpop.f32.mrb[0].mxu0
        %v7215 = vadd.f32 0.0, %v7214
        %v7216 = vpop.f32.mrb[0].mxu0
        %v7217 = vpop.f32.mrb[0].mxu0
        %v7218 = vadd.f32 0.0, %v7217
        %v7219 = vpop.f32.mrb[0].mxu0
        %7220 = vmatprep.mubr.bf16.mxu0 0
        %7221 = vmatmul.mubr.bf16.gmra.mrb[0].mxu0 %v6987
        %v7222 = vpop.f32.mrb[0].mxu0
        %v7223 = vadd.f32 0.0, %v7222
        %v7224 = vpop.f32.mrb[0].mxu0
        %v7225 = vpop.f32.mrb[0].mxu0
        %v7226 = vadd.f32 0.0, %v7225
        %v7227 = vpop.f32.mrb[0].mxu0
        %7228 = vmatprep.mubr.bf16.mxu0 0
        %7229 = vmatmul.mubr.bf16.gmra.mrb[0].mxu0 %v6990
        %v7230 = vpop.f32.mrb[0].mxu0
        %v7231 = vadd.f32 0.0, %v7230
        %v7232 = vpop.f32.mrb[0].mxu0
        %v7233 = vpop.f32.mrb[0].mxu0
        %v7234 = vadd.f32 0.0, %v7233
        %v7235 = vpop.f32.mrb[0].mxu0
        %7236 = vmatprep.mubr.bf16.mxu0 0
        %7237 = vmatmul.mubr.bf16.gmra.mrb[0].mxu0 %v6993
        %v7238 = vpop.f32.mrb[0].mxu0
        %v7239 = vadd.f32 0.0, %v7238
        %v7240 = vpop.f32.mrb[0].mxu0
        %v7241 = vpop.f32.mrb[0].mxu0
        %v7242 = vadd.f32 0.0, %v7241
        %v7243 = vpop.f32.mrb[0].mxu0
        %7244 = vdwg.mxu0
        %v7245 = vmax.f32 %v7030, %v7183
        %v7246 = vmax.f32 %v7033, %v7186
        %v7247 = vmax.f32 %v7038, %v7191
        %v7248 = vmax.f32 %v7041, %v7194
        %v7249 = vmax.f32 %v7046, %v7199
        %v7250 = vmax.f32 %v7049, %v7202
        %v7251 = vmax.f32 %v7054, %v7207
        %v7252 = vmax.f32 %v7057, %v7210
        %v7253 = vmax.f32 %v7062, %v7215
        %v7254 = vmax.f32 %v7065, %v7218
        %v7255 = vmax.f32 %v7070, %v7223
        %v7256 = vmax.f32 %v7073, %v7226
        %v7257 = vmax.f32 %v7078, %v7231
        %v7258 = vmax.f32 %v7081, %v7234
        %v7259 = vmax.f32 %v7086, %v7239
        %v7260 = vmax.f32 %v7089, %v7242
        %v7261 = vpack.c.bf16 %v7246, %v7245
        %v7262 = vpack.c.bf16 %v7248, %v7247
        %v7263 = vpack.c.bf16 %v7250, %v7249
        %v7264 = vpack.c.bf16 %v7252, %v7251
        %v7265 = vpack.c.bf16 %v7254, %v7253
        %v7266 = vpack.c.bf16 %v7256, %v7255
        %v7267 = vpack.c.bf16 %v7258, %v7257
        %v7268 = vpack.c.bf16 %v7260, %v7259
        %v7269 = vld [vmem:[%s16] sm:$0xf]
        %v7270 = vld [vmem:[%s16 + $0x4] sm:$0xf]
        %v7271 = vld [vmem:[%s16 + $0x8] sm:$0xf]
        %v7272 = vld [vmem:[%s16 + $0xc] sm:$0xf]
        %v7273 = vld [vmem:[%s16 + $0x10] sm:$0xf]
        %v7274 = vld [vmem:[%s16 + $0x14] sm:$0xf]
        %v7275 = vld [vmem:[%s16 + $0x18] sm:$0xf]
        %v7283 = vunpack.c.l.b16 %v7269
        %v7284 = vunpack.c.l.b16 %v7270
        %v7285 = vunpack.c.l.b16 %v7271
        %v7286 = vunpack.c.l.b16 %v7272
        %v7287 = vunpack.c.l.b16 %v7273
        %v7288 = vunpack.c.l.b16 %v7274
        %v7289 = vunpack.c.l.b16 %v7275
        %v7290 = vpack.c.b16 %v7284, %v7283
        %v7291 = vpack.c.b16 %v7286, %v7285
        %v7292 = vpack.c.b16 %v7288, %v7287
        %v7293 = vpack.c.b16 %v7289, %v7289
        %vm7294 = vcmask 1022976
        %v7296 = vsel %vm7294, %v7290, 0
        %v7299 = vsel %vm7294, %v7291, 0
        %v7302 = vsel %vm7294, %v7292, 0
        %v7305 = vsel %vm7294, %v7293, 0
        %v7308 = vand.u32 %v7268, %v5273
        %7310 = vmatprep.subr.bf16.mxu0 0
        %7311 = vmatpush1.bf16.msra.mxu0 %v7261
        %7312 = vmatprep.subr.bf16.mxu0 0
        %7313 = vmatpush1.bf16.msra.mxu0 %v7262
        %7314 = vmatprep.subr.bf16.mxu0 0
        %7315 = vmatpush1.bf16.msra.mxu0 %v7263
        %7316 = vmatprep.subr.bf16.mxu0 0
        %7317 = vmatpush1.bf16.msra.mxu0 %v7264
        %7318 = vmatprep.subr.bf16.mxu0 0
        %7319 = vmatpush1.bf16.msra.mxu0 %v7265
        %7320 = vmatprep.subr.bf16.mxu0 0
        %7321 = vmatpush1.bf16.msra.mxu0 %v7266
        %7322 = vmatprep.subr.bf16.mxu0 0
        %7323 = vmatpush1.bf16.msra.mxu0 %v7267
        %7324 = vmatprep.subr.bf16.mxu0 0
        %7325 = vmatpush1.bf16.msra.mxu0 %v7308
        %7326 = vmatprep.subr.bf16.mxu0 0
        %7327 = vmatpush1.bf16.msra.mxu0 0
        %7328 = vmatprep.subr.bf16.mxu0 0
        %7329 = vmatpush1.bf16.msra.mxu0 0
        %7330 = vmatprep.subr.bf16.mxu0 0
        %7331 = vmatpush1.bf16.msra.mxu0 0
        %7332 = vmatprep.subr.bf16.mxu0 0
        %7333 = vmatpush1.bf16.msra.mxu0 0
        %7334 = vmatprep.subr.bf16.mxu0 0
        %7335 = vmatpush1.bf16.msra.mxu0 0
        %7336 = vmatprep.subr.bf16.mxu0 0
        %7337 = vmatpush1.bf16.msra.mxu0 0
        %7338 = vmatprep.subr.bf16.mxu0 0
        %7339 = vmatpush1.bf16.msra.mxu0 0
        %7340 = vmatprep.subr.bf16.mxu0 0
        %7341 = vmatpush1.bf16.msra.mxu0 0
        %7342 = vmatprep.mubr.bf16.mxu0 0
        %7343 = vmatmul.mubr.bf16.gmra.mrb[0].mxu0 %v7296
        %v7344 = vpop.f32.mrb[0].mxu0
        %v7345 = vadd.f32 0.0, %v7344
        %v7346 = vpop.f32.mrb[0].mxu0
        %v7347 = vpop.f32.mrb[0].mxu0
        %v7348 = vadd.f32 0.0, %v7347
        %v7349 = vpop.f32.mrb[0].mxu0
        %7350 = vmatprep.mubr.bf16.mxu0 0
        %7351 = vmatmul.mubr.bf16.gmra.mrb[0].mxu0 %v7299
        %v7352 = vpop.f32.mrb[0].mxu0
        %v7353 = vadd.f32 0.0, %v7352
        %v7354 = vpop.f32.mrb[0].mxu0
        %v7355 = vpop.f32.mrb[0].mxu0
        %v7356 = vadd.f32 0.0, %v7355
        %v7357 = vpop.f32.mrb[0].mxu0
        %7358 = vmatprep.mubr.bf16.mxu0 0
        %7359 = vmatmul.mubr.bf16.gmra.mrb[0].mxu0 %v7302
        %v7360 = vpop.f32.mrb[0].mxu0
        %v7361 = vadd.f32 0.0, %v7360
        %v7362 = vpop.f32.mrb[0].mxu0
        %v7363 = vpop.f32.mrb[0].mxu0
        %v7364 = vadd.f32 0.0, %v7363
        %v7365 = vpop.f32.mrb[0].mxu0
        %7366 = vmatprep.mubr.bf16.mxu0 0
        %7367 = vmatmul.mubr.bf16.gmra.mrb[0].mxu0 %v7305
        %v7368 = vpop.f32.mrb[0].mxu0
        %v7369 = vadd.f32 0.0, %v7368
        %v7370 = vpop.f32.mrb[0].mxu0
        %v7371 = vpop.f32.mrb[0].mxu0
        %v7372 = vpop.f32.mrb[0].mxu0
        %7373 = vdwg.mxu0
        %vm7374 = vcmask 457728
        %7375 = vst.msk [vmem:[#allocation7] sm:$0xff] %vm7374, %v7345
        %7376 = vst.msk [vmem:[#allocation7 + $0x8] sm:$0xff] %vm7374, %v7348
        %7377 = vst.msk [vmem:[#allocation7 + $0x10] sm:$0xff] %vm7374, %v7353
        %7378 = vst.msk [vmem:[#allocation7 + $0x18] sm:$0xff] %vm7374, %v7356
        %7379 = vst.msk [vmem:[#allocation7 + $0x20] sm:$0xff] %vm7374, %v7361
        %7380 = vst.msk [vmem:[#allocation7 + $0x28] sm:$0xff] %vm7374, %v7364
        %7381 = vst.msk [vmem:[#allocation7 + $0x30] sm:$0xff] %vm7374, %v7369
        %v7382 = vld [vmem:[#allocation7] sm:$0xff]
        %v7383 = vpack.c.bf16 %v7382, %v7382
        %v7384 = vld [vmem:[%s9] sm:$0xf]
        %v7385 = vld [vmem:[%s9 + $0x4] sm:$0xf]
        %v7386 = vld [vmem:[%s9 + $0x8] sm:$0xf]
        %v7387 = vld [vmem:[%s9 + $0xc] sm:$0xf]
        %v7388 = vld [vmem:[%s9 + $0x10] sm:$0xf]
        %v7389 = vld [vmem:[%s9 + $0x14] sm:$0xf]
        %v7390 = vld [vmem:[%s9 + $0x18] sm:$0xf]
        %v7391 = vld [vmem:[#allocation7 + $0x8] sm:$0xff]
        %v7392 = vpack.c.bf16 %v7391, %v7391
        %s7393 = scalar_lea.vmem %s9, 28
        %v7394 = vld [vmem:[%s7393] sm:$0xf]
        %v7395 = vld [vmem:[%s7393 + $0x4] sm:$0xf]
        %v7396 = vld [vmem:[%s7393 + $0x8] sm:$0xf]
        %v7397 = vld [vmem:[%s7393 + $0xc] sm:$0xf]
        %v7398 = vld [vmem:[%s7393 + $0x10] sm:$0xf]
        %v7399 = vld [vmem:[%s7393 + $0x14] sm:$0xf]
        %v7400 = vld [vmem:[%s7393 + $0x18] sm:$0xf]
        %v7408 = vunpack.c.l.b16 %v7394
        %v7409 = vunpack.c.l.b16 %v7395
        %v7410 = vunpack.c.l.b16 %v7396
        %v7411 = vunpack.c.l.b16 %v7397
        %v7412 = vunpack.c.l.b16 %v7398
        %v7413 = vunpack.c.l.b16 %v7399
        %v7414 = vunpack.c.l.b16 %v7400
        %v7415 = vpack.c.b16 %v7409, %v7408
        %v7416 = vpack.c.b16 %v7411, %v7410
        %v7417 = vpack.c.b16 %v7413, %v7412
        %v7418 = vpack.c.b16 %v7414, %v7414
        %v7423 = vsel %vm7374, %v7392, 0
        %vm7425 = vcmask 1043456
        %v7427 = vsel %vm7425, %v7418, 0
        %7429 = vmatprep.subr.bf16.mxu0 0
        %7430 = vmatpush1.bf16.msra.mxu0 %v7415
        %7431 = vmatprep.subr.bf16.mxu0 0
        %7432 = vmatpush1.bf16.msra.mxu0 %v7416
        %7433 = vmatprep.subr.bf16.mxu0 0
        %7434 = vmatpush1.bf16.msra.mxu0 %v7417
        %7435 = vmatprep.subr.bf16.mxu0 0
        %7436 = vmatpush1.bf16.msra.mxu0 %v7427
        %7437 = vmatprep.subr.bf16.mxu0 0
        %7438 = vmatpush1.bf16.msra.mxu0 0
        %7439 = vmatprep.subr.bf16.mxu0 0
        %7440 = vmatpush1.bf16.msra.mxu0 0
        %7441 = vmatprep.subr.bf16.mxu0 0
        %7442 = vmatpush1.bf16.msra.mxu0 0
        %7443 = vmatprep.subr.bf16.mxu0 0
        %7444 = vmatpush1.bf16.msra.mxu0 0
        %7445 = vmatprep.subr.bf16.mxu0 0
        %7446 = vmatpush1.bf16.msra.mxu0 0
        %7447 = vmatprep.subr.bf16.mxu0 0
        %7448 = vmatpush1.bf16.msra.mxu0 0
        %7449 = vmatprep.subr.bf16.mxu0 0
        %7450 = vmatpush1.bf16.msra.mxu0 0
        %7451 = vmatprep.subr.bf16.mxu0 0
        %7452 = vmatpush1.bf16.msra.mxu0 0
        %7453 = vmatprep.subr.bf16.mxu0 0
        %7454 = vmatpush1.bf16.msra.mxu0 0
        %7455 = vmatprep.subr.bf16.mxu0 0
        %7456 = vmatpush1.bf16.msra.mxu0 0
        %7457 = vmatprep.subr.bf16.mxu0 0
        %7458 = vmatpush1.bf16.msra.mxu0 0
        %7459 = vmatprep.subr.bf16.mxu0 0
        %7460 = vmatpush1.bf16.msra.mxu0 0
        %7461 = vmatprep.mubr.bf16.mxu0 0
        %7462 = vmatmul.mubr.bf16.gmra.mrb[0].mxu0 %v7423
        %v7463 = vpop.f32.mrb[0].mxu0
        %v7464 = vadd.f32 0.0, %v7463
        %v7465 = vpop.f32.mrb[0].mxu0
        %v7466 = vpop.f32.mrb[0].mxu0
        %v7467 = vpop.f32.mrb[0].mxu0
        %7468 = vdwg.mxu0
        %v7476 = vunpack.c.l.b16 %v7384
        %v7477 = vunpack.c.l.b16 %v7385
        %v7478 = vunpack.c.l.b16 %v7386
        %v7479 = vunpack.c.l.b16 %v7387
        %v7480 = vunpack.c.l.b16 %v7388
        %v7481 = vunpack.c.l.b16 %v7389
        %v7482 = vunpack.c.l.b16 %v7390
        %v7483 = vpack.c.b16 %v7477, %v7476
        %v7484 = vpack.c.b16 %v7479, %v7478
        %v7485 = vpack.c.b16 %v7481, %v7480
        %v7486 = vpack.c.b16 %v7482, %v7482
        %v7491 = vsel %vm7374, %v7383, 0
        %v7494 = vsel %vm7425, %v7486, 0
        %7496 = vmatprep.subr.bf16.mxu0 0
        %7497 = vmatpush1.bf16.msra.mxu0 %v7483
        %7498 = vmatprep.subr.bf16.mxu0 0
        %7499 = vmatpush1.bf16.msra.mxu0 %v7484
        %7500 = vmatprep.subr.bf16.mxu0 0
        %7501 = vmatpush1.bf16.msra.mxu0 %v7485
        %7502 = vmatprep.subr.bf16.mxu0 0
        %7503 = vmatpush1.bf16.msra.mxu0 %v7494
        %7504 = vmatprep.subr.bf16.mxu0 0
        %7505 = vmatpush1.bf16.msra.mxu0 0
        %7506 = vmatprep.subr.bf16.mxu0 0
        %7507 = vmatpush1.bf16.msra.mxu0 0
        %7508 = vmatprep.subr.bf16.mxu0 0
        %7509 = vmatpush1.bf16.msra.mxu0 0
        %7510 = vmatprep.subr.bf16.mxu0 0
        %7511 = vmatpush1.bf16.msra.mxu0 0
        %7512 = vmatprep.subr.bf16.mxu0 0
        %7513 = vmatpush1.bf16.msra.mxu0 0
        %7514 = vmatprep.subr.bf16.mxu0 0
        %7515 = vmatpush1.bf16.msra.mxu0 0
        %7516 = vmatprep.subr.bf16.mxu0 0
        %7517 = vmatpush1.bf16.msra.mxu0 0
        %7518 = vmatprep.subr.bf16.mxu0 0
        %7519 = vmatpush1.bf16.msra.mxu0 0
        %7520 = vmatprep.subr.bf16.mxu0 0
        %7521 = vmatpush1.bf16.msra.mxu0 0
        %7522 = vmatprep.subr.bf16.mxu0 0
        %7523 = vmatpush1.bf16.msra.mxu0 0
        %7524 = vmatprep.subr.bf16.mxu0 0
        %7525 = vmatpush1.bf16.msra.mxu0 0
        %7526 = vmatprep.subr.bf16.mxu0 0
        %7527 = vmatpush1.bf16.msra.mxu0 0
        %7528 = vmatprep.mubr.bf16.mxu0 0
        %7529 = vmatmul.mubr.bf16.gmra.mrb[0].mxu0 %v7491
        %v7530 = vpop.f32.mrb[0].mxu0
        %v7531 = vadd.f32 %v7464, %v7530
        %v7532 = vpop.f32.mrb[0].mxu0
        %v7533 = vpop.f32.mrb[0].mxu0
        %v7534 = vpop.f32.mrb[0].mxu0
        %7535 = vdwg.mxu0
        %v7536 = vld [vmem:[#allocation7 + $0x10] sm:$0xff]
        %v7537 = vpack.c.bf16 %v7536, %v7536
        %s7538 = scalar_lea.vmem %s9, 56
        %v7539 = vld [vmem:[%s7538] sm:$0xf]
        %v7540 = vld [vmem:[%s7538 + $0x4] sm:$0xf]
        %v7541 = vld [vmem:[%s7538 + $0x8] sm:$0xf]
        %v7542 = vld [vmem:[%s7538 + $0xc] sm:$0xf]
        %v7543 = vld [vmem:[%s7538 + $0x10] sm:$0xf]
        %v7544 = vld [vmem:[%s7538 + $0x14] sm:$0xf]
        %v7545 = vld [vmem:[%s7538 + $0x18] sm:$0xf]
        %v7553 = vunpack.c.l.b16 %v7539
        %v7554 = vunpack.c.l.b16 %v7540
        %v7555 = vunpack.c.l.b16 %v7541
        %v7556 = vunpack.c.l.b16 %v7542
        %v7557 = vunpack.c.l.b16 %v7543
        %v7558 = vunpack.c.l.b16 %v7544
        %v7559 = vunpack.c.l.b16 %v7545
        %v7560 = vpack.c.b16 %v7554, %v7553
        %v7561 = vpack.c.b16 %v7556, %v7555
        %v7562 = vpack.c.b16 %v7558, %v7557
        %v7563 = vpack.c.b16 %v7559, %v7559
        %v7568 = vsel %vm7374, %v7537, 0
        %v7571 = vsel %vm7425, %v7563, 0
        %7573 = vmatprep.subr.bf16.mxu0 0
        %7574 = vmatpush1.bf16.msra.mxu0 %v7560
        %7575 = vmatprep.subr.bf16.mxu0 0
        %7576 = vmatpush1.bf16.msra.mxu0 %v7561
        %7577 = vmatprep.subr.bf16.mxu0 0
        %7578 = vmatpush1.bf16.msra.mxu0 %v7562
        %7579 = vmatprep.subr.bf16.mxu0 0
        %7580 = vmatpush1.bf16.msra.mxu0 %v7571
        %7581 = vmatprep.subr.bf16.mxu0 0
        %7582 = vmatpush1.bf16.msra.mxu0 0
        %7583 = vmatprep.subr.bf16.mxu0 0
        %7584 = vmatpush1.bf16.msra.mxu0 0
        %7585 = vmatprep.subr.bf16.mxu0 0
        %7586 = vmatpush1.bf16.msra.mxu0 0
        %7587 = vmatprep.subr.bf16.mxu0 0
        %7588 = vmatpush1.bf16.msra.mxu0 0
        %7589 = vmatprep.subr.bf16.mxu0 0
        %7590 = vmatpush1.bf16.msra.mxu0 0
        %7591 = vmatprep.subr.bf16.mxu0 0
        %7592 = vmatpush1.bf16.msra.mxu0 0
        %7593 = vmatprep.subr.bf16.mxu0 0
        %7594 = vmatpush1.bf16.msra.mxu0 0
        %7595 = vmatprep.subr.bf16.mxu0 0
        %7596 = vmatpush1.bf16.msra.mxu0 0
        %7597 = vmatprep.subr.bf16.mxu0 0
        %7598 = vmatpush1.bf16.msra.mxu0 0
        %7599 = vmatprep.subr.bf16.mxu0 0
        %7600 = vmatpush1.bf16.msra.mxu0 0
        %7601 = vmatprep.subr.bf16.mxu0 0
        %7602 = vmatpush1.bf16.msra.mxu0 0
        %7603 = vmatprep.subr.bf16.mxu0 0
        %7604 = vmatpush1.bf16.msra.mxu0 0
        %7605 = vmatprep.mubr.bf16.mxu0 0
        %7606 = vmatmul.mubr.bf16.gmra.mrb[0].mxu0 %v7568
        %v7607 = vpop.f32.mrb[0].mxu0
        %v7608 = vadd.f32 0.0, %v7607
        %v7609 = vpop.f32.mrb[0].mxu0
        %v7610 = vpop.f32.mrb[0].mxu0
        %v7611 = vpop.f32.mrb[0].mxu0
        %7612 = vdwg.mxu0
        %v7613 = vadd.f32 %v7531, %v7608
        %v7614 = vld [vmem:[#allocation7 + $0x18] sm:$0xff]
        %v7615 = vpack.c.bf16 %v7614, %v7614
        %s7616 = scalar_lea.vmem %s9, 84
        %v7617 = vld [vmem:[%s7616] sm:$0xf]
        %v7618 = vld [vmem:[%s7616 + $0x4] sm:$0xf]
        %v7619 = vld [vmem:[%s7616 + $0x8] sm:$0xf]
        %v7620 = vld [vmem:[%s7616 + $0xc] sm:$0xf]
        %v7621 = vld [vmem:[%s7616 + $0x10] sm:$0xf]
        %v7622 = vld [vmem:[%s7616 + $0x14] sm:$0xf]
        %v7623 = vld [vmem:[%s7616 + $0x18] sm:$0xf]
        %v7631 = vunpack.c.l.b16 %v7617
        %v7632 = vunpack.c.l.b16 %v7618
        %v7633 = vunpack.c.l.b16 %v7619
        %v7634 = vunpack.c.l.b16 %v7620
        %v7635 = vunpack.c.l.b16 %v7621
        %v7636 = vunpack.c.l.b16 %v7622
        %v7637 = vunpack.c.l.b16 %v7623
        %v7638 = vpack.c.b16 %v7632, %v7631
        %v7639 = vpack.c.b16 %v7634, %v7633
        %v7640 = vpack.c.b16 %v7636, %v7635
        %v7641 = vpack.c.b16 %v7637, %v7637
        %v7646 = vsel %vm7374, %v7615, 0
        %v7649 = vsel %vm7425, %v7641, 0
        %7651 = vmatprep.subr.bf16.mxu0 0
        %7652 = vmatpush1.bf16.msra.mxu0 %v7638
        %7653 = vmatprep.subr.bf16.mxu0 0
        %7654 = vmatpush1.bf16.msra.mxu0 %v7639
        %7655 = vmatprep.subr.bf16.mxu0 0
        %7656 = vmatpush1.bf16.msra.mxu0 %v7640
        %7657 = vmatprep.subr.bf16.mxu0 0
        %7658 = vmatpush1.bf16.msra.mxu0 %v7649
        %7659 = vmatprep.subr.bf16.mxu0 0
        %7660 = vmatpush1.bf16.msra.mxu0 0
        %7661 = vmatprep.subr.bf16.mxu0 0
        %7662 = vmatpush1.bf16.msra.mxu0 0
        %7663 = vmatprep.subr.bf16.mxu0 0
        %7664 = vmatpush1.bf16.msra.mxu0 0
        %7665 = vmatprep.subr.bf16.mxu0 0
        %7666 = vmatpush1.bf16.msra.mxu0 0
        %7667 = vmatprep.subr.bf16.mxu0 0
        %7668 = vmatpush1.bf16.msra.mxu0 0
        %7669 = vmatprep.subr.bf16.mxu0 0
        %7670 = vmatpush1.bf16.msra.mxu0 0
        %7671 = vmatprep.subr.bf16.mxu0 0
        %7672 = vmatpush1.bf16.msra.mxu0 0
        %7673 = vmatprep.subr.bf16.mxu0 0
        %7674 = vmatpush1.bf16.msra.mxu0 0
        %7675 = vmatprep.subr.bf16.mxu0 0
        %7676 = vmatpush1.bf16.msra.mxu0 0
        %7677 = vmatprep.subr.bf16.mxu0 0
        %7678 = vmatpush1.bf16.msra.mxu0 0
        %7679 = vmatprep.subr.bf16.mxu0 0
        %7680 = vmatpush1.bf16.msra.mxu0 0
        %7681 = vmatprep.subr.bf16.mxu0 0
        %7682 = vmatpush1.bf16.msra.mxu0 0
        %7683 = vmatprep.mubr.bf16.mxu0 0
        %7684 = vmatmul.mubr.bf16.gmra.mrb[0].mxu0 %v7646
        %v7685 = vpop.f32.mrb[0].mxu0
        %v7686 = vadd.f32 0.0, %v7685
        %v7687 = vpop.f32.mrb[0].mxu0
        %v7688 = vpop.f32.mrb[0].mxu0
        %v7689 = vpop.f32.mrb[0].mxu0
        %7690 = vdwg.mxu0
        %v7691 = vadd.f32 %v7613, %v7686
        %v7692 = vld [vmem:[#allocation7 + $0x20] sm:$0xff]
        %v7693 = vpack.c.bf16 %v7692, %v7692
        %s7694 = scalar_lea.vmem %s9, 112
        %v7695 = vld [vmem:[%s7694] sm:$0xf]
        %v7696 = vld [vmem:[%s7694 + $0x4] sm:$0xf]
        %v7697 = vld [vmem:[%s7694 + $0x8] sm:$0xf]
        %v7698 = vld [vmem:[%s7694 + $0xc] sm:$0xf]
        %v7699 = vld [vmem:[%s7694 + $0x10] sm:$0xf]
        %v7700 = vld [vmem:[%s7694 + $0x14] sm:$0xf]
        %v7701 = vld [vmem:[%s7694 + $0x18] sm:$0xf]
        %v7709 = vunpack.c.l.b16 %v7695
        %v7710 = vunpack.c.l.b16 %v7696
        %v7711 = vunpack.c.l.b16 %v7697
        %v7712 = vunpack.c.l.b16 %v7698
        %v7713 = vunpack.c.l.b16 %v7699
        %v7714 = vunpack.c.l.b16 %v7700
        %v7715 = vunpack.c.l.b16 %v7701
        %v7716 = vpack.c.b16 %v7710, %v7709
        %v7717 = vpack.c.b16 %v7712, %v7711
        %v7718 = vpack.c.b16 %v7714, %v7713
        %v7719 = vpack.c.b16 %v7715, %v7715
        %v7724 = vsel %vm7374, %v7693, 0
        %v7727 = vsel %vm7425, %v7719, 0
        %7729 = vmatprep.subr.bf16.mxu0 0
        %7730 = vmatpush1.bf16.msra.mxu0 %v7716
        %7731 = vmatprep.subr.bf16.mxu0 0
        %7732 = vmatpush1.bf16.msra.mxu0 %v7717
        %7733 = vmatprep.subr.bf16.mxu0 0
        %7734 = vmatpush1.bf16.msra.mxu0 %v7718
        %7735 = vmatprep.subr.bf16.mxu0 0
        %7736 = vmatpush1.bf16.msra.mxu0 %v7727
        %7737 = vmatprep.subr.bf16.mxu0 0
        %7738 = vmatpush1.bf16.msra.mxu0 0
        %7739 = vmatprep.subr.bf16.mxu0 0
        %7740 = vmatpush1.bf16.msra.mxu0 0
        %7741 = vmatprep.subr.bf16.mxu0 0
        %7742 = vmatpush1.bf16.msra.mxu0 0
        %7743 = vmatprep.subr.bf16.mxu0 0
        %7744 = vmatpush1.bf16.msra.mxu0 0
        %7745 = vmatprep.subr.bf16.mxu0 0
        %7746 = vmatpush1.bf16.msra.mxu0 0
        %7747 = vmatprep.subr.bf16.mxu0 0
        %7748 = vmatpush1.bf16.msra.mxu0 0
        %7749 = vmatprep.subr.bf16.mxu0 0
        %7750 = vmatpush1.bf16.msra.mxu0 0
        %7751 = vmatprep.subr.bf16.mxu0 0
        %7752 = vmatpush1.bf16.msra.mxu0 0
        %7753 = vmatprep.subr.bf16.mxu0 0
        %7754 = vmatpush1.bf16.msra.mxu0 0
        %7755 = vmatprep.subr.bf16.mxu0 0
        %7756 = vmatpush1.bf16.msra.mxu0 0
        %7757 = vmatprep.subr.bf16.mxu0 0
        %7758 = vmatpush1.bf16.msra.mxu0 0
        %7759 = vmatprep.subr.bf16.mxu0 0
        %7760 = vmatpush1.bf16.msra.mxu0 0
        %7761 = vmatprep.mubr.bf16.mxu0 0
        %7762 = vmatmul.mubr.bf16.gmra.mrb[0].mxu0 %v7724
        %v7763 = vpop.f32.mrb[0].mxu0
        %v7764 = vadd.f32 0.0, %v7763
        %v7765 = vpop.f32.mrb[0].mxu0
        %v7766 = vpop.f32.mrb[0].mxu0
        %v7767 = vpop.f32.mrb[0].mxu0
        %7768 = vdwg.mxu0
        %v7769 = vadd.f32 %v7691, %v7764
        %v7770 = vld [vmem:[#allocation7 + $0x28] sm:$0xff]
        %v7771 = vpack.c.bf16 %v7770, %v7770
        %s7772 = scalar_lea.vmem %s9, 140
        %v7773 = vld [vmem:[%s7772] sm:$0xf]
        %v7774 = vld [vmem:[%s7772 + $0x4] sm:$0xf]
        %v7775 = vld [vmem:[%s7772 + $0x8] sm:$0xf]
        %v7776 = vld [vmem:[%s7772 + $0xc] sm:$0xf]
        %v7777 = vld [vmem:[%s7772 + $0x10] sm:$0xf]
        %v7778 = vld [vmem:[%s7772 + $0x14] sm:$0xf]
        %v7779 = vld [vmem:[%s7772 + $0x18] sm:$0xf]
        %v7787 = vunpack.c.l.b16 %v7773
        %v7788 = vunpack.c.l.b16 %v7774
        %v7789 = vunpack.c.l.b16 %v7775
        %v7790 = vunpack.c.l.b16 %v7776
        %v7791 = vunpack.c.l.b16 %v7777
        %v7792 = vunpack.c.l.b16 %v7778
        %v7793 = vunpack.c.l.b16 %v7779
        %v7794 = vpack.c.b16 %v7788, %v7787
        %v7795 = vpack.c.b16 %v7790, %v7789
        %v7796 = vpack.c.b16 %v7792, %v7791
        %v7797 = vpack.c.b16 %v7793, %v7793
        %v7802 = vsel %vm7374, %v7771, 0
        %v7805 = vsel %vm7425, %v7797, 0
        %7807 = vmatprep.subr.bf16.mxu0 0
        %7808 = vmatpush1.bf16.msra.mxu0 %v7794
        %7809 = vmatprep.subr.bf16.mxu0 0
        %7810 = vmatpush1.bf16.msra.mxu0 %v7795
        %7811 = vmatprep.subr.bf16.mxu0 0
        %7812 = vmatpush1.bf16.msra.mxu0 %v7796
        %7813 = vmatprep.subr.bf16.mxu0 0
        %7814 = vmatpush1.bf16.msra.mxu0 %v7805
        %7815 = vmatprep.subr.bf16.mxu0 0
        %7816 = vmatpush1.bf16.msra.mxu0 0
        %7817 = vmatprep.subr.bf16.mxu0 0
        %7818 = vmatpush1.bf16.msra.mxu0 0
        %7819 = vmatprep.subr.bf16.mxu0 0
        %7820 = vmatpush1.bf16.msra.mxu0 0
        %7821 = vmatprep.subr.bf16.mxu0 0
        %7822 = vmatpush1.bf16.msra.mxu0 0
        %7823 = vmatprep.subr.bf16.mxu0 0
        %7824 = vmatpush1.bf16.msra.mxu0 0
        %7825 = vmatprep.subr.bf16.mxu0 0
        %7826 = vmatpush1.bf16.msra.mxu0 0
        %7827 = vmatprep.subr.bf16.mxu0 0
        %7828 = vmatpush1.bf16.msra.mxu0 0
        %7829 = vmatprep.subr.bf16.mxu0 0
        %7830 = vmatpush1.bf16.msra.mxu0 0
        %7831 = vmatprep.subr.bf16.mxu0 0
        %7832 = vmatpush1.bf16.msra.mxu0 0
        %7833 = vmatprep.subr.bf16.mxu0 0
        %7834 = vmatpush1.bf16.msra.mxu0 0
        %7835 = vmatprep.subr.bf16.mxu0 0
        %7836 = vmatpush1.bf16.msra.mxu0 0
        %7837 = vmatprep.subr.bf16.mxu0 0
        %7838 = vmatpush1.bf16.msra.mxu0 0
        %7839 = vmatprep.mubr.bf16.mxu0 0
        %7840 = vmatmul.mubr.bf16.gmra.mrb[0].mxu0 %v7802
        %v7841 = vpop.f32.mrb[0].mxu0
        %v7842 = vadd.f32 0.0, %v7841
        %v7843 = vpop.f32.mrb[0].mxu0
        %v7844 = vpop.f32.mrb[0].mxu0
        %v7845 = vpop.f32.mrb[0].mxu0
        %7846 = vdwg.mxu0
        %v7847 = vadd.f32 %v7769, %v7842
        %v7848 = vld [vmem:[#allocation7 + $0x30] sm:$0xff]
        %v7849 = vpack.c.bf16 %v7848, %v7848
        %s7850 = scalar_lea.vmem %s9, 168
        %v7851 = vld [vmem:[%s7850] sm:$0xf]
        %v7852 = vld [vmem:[%s7850 + $0x4] sm:$0xf]
        %v7853 = vld [vmem:[%s7850 + $0x8] sm:$0xf]
        %v7854 = vld [vmem:[%s7850 + $0xc] sm:$0xf]
        %v7855 = vld [vmem:[%s7850 + $0x10] sm:$0xf]
        %v7856 = vld [vmem:[%s7850 + $0x14] sm:$0xf]
        %v7857 = vld [vmem:[%s7850 + $0x18] sm:$0xf]
        %v7865 = vunpack.c.l.b16 %v7851
        %v7866 = vunpack.c.l.b16 %v7852
        %v7867 = vunpack.c.l.b16 %v7853
        %v7868 = vunpack.c.l.b16 %v7854
        %v7869 = vunpack.c.l.b16 %v7855
        %v7870 = vunpack.c.l.b16 %v7856
        %v7871 = vunpack.c.l.b16 %v7857
        %v7872 = vpack.c.b16 %v7866, %v7865
        %v7873 = vpack.c.b16 %v7868, %v7867
        %v7874 = vpack.c.b16 %v7870, %v7869
        %v7875 = vpack.c.b16 %v7871, %v7871
        %v7880 = vsel %vm7374, %v7849, 0
        %v7883 = vsel %vm7425, %v7875, 0
        %7885 = vmatprep.subr.bf16.mxu0 0
        %7886 = vmatpush1.bf16.msra.mxu0 %v7872
        %7887 = vmatprep.subr.bf16.mxu0 0
        %7888 = vmatpush1.bf16.msra.mxu0 %v7873
        %7889 = vmatprep.subr.bf16.mxu0 0
        %7890 = vmatpush1.bf16.msra.mxu0 %v7874
        %7891 = vmatprep.subr.bf16.mxu0 0
        %7892 = vmatpush1.bf16.msra.mxu0 %v7883
        %7893 = vmatprep.subr.bf16.mxu0 0
        %7894 = vmatpush1.bf16.msra.mxu0 0
        %7895 = vmatprep.subr.bf16.mxu0 0
        %7896 = vmatpush1.bf16.msra.mxu0 0
        %7897 = vmatprep.subr.bf16.mxu0 0
        %7898 = vmatpush1.bf16.msra.mxu0 0
        %7899 = vmatprep.subr.bf16.mxu0 0
        %7900 = vmatpush1.bf16.msra.mxu0 0
        %7901 = vmatprep.subr.bf16.mxu0 0
        %7902 = vmatpush1.bf16.msra.mxu0 0
        %7903 = vmatprep.subr.bf16.mxu0 0
        %7904 = vmatpush1.bf16.msra.mxu0 0
        %7905 = vmatprep.subr.bf16.mxu0 0
        %7906 = vmatpush1.bf16.msra.mxu0 0
        %7907 = vmatprep.subr.bf16.mxu0 0
        %7908 = vmatpush1.bf16.msra.mxu0 0
        %7909 = vmatprep.subr.bf16.mxu0 0
        %7910 = vmatpush1.bf16.msra.mxu0 0
        %7911 = vmatprep.subr.bf16.mxu0 0
        %7912 = vmatpush1.bf16.msra.mxu0 0
        %7913 = vmatprep.subr.bf16.mxu0 0
        %7914 = vmatpush1.bf16.msra.mxu0 0
        %7915 = vmatprep.subr.bf16.mxu0 0
        %7916 = vmatpush1.bf16.msra.mxu0 0
        %7917 = vmatprep.mubr.bf16.mxu0 0
        %7918 = vmatmul.mubr.bf16.gmra.mrb[0].mxu0 %v7880
        %v7919 = vpop.f32.mrb[0].mxu0
        %v7920 = vadd.f32 0.0, %v7919
        %v7921 = vpop.f32.mrb[0].mxu0
        %v7922 = vpop.f32.mrb[0].mxu0
        %v7923 = vpop.f32.mrb[0].mxu0
        %7924 = vdwg.mxu0
        %v7925 = vadd.f32 %v7847, %v7920
        %v7926 = vld [vmem:[%s10] sm:$0x1]
        %v7928 = vlaneseq
        %v7929 = vshrl.u32 %v7928, 7
        %v7930 = vsub.s32 0, %v7929
        %v7931 = vrot.slane %v7926, %v7930
        %v7933 = vadd.f32 %v7925, %v7931
        %7934 = vst [vmem:[%s595] sm:$0xff] %v7933
        %s7935 = sand.u32 %s445, 1
        %s7936 = scalar_lea.sflag [#allocation9], %s7935
        %s7937 = sand.u32 %s445, 1
        %s7938 = smul.addr %s7937, 8
        %s7939 = scalar_lea.vmem [#allocation8], %s7938
        // Predicated region
        $region97: #{tinyvgg_forward.1} parent=95 // pred_check
          %p7940 = pneg %p455
        $region98: #{tinyvgg_forward.1} parent=95 // pred_check_branch
          %7942 = sbr.rel (%p7940) target = $region100
        $region99: #{tinyvgg_forward.1} parent=95 // pred_region
          %s7944 = ssub.s32 128, 128
          %7945 = vsyncadd %s7936, %s7944
          %s7946 = smul.addr %s33, 128
          %s7947 = scalar_lea.hbm %s19, %s7946
          %s7949 = sshll.u32 %s7939, 4
          %s7950 = int_to_ptr.vmem [resolvable:$true] %s7949
          %7952 = dma.vmem_to_hbm [thread:$0]  %s7950, 128, %s7947, %s7936
        $region100: #{tinyvgg_forward.1} parent=95 // pred_fallthru
          _
      $region96: #{tinyvgg_forward.1} parent=5 // pred_fallthru
        _
      %p7953 = scmp.le.s32.totalorder 2, %s28
      // Predicated region
      $region101: #{tinyvgg_forward.1} parent=5 // pred_check
        %p7954 = pneg %p7953
      $region102: #{tinyvgg_forward.1} parent=5 // pred_check_branch
        %7956 = sbr.rel (%p7954) target = $region104
      $region103: #{tinyvgg_forward.1} parent=5 // pred_region
        %s7957 = ssub.s32 %s28, 2
        // Predicated region
        $region105: #{tinyvgg_forward.1} parent=103 // pred_check
          %p7958 = pneg %p461
        $region106: #{tinyvgg_forward.1} parent=103 // pred_check_branch
          %7960 = sbr.rel (%p7958) target = $region108
        $region107: #{tinyvgg_forward.1} parent=103 // pred_region
          %s7961 = sand.u32 %s446, 1
          %s7962 = scalar_lea.sflag [#allocation9], %s7961
          %s7963 = sand.u32 %s446, 1
          %s7964 = smul.addr %s7963, 8
          %s7965 = scalar_lea.vmem [#allocation8], %s7964
          %7966 = dma.done %s7962, 128
        $region108: #{tinyvgg_forward.1} parent=103 // pred_fallthru
          _
      $region104: #{tinyvgg_forward.1} parent=5 // pred_fallthru
        _
    $region6: #{tinyvgg_forward.1} parent=1 // loop_footer
      %s32 = sadd.s32 1, %s28
    $region7: #{tinyvgg_forward.1} parent=1 // loop_footer_branch
      %27 = sbr.rel target = $region3
    $region8: #{tinyvgg_forward.1} parent=1 // loop_exit
      _
    %7967 = vsyncpa [#allocation9], 1
    %s7968 = scalar_lea.sflag [#allocation9], 1
    %7969 = vsyncpa %s7968, 1

</llo_original>
